<compile_context>
chip_gen: v7x
topology: tpu7x:2x2x1
jax: 0.10.0
libtpu: 0.0.40
codegen_flags: <defaults>
</compile_context>

<pallas_src>
import numpy as np

import jax
import jax.numpy as jnp
from jax.experimental import pallas as pl
from jax.experimental.pallas import tpu as pltpu


# --------------------------------------------------------------------------
# Constant "im2col" selection matrices (built once, at trace time, in numpy)
# --------------------------------------------------------------------------
def _make_selectors(h, w):
    """S[t, p, q] = 1 iff output pixel p reads input pixel q for tap t of a
    3x3 / stride-2 / pad-1 conv (out-of-bounds taps -> all-zero row == zero pad)."""
    oh = (h + 2 - 3) // 2 + 1
    ow = (w + 2 - 3) // 2 + 1
    s = np.zeros((9, oh * ow, h * w), np.float32)
    for kh in range(3):
        for kw in range(3):
            t = kh * 3 + kw
            for i in range(oh):
                for j in range(ow):
                    hi = 2 * i + kh - 1
                    wj = 2 * j + kw - 1
                    if 0 <= hi < h and 0 <= wj < w:
                        s[t, i * ow + j, hi * w + wj] = 1.0
    return s, oh, ow


# --------------------------------------------------------------------------
# Fused Pallas kernel: one grid step == one batch element
# --------------------------------------------------------------------------
def _fused_forward_kernel(x_ref,
                          s0_ref, s1_ref, s2_ref, s3_ref,
                          w0_ref, w1_ref, w2_ref, w3_ref,
                          b0_ref, b1_ref, b2_ref, b3_ref,
                          wh_ref, bh_ref,
                          o_ref):
    a = x_ref[0]                                           # (H*W, Cin) bf16
    layers = ((s0_ref, w0_ref, b0_ref),
              (s1_ref, w1_ref, b1_ref),
              (s2_ref, w2_ref, b2_ref),
              (s3_ref, w3_ref, b3_ref))
    for s_ref, w_ref, b_ref in layers:
        p = s_ref.shape[1]                                 # output pixels
        cout = w_ref.shape[2]
        acc = jnp.broadcast_to(b_ref[...], (p, cout)).astype(jnp.float32)
        for t in range(9):                                 # 3x3 taps, unrolled
            # MXU gather of the strided / zero-padded patch rows for this tap.
            g = jnp.dot(s_ref[t], a, preferred_element_type=jnp.float32)
            # Tap contribution: bf16 MXU inputs, f32 accumulate.
            acc = acc + jnp.dot(g.astype(jnp.bfloat16), w_ref[t],
                                preferred_element_type=jnp.float32)
        a = jnp.maximum(acc, 0.0).astype(jnp.bfloat16)     # ReLU -> next layer

    # AdaptiveAvgPool2d(1): mean over remaining spatial rows (cheap XLU reduce).
    pooled = jnp.mean(a.astype(jnp.float32), axis=0, keepdims=True)     # (1, 512)

    # Fused classifier + feature_proj head (zero-padded to a 128-lane multiple).
    head = jnp.dot(pooled.astype(jnp.bfloat16), wh_ref[...],
                   preferred_element_type=jnp.float32) + bh_ref[...]    # (1, Hpad)
    o_ref[0] = jnp.broadcast_to(head, (o_ref.shape[1], o_ref.shape[2]))


# --------------------------------------------------------------------------
# Parameter init (deterministic, synthetic — PyTorch-shaped tensors)
# --------------------------------------------------------------------------
def init_params(key, feature_dim=128, num_classes=2):
    conv_io = [(3, 64), (64, 128), (128, 256), (256, 512)]
    params = {}
    keys = jax.random.split(key, 2 * len(conv_io) + 4)
    ki = 0
    for i, (cin, cout) in enumerate(conv_io):
        fan_in = cin * 3 * 3
        bound = 1.0 / jnp.sqrt(fan_in)
        params[f"conv{i}_w"] = jax.random.uniform(
            keys[ki], (cout, cin, 3, 3), jnp.float32, -bound, bound); ki += 1
        params[f"conv{i}_b"] = jax.random.uniform(
            keys[ki], (cout,), jnp.float32, -bound, bound); ki += 1
    bound = 1.0 / jnp.sqrt(512.0)
    params["cls_w"] = jax.random.uniform(
        keys[ki], (num_classes, 512), jnp.float32, -bound, bound); ki += 1
    params["cls_b"] = jax.random.uniform(
        keys[ki], (num_classes,), jnp.float32, -bound, bound); ki += 1
    params["proj_w"] = jax.random.uniform(
        keys[ki], (feature_dim, 512), jnp.float32, -bound, bound); ki += 1
    params["proj_b"] = jax.random.uniform(
        keys[ki], (feature_dim,), jnp.float32, -bound, bound); ki += 1
    return params


# --------------------------------------------------------------------------
# Forward pass (matches PyTorch module semantics)
# --------------------------------------------------------------------------
def forward(params, x_nchw):
    n, c, h, w = x_nchw.shape
    assert c == 3, "FedAvgClassifier_with_custom_dataset expects 3 input channels"

    # Constant selection matrices per layer (trace-time numpy -> folded constants).
    s_arrs = []
    hh, ww = h, w
    for _ in range(4):
        s_np, oh, ow = _make_selectors(hh, ww)
        s_arrs.append(jnp.asarray(s_np, jnp.bfloat16))
        hh, ww = oh, ow

    # Conv weights in tap-major (9, Cin, Cout) bf16 form; biases as (1, Cout) f32.
    w_taps, b_rows = [], []
    for i in range(4):
        wt = params[f"conv{i}_w"]                               # (Cout, Cin, 3, 3)
        cout, cin = wt.shape[0], wt.shape[1]
        w_taps.append(jnp.transpose(wt, (2, 3, 1, 0)).reshape(9, cin, cout)
                      .astype(jnp.bfloat16))
        b_rows.append(params[f"conv{i}_b"].reshape(1, cout).astype(jnp.float32))

    # Fused (classifier | feature_proj) head, zero-padded to a lane multiple.
    num_classes = params["cls_w"].shape[0]
    feature_dim = params["proj_w"].shape[0]
    hout = num_classes + feature_dim                            # 130
    hpad = max(128, ((hout + 127) // 128) * 128)                # 256
    w_head = jnp.concatenate([params["cls_w"].T, params["proj_w"].T], axis=1)
    w_head = jnp.pad(w_head, ((0, 0), (0, hpad - hout))).astype(jnp.bfloat16)
    b_head = jnp.pad(jnp.concatenate([params["cls_b"], params["proj_b"]]),
                     (0, hpad - hout)).reshape(1, hpad).astype(jnp.float32)

    # Input: NCHW -> per-batch (H*W, C) rows, bf16 for the MXU.
    x_rows = jnp.transpose(x_nchw, (0, 2, 3, 1)).reshape(n, h * w, c) \
                .astype(jnp.bfloat16)

    # Advisory cost estimate so XLA can overlap the custom call.
    flops = 0
    bytes_accessed = x_rows.size * 2 + n * 8 * hpad * 4
    for s_a, w_t in zip(s_arrs, w_taps):
        _, p_l, q_l = s_a.shape
        _, cin_l, cout_l = w_t.shape
        flops += n * 9 * 2 * (p_l * q_l * cin_l + p_l * cin_l * cout_l)
        bytes_accessed += s_a.size * 2 + w_t.size * 2 + cout_l * 4
    flops += n * 2 * w_head.shape[0] * hpad
    bytes_accessed += w_head.size * 2 + b_head.size * 4

    out = pl.pallas_call(
        _fused_forward_kernel,
        out_shape=jax.ShapeDtypeStruct((n, 8, hpad), jnp.float32),
        grid=(n,),
        in_specs=[
            pl.BlockSpec((1, h * w, c), lambda b: (b, 0, 0)),
            *[pl.BlockSpec(s.shape, lambda b: (0, 0, 0)) for s in s_arrs],
            *[pl.BlockSpec(wt.shape, lambda b: (0, 0, 0)) for wt in w_taps],
            *[pl.BlockSpec(bb.shape, lambda b: (0, 0)) for bb in b_rows],
            pl.BlockSpec(w_head.shape, lambda b: (0, 0)),
            pl.BlockSpec(b_head.shape, lambda b: (0, 0)),
        ],
        out_specs=pl.BlockSpec((1, 8, hpad), lambda b: (b, 0, 0)),
        compiler_params=pltpu.CompilerParams(
            dimension_semantics=("parallel",)),
        cost_estimate=pl.CostEstimate(flops=int(flops), transcendentals=0,
                                      bytes_accessed=int(bytes_accessed)),
    )(x_rows, *s_arrs, *w_taps, *b_rows, w_head, b_head)

    logits = out[:, 0, :num_classes]
    features = out[:, 0, num_classes:hout]
    return logits, features


if __name__ == "__main__":
    key = jax.random.PRNGKey(0)
    pkey, xkey = jax.random.split(key)
    params = init_params(pkey, feature_dim=128, num_classes=2)

    # Small NCHW input consistent with the module: 3 channels, 16x16 spatial
    # (16 -> 8 -> 4 -> 2 -> 1 through the four stride-2 convs).
    x = jax.random.normal(xkey, (2, 3, 16, 16), jnp.float32)

    logits, features = jax.jit(forward)(params, x)
    jax.block_until_ready((logits, features))
    assert logits.shape == (2, 2) and features.shape == (2, 128)
    print("KERNEL_OK")
</pallas_src>

<mosaic_0001>
module attributes {stable_mosaic.version = 11 : i64} {
  func.func @_fused_forward_kernel(%arg0: i32, %arg1: memref<1x256x3xbf16, #tpu.memory_space<vmem>>, %arg2: memref<9x64x256xbf16, #tpu.memory_space<vmem>>, %arg3: memref<9x16x64xbf16, #tpu.memory_space<vmem>>, %arg4: memref<9x4x16xbf16, #tpu.memory_space<vmem>>, %arg5: memref<9x1x4xbf16, #tpu.memory_space<vmem>>, %arg6: memref<9x3x64xbf16, #tpu.memory_space<vmem>>, %arg7: memref<9x64x128xbf16, #tpu.memory_space<vmem>>, %arg8: memref<9x128x256xbf16, #tpu.memory_space<vmem>>, %arg9: memref<9x256x512xbf16, #tpu.memory_space<vmem>>, %arg10: memref<1x64xf32, #tpu.memory_space<vmem>>, %arg11: memref<1x128xf32, #tpu.memory_space<vmem>>, %arg12: memref<1x256xf32, #tpu.memory_space<vmem>>, %arg13: memref<1x512xf32, #tpu.memory_space<vmem>>, %arg14: memref<512x256xbf16, #tpu.memory_space<vmem>>, %arg15: memref<1x256xf32, #tpu.memory_space<vmem>>, %arg16: memref<1x8x256xf32, #tpu.memory_space<vmem>>) attributes {dimension_semantics = [#tpu.dimension_semantics<parallel>], iteration_bounds = array<i64: 2>, scalar_prefetch = 0 : i64, scratch_operands = 0 : i64, tpu.core_type = #tpu.core_type<tc>, window_params = [{transform_indices = @transform_0, window_bounds = array<i64: 1, 256, 3>}, {pipeline_mode = #tpu.pipeline_mode<synchronous>, transform_indices = @transform_1, window_bounds = array<i64: 9, 64, 256>}, {pipeline_mode = #tpu.pipeline_mode<synchronous>, transform_indices = @transform_2, window_bounds = array<i64: 9, 16, 64>}, {pipeline_mode = #tpu.pipeline_mode<synchronous>, transform_indices = @transform_3, window_bounds = array<i64: 9, 4, 16>}, {pipeline_mode = #tpu.pipeline_mode<synchronous>, transform_indices = @transform_4, window_bounds = array<i64: 9, 1, 4>}, {pipeline_mode = #tpu.pipeline_mode<synchronous>, transform_indices = @transform_5, window_bounds = array<i64: 9, 3, 64>}, {pipeline_mode = #tpu.pipeline_mode<synchronous>, transform_indices = @transform_6, window_bounds = array<i64: 9, 64, 128>}, {pipeline_mode = #tpu.pipeline_mode<synchronous>, transform_indices = @transform_7, window_bounds = array<i64: 9, 128, 256>}, {pipeline_mode = #tpu.pipeline_mode<synchronous>, transform_indices = @transform_8, window_bounds = array<i64: 9, 256, 512>}, {pipeline_mode = #tpu.pipeline_mode<synchronous>, transform_indices = @transform_9, window_bounds = array<i64: 1, 64>}, {pipeline_mode = #tpu.pipeline_mode<synchronous>, transform_indices = @transform_10, window_bounds = array<i64: 1, 128>}, {pipeline_mode = #tpu.pipeline_mode<synchronous>, transform_indices = @transform_11, window_bounds = array<i64: 1, 256>}, {pipeline_mode = #tpu.pipeline_mode<synchronous>, transform_indices = @transform_12, window_bounds = array<i64: 1, 512>}, {pipeline_mode = #tpu.pipeline_mode<synchronous>, transform_indices = @transform_13, window_bounds = array<i64: 512, 256>}, {pipeline_mode = #tpu.pipeline_mode<synchronous>, transform_indices = @transform_14, window_bounds = array<i64: 1, 256>}, {transform_indices = @transform_15, window_bounds = array<i64: 1, 8, 256>}]} {
    %c0 = arith.constant 0 : index
    %c0_0 = arith.constant 0 : index
    %c0_1 = arith.constant 0 : index
    %0 = vector.load %arg1[%c0, %c0_0, %c0_1] : memref<1x256x3xbf16, #tpu.memory_space<vmem>>, vector<1x256x3xbf16>
    %1 = vector.shape_cast %0 : vector<1x256x3xbf16> to vector<256x3xbf16>
    %c0_2 = arith.constant 0 : index
    %c0_3 = arith.constant 0 : index
    %2 = vector.load %arg10[%c0_2, %c0_3] : memref<1x64xf32, #tpu.memory_space<vmem>>, vector<1x64xf32>
    %3 = vector.shape_cast %2 : vector<1x64xf32> to vector<1x64xf32>
    %4 = vector.broadcast %3 : vector<1x64xf32> to vector<64x64xf32>
    %c0_4 = arith.constant 0 : index
    %c0_5 = arith.constant 0 : index
    %c0_6 = arith.constant 0 : index
    %5 = vector.load %arg2[%c0_4, %c0_5, %c0_6] : memref<9x64x256xbf16, #tpu.memory_space<vmem>>, vector<1x64x256xbf16>
    %6 = vector.shape_cast %5 : vector<1x64x256xbf16> to vector<64x256xbf16>
    %cst = arith.constant dense<0.000000e+00> : vector<64x3xf32>
    %7 = tpu.matmul %6, %1, %cst {dimension_numbers = #tpu.dot_dimension_numbers<[1], [0], [0], [1], [0, 0, 1, 1], [], []>} : vector<64x256xbf16>, vector<256x3xbf16>, vector<64x3xf32> -> vector<64x3xf32>
    %8 = arith.truncf %7 : vector<64x3xf32> to vector<64x3xbf16>
    %c0_7 = arith.constant 0 : index
    %c0_8 = arith.constant 0 : index
    %c0_9 = arith.constant 0 : index
    %9 = vector.load %arg6[%c0_7, %c0_8, %c0_9] : memref<9x3x64xbf16, #tpu.memory_space<vmem>>, vector<1x3x64xbf16>
    %10 = vector.shape_cast %9 : vector<1x3x64xbf16> to vector<3x64xbf16>
    %cst_10 = arith.constant dense<0.000000e+00> : vector<64x64xf32>
    %11 = tpu.matmul %8, %10, %cst_10 {dimension_numbers = #tpu.dot_dimension_numbers<[1], [0], [0], [1], [0, 0, 1, 1], [], []>} : vector<64x3xbf16>, vector<3x64xbf16>, vector<64x64xf32> -> vector<64x64xf32>
    %12 = arith.addf %4, %11 : vector<64x64xf32>
    %c1 = arith.constant 1 : index
    %c0_11 = arith.constant 0 : index
    %c0_12 = arith.constant 0 : index
    %13 = vector.load %arg2[%c1, %c0_11, %c0_12] : memref<9x64x256xbf16, #tpu.memory_space<vmem>>, vector<1x64x256xbf16>
    %14 = vector.shape_cast %13 : vector<1x64x256xbf16> to vector<64x256xbf16>
    %cst_13 = arith.constant dense<0.000000e+00> : vector<64x3xf32>
    %15 = tpu.matmul %14, %1, %cst_13 {dimension_numbers = #tpu.dot_dimension_numbers<[1], [0], [0], [1], [0, 0, 1, 1], [], []>} : vector<64x256xbf16>, vector<256x3xbf16>, vector<64x3xf32> -> vector<64x3xf32>
    %16 = arith.truncf %15 : vector<64x3xf32> to vector<64x3xbf16>
    %c1_14 = arith.constant 1 : index
    %c0_15 = arith.constant 0 : index
    %c0_16 = arith.constant 0 : index
    %17 = vector.load %arg6[%c1_14, %c0_15, %c0_16] : memref<9x3x64xbf16, #tpu.memory_space<vmem>>, vector<1x3x64xbf16>
    %18 = vector.shape_cast %17 : vector<1x3x64xbf16> to vector<3x64xbf16>
    %cst_17 = arith.constant dense<0.000000e+00> : vector<64x64xf32>
    %19 = tpu.matmul %16, %18, %cst_17 {dimension_numbers = #tpu.dot_dimension_numbers<[1], [0], [0], [1], [0, 0, 1, 1], [], []>} : vector<64x3xbf16>, vector<3x64xbf16>, vector<64x64xf32> -> vector<64x64xf32>
    %20 = arith.addf %12, %19 : vector<64x64xf32>
    %c2 = arith.constant 2 : index
    %c0_18 = arith.constant 0 : index
    %c0_19 = arith.constant 0 : index
    %21 = vector.load %arg2[%c2, %c0_18, %c0_19] : memref<9x64x256xbf16, #tpu.memory_space<vmem>>, vector<1x64x256xbf16>
    %22 = vector.shape_cast %21 : vector<1x64x256xbf16> to vector<64x256xbf16>
    %cst_20 = arith.constant dense<0.000000e+00> : vector<64x3xf32>
    %23 = tpu.matmul %22, %1, %cst_20 {dimension_numbers = #tpu.dot_dimension_numbers<[1], [0], [0], [1], [0, 0, 1, 1], [], []>} : vector<64x256xbf16>, vector<256x3xbf16>, vector<64x3xf32> -> vector<64x3xf32>
    %24 = arith.truncf %23 : vector<64x3xf32> to vector<64x3xbf16>
    %c2_21 = arith.constant 2 : index
    %c0_22 = arith.constant 0 : index
    %c0_23 = arith.constant 0 : index
    %25 = vector.load %arg6[%c2_21, %c0_22, %c0_23] : memref<9x3x64xbf16, #tpu.memory_space<vmem>>, vector<1x3x64xbf16>
    %26 = vector.shape_cast %25 : vector<1x3x64xbf16> to vector<3x64xbf16>
    %cst_24 = arith.constant dense<0.000000e+00> : vector<64x64xf32>
    %27 = tpu.matmul %24, %26, %cst_24 {dimension_numbers = #tpu.dot_dimension_numbers<[1], [0], [0], [1], [0, 0, 1, 1], [], []>} : vector<64x3xbf16>, vector<3x64xbf16>, vector<64x64xf32> -> vector<64x64xf32>
    %28 = arith.addf %20, %27 : vector<64x64xf32>
    %c3 = arith.constant 3 : index
    %c0_25 = arith.constant 0 : index
    %c0_26 = arith.constant 0 : index
    %29 = vector.load %arg2[%c3, %c0_25, %c0_26] : memref<9x64x256xbf16, #tpu.memory_space<vmem>>, vector<1x64x256xbf16>
    %30 = vector.shape_cast %29 : vector<1x64x256xbf16> to vector<64x256xbf16>
    %cst_27 = arith.constant dense<0.000000e+00> : vector<64x3xf32>
    %31 = tpu.matmul %30, %1, %cst_27 {dimension_numbers = #tpu.dot_dimension_numbers<[1], [0], [0], [1], [0, 0, 1, 1], [], []>} : vector<64x256xbf16>, vector<256x3xbf16>, vector<64x3xf32> -> vector<64x3xf32>
    %32 = arith.truncf %31 : vector<64x3xf32> to vector<64x3xbf16>
    %c3_28 = arith.constant 3 : index
    %c0_29 = arith.constant 0 : index
    %c0_30 = arith.constant 0 : index
    %33 = vector.load %arg6[%c3_28, %c0_29, %c0_30] : memref<9x3x64xbf16, #tpu.memory_space<vmem>>, vector<1x3x64xbf16>
    %34 = vector.shape_cast %33 : vector<1x3x64xbf16> to vector<3x64xbf16>
    %cst_31 = arith.constant dense<0.000000e+00> : vector<64x64xf32>
    %35 = tpu.matmul %32, %34, %cst_31 {dimension_numbers = #tpu.dot_dimension_numbers<[1], [0], [0], [1], [0, 0, 1, 1], [], []>} : vector<64x3xbf16>, vector<3x64xbf16>, vector<64x64xf32> -> vector<64x64xf32>
    %36 = arith.addf %28, %35 : vector<64x64xf32>
    %c4 = arith.constant 4 : index
    %c0_32 = arith.constant 0 : index
    %c0_33 = arith.constant 0 : index
    %37 = vector.load %arg2[%c4, %c0_32, %c0_33] : memref<9x64x256xbf16, #tpu.memory_space<vmem>>, vector<1x64x256xbf16>
    %38 = vector.shape_cast %37 : vector<1x64x256xbf16> to vector<64x256xbf16>
    %cst_34 = arith.constant dense<0.000000e+00> : vector<64x3xf32>
    %39 = tpu.matmul %38, %1, %cst_34 {dimension_numbers = #tpu.dot_dimension_numbers<[1], [0], [0], [1], [0, 0, 1, 1], [], []>} : vector<64x256xbf16>, vector<256x3xbf16>, vector<64x3xf32> -> vector<64x3xf32>
    %40 = arith.truncf %39 : vector<64x3xf32> to vector<64x3xbf16>
    %c4_35 = arith.constant 4 : index
    %c0_36 = arith.constant 0 : index
    %c0_37 = arith.constant 0 : index
    %41 = vector.load %arg6[%c4_35, %c0_36, %c0_37] : memref<9x3x64xbf16, #tpu.memory_space<vmem>>, vector<1x3x64xbf16>
    %42 = vector.shape_cast %41 : vector<1x3x64xbf16> to vector<3x64xbf16>
    %cst_38 = arith.constant dense<0.000000e+00> : vector<64x64xf32>
    %43 = tpu.matmul %40, %42, %cst_38 {dimension_numbers = #tpu.dot_dimension_numbers<[1], [0], [0], [1], [0, 0, 1, 1], [], []>} : vector<64x3xbf16>, vector<3x64xbf16>, vector<64x64xf32> -> vector<64x64xf32>
    %44 = arith.addf %36, %43 : vector<64x64xf32>
    %c5 = arith.constant 5 : index
    %c0_39 = arith.constant 0 : index
    %c0_40 = arith.constant 0 : index
    %45 = vector.load %arg2[%c5, %c0_39, %c0_40] : memref<9x64x256xbf16, #tpu.memory_space<vmem>>, vector<1x64x256xbf16>
    %46 = vector.shape_cast %45 : vector<1x64x256xbf16> to vector<64x256xbf16>
    %cst_41 = arith.constant dense<0.000000e+00> : vector<64x3xf32>
    %47 = tpu.matmul %46, %1, %cst_41 {dimension_numbers = #tpu.dot_dimension_numbers<[1], [0], [0], [1], [0, 0, 1, 1], [], []>} : vector<64x256xbf16>, vector<256x3xbf16>, vector<64x3xf32> -> vector<64x3xf32>
    %48 = arith.truncf %47 : vector<64x3xf32> to vector<64x3xbf16>
    %c5_42 = arith.constant 5 : index
    %c0_43 = arith.constant 0 : index
    %c0_44 = arith.constant 0 : index
    %49 = vector.load %arg6[%c5_42, %c0_43, %c0_44] : memref<9x3x64xbf16, #tpu.memory_space<vmem>>, vector<1x3x64xbf16>
    %50 = vector.shape_cast %49 : vector<1x3x64xbf16> to vector<3x64xbf16>
    %cst_45 = arith.constant dense<0.000000e+00> : vector<64x64xf32>
    %51 = tpu.matmul %48, %50, %cst_45 {dimension_numbers = #tpu.dot_dimension_numbers<[1], [0], [0], [1], [0, 0, 1, 1], [], []>} : vector<64x3xbf16>, vector<3x64xbf16>, vector<64x64xf32> -> vector<64x64xf32>
    %52 = arith.addf %44, %51 : vector<64x64xf32>
    %c6 = arith.constant 6 : index
    %c0_46 = arith.constant 0 : index
    %c0_47 = arith.constant 0 : index
    %53 = vector.load %arg2[%c6, %c0_46, %c0_47] : memref<9x64x256xbf16, #tpu.memory_space<vmem>>, vector<1x64x256xbf16>
    %54 = vector.shape_cast %53 : vector<1x64x256xbf16> to vector<64x256xbf16>
    %cst_48 = arith.constant dense<0.000000e+00> : vector<64x3xf32>
    %55 = tpu.matmul %54, %1, %cst_48 {dimension_numbers = #tpu.dot_dimension_numbers<[1], [0], [0], [1], [0, 0, 1, 1], [], []>} : vector<64x256xbf16>, vector<256x3xbf16>, vector<64x3xf32> -> vector<64x3xf32>
    %56 = arith.truncf %55 : vector<64x3xf32> to vector<64x3xbf16>
    %c6_49 = arith.constant 6 : index
    %c0_50 = arith.constant 0 : index
    %c0_51 = arith.constant 0 : index
    %57 = vector.load %arg6[%c6_49, %c0_50, %c0_51] : memref<9x3x64xbf16, #tpu.memory_space<vmem>>, vector<1x3x64xbf16>
    %58 = vector.shape_cast %57 : vector<1x3x64xbf16> to vector<3x64xbf16>
    %cst_52 = arith.constant dense<0.000000e+00> : vector<64x64xf32>
    %59 = tpu.matmul %56, %58, %cst_52 {dimension_numbers = #tpu.dot_dimension_numbers<[1], [0], [0], [1], [0, 0, 1, 1], [], []>} : vector<64x3xbf16>, vector<3x64xbf16>, vector<64x64xf32> -> vector<64x64xf32>
    %60 = arith.addf %52, %59 : vector<64x64xf32>
    %c7 = arith.constant 7 : index
    %c0_53 = arith.constant 0 : index
    %c0_54 = arith.constant 0 : index
    %61 = vector.load %arg2[%c7, %c0_53, %c0_54] : memref<9x64x256xbf16, #tpu.memory_space<vmem>>, vector<1x64x256xbf16>
    %62 = vector.shape_cast %61 : vector<1x64x256xbf16> to vector<64x256xbf16>
    %cst_55 = arith.constant dense<0.000000e+00> : vector<64x3xf32>
    %63 = tpu.matmul %62, %1, %cst_55 {dimension_numbers = #tpu.dot_dimension_numbers<[1], [0], [0], [1], [0, 0, 1, 1], [], []>} : vector<64x256xbf16>, vector<256x3xbf16>, vector<64x3xf32> -> vector<64x3xf32>
    %64 = arith.truncf %63 : vector<64x3xf32> to vector<64x3xbf16>
    %c7_56 = arith.constant 7 : index
    %c0_57 = arith.constant 0 : index
    %c0_58 = arith.constant 0 : index
    %65 = vector.load %arg6[%c7_56, %c0_57, %c0_58] : memref<9x3x64xbf16, #tpu.memory_space<vmem>>, vector<1x3x64xbf16>
    %66 = vector.shape_cast %65 : vector<1x3x64xbf16> to vector<3x64xbf16>
    %cst_59 = arith.constant dense<0.000000e+00> : vector<64x64xf32>
    %67 = tpu.matmul %64, %66, %cst_59 {dimension_numbers = #tpu.dot_dimension_numbers<[1], [0], [0], [1], [0, 0, 1, 1], [], []>} : vector<64x3xbf16>, vector<3x64xbf16>, vector<64x64xf32> -> vector<64x64xf32>
    %68 = arith.addf %60, %67 : vector<64x64xf32>
    %c8 = arith.constant 8 : index
    %c0_60 = arith.constant 0 : index
    %c0_61 = arith.constant 0 : index
    %69 = vector.load %arg2[%c8, %c0_60, %c0_61] : memref<9x64x256xbf16, #tpu.memory_space<vmem>>, vector<1x64x256xbf16>
    %70 = vector.shape_cast %69 : vector<1x64x256xbf16> to vector<64x256xbf16>
    %cst_62 = arith.constant dense<0.000000e+00> : vector<64x3xf32>
    %71 = tpu.matmul %70, %1, %cst_62 {dimension_numbers = #tpu.dot_dimension_numbers<[1], [0], [0], [1], [0, 0, 1, 1], [], []>} : vector<64x256xbf16>, vector<256x3xbf16>, vector<64x3xf32> -> vector<64x3xf32>
    %72 = arith.truncf %71 : vector<64x3xf32> to vector<64x3xbf16>
    %c8_63 = arith.constant 8 : index
    %c0_64 = arith.constant 0 : index
    %c0_65 = arith.constant 0 : index
    %73 = vector.load %arg6[%c8_63, %c0_64, %c0_65] : memref<9x3x64xbf16, #tpu.memory_space<vmem>>, vector<1x3x64xbf16>
    %74 = vector.shape_cast %73 : vector<1x3x64xbf16> to vector<3x64xbf16>
    %cst_66 = arith.constant dense<0.000000e+00> : vector<64x64xf32>
    %75 = tpu.matmul %72, %74, %cst_66 {dimension_numbers = #tpu.dot_dimension_numbers<[1], [0], [0], [1], [0, 0, 1, 1], [], []>} : vector<64x3xbf16>, vector<3x64xbf16>, vector<64x64xf32> -> vector<64x64xf32>
    %76 = arith.addf %68, %75 : vector<64x64xf32>
    %cst_67 = arith.constant 0.000000e+00 : f32
    %77 = vector.broadcast %cst_67 : f32 to vector<64x64xf32>
    %78 = arith.maximumf %76, %77 : vector<64x64xf32>
    %79 = arith.truncf %78 : vector<64x64xf32> to vector<64x64xbf16>
    %c0_68 = arith.constant 0 : index
    %c0_69 = arith.constant 0 : index
    %80 = vector.load %arg11[%c0_68, %c0_69] : memref<1x128xf32, #tpu.memory_space<vmem>>, vector<1x128xf32>
    %81 = vector.shape_cast %80 : vector<1x128xf32> to vector<1x128xf32>
    %82 = vector.broadcast %81 : vector<1x128xf32> to vector<16x128xf32>
    %c0_70 = arith.constant 0 : index
    %c0_71 = arith.constant 0 : index
    %c0_72 = arith.constant 0 : index
    %83 = vector.load %arg3[%c0_70, %c0_71, %c0_72] : memref<9x16x64xbf16, #tpu.memory_space<vmem>>, vector<1x16x64xbf16>
    %84 = vector.shape_cast %83 : vector<1x16x64xbf16> to vector<16x64xbf16>
    %cst_73 = arith.constant dense<0.000000e+00> : vector<16x64xf32>
    %85 = tpu.matmul %84, %79, %cst_73 {dimension_numbers = #tpu.dot_dimension_numbers<[1], [0], [0], [1], [0, 0, 1, 1], [], []>} : vector<16x64xbf16>, vector<64x64xbf16>, vector<16x64xf32> -> vector<16x64xf32>
    %86 = arith.truncf %85 : vector<16x64xf32> to vector<16x64xbf16>
    %c0_74 = arith.constant 0 : index
    %c0_75 = arith.constant 0 : index
    %c0_76 = arith.constant 0 : index
    %87 = vector.load %arg7[%c0_74, %c0_75, %c0_76] : memref<9x64x128xbf16, #tpu.memory_space<vmem>>, vector<1x64x128xbf16>
    %88 = vector.shape_cast %87 : vector<1x64x128xbf16> to vector<64x128xbf16>
    %cst_77 = arith.constant dense<0.000000e+00> : vector<16x128xf32>
    %89 = tpu.matmul %86, %88, %cst_77 {dimension_numbers = #tpu.dot_dimension_numbers<[1], [0], [0], [1], [0, 0, 1, 1], [], []>} : vector<16x64xbf16>, vector<64x128xbf16>, vector<16x128xf32> -> vector<16x128xf32>
    %90 = arith.addf %82, %89 : vector<16x128xf32>
    %c1_78 = arith.constant 1 : index
    %c0_79 = arith.constant 0 : index
    %c0_80 = arith.constant 0 : index
    %91 = vector.load %arg3[%c1_78, %c0_79, %c0_80] : memref<9x16x64xbf16, #tpu.memory_space<vmem>>, vector<1x16x64xbf16>
    %92 = vector.shape_cast %91 : vector<1x16x64xbf16> to vector<16x64xbf16>
    %cst_81 = arith.constant dense<0.000000e+00> : vector<16x64xf32>
    %93 = tpu.matmul %92, %79, %cst_81 {dimension_numbers = #tpu.dot_dimension_numbers<[1], [0], [0], [1], [0, 0, 1, 1], [], []>} : vector<16x64xbf16>, vector<64x64xbf16>, vector<16x64xf32> -> vector<16x64xf32>
    %94 = arith.truncf %93 : vector<16x64xf32> to vector<16x64xbf16>
    %c1_82 = arith.constant 1 : index
    %c0_83 = arith.constant 0 : index
    %c0_84 = arith.constant 0 : index
    %95 = vector.load %arg7[%c1_82, %c0_83, %c0_84] : memref<9x64x128xbf16, #tpu.memory_space<vmem>>, vector<1x64x128xbf16>
    %96 = vector.shape_cast %95 : vector<1x64x128xbf16> to vector<64x128xbf16>
    %cst_85 = arith.constant dense<0.000000e+00> : vector<16x128xf32>
    %97 = tpu.matmul %94, %96, %cst_85 {dimension_numbers = #tpu.dot_dimension_numbers<[1], [0], [0], [1], [0, 0, 1, 1], [], []>} : vector<16x64xbf16>, vector<64x128xbf16>, vector<16x128xf32> -> vector<16x128xf32>
    %98 = arith.addf %90, %97 : vector<16x128xf32>
    %c2_86 = arith.constant 2 : index
    %c0_87 = arith.constant 0 : index
    %c0_88 = arith.constant 0 : index
    %99 = vector.load %arg3[%c2_86, %c0_87, %c0_88] : memref<9x16x64xbf16, #tpu.memory_space<vmem>>, vector<1x16x64xbf16>
    %100 = vector.shape_cast %99 : vector<1x16x64xbf16> to vector<16x64xbf16>
    %cst_89 = arith.constant dense<0.000000e+00> : vector<16x64xf32>
    %101 = tpu.matmul %100, %79, %cst_89 {dimension_numbers = #tpu.dot_dimension_numbers<[1], [0], [0], [1], [0, 0, 1, 1], [], []>} : vector<16x64xbf16>, vector<64x64xbf16>, vector<16x64xf32> -> vector<16x64xf32>
    %102 = arith.truncf %101 : vector<16x64xf32> to vector<16x64xbf16>
    %c2_90 = arith.constant 2 : index
    %c0_91 = arith.constant 0 : index
    %c0_92 = arith.constant 0 : index
    %103 = vector.load %arg7[%c2_90, %c0_91, %c0_92] : memref<9x64x128xbf16, #tpu.memory_space<vmem>>, vector<1x64x128xbf16>
    %104 = vector.shape_cast %103 : vector<1x64x128xbf16> to vector<64x128xbf16>
    %cst_93 = arith.constant dense<0.000000e+00> : vector<16x128xf32>
    %105 = tpu.matmul %102, %104, %cst_93 {dimension_numbers = #tpu.dot_dimension_numbers<[1], [0], [0], [1], [0, 0, 1, 1], [], []>} : vector<16x64xbf16>, vector<64x128xbf16>, vector<16x128xf32> -> vector<16x128xf32>
    %106 = arith.addf %98, %105 : vector<16x128xf32>
    %c3_94 = arith.constant 3 : index
    %c0_95 = arith.constant 0 : index
    %c0_96 = arith.constant 0 : index
    %107 = vector.load %arg3[%c3_94, %c0_95, %c0_96] : memref<9x16x64xbf16, #tpu.memory_space<vmem>>, vector<1x16x64xbf16>
    %108 = vector.shape_cast %107 : vector<1x16x64xbf16> to vector<16x64xbf16>
    %cst_97 = arith.constant dense<0.000000e+00> : vector<16x64xf32>
    %109 = tpu.matmul %108, %79, %cst_97 {dimension_numbers = #tpu.dot_dimension_numbers<[1], [0], [0], [1], [0, 0, 1, 1], [], []>} : vector<16x64xbf16>, vector<64x64xbf16>, vector<16x64xf32> -> vector<16x64xf32>
    %110 = arith.truncf %109 : vector<16x64xf32> to vector<16x64xbf16>
    %c3_98 = arith.constant 3 : index
    %c0_99 = arith.constant 0 : index
    %c0_100 = arith.constant 0 : index
    %111 = vector.load %arg7[%c3_98, %c0_99, %c0_100] : memref<9x64x128xbf16, #tpu.memory_space<vmem>>, vector<1x64x128xbf16>
    %112 = vector.shape_cast %111 : vector<1x64x128xbf16> to vector<64x128xbf16>
    %cst_101 = arith.constant dense<0.000000e+00> : vector<16x128xf32>
    %113 = tpu.matmul %110, %112, %cst_101 {dimension_numbers = #tpu.dot_dimension_numbers<[1], [0], [0], [1], [0, 0, 1, 1], [], []>} : vector<16x64xbf16>, vector<64x128xbf16>, vector<16x128xf32> -> vector<16x128xf32>
    %114 = arith.addf %106, %113 : vector<16x128xf32>
    %c4_102 = arith.constant 4 : index
    %c0_103 = arith.constant 0 : index
    %c0_104 = arith.constant 0 : index
    %115 = vector.load %arg3[%c4_102, %c0_103, %c0_104] : memref<9x16x64xbf16, #tpu.memory_space<vmem>>, vector<1x16x64xbf16>
    %116 = vector.shape_cast %115 : vector<1x16x64xbf16> to vector<16x64xbf16>
    %cst_105 = arith.constant dense<0.000000e+00> : vector<16x64xf32>
    %117 = tpu.matmul %116, %79, %cst_105 {dimension_numbers = #tpu.dot_dimension_numbers<[1], [0], [0], [1], [0, 0, 1, 1], [], []>} : vector<16x64xbf16>, vector<64x64xbf16>, vector<16x64xf32> -> vector<16x64xf32>
    %118 = arith.truncf %117 : vector<16x64xf32> to vector<16x64xbf16>
    %c4_106 = arith.constant 4 : index
    %c0_107 = arith.constant 0 : index
    %c0_108 = arith.constant 0 : index
    %119 = vector.load %arg7[%c4_106, %c0_107, %c0_108] : memref<9x64x128xbf16, #tpu.memory_space<vmem>>, vector<1x64x128xbf16>
    %120 = vector.shape_cast %119 : vector<1x64x128xbf16> to vector<64x128xbf16>
    %cst_109 = arith.constant dense<0.000000e+00> : vector<16x128xf32>
    %121 = tpu.matmul %118, %120, %cst_109 {dimension_numbers = #tpu.dot_dimension_numbers<[1], [0], [0], [1], [0, 0, 1, 1], [], []>} : vector<16x64xbf16>, vector<64x128xbf16>, vector<16x128xf32> -> vector<16x128xf32>
    %122 = arith.addf %114, %121 : vector<16x128xf32>
    %c5_110 = arith.constant 5 : index
    %c0_111 = arith.constant 0 : index
    %c0_112 = arith.constant 0 : index
    %123 = vector.load %arg3[%c5_110, %c0_111, %c0_112] : memref<9x16x64xbf16, #tpu.memory_space<vmem>>, vector<1x16x64xbf16>
    %124 = vector.shape_cast %123 : vector<1x16x64xbf16> to vector<16x64xbf16>
    %cst_113 = arith.constant dense<0.000000e+00> : vector<16x64xf32>
    %125 = tpu.matmul %124, %79, %cst_113 {dimension_numbers = #tpu.dot_dimension_numbers<[1], [0], [0], [1], [0, 0, 1, 1], [], []>} : vector<16x64xbf16>, vector<64x64xbf16>, vector<16x64xf32> -> vector<16x64xf32>
    %126 = arith.truncf %125 : vector<16x64xf32> to vector<16x64xbf16>
    %c5_114 = arith.constant 5 : index
    %c0_115 = arith.constant 0 : index
    %c0_116 = arith.constant 0 : index
    %127 = vector.load %arg7[%c5_114, %c0_115, %c0_116] : memref<9x64x128xbf16, #tpu.memory_space<vmem>>, vector<1x64x128xbf16>
    %128 = vector.shape_cast %127 : vector<1x64x128xbf16> to vector<64x128xbf16>
    %cst_117 = arith.constant dense<0.000000e+00> : vector<16x128xf32>
    %129 = tpu.matmul %126, %128, %cst_117 {dimension_numbers = #tpu.dot_dimension_numbers<[1], [0], [0], [1], [0, 0, 1, 1], [], []>} : vector<16x64xbf16>, vector<64x128xbf16>, vector<16x128xf32> -> vector<16x128xf32>
    %130 = arith.addf %122, %129 : vector<16x128xf32>
    %c6_118 = arith.constant 6 : index
    %c0_119 = arith.constant 0 : index
    %c0_120 = arith.constant 0 : index
    %131 = vector.load %arg3[%c6_118, %c0_119, %c0_120] : memref<9x16x64xbf16, #tpu.memory_space<vmem>>, vector<1x16x64xbf16>
    %132 = vector.shape_cast %131 : vector<1x16x64xbf16> to vector<16x64xbf16>
    %cst_121 = arith.constant dense<0.000000e+00> : vector<16x64xf32>
    %133 = tpu.matmul %132, %79, %cst_121 {dimension_numbers = #tpu.dot_dimension_numbers<[1], [0], [0], [1], [0, 0, 1, 1], [], []>} : vector<16x64xbf16>, vector<64x64xbf16>, vector<16x64xf32> -> vector<16x64xf32>
    %134 = arith.truncf %133 : vector<16x64xf32> to vector<16x64xbf16>
    %c6_122 = arith.constant 6 : index
    %c0_123 = arith.constant 0 : index
    %c0_124 = arith.constant 0 : index
    %135 = vector.load %arg7[%c6_122, %c0_123, %c0_124] : memref<9x64x128xbf16, #tpu.memory_space<vmem>>, vector<1x64x128xbf16>
    %136 = vector.shape_cast %135 : vector<1x64x128xbf16> to vector<64x128xbf16>
    %cst_125 = arith.constant dense<0.000000e+00> : vector<16x128xf32>
    %137 = tpu.matmul %134, %136, %cst_125 {dimension_numbers = #tpu.dot_dimension_numbers<[1], [0], [0], [1], [0, 0, 1, 1], [], []>} : vector<16x64xbf16>, vector<64x128xbf16>, vector<16x128xf32> -> vector<16x128xf32>
    %138 = arith.addf %130, %137 : vector<16x128xf32>
    %c7_126 = arith.constant 7 : index
    %c0_127 = arith.constant 0 : index
    %c0_128 = arith.constant 0 : index
    %139 = vector.load %arg3[%c7_126, %c0_127, %c0_128] : memref<9x16x64xbf16, #tpu.memory_space<vmem>>, vector<1x16x64xbf16>
    %140 = vector.shape_cast %139 : vector<1x16x64xbf16> to vector<16x64xbf16>
    %cst_129 = arith.constant dense<0.000000e+00> : vector<16x64xf32>
    %141 = tpu.matmul %140, %79, %cst_129 {dimension_numbers = #tpu.dot_dimension_numbers<[1], [0], [0], [1], [0, 0, 1, 1], [], []>} : vector<16x64xbf16>, vector<64x64xbf16>, vector<16x64xf32> -> vector<16x64xf32>
    %142 = arith.truncf %141 : vector<16x64xf32> to vector<16x64xbf16>
    %c7_130 = arith.constant 7 : index
    %c0_131 = arith.constant 0 : index
    %c0_132 = arith.constant 0 : index
    %143 = vector.load %arg7[%c7_130, %c0_131, %c0_132] : memref<9x64x128xbf16, #tpu.memory_space<vmem>>, vector<1x64x128xbf16>
    %144 = vector.shape_cast %143 : vector<1x64x128xbf16> to vector<64x128xbf16>
    %cst_133 = arith.constant dense<0.000000e+00> : vector<16x128xf32>
    %145 = tpu.matmul %142, %144, %cst_133 {dimension_numbers = #tpu.dot_dimension_numbers<[1], [0], [0], [1], [0, 0, 1, 1], [], []>} : vector<16x64xbf16>, vector<64x128xbf16>, vector<16x128xf32> -> vector<16x128xf32>
    %146 = arith.addf %138, %145 : vector<16x128xf32>
    %c8_134 = arith.constant 8 : index
    %c0_135 = arith.constant 0 : index
    %c0_136 = arith.constant 0 : index
    %147 = vector.load %arg3[%c8_134, %c0_135, %c0_136] : memref<9x16x64xbf16, #tpu.memory_space<vmem>>, vector<1x16x64xbf16>
    %148 = vector.shape_cast %147 : vector<1x16x64xbf16> to vector<16x64xbf16>
    %cst_137 = arith.constant dense<0.000000e+00> : vector<16x64xf32>
    %149 = tpu.matmul %148, %79, %cst_137 {dimension_numbers = #tpu.dot_dimension_numbers<[1], [0], [0], [1], [0, 0, 1, 1], [], []>} : vector<16x64xbf16>, vector<64x64xbf16>, vector<16x64xf32> -> vector<16x64xf32>
    %150 = arith.truncf %149 : vector<16x64xf32> to vector<16x64xbf16>
    %c8_138 = arith.constant 8 : index
    %c0_139 = arith.constant 0 : index
    %c0_140 = arith.constant 0 : index
    %151 = vector.load %arg7[%c8_138, %c0_139, %c0_140] : memref<9x64x128xbf16, #tpu.memory_space<vmem>>, vector<1x64x128xbf16>
    %152 = vector.shape_cast %151 : vector<1x64x128xbf16> to vector<64x128xbf16>
    %cst_141 = arith.constant dense<0.000000e+00> : vector<16x128xf32>
    %153 = tpu.matmul %150, %152, %cst_141 {dimension_numbers = #tpu.dot_dimension_numbers<[1], [0], [0], [1], [0, 0, 1, 1], [], []>} : vector<16x64xbf16>, vector<64x128xbf16>, vector<16x128xf32> -> vector<16x128xf32>
    %154 = arith.addf %146, %153 : vector<16x128xf32>
    %cst_142 = arith.constant 0.000000e+00 : f32
    %155 = vector.broadcast %cst_142 : f32 to vector<16x128xf32>
    %156 = arith.maximumf %154, %155 : vector<16x128xf32>
    %157 = arith.truncf %156 : vector<16x128xf32> to vector<16x128xbf16>
    %c0_143 = arith.constant 0 : index
    %c0_144 = arith.constant 0 : index
    %158 = vector.load %arg12[%c0_143, %c0_144] : memref<1x256xf32, #tpu.memory_space<vmem>>, vector<1x256xf32>
    %159 = vector.shape_cast %158 : vector<1x256xf32> to vector<1x256xf32>
    %160 = vector.broadcast %159 : vector<1x256xf32> to vector<4x256xf32>
    %c0_145 = arith.constant 0 : index
    %c0_146 = arith.constant 0 : index
    %c0_147 = arith.constant 0 : index
    %161 = vector.load %arg4[%c0_145, %c0_146, %c0_147] : memref<9x4x16xbf16, #tpu.memory_space<vmem>>, vector<1x4x16xbf16>
    %162 = vector.shape_cast %161 : vector<1x4x16xbf16> to vector<4x16xbf16>
    %cst_148 = arith.constant dense<0.000000e+00> : vector<4x128xf32>
    %163 = tpu.matmul %162, %157, %cst_148 {dimension_numbers = #tpu.dot_dimension_numbers<[1], [0], [0], [1], [0, 0, 1, 1], [], []>} : vector<4x16xbf16>, vector<16x128xbf16>, vector<4x128xf32> -> vector<4x128xf32>
    %164 = arith.truncf %163 : vector<4x128xf32> to vector<4x128xbf16>
    %c0_149 = arith.constant 0 : index
    %c0_150 = arith.constant 0 : index
    %c0_151 = arith.constant 0 : index
    %165 = vector.load %arg8[%c0_149, %c0_150, %c0_151] : memref<9x128x256xbf16, #tpu.memory_space<vmem>>, vector<1x128x256xbf16>
    %166 = vector.shape_cast %165 : vector<1x128x256xbf16> to vector<128x256xbf16>
    %cst_152 = arith.constant dense<0.000000e+00> : vector<4x256xf32>
    %167 = tpu.matmul %164, %166, %cst_152 {dimension_numbers = #tpu.dot_dimension_numbers<[1], [0], [0], [1], [0, 0, 1, 1], [], []>} : vector<4x128xbf16>, vector<128x256xbf16>, vector<4x256xf32> -> vector<4x256xf32>
    %168 = arith.addf %160, %167 : vector<4x256xf32>
    %c1_153 = arith.constant 1 : index
    %c0_154 = arith.constant 0 : index
    %c0_155 = arith.constant 0 : index
    %169 = vector.load %arg4[%c1_153, %c0_154, %c0_155] : memref<9x4x16xbf16, #tpu.memory_space<vmem>>, vector<1x4x16xbf16>
    %170 = vector.shape_cast %169 : vector<1x4x16xbf16> to vector<4x16xbf16>
    %cst_156 = arith.constant dense<0.000000e+00> : vector<4x128xf32>
    %171 = tpu.matmul %170, %157, %cst_156 {dimension_numbers = #tpu.dot_dimension_numbers<[1], [0], [0], [1], [0, 0, 1, 1], [], []>} : vector<4x16xbf16>, vector<16x128xbf16>, vector<4x128xf32> -> vector<4x128xf32>
    %172 = arith.truncf %171 : vector<4x128xf32> to vector<4x128xbf16>
    %c1_157 = arith.constant 1 : index
    %c0_158 = arith.constant 0 : index
    %c0_159 = arith.constant 0 : index
    %173 = vector.load %arg8[%c1_157, %c0_158, %c0_159] : memref<9x128x256xbf16, #tpu.memory_space<vmem>>, vector<1x128x256xbf16>
    %174 = vector.shape_cast %173 : vector<1x128x256xbf16> to vector<128x256xbf16>
    %cst_160 = arith.constant dense<0.000000e+00> : vector<4x256xf32>
    %175 = tpu.matmul %172, %174, %cst_160 {dimension_numbers = #tpu.dot_dimension_numbers<[1], [0], [0], [1], [0, 0, 1, 1], [], []>} : vector<4x128xbf16>, vector<128x256xbf16>, vector<4x256xf32> -> vector<4x256xf32>
    %176 = arith.addf %168, %175 : vector<4x256xf32>
    %c2_161 = arith.constant 2 : index
    %c0_162 = arith.constant 0 : index
    %c0_163 = arith.constant 0 : index
    %177 = vector.load %arg4[%c2_161, %c0_162, %c0_163] : memref<9x4x16xbf16, #tpu.memory_space<vmem>>, vector<1x4x16xbf16>
    %178 = vector.shape_cast %177 : vector<1x4x16xbf16> to vector<4x16xbf16>
    %cst_164 = arith.constant dense<0.000000e+00> : vector<4x128xf32>
    %179 = tpu.matmul %178, %157, %cst_164 {dimension_numbers = #tpu.dot_dimension_numbers<[1], [0], [0], [1], [0, 0, 1, 1], [], []>} : vector<4x16xbf16>, vector<16x128xbf16>, vector<4x128xf32> -> vector<4x128xf32>
    %180 = arith.truncf %179 : vector<4x128xf32> to vector<4x128xbf16>
    %c2_165 = arith.constant 2 : index
    %c0_166 = arith.constant 0 : index
    %c0_167 = arith.constant 0 : index
    %181 = vector.load %arg8[%c2_165, %c0_166, %c0_167] : memref<9x128x256xbf16, #tpu.memory_space<vmem>>, vector<1x128x256xbf16>
    %182 = vector.shape_cast %181 : vector<1x128x256xbf16> to vector<128x256xbf16>
    %cst_168 = arith.constant dense<0.000000e+00> : vector<4x256xf32>
    %183 = tpu.matmul %180, %182, %cst_168 {dimension_numbers = #tpu.dot_dimension_numbers<[1], [0], [0], [1], [0, 0, 1, 1], [], []>} : vector<4x128xbf16>, vector<128x256xbf16>, vector<4x256xf32> -> vector<4x256xf32>
    %184 = arith.addf %176, %183 : vector<4x256xf32>
    %c3_169 = arith.constant 3 : index
    %c0_170 = arith.constant 0 : index
    %c0_171 = arith.constant 0 : index
    %185 = vector.load %arg4[%c3_169, %c0_170, %c0_171] : memref<9x4x16xbf16, #tpu.memory_space<vmem>>, vector<1x4x16xbf16>
    %186 = vector.shape_cast %185 : vector<1x4x16xbf16> to vector<4x16xbf16>
    %cst_172 = arith.constant dense<0.000000e+00> : vector<4x128xf32>
    %187 = tpu.matmul %186, %157, %cst_172 {dimension_numbers = #tpu.dot_dimension_numbers<[1], [0], [0], [1], [0, 0, 1, 1], [], []>} : vector<4x16xbf16>, vector<16x128xbf16>, vector<4x128xf32> -> vector<4x128xf32>
    %188 = arith.truncf %187 : vector<4x128xf32> to vector<4x128xbf16>
    %c3_173 = arith.constant 3 : index
    %c0_174 = arith.constant 0 : index
    %c0_175 = arith.constant 0 : index
    %189 = vector.load %arg8[%c3_173, %c0_174, %c0_175] : memref<9x128x256xbf16, #tpu.memory_space<vmem>>, vector<1x128x256xbf16>
    %190 = vector.shape_cast %189 : vector<1x128x256xbf16> to vector<128x256xbf16>
    %cst_176 = arith.constant dense<0.000000e+00> : vector<4x256xf32>
    %191 = tpu.matmul %188, %190, %cst_176 {dimension_numbers = #tpu.dot_dimension_numbers<[1], [0], [0], [1], [0, 0, 1, 1], [], []>} : vector<4x128xbf16>, vector<128x256xbf16>, vector<4x256xf32> -> vector<4x256xf32>
    %192 = arith.addf %184, %191 : vector<4x256xf32>
    %c4_177 = arith.constant 4 : index
    %c0_178 = arith.constant 0 : index
    %c0_179 = arith.constant 0 : index
    %193 = vector.load %arg4[%c4_177, %c0_178, %c0_179] : memref<9x4x16xbf16, #tpu.memory_space<vmem>>, vector<1x4x16xbf16>
    %194 = vector.shape_cast %193 : vector<1x4x16xbf16> to vector<4x16xbf16>
    %cst_180 = arith.constant dense<0.000000e+00> : vector<4x128xf32>
    %195 = tpu.matmul %194, %157, %cst_180 {dimension_numbers = #tpu.dot_dimension_numbers<[1], [0], [0], [1], [0, 0, 1, 1], [], []>} : vector<4x16xbf16>, vector<16x128xbf16>, vector<4x128xf32> -> vector<4x128xf32>
    %196 = arith.truncf %195 : vector<4x128xf32> to vector<4x128xbf16>
    %c4_181 = arith.constant 4 : index
    %c0_182 = arith.constant 0 : index
    %c0_183 = arith.constant 0 : index
    %197 = vector.load %arg8[%c4_181, %c0_182, %c0_183] : memref<9x128x256xbf16, #tpu.memory_space<vmem>>, vector<1x128x256xbf16>
    %198 = vector.shape_cast %197 : vector<1x128x256xbf16> to vector<128x256xbf16>
    %cst_184 = arith.constant dense<0.000000e+00> : vector<4x256xf32>
    %199 = tpu.matmul %196, %198, %cst_184 {dimension_numbers = #tpu.dot_dimension_numbers<[1], [0], [0], [1], [0, 0, 1, 1], [], []>} : vector<4x128xbf16>, vector<128x256xbf16>, vector<4x256xf32> -> vector<4x256xf32>
    %200 = arith.addf %192, %199 : vector<4x256xf32>
    %c5_185 = arith.constant 5 : index
    %c0_186 = arith.constant 0 : index
    %c0_187 = arith.constant 0 : index
    %201 = vector.load %arg4[%c5_185, %c0_186, %c0_187] : memref<9x4x16xbf16, #tpu.memory_space<vmem>>, vector<1x4x16xbf16>
    %202 = vector.shape_cast %201 : vector<1x4x16xbf16> to vector<4x16xbf16>
    %cst_188 = arith.constant dense<0.000000e+00> : vector<4x128xf32>
    %203 = tpu.matmul %202, %157, %cst_188 {dimension_numbers = #tpu.dot_dimension_numbers<[1], [0], [0], [1], [0, 0, 1, 1], [], []>} : vector<4x16xbf16>, vector<16x128xbf16>, vector<4x128xf32> -> vector<4x128xf32>
    %204 = arith.truncf %203 : vector<4x128xf32> to vector<4x128xbf16>
    %c5_189 = arith.constant 5 : index
    %c0_190 = arith.constant 0 : index
    %c0_191 = arith.constant 0 : index
    %205 = vector.load %arg8[%c5_189, %c0_190, %c0_191] : memref<9x128x256xbf16, #tpu.memory_space<vmem>>, vector<1x128x256xbf16>
    %206 = vector.shape_cast %205 : vector<1x128x256xbf16> to vector<128x256xbf16>
    %cst_192 = arith.constant dense<0.000000e+00> : vector<4x256xf32>
    %207 = tpu.matmul %204, %206, %cst_192 {dimension_numbers = #tpu.dot_dimension_numbers<[1], [0], [0], [1], [0, 0, 1, 1], [], []>} : vector<4x128xbf16>, vector<128x256xbf16>, vector<4x256xf32> -> vector<4x256xf32>
    %208 = arith.addf %200, %207 : vector<4x256xf32>
    %c6_193 = arith.constant 6 : index
    %c0_194 = arith.constant 0 : index
    %c0_195 = arith.constant 0 : index
    %209 = vector.load %arg4[%c6_193, %c0_194, %c0_195] : memref<9x4x16xbf16, #tpu.memory_space<vmem>>, vector<1x4x16xbf16>
    %210 = vector.shape_cast %209 : vector<1x4x16xbf16> to vector<4x16xbf16>
    %cst_196 = arith.constant dense<0.000000e+00> : vector<4x128xf32>
    %211 = tpu.matmul %210, %157, %cst_196 {dimension_numbers = #tpu.dot_dimension_numbers<[1], [0], [0], [1], [0, 0, 1, 1], [], []>} : vector<4x16xbf16>, vector<16x128xbf16>, vector<4x128xf32> -> vector<4x128xf32>
    %212 = arith.truncf %211 : vector<4x128xf32> to vector<4x128xbf16>
    %c6_197 = arith.constant 6 : index
    %c0_198 = arith.constant 0 : index
    %c0_199 = arith.constant 0 : index
    %213 = vector.load %arg8[%c6_197, %c0_198, %c0_199] : memref<9x128x256xbf16, #tpu.memory_space<vmem>>, vector<1x128x256xbf16>
    %214 = vector.shape_cast %213 : vector<1x128x256xbf16> to vector<128x256xbf16>
    %cst_200 = arith.constant dense<0.000000e+00> : vector<4x256xf32>
    %215 = tpu.matmul %212, %214, %cst_200 {dimension_numbers = #tpu.dot_dimension_numbers<[1], [0], [0], [1], [0, 0, 1, 1], [], []>} : vector<4x128xbf16>, vector<128x256xbf16>, vector<4x256xf32> -> vector<4x256xf32>
    %216 = arith.addf %208, %215 : vector<4x256xf32>
    %c7_201 = arith.constant 7 : index
    %c0_202 = arith.constant 0 : index
    %c0_203 = arith.constant 0 : index
    %217 = vector.load %arg4[%c7_201, %c0_202, %c0_203] : memref<9x4x16xbf16, #tpu.memory_space<vmem>>, vector<1x4x16xbf16>
    %218 = vector.shape_cast %217 : vector<1x4x16xbf16> to vector<4x16xbf16>
    %cst_204 = arith.constant dense<0.000000e+00> : vector<4x128xf32>
    %219 = tpu.matmul %218, %157, %cst_204 {dimension_numbers = #tpu.dot_dimension_numbers<[1], [0], [0], [1], [0, 0, 1, 1], [], []>} : vector<4x16xbf16>, vector<16x128xbf16>, vector<4x128xf32> -> vector<4x128xf32>
    %220 = arith.truncf %219 : vector<4x128xf32> to vector<4x128xbf16>
    %c7_205 = arith.constant 7 : index
    %c0_206 = arith.constant 0 : index
    %c0_207 = arith.constant 0 : index
    %221 = vector.load %arg8[%c7_205, %c0_206, %c0_207] : memref<9x128x256xbf16, #tpu.memory_space<vmem>>, vector<1x128x256xbf16>
    %222 = vector.shape_cast %221 : vector<1x128x256xbf16> to vector<128x256xbf16>
    %cst_208 = arith.constant dense<0.000000e+00> : vector<4x256xf32>
    %223 = tpu.matmul %220, %222, %cst_208 {dimension_numbers = #tpu.dot_dimension_numbers<[1], [0], [0], [1], [0, 0, 1, 1], [], []>} : vector<4x128xbf16>, vector<128x256xbf16>, vector<4x256xf32> -> vector<4x256xf32>
    %224 = arith.addf %216, %223 : vector<4x256xf32>
    %c8_209 = arith.constant 8 : index
    %c0_210 = arith.constant 0 : index
    %c0_211 = arith.constant 0 : index
    %225 = vector.load %arg4[%c8_209, %c0_210, %c0_211] : memref<9x4x16xbf16, #tpu.memory_space<vmem>>, vector<1x4x16xbf16>
    %226 = vector.shape_cast %225 : vector<1x4x16xbf16> to vector<4x16xbf16>
    %cst_212 = arith.constant dense<0.000000e+00> : vector<4x128xf32>
    %227 = tpu.matmul %226, %157, %cst_212 {dimension_numbers = #tpu.dot_dimension_numbers<[1], [0], [0], [1], [0, 0, 1, 1], [], []>} : vector<4x16xbf16>, vector<16x128xbf16>, vector<4x128xf32> -> vector<4x128xf32>
    %228 = arith.truncf %227 : vector<4x128xf32> to vector<4x128xbf16>
    %c8_213 = arith.constant 8 : index
    %c0_214 = arith.constant 0 : index
    %c0_215 = arith.constant 0 : index
    %229 = vector.load %arg8[%c8_213, %c0_214, %c0_215] : memref<9x128x256xbf16, #tpu.memory_space<vmem>>, vector<1x128x256xbf16>
    %230 = vector.shape_cast %229 : vector<1x128x256xbf16> to vector<128x256xbf16>
    %cst_216 = arith.constant dense<0.000000e+00> : vector<4x256xf32>
    %231 = tpu.matmul %228, %230, %cst_216 {dimension_numbers = #tpu.dot_dimension_numbers<[1], [0], [0], [1], [0, 0, 1, 1], [], []>} : vector<4x128xbf16>, vector<128x256xbf16>, vector<4x256xf32> -> vector<4x256xf32>
    %232 = arith.addf %224, %231 : vector<4x256xf32>
    %cst_217 = arith.constant 0.000000e+00 : f32
    %233 = vector.broadcast %cst_217 : f32 to vector<4x256xf32>
    %234 = arith.maximumf %232, %233 : vector<4x256xf32>
    %235 = arith.truncf %234 : vector<4x256xf32> to vector<4x256xbf16>
    %c0_218 = arith.constant 0 : index
    %c0_219 = arith.constant 0 : index
    %236 = vector.load %arg13[%c0_218, %c0_219] : memref<1x512xf32, #tpu.memory_space<vmem>>, vector<1x512xf32>
    %c0_220 = arith.constant 0 : index
    %c0_221 = arith.constant 0 : index
    %c0_222 = arith.constant 0 : index
    %237 = vector.load %arg5[%c0_220, %c0_221, %c0_222] : memref<9x1x4xbf16, #tpu.memory_space<vmem>>, vector<1x1x4xbf16>
    %238 = vector.shape_cast %237 : vector<1x1x4xbf16> to vector<1x4xbf16>
    %cst_223 = arith.constant dense<0.000000e+00> : vector<1x256xf32>
    %239 = tpu.matmul %238, %235, %cst_223 {dimension_numbers = #tpu.dot_dimension_numbers<[1], [0], [0], [1], [0, 0, 1, 1], [], []>} : vector<1x4xbf16>, vector<4x256xbf16>, vector<1x256xf32> -> vector<1x256xf32>
    %240 = arith.truncf %239 : vector<1x256xf32> to vector<1x256xbf16>
    %c0_224 = arith.constant 0 : index
    %c0_225 = arith.constant 0 : index
    %c0_226 = arith.constant 0 : index
    %241 = vector.load %arg9[%c0_224, %c0_225, %c0_226] : memref<9x256x512xbf16, #tpu.memory_space<vmem>>, vector<1x256x512xbf16>
    %242 = vector.shape_cast %241 : vector<1x256x512xbf16> to vector<256x512xbf16>
    %cst_227 = arith.constant dense<0.000000e+00> : vector<1x512xf32>
    %243 = tpu.matmul %240, %242, %cst_227 {dimension_numbers = #tpu.dot_dimension_numbers<[1], [0], [0], [1], [0, 0, 1, 1], [], []>} : vector<1x256xbf16>, vector<256x512xbf16>, vector<1x512xf32> -> vector<1x512xf32>
    %244 = arith.addf %236, %243 : vector<1x512xf32>
    %c1_228 = arith.constant 1 : index
    %c0_229 = arith.constant 0 : index
    %c0_230 = arith.constant 0 : index
    %245 = vector.load %arg5[%c1_228, %c0_229, %c0_230] : memref<9x1x4xbf16, #tpu.memory_space<vmem>>, vector<1x1x4xbf16>
    %246 = vector.shape_cast %245 : vector<1x1x4xbf16> to vector<1x4xbf16>
    %cst_231 = arith.constant dense<0.000000e+00> : vector<1x256xf32>
    %247 = tpu.matmul %246, %235, %cst_231 {dimension_numbers = #tpu.dot_dimension_numbers<[1], [0], [0], [1], [0, 0, 1, 1], [], []>} : vector<1x4xbf16>, vector<4x256xbf16>, vector<1x256xf32> -> vector<1x256xf32>
    %248 = arith.truncf %247 : vector<1x256xf32> to vector<1x256xbf16>
    %c1_232 = arith.constant 1 : index
    %c0_233 = arith.constant 0 : index
    %c0_234 = arith.constant 0 : index
    %249 = vector.load %arg9[%c1_232, %c0_233, %c0_234] : memref<9x256x512xbf16, #tpu.memory_space<vmem>>, vector<1x256x512xbf16>
    %250 = vector.shape_cast %249 : vector<1x256x512xbf16> to vector<256x512xbf16>
    %cst_235 = arith.constant dense<0.000000e+00> : vector<1x512xf32>
    %251 = tpu.matmul %248, %250, %cst_235 {dimension_numbers = #tpu.dot_dimension_numbers<[1], [0], [0], [1], [0, 0, 1, 1], [], []>} : vector<1x256xbf16>, vector<256x512xbf16>, vector<1x512xf32> -> vector<1x512xf32>
    %252 = arith.addf %244, %251 : vector<1x512xf32>
    %c2_236 = arith.constant 2 : index
    %c0_237 = arith.constant 0 : index
    %c0_238 = arith.constant 0 : index
    %253 = vector.load %arg5[%c2_236, %c0_237, %c0_238] : memref<9x1x4xbf16, #tpu.memory_space<vmem>>, vector<1x1x4xbf16>
    %254 = vector.shape_cast %253 : vector<1x1x4xbf16> to vector<1x4xbf16>
    %cst_239 = arith.constant dense<0.000000e+00> : vector<1x256xf32>
    %255 = tpu.matmul %254, %235, %cst_239 {dimension_numbers = #tpu.dot_dimension_numbers<[1], [0], [0], [1], [0, 0, 1, 1], [], []>} : vector<1x4xbf16>, vector<4x256xbf16>, vector<1x256xf32> -> vector<1x256xf32>
    %256 = arith.truncf %255 : vector<1x256xf32> to vector<1x256xbf16>
    %c2_240 = arith.constant 2 : index
    %c0_241 = arith.constant 0 : index
    %c0_242 = arith.constant 0 : index
    %257 = vector.load %arg9[%c2_240, %c0_241, %c0_242] : memref<9x256x512xbf16, #tpu.memory_space<vmem>>, vector<1x256x512xbf16>
    %258 = vector.shape_cast %257 : vector<1x256x512xbf16> to vector<256x512xbf16>
    %cst_243 = arith.constant dense<0.000000e+00> : vector<1x512xf32>
    %259 = tpu.matmul %256, %258, %cst_243 {dimension_numbers = #tpu.dot_dimension_numbers<[1], [0], [0], [1], [0, 0, 1, 1], [], []>} : vector<1x256xbf16>, vector<256x512xbf16>, vector<1x512xf32> -> vector<1x512xf32>
    %260 = arith.addf %252, %259 : vector<1x512xf32>
    %c3_244 = arith.constant 3 : index
    %c0_245 = arith.constant 0 : index
    %c0_246 = arith.constant 0 : index
    %261 = vector.load %arg5[%c3_244, %c0_245, %c0_246] : memref<9x1x4xbf16, #tpu.memory_space<vmem>>, vector<1x1x4xbf16>
    %262 = vector.shape_cast %261 : vector<1x1x4xbf16> to vector<1x4xbf16>
    %cst_247 = arith.constant dense<0.000000e+00> : vector<1x256xf32>
    %263 = tpu.matmul %262, %235, %cst_247 {dimension_numbers = #tpu.dot_dimension_numbers<[1], [0], [0], [1], [0, 0, 1, 1], [], []>} : vector<1x4xbf16>, vector<4x256xbf16>, vector<1x256xf32> -> vector<1x256xf32>
    %264 = arith.truncf %263 : vector<1x256xf32> to vector<1x256xbf16>
    %c3_248 = arith.constant 3 : index
    %c0_249 = arith.constant 0 : index
    %c0_250 = arith.constant 0 : index
    %265 = vector.load %arg9[%c3_248, %c0_249, %c0_250] : memref<9x256x512xbf16, #tpu.memory_space<vmem>>, vector<1x256x512xbf16>
    %266 = vector.shape_cast %265 : vector<1x256x512xbf16> to vector<256x512xbf16>
    %cst_251 = arith.constant dense<0.000000e+00> : vector<1x512xf32>
    %267 = tpu.matmul %264, %266, %cst_251 {dimension_numbers = #tpu.dot_dimension_numbers<[1], [0], [0], [1], [0, 0, 1, 1], [], []>} : vector<1x256xbf16>, vector<256x512xbf16>, vector<1x512xf32> -> vector<1x512xf32>
    %268 = arith.addf %260, %267 : vector<1x512xf32>
    %c4_252 = arith.constant 4 : index
    %c0_253 = arith.constant 0 : index
    %c0_254 = arith.constant 0 : index
    %269 = vector.load %arg5[%c4_252, %c0_253, %c0_254] : memref<9x1x4xbf16, #tpu.memory_space<vmem>>, vector<1x1x4xbf16>
    %270 = vector.shape_cast %269 : vector<1x1x4xbf16> to vector<1x4xbf16>
    %cst_255 = arith.constant dense<0.000000e+00> : vector<1x256xf32>
    %271 = tpu.matmul %270, %235, %cst_255 {dimension_numbers = #tpu.dot_dimension_numbers<[1], [0], [0], [1], [0, 0, 1, 1], [], []>} : vector<1x4xbf16>, vector<4x256xbf16>, vector<1x256xf32> -> vector<1x256xf32>
    %272 = arith.truncf %271 : vector<1x256xf32> to vector<1x256xbf16>
    %c4_256 = arith.constant 4 : index
    %c0_257 = arith.constant 0 : index
    %c0_258 = arith.constant 0 : index
    %273 = vector.load %arg9[%c4_256, %c0_257, %c0_258] : memref<9x256x512xbf16, #tpu.memory_space<vmem>>, vector<1x256x512xbf16>
    %274 = vector.shape_cast %273 : vector<1x256x512xbf16> to vector<256x512xbf16>
    %cst_259 = arith.constant dense<0.000000e+00> : vector<1x512xf32>
    %275 = tpu.matmul %272, %274, %cst_259 {dimension_numbers = #tpu.dot_dimension_numbers<[1], [0], [0], [1], [0, 0, 1, 1], [], []>} : vector<1x256xbf16>, vector<256x512xbf16>, vector<1x512xf32> -> vector<1x512xf32>
    %276 = arith.addf %268, %275 : vector<1x512xf32>
    %c5_260 = arith.constant 5 : index
    %c0_261 = arith.constant 0 : index
    %c0_262 = arith.constant 0 : index
    %277 = vector.load %arg5[%c5_260, %c0_261, %c0_262] : memref<9x1x4xbf16, #tpu.memory_space<vmem>>, vector<1x1x4xbf16>
    %278 = vector.shape_cast %277 : vector<1x1x4xbf16> to vector<1x4xbf16>
    %cst_263 = arith.constant dense<0.000000e+00> : vector<1x256xf32>
    %279 = tpu.matmul %278, %235, %cst_263 {dimension_numbers = #tpu.dot_dimension_numbers<[1], [0], [0], [1], [0, 0, 1, 1], [], []>} : vector<1x4xbf16>, vector<4x256xbf16>, vector<1x256xf32> -> vector<1x256xf32>
    %280 = arith.truncf %279 : vector<1x256xf32> to vector<1x256xbf16>
    %c5_264 = arith.constant 5 : index
    %c0_265 = arith.constant 0 : index
    %c0_266 = arith.constant 0 : index
    %281 = vector.load %arg9[%c5_264, %c0_265, %c0_266] : memref<9x256x512xbf16, #tpu.memory_space<vmem>>, vector<1x256x512xbf16>
    %282 = vector.shape_cast %281 : vector<1x256x512xbf16> to vector<256x512xbf16>
    %cst_267 = arith.constant dense<0.000000e+00> : vector<1x512xf32>
    %283 = tpu.matmul %280, %282, %cst_267 {dimension_numbers = #tpu.dot_dimension_numbers<[1], [0], [0], [1], [0, 0, 1, 1], [], []>} : vector<1x256xbf16>, vector<256x512xbf16>, vector<1x512xf32> -> vector<1x512xf32>
    %284 = arith.addf %276, %283 : vector<1x512xf32>
    %c6_268 = arith.constant 6 : index
    %c0_269 = arith.constant 0 : index
    %c0_270 = arith.constant 0 : index
    %285 = vector.load %arg5[%c6_268, %c0_269, %c0_270] : memref<9x1x4xbf16, #tpu.memory_space<vmem>>, vector<1x1x4xbf16>
    %286 = vector.shape_cast %285 : vector<1x1x4xbf16> to vector<1x4xbf16>
    %cst_271 = arith.constant dense<0.000000e+00> : vector<1x256xf32>
    %287 = tpu.matmul %286, %235, %cst_271 {dimension_numbers = #tpu.dot_dimension_numbers<[1], [0], [0], [1], [0, 0, 1, 1], [], []>} : vector<1x4xbf16>, vector<4x256xbf16>, vector<1x256xf32> -> vector<1x256xf32>
    %288 = arith.truncf %287 : vector<1x256xf32> to vector<1x256xbf16>
    %c6_272 = arith.constant 6 : index
    %c0_273 = arith.constant 0 : index
    %c0_274 = arith.constant 0 : index
    %289 = vector.load %arg9[%c6_272, %c0_273, %c0_274] : memref<9x256x512xbf16, #tpu.memory_space<vmem>>, vector<1x256x512xbf16>
    %290 = vector.shape_cast %289 : vector<1x256x512xbf16> to vector<256x512xbf16>
    %cst_275 = arith.constant dense<0.000000e+00> : vector<1x512xf32>
    %291 = tpu.matmul %288, %290, %cst_275 {dimension_numbers = #tpu.dot_dimension_numbers<[1], [0], [0], [1], [0, 0, 1, 1], [], []>} : vector<1x256xbf16>, vector<256x512xbf16>, vector<1x512xf32> -> vector<1x512xf32>
    %292 = arith.addf %284, %291 : vector<1x512xf32>
    %c7_276 = arith.constant 7 : index
    %c0_277 = arith.constant 0 : index
    %c0_278 = arith.constant 0 : index
    %293 = vector.load %arg5[%c7_276, %c0_277, %c0_278] : memref<9x1x4xbf16, #tpu.memory_space<vmem>>, vector<1x1x4xbf16>
    %294 = vector.shape_cast %293 : vector<1x1x4xbf16> to vector<1x4xbf16>
    %cst_279 = arith.constant dense<0.000000e+00> : vector<1x256xf32>
    %295 = tpu.matmul %294, %235, %cst_279 {dimension_numbers = #tpu.dot_dimension_numbers<[1], [0], [0], [1], [0, 0, 1, 1], [], []>} : vector<1x4xbf16>, vector<4x256xbf16>, vector<1x256xf32> -> vector<1x256xf32>
    %296 = arith.truncf %295 : vector<1x256xf32> to vector<1x256xbf16>
    %c7_280 = arith.constant 7 : index
    %c0_281 = arith.constant 0 : index
    %c0_282 = arith.constant 0 : index
    %297 = vector.load %arg9[%c7_280, %c0_281, %c0_282] : memref<9x256x512xbf16, #tpu.memory_space<vmem>>, vector<1x256x512xbf16>
    %298 = vector.shape_cast %297 : vector<1x256x512xbf16> to vector<256x512xbf16>
    %cst_283 = arith.constant dense<0.000000e+00> : vector<1x512xf32>
    %299 = tpu.matmul %296, %298, %cst_283 {dimension_numbers = #tpu.dot_dimension_numbers<[1], [0], [0], [1], [0, 0, 1, 1], [], []>} : vector<1x256xbf16>, vector<256x512xbf16>, vector<1x512xf32> -> vector<1x512xf32>
    %300 = arith.addf %292, %299 : vector<1x512xf32>
    %c8_284 = arith.constant 8 : index
    %c0_285 = arith.constant 0 : index
    %c0_286 = arith.constant 0 : index
    %301 = vector.load %arg5[%c8_284, %c0_285, %c0_286] : memref<9x1x4xbf16, #tpu.memory_space<vmem>>, vector<1x1x4xbf16>
    %302 = vector.shape_cast %301 : vector<1x1x4xbf16> to vector<1x4xbf16>
    %cst_287 = arith.constant dense<0.000000e+00> : vector<1x256xf32>
    %303 = tpu.matmul %302, %235, %cst_287 {dimension_numbers = #tpu.dot_dimension_numbers<[1], [0], [0], [1], [0, 0, 1, 1], [], []>} : vector<1x4xbf16>, vector<4x256xbf16>, vector<1x256xf32> -> vector<1x256xf32>
    %304 = arith.truncf %303 : vector<1x256xf32> to vector<1x256xbf16>
    %c8_288 = arith.constant 8 : index
    %c0_289 = arith.constant 0 : index
    %c0_290 = arith.constant 0 : index
    %305 = vector.load %arg9[%c8_288, %c0_289, %c0_290] : memref<9x256x512xbf16, #tpu.memory_space<vmem>>, vector<1x256x512xbf16>
    %306 = vector.shape_cast %305 : vector<1x256x512xbf16> to vector<256x512xbf16>
    %cst_291 = arith.constant dense<0.000000e+00> : vector<1x512xf32>
    %307 = tpu.matmul %304, %306, %cst_291 {dimension_numbers = #tpu.dot_dimension_numbers<[1], [0], [0], [1], [0, 0, 1, 1], [], []>} : vector<1x256xbf16>, vector<256x512xbf16>, vector<1x512xf32> -> vector<1x512xf32>
    %308 = arith.addf %300, %307 : vector<1x512xf32>
    %cst_292 = arith.constant 0.000000e+00 : f32
    %309 = vector.broadcast %cst_292 : f32 to vector<1x512xf32>
    %310 = arith.maximumf %308, %309 : vector<1x512xf32>
    %311 = arith.truncf %310 : vector<1x512xf32> to vector<1x512xbf16>
    %312 = arith.extf %311 : vector<1x512xbf16> to vector<1x512xf32>
    %cst_293 = arith.constant dense<0.000000e+00> : vector<512xf32>
    %313 = vector.multi_reduction <add>, %312, %cst_293 [0] : vector<1x512xf32> to vector<512xf32>
    %314 = vector.shape_cast %313 : vector<512xf32> to vector<1x512xf32>
    %cst_294 = arith.constant 1.000000e+00 : f32
    %315 = vector.broadcast %cst_294 : f32 to vector<1x512xf32>
    %316 = arith.divf %314, %315 : vector<1x512xf32>
    %317 = arith.truncf %316 : vector<1x512xf32> to vector<1x512xbf16>
    %c0_295 = arith.constant 0 : index
    %c0_296 = arith.constant 0 : index
    %318 = vector.load %arg14[%c0_295, %c0_296] : memref<512x256xbf16, #tpu.memory_space<vmem>>, vector<512x256xbf16>
    %cst_297 = arith.constant dense<0.000000e+00> : vector<1x256xf32>
    %319 = tpu.matmul %317, %318, %cst_297 {dimension_numbers = #tpu.dot_dimension_numbers<[1], [0], [0], [1], [0, 0, 1, 1], [], []>} : vector<1x512xbf16>, vector<512x256xbf16>, vector<1x256xf32> -> vector<1x256xf32>
    %c0_298 = arith.constant 0 : index
    %c0_299 = arith.constant 0 : index
    %320 = vector.load %arg15[%c0_298, %c0_299] : memref<1x256xf32, #tpu.memory_space<vmem>>, vector<1x256xf32>
    %321 = arith.addf %319, %320 : vector<1x256xf32>
    %322 = vector.shape_cast %321 : vector<1x256xf32> to vector<1x256xf32>
    %323 = vector.broadcast %322 : vector<1x256xf32> to vector<8x256xf32>
    %c0_300 = arith.constant 0 : index
    %c0_301 = arith.constant 0 : index
    %c0_302 = arith.constant 0 : index
    %324 = vector.load %arg16[%c0_300, %c0_301, %c0_302] : memref<1x8x256xf32, #tpu.memory_space<vmem>>, vector<1x8x256xf32>
    %325 = vector.shape_cast %324 : vector<1x8x256xf32> to vector<8x256xf32>
    %326 = vector.shape_cast %323 : vector<8x256xf32> to vector<1x8x256xf32>
    tpu.vector_store %arg16[%c0_300, %c0_301, %c0_302], %326 {strides = array<i32>} : memref<1x8x256xf32, #tpu.memory_space<vmem>>, vector<1x8x256xf32>,
    return
  }
  func.func @transform_0(%arg0: i32) -> (i32, i32, i32) {
    %c0_i32 = arith.constant 0 : i32
    %c0_i32_0 = arith.constant 0 : i32
    %c0_i32_1 = arith.constant 0 : i32
    return %arg0, %c0_i32, %c0_i32_0 : i32, i32, i32
  }
  func.func @transform_1(%arg0: i32) -> (i32, i32, i32) {
    %c0_i32 = arith.constant 0 : i32
    %c0_i32_0 = arith.constant 0 : i32
    %c0_i32_1 = arith.constant 0 : i32
    %c0_i32_2 = arith.constant 0 : i32
    return %c0_i32, %c0_i32_0, %c0_i32_1 : i32, i32, i32
  }
  func.func @transform_2(%arg0: i32) -> (i32, i32, i32) {
    %c0_i32 = arith.constant 0 : i32
    %c0_i32_0 = arith.constant 0 : i32
    %c0_i32_1 = arith.constant 0 : i32
    %c0_i32_2 = arith.constant 0 : i32
    return %c0_i32, %c0_i32_0, %c0_i32_1 : i32, i32, i32
  }
  func.func @transform_3(%arg0: i32) -> (i32, i32, i32) {
    %c0_i32 = arith.constant 0 : i32
    %c0_i32_0 = arith.constant 0 : i32
    %c0_i32_1 = arith.constant 0 : i32
    %c0_i32_2 = arith.constant 0 : i32
    return %c0_i32, %c0_i32_0, %c0_i32_1 : i32, i32, i32
  }
  func.func @transform_4(%arg0: i32) -> (i32, i32, i32) {
    %c0_i32 = arith.constant 0 : i32
    %c0_i32_0 = arith.constant 0 : i32
    %c0_i32_1 = arith.constant 0 : i32
    %c0_i32_2 = arith.constant 0 : i32
    return %c0_i32, %c0_i32_0, %c0_i32_1 : i32, i32, i32
  }
  func.func @transform_5(%arg0: i32) -> (i32, i32, i32) {
    %c0_i32 = arith.constant 0 : i32
    %c0_i32_0 = arith.constant 0 : i32
    %c0_i32_1 = arith.constant 0 : i32
    %c0_i32_2 = arith.constant 0 : i32
    return %c0_i32, %c0_i32_0, %c0_i32_1 : i32, i32, i32
  }
  func.func @transform_6(%arg0: i32) -> (i32, i32, i32) {
    %c0_i32 = arith.constant 0 : i32
    %c0_i32_0 = arith.constant 0 : i32
    %c0_i32_1 = arith.constant 0 : i32
    %c0_i32_2 = arith.constant 0 : i32
    return %c0_i32, %c0_i32_0, %c0_i32_1 : i32, i32, i32
  }
  func.func @transform_7(%arg0: i32) -> (i32, i32, i32) {
    %c0_i32 = arith.constant 0 : i32
    %c0_i32_0 = arith.constant 0 : i32
    %c0_i32_1 = arith.constant 0 : i32
    %c0_i32_2 = arith.constant 0 : i32
    return %c0_i32, %c0_i32_0, %c0_i32_1 : i32, i32, i32
  }
  func.func @transform_8(%arg0: i32) -> (i32, i32, i32) {
    %c0_i32 = arith.constant 0 : i32
    %c0_i32_0 = arith.constant 0 : i32
    %c0_i32_1 = arith.constant 0 : i32
    %c0_i32_2 = arith.constant 0 : i32
    return %c0_i32, %c0_i32_0, %c0_i32_1 : i32, i32, i32
  }
  func.func @transform_9(%arg0: i32) -> (i32, i32) {
    %c0_i32 = arith.constant 0 : i32
    %c0_i32_0 = arith.constant 0 : i32
    %c0_i32_1 = arith.constant 0 : i32
    return %c0_i32, %c0_i32_0 : i32, i32
  }
  func.func @transform_10(%arg0: i32) -> (i32, i32) {
    %c0_i32 = arith.constant 0 : i32
    %c0_i32_0 = arith.constant 0 : i32
    %c0_i32_1 = arith.constant 0 : i32
    return %c0_i32, %c0_i32_0 : i32, i32
  }
  func.func @transform_11(%arg0: i32) -> (i32, i32) {
    %c0_i32 = arith.constant 0 : i32
    %c0_i32_0 = arith.constant 0 : i32
    %c0_i32_1 = arith.constant 0 : i32
    return %c0_i32, %c0_i32_0 : i32, i32
  }
  func.func @transform_12(%arg0: i32) -> (i32, i32) {
    %c0_i32 = arith.constant 0 : i32
    %c0_i32_0 = arith.constant 0 : i32
    %c0_i32_1 = arith.constant 0 : i32
    return %c0_i32, %c0_i32_0 : i32, i32
  }
  func.func @transform_13(%arg0: i32) -> (i32, i32) {
    %c0_i32 = arith.constant 0 : i32
    %c0_i32_0 = arith.constant 0 : i32
    %c0_i32_1 = arith.constant 0 : i32
    return %c0_i32, %c0_i32_0 : i32, i32
  }
  func.func @transform_14(%arg0: i32) -> (i32, i32) {
    %c0_i32 = arith.constant 0 : i32
    %c0_i32_0 = arith.constant 0 : i32
    %c0_i32_1 = arith.constant 0 : i32
    return %c0_i32, %c0_i32_0 : i32, i32
  }
  func.func @transform_15(%arg0: i32) -> (i32, i32, i32) {
    %c0_i32 = arith.constant 0 : i32
    %c0_i32_0 = arith.constant 0 : i32
    %c0_i32_1 = arith.constant 0 : i32
    return %arg0, %c0_i32, %c0_i32_0 : i32, i32, i32
  }
}

</mosaic_0001>

<llo_original>
// kernel: forward.1
$region0: #{forward.1}
  #allocation0 [shape = 'u32[]', space=smem, size = 0x4, offset = 0x4, fixed_abs, tag = 'smem constant byte address 0x4 - core index']
  #allocation1 [shape = 'u32[144,128]{1,0:T(1,128)}', space=vmem, size = 0x12000, scoped, tag = 'internal scratch']
  %s0 = inlined_call_operand.vmem [shape: bf16[2,256,3], index: 0, kind: input, shape index: {}]
  %s1 = inlined_call_operand.vmem [shape: bf16[9,64,256], index: 1, kind: input, shape index: {}]
  %s2 = inlined_call_operand.vmem [shape: bf16[9,16,64], index: 2, kind: input, shape index: {}]
  %s3 = inlined_call_operand.vmem [shape: bf16[9,4,16], index: 3, kind: input, shape index: {}]
  %s4 = inlined_call_operand.vmem [shape: bf16[9,1,4], index: 4, kind: input, shape index: {}]
  %s5 = inlined_call_operand.vmem [shape: bf16[9,3,64], index: 5, kind: input, shape index: {}]
  %s6 = inlined_call_operand.vmem [shape: bf16[9,64,128], index: 6, kind: input, shape index: {}]
  %s7 = inlined_call_operand.vmem [shape: bf16[9,128,256], index: 7, kind: input, shape index: {}]
  %s8 = inlined_call_operand.vmem [shape: bf16[9,256,512], index: 8, kind: input, shape index: {}]
  %s9 = inlined_call_operand.vmem [shape: f32[1,64], index: 9, kind: input, shape index: {}]
  %s10 = inlined_call_operand.vmem [shape: f32[1,128], index: 10, kind: input, shape index: {}]
  %s11 = inlined_call_operand.vmem [shape: f32[1,256], index: 11, kind: input, shape index: {}]
  %s12 = inlined_call_operand.vmem [shape: f32[1,512], index: 12, kind: input, shape index: {}]
  %s13 = inlined_call_operand.vmem [shape: bf16[512,256], index: 13, kind: input, shape index: {}]
  %s14 = inlined_call_operand.vmem [shape: f32[1,256], index: 14, kind: input, shape index: {}]
  %s15 = inlined_call_operand.vmem [shape: f32[2,8,256], index: 15, kind: output, shape index: {}]
  %s16 = sld [smem:[#allocation0]]
  $region93: #{forward.1} parent=0
    _
  %s18 = ssub.s32 1, %s16
  %s19 = scalar_select 0, %s18, %s16
  loop: start=0, step=1, limit=4
  $region2: #{forward.1} parent=0 // loop_pre_header
    _
  $region3: #{forward.1} parent=0 // loop_header
    %s21 = sphi 0, %s25
    %p22 = scmp.ge.s32.totalorder %s21, 4
    %s31 = sphi 0, %s33
    %s34 = sphi 0, %s31
    %s35 = sphi 0, %s34
    %s51 = sphi 0, %s35
    %s55 = sphi 0, %s55
    %s57 = sphi 0, %s55
    %s58 = sphi 0, %s57
    %s72 = sphi 0, %s58
    %s76 = sphi 0, %s76
    %s78 = sphi 0, %s76
    %s79 = sphi 0, %s78
    %s93 = sphi 0, %s79
    %s97 = sphi 0, %s97
    %s99 = sphi 0, %s97
    %s100 = sphi 0, %s99
    %s114 = sphi 0, %s100
    %s118 = sphi 0, %s118
    %s120 = sphi 0, %s118
    %s121 = sphi 0, %s120
    %s135 = sphi 0, %s121
    %s139 = sphi 0, %s139
    %s141 = sphi 0, %s139
    %s142 = sphi 0, %s141
    %s156 = sphi 0, %s142
    %s160 = sphi 0, %s160
    %s162 = sphi 0, %s160
    %s163 = sphi 0, %s162
    %s177 = sphi 0, %s163
    %s181 = sphi 0, %s181
    %s183 = sphi 0, %s181
    %s184 = sphi 0, %s183
    %s198 = sphi 0, %s184
    %s202 = sphi 0, %s202
    %s204 = sphi 0, %s202
    %s205 = sphi 0, %s204
    %s219 = sphi 0, %s205
    %s223 = sphi 0, %s223
    %s225 = sphi 0, %s223
    %s226 = sphi 0, %s225
    %s240 = sphi 0, %s226
    %s244 = sphi 0, %s244
    %s246 = sphi 0, %s244
    %s247 = sphi 0, %s246
    %s261 = sphi 0, %s247
    %s265 = sphi 0, %s265
    %s267 = sphi 0, %s265
    %s268 = sphi 0, %s267
    %s282 = sphi 0, %s268
    %s286 = sphi 0, %s286
    %s288 = sphi 0, %s286
    %s289 = sphi 0, %s288
    %s303 = sphi 0, %s289
    %s307 = sphi 0, %s307
    %s309 = sphi 0, %s307
    %s310 = sphi 0, %s309
    %s324 = sphi 0, %s310
    %s328 = sphi 0, %s328
    %s330 = sphi 0, %s328
    %s331 = sphi 0, %s330
    %s345 = sphi 0, %s331
    %s351 = sphi 0, %s353
    %s354 = sphi 0, %s351
    %s355 = sphi 0, %s354
    %s371 = sphi 0, %s355
  $region4: #{forward.1} parent=0 // loop_header_branch
    %24 = sbr.rel (%p22) target = $region8
  $region5: #{forward.1} parent=0 // loop_body
    %s26 = ssub.s32 %s21, 1
    %s27 = ssub.s32 %s21, 2
    %s28 = sadd.s32 %s21, 1
    %s29 = ssub.s32 %s21, %s28
    %p30 = scmp.eq.s32.totalorder %s29, 0
    %s32 = sadd.s32 %s31, 1
    %s33 = scalar_select %p30, %s31, %s32
    %p36 = pneg %p30
    %p37 = scmp.eq.s32.totalorder %s21, 1
    %p38 = por %p36, %p37
    %p39 = scmp.ne.s32.totalorder %s31, %s34
    %p40 = scmp.eq.s32.totalorder %s21, 0
    %p41 = por %p39, %p40
    %p42 = scmp.ne.s32.totalorder %s31, %s34
    %p43 = scmp.eq.s32.totalorder %s26, 1
    %p44 = por %p42, %p43
    %p45 = scmp.ne.s32.totalorder %s34, %s35
    %p46 = scmp.eq.s32.totalorder %s26, 0
    %p47 = por %p45, %p46
    %p48 = scmp.ne.s32.totalorder %s34, %s35
    %p49 = scmp.eq.s32.totalorder %s27, 1
    %p50 = por %p48, %p49
    %p52 = scmp.ne.s32.totalorder %s35, %s51
    %p53 = scmp.eq.s32.totalorder %s27, 0
    %p54 = por %p52, %p53
    %s56 = sadd.s32 %s55, 1
    %p59 = scmp.eq.s32.totalorder %s21, 1
    %p60 = scmp.ne.s32.totalorder %s55, %s57
    %p61 = scmp.eq.s32.totalorder %s21, 0
    %p62 = por %p60, %p61
    %p63 = scmp.ne.s32.totalorder %s55, %s57
    %p64 = scmp.eq.s32.totalorder %s26, 1
    %p65 = por %p63, %p64
    %p66 = scmp.ne.s32.totalorder %s57, %s58
    %p67 = scmp.eq.s32.totalorder %s26, 0
    %p68 = por %p66, %p67
    %p69 = scmp.ne.s32.totalorder %s57, %s58
    %p70 = scmp.eq.s32.totalorder %s27, 1
    %p71 = por %p69, %p70
    %p73 = scmp.ne.s32.totalorder %s58, %s72
    %p74 = scmp.eq.s32.totalorder %s27, 0
    %p75 = por %p73, %p74
    %s77 = sadd.s32 %s76, 1
    %p80 = scmp.eq.s32.totalorder %s21, 1
    %p81 = scmp.ne.s32.totalorder %s76, %s78
    %p82 = scmp.eq.s32.totalorder %s21, 0
    %p83 = por %p81, %p82
    %p84 = scmp.ne.s32.totalorder %s76, %s78
    %p85 = scmp.eq.s32.totalorder %s26, 1
    %p86 = por %p84, %p85
    %p87 = scmp.ne.s32.totalorder %s78, %s79
    %p88 = scmp.eq.s32.totalorder %s26, 0
    %p89 = por %p87, %p88
    %p90 = scmp.ne.s32.totalorder %s78, %s79
    %p91 = scmp.eq.s32.totalorder %s27, 1
    %p92 = por %p90, %p91
    %p94 = scmp.ne.s32.totalorder %s79, %s93
    %p95 = scmp.eq.s32.totalorder %s27, 0
    %p96 = por %p94, %p95
    %s98 = sadd.s32 %s97, 1
    %p101 = scmp.eq.s32.totalorder %s21, 1
    %p102 = scmp.ne.s32.totalorder %s97, %s99
    %p103 = scmp.eq.s32.totalorder %s21, 0
    %p104 = por %p102, %p103
    %p105 = scmp.ne.s32.totalorder %s97, %s99
    %p106 = scmp.eq.s32.totalorder %s26, 1
    %p107 = por %p105, %p106
    %p108 = scmp.ne.s32.totalorder %s99, %s100
    %p109 = scmp.eq.s32.totalorder %s26, 0
    %p110 = por %p108, %p109
    %p111 = scmp.ne.s32.totalorder %s99, %s100
    %p112 = scmp.eq.s32.totalorder %s27, 1
    %p113 = por %p111, %p112
    %p115 = scmp.ne.s32.totalorder %s100, %s114
    %p116 = scmp.eq.s32.totalorder %s27, 0
    %p117 = por %p115, %p116
    %s119 = sadd.s32 %s118, 1
    %p122 = scmp.eq.s32.totalorder %s21, 1
    %p123 = scmp.ne.s32.totalorder %s118, %s120
    %p124 = scmp.eq.s32.totalorder %s21, 0
    %p125 = por %p123, %p124
    %p126 = scmp.ne.s32.totalorder %s118, %s120
    %p127 = scmp.eq.s32.totalorder %s26, 1
    %p128 = por %p126, %p127
    %p129 = scmp.ne.s32.totalorder %s120, %s121
    %p130 = scmp.eq.s32.totalorder %s26, 0
    %p131 = por %p129, %p130
    %p132 = scmp.ne.s32.totalorder %s120, %s121
    %p133 = scmp.eq.s32.totalorder %s27, 1
    %p134 = por %p132, %p133
    %p136 = scmp.ne.s32.totalorder %s121, %s135
    %p137 = scmp.eq.s32.totalorder %s27, 0
    %p138 = por %p136, %p137
    %s140 = sadd.s32 %s139, 1
    %p143 = scmp.eq.s32.totalorder %s21, 1
    %p144 = scmp.ne.s32.totalorder %s139, %s141
    %p145 = scmp.eq.s32.totalorder %s21, 0
    %p146 = por %p144, %p145
    %p147 = scmp.ne.s32.totalorder %s139, %s141
    %p148 = scmp.eq.s32.totalorder %s26, 1
    %p149 = por %p147, %p148
    %p150 = scmp.ne.s32.totalorder %s141, %s142
    %p151 = scmp.eq.s32.totalorder %s26, 0
    %p152 = por %p150, %p151
    %p153 = scmp.ne.s32.totalorder %s141, %s142
    %p154 = scmp.eq.s32.totalorder %s27, 1
    %p155 = por %p153, %p154
    %p157 = scmp.ne.s32.totalorder %s142, %s156
    %p158 = scmp.eq.s32.totalorder %s27, 0
    %p159 = por %p157, %p158
    %s161 = sadd.s32 %s160, 1
    %p164 = scmp.eq.s32.totalorder %s21, 1
    %p165 = scmp.ne.s32.totalorder %s160, %s162
    %p166 = scmp.eq.s32.totalorder %s21, 0
    %p167 = por %p165, %p166
    %p168 = scmp.ne.s32.totalorder %s160, %s162
    %p169 = scmp.eq.s32.totalorder %s26, 1
    %p170 = por %p168, %p169
    %p171 = scmp.ne.s32.totalorder %s162, %s163
    %p172 = scmp.eq.s32.totalorder %s26, 0
    %p173 = por %p171, %p172
    %p174 = scmp.ne.s32.totalorder %s162, %s163
    %p175 = scmp.eq.s32.totalorder %s27, 1
    %p176 = por %p174, %p175
    %p178 = scmp.ne.s32.totalorder %s163, %s177
    %p179 = scmp.eq.s32.totalorder %s27, 0
    %p180 = por %p178, %p179
    %s182 = sadd.s32 %s181, 1
    %p185 = scmp.eq.s32.totalorder %s21, 1
    %p186 = scmp.ne.s32.totalorder %s181, %s183
    %p187 = scmp.eq.s32.totalorder %s21, 0
    %p188 = por %p186, %p187
    %p189 = scmp.ne.s32.totalorder %s181, %s183
    %p190 = scmp.eq.s32.totalorder %s26, 1
    %p191 = por %p189, %p190
    %p192 = scmp.ne.s32.totalorder %s183, %s184
    %p193 = scmp.eq.s32.totalorder %s26, 0
    %p194 = por %p192, %p193
    %p195 = scmp.ne.s32.totalorder %s183, %s184
    %p196 = scmp.eq.s32.totalorder %s27, 1
    %p197 = por %p195, %p196
    %p199 = scmp.ne.s32.totalorder %s184, %s198
    %p200 = scmp.eq.s32.totalorder %s27, 0
    %p201 = por %p199, %p200
    %s203 = sadd.s32 %s202, 1
    %p206 = scmp.eq.s32.totalorder %s21, 1
    %p207 = scmp.ne.s32.totalorder %s202, %s204
    %p208 = scmp.eq.s32.totalorder %s21, 0
    %p209 = por %p207, %p208
    %p210 = scmp.ne.s32.totalorder %s202, %s204
    %p211 = scmp.eq.s32.totalorder %s26, 1
    %p212 = por %p210, %p211
    %p213 = scmp.ne.s32.totalorder %s204, %s205
    %p214 = scmp.eq.s32.totalorder %s26, 0
    %p215 = por %p213, %p214
    %p216 = scmp.ne.s32.totalorder %s204, %s205
    %p217 = scmp.eq.s32.totalorder %s27, 1
    %p218 = por %p216, %p217
    %p220 = scmp.ne.s32.totalorder %s205, %s219
    %p221 = scmp.eq.s32.totalorder %s27, 0
    %p222 = por %p220, %p221
    %s224 = sadd.s32 %s223, 1
    %p227 = scmp.eq.s32.totalorder %s21, 1
    %p228 = scmp.ne.s32.totalorder %s223, %s225
    %p229 = scmp.eq.s32.totalorder %s21, 0
    %p230 = por %p228, %p229
    %p231 = scmp.ne.s32.totalorder %s223, %s225
    %p232 = scmp.eq.s32.totalorder %s26, 1
    %p233 = por %p231, %p232
    %p234 = scmp.ne.s32.totalorder %s225, %s226
    %p235 = scmp.eq.s32.totalorder %s26, 0
    %p236 = por %p234, %p235
    %p237 = scmp.ne.s32.totalorder %s225, %s226
    %p238 = scmp.eq.s32.totalorder %s27, 1
    %p239 = por %p237, %p238
    %p241 = scmp.ne.s32.totalorder %s226, %s240
    %p242 = scmp.eq.s32.totalorder %s27, 0
    %p243 = por %p241, %p242
    %s245 = sadd.s32 %s244, 1
    %p248 = scmp.eq.s32.totalorder %s21, 1
    %p249 = scmp.ne.s32.totalorder %s244, %s246
    %p250 = scmp.eq.s32.totalorder %s21, 0
    %p251 = por %p249, %p250
    %p252 = scmp.ne.s32.totalorder %s244, %s246
    %p253 = scmp.eq.s32.totalorder %s26, 1
    %p254 = por %p252, %p253
    %p255 = scmp.ne.s32.totalorder %s246, %s247
    %p256 = scmp.eq.s32.totalorder %s26, 0
    %p257 = por %p255, %p256
    %p258 = scmp.ne.s32.totalorder %s246, %s247
    %p259 = scmp.eq.s32.totalorder %s27, 1
    %p260 = por %p258, %p259
    %p262 = scmp.ne.s32.totalorder %s247, %s261
    %p263 = scmp.eq.s32.totalorder %s27, 0
    %p264 = por %p262, %p263
    %s266 = sadd.s32 %s265, 1
    %p269 = scmp.eq.s32.totalorder %s21, 1
    %p270 = scmp.ne.s32.totalorder %s265, %s267
    %p271 = scmp.eq.s32.totalorder %s21, 0
    %p272 = por %p270, %p271
    %p273 = scmp.ne.s32.totalorder %s265, %s267
    %p274 = scmp.eq.s32.totalorder %s26, 1
    %p275 = por %p273, %p274
    %p276 = scmp.ne.s32.totalorder %s267, %s268
    %p277 = scmp.eq.s32.totalorder %s26, 0
    %p278 = por %p276, %p277
    %p279 = scmp.ne.s32.totalorder %s267, %s268
    %p280 = scmp.eq.s32.totalorder %s27, 1
    %p281 = por %p279, %p280
    %p283 = scmp.ne.s32.totalorder %s268, %s282
    %p284 = scmp.eq.s32.totalorder %s27, 0
    %p285 = por %p283, %p284
    %s287 = sadd.s32 %s286, 1
    %p290 = scmp.eq.s32.totalorder %s21, 1
    %p291 = scmp.ne.s32.totalorder %s286, %s288
    %p292 = scmp.eq.s32.totalorder %s21, 0
    %p293 = por %p291, %p292
    %p294 = scmp.ne.s32.totalorder %s286, %s288
    %p295 = scmp.eq.s32.totalorder %s26, 1
    %p296 = por %p294, %p295
    %p297 = scmp.ne.s32.totalorder %s288, %s289
    %p298 = scmp.eq.s32.totalorder %s26, 0
    %p299 = por %p297, %p298
    %p300 = scmp.ne.s32.totalorder %s288, %s289
    %p301 = scmp.eq.s32.totalorder %s27, 1
    %p302 = por %p300, %p301
    %p304 = scmp.ne.s32.totalorder %s289, %s303
    %p305 = scmp.eq.s32.totalorder %s27, 0
    %p306 = por %p304, %p305
    %s308 = sadd.s32 %s307, 1
    %p311 = scmp.eq.s32.totalorder %s21, 1
    %p312 = scmp.ne.s32.totalorder %s307, %s309
    %p313 = scmp.eq.s32.totalorder %s21, 0
    %p314 = por %p312, %p313
    %p315 = scmp.ne.s32.totalorder %s307, %s309
    %p316 = scmp.eq.s32.totalorder %s26, 1
    %p317 = por %p315, %p316
    %p318 = scmp.ne.s32.totalorder %s309, %s310
    %p319 = scmp.eq.s32.totalorder %s26, 0
    %p320 = por %p318, %p319
    %p321 = scmp.ne.s32.totalorder %s309, %s310
    %p322 = scmp.eq.s32.totalorder %s27, 1
    %p323 = por %p321, %p322
    %p325 = scmp.ne.s32.totalorder %s310, %s324
    %p326 = scmp.eq.s32.totalorder %s27, 0
    %p327 = por %p325, %p326
    %s329 = sadd.s32 %s328, 1
    %p332 = scmp.eq.s32.totalorder %s21, 1
    %p333 = scmp.ne.s32.totalorder %s328, %s330
    %p334 = scmp.eq.s32.totalorder %s21, 0
    %p335 = por %p333, %p334
    %p336 = scmp.ne.s32.totalorder %s328, %s330
    %p337 = scmp.eq.s32.totalorder %s26, 1
    %p338 = por %p336, %p337
    %p339 = scmp.ne.s32.totalorder %s330, %s331
    %p340 = scmp.eq.s32.totalorder %s26, 0
    %p341 = por %p339, %p340
    %p342 = scmp.ne.s32.totalorder %s330, %s331
    %p343 = scmp.eq.s32.totalorder %s27, 1
    %p344 = por %p342, %p343
    %p346 = scmp.ne.s32.totalorder %s331, %s345
    %p347 = scmp.eq.s32.totalorder %s27, 0
    %p348 = por %p346, %p347
    %s349 = ssub.s32 %s21, %s28
    %p350 = scmp.eq.s32.totalorder %s349, 0
    %s352 = sadd.s32 %s351, 1
    %s353 = scalar_select %p350, %s351, %s352
    %p356 = pneg %p350
    %p357 = scmp.eq.s32.totalorder %s21, 1
    %p358 = por %p356, %p357
    %p359 = scmp.ne.s32.totalorder %s351, %s354
    %p360 = scmp.eq.s32.totalorder %s21, 0
    %p361 = por %p359, %p360
    %p362 = scmp.ne.s32.totalorder %s351, %s354
    %p363 = scmp.eq.s32.totalorder %s26, 1
    %p364 = por %p362, %p363
    %p365 = scmp.ne.s32.totalorder %s354, %s355
    %p366 = scmp.eq.s32.totalorder %s26, 0
    %p367 = por %p365, %p366
    %p368 = scmp.ne.s32.totalorder %s354, %s355
    %p369 = scmp.eq.s32.totalorder %s27, 1
    %p370 = por %p368, %p369
    %p372 = scmp.ne.s32.totalorder %s355, %s371
    %p373 = scmp.eq.s32.totalorder %s27, 0
    %p374 = por %p372, %p373
    %p375 = scmp.le.s32.totalorder 1, %s21
    %p376 = scmp.lt.s32.totalorder %s21, 3
    %p377 = pnand %p375, %p376
    %p378 = pneg %p377
    // Predicated region
    $region9: #{forward.1} parent=5 // pred_check
      _
    $region10: #{forward.1} parent=5 // pred_check_branch
      %380 = sbr.rel (%p377) target = $region12
    $region11: #{forward.1} parent=5 // pred_region
      %s381 = ssub.s32 %s21, 1
      // Predicated region
      $region13: #{forward.1} parent=11 // pred_check
        %p382 = pneg %p68
      $region14: #{forward.1} parent=11 // pred_check_branch
        %384 = sbr.rel (%p382) target = $region16
      $region15: #{forward.1} parent=11 // pred_region
        _
      $region16: #{forward.1} parent=11 // pred_fallthru
        _
      // Predicated region
      $region17: #{forward.1} parent=11 // pred_check
        %p385 = pneg %p89
      $region18: #{forward.1} parent=11 // pred_check_branch
        %387 = sbr.rel (%p385) target = $region20
      $region19: #{forward.1} parent=11 // pred_region
        _
      $region20: #{forward.1} parent=11 // pred_fallthru
        _
      // Predicated region
      $region21: #{forward.1} parent=11 // pred_check
        %p388 = pneg %p110
      $region22: #{forward.1} parent=11 // pred_check_branch
        %390 = sbr.rel (%p388) target = $region24
      $region23: #{forward.1} parent=11 // pred_region
        _
      $region24: #{forward.1} parent=11 // pred_fallthru
        _
      // Predicated region
      $region25: #{forward.1} parent=11 // pred_check
        %p391 = pneg %p131
      $region26: #{forward.1} parent=11 // pred_check_branch
        %393 = sbr.rel (%p391) target = $region28
      $region27: #{forward.1} parent=11 // pred_region
        _
      $region28: #{forward.1} parent=11 // pred_fallthru
        _
      // Predicated region
      $region29: #{forward.1} parent=11 // pred_check
        %p394 = pneg %p152
      $region30: #{forward.1} parent=11 // pred_check_branch
        %396 = sbr.rel (%p394) target = $region32
      $region31: #{forward.1} parent=11 // pred_region
        _
      $region32: #{forward.1} parent=11 // pred_fallthru
        _
      // Predicated region
      $region33: #{forward.1} parent=11 // pred_check
        %p397 = pneg %p173
      $region34: #{forward.1} parent=11 // pred_check_branch
        %399 = sbr.rel (%p397) target = $region36
      $region35: #{forward.1} parent=11 // pred_region
        _
      $region36: #{forward.1} parent=11 // pred_fallthru
        _
      // Predicated region
      $region37: #{forward.1} parent=11 // pred_check
        %p400 = pneg %p194
      $region38: #{forward.1} parent=11 // pred_check_branch
        %402 = sbr.rel (%p400) target = $region40
      $region39: #{forward.1} parent=11 // pred_region
        _
      $region40: #{forward.1} parent=11 // pred_fallthru
        _
      // Predicated region
      $region41: #{forward.1} parent=11 // pred_check
        %p403 = pneg %p215
      $region42: #{forward.1} parent=11 // pred_check_branch
        %405 = sbr.rel (%p403) target = $region44
      $region43: #{forward.1} parent=11 // pred_region
        _
      $region44: #{forward.1} parent=11 // pred_fallthru
        _
      // Predicated region
      $region45: #{forward.1} parent=11 // pred_check
        %p406 = pneg %p236
      $region46: #{forward.1} parent=11 // pred_check_branch
        %408 = sbr.rel (%p406) target = $region48
      $region47: #{forward.1} parent=11 // pred_region
        _
      $region48: #{forward.1} parent=11 // pred_fallthru
        _
      // Predicated region
      $region49: #{forward.1} parent=11 // pred_check
        %p409 = pneg %p257
      $region50: #{forward.1} parent=11 // pred_check_branch
        %411 = sbr.rel (%p409) target = $region52
      $region51: #{forward.1} parent=11 // pred_region
        _
      $region52: #{forward.1} parent=11 // pred_fallthru
        _
      // Predicated region
      $region53: #{forward.1} parent=11 // pred_check
        %p412 = pneg %p278
      $region54: #{forward.1} parent=11 // pred_check_branch
        %414 = sbr.rel (%p412) target = $region56
      $region55: #{forward.1} parent=11 // pred_region
        _
      $region56: #{forward.1} parent=11 // pred_fallthru
        _
      // Predicated region
      $region57: #{forward.1} parent=11 // pred_check
        %p415 = pneg %p299
      $region58: #{forward.1} parent=11 // pred_check_branch
        %417 = sbr.rel (%p415) target = $region60
      $region59: #{forward.1} parent=11 // pred_region
        _
      $region60: #{forward.1} parent=11 // pred_fallthru
        _
      // Predicated region
      $region61: #{forward.1} parent=11 // pred_check
        %p418 = pneg %p320
      $region62: #{forward.1} parent=11 // pred_check_branch
        %420 = sbr.rel (%p418) target = $region64
      $region63: #{forward.1} parent=11 // pred_region
        _
      $region64: #{forward.1} parent=11 // pred_fallthru
        _
      // Predicated region
      $region65: #{forward.1} parent=11 // pred_check
        %p421 = pneg %p341
      $region66: #{forward.1} parent=11 // pred_check_branch
        %423 = sbr.rel (%p421) target = $region68
      $region67: #{forward.1} parent=11 // pred_region
        _
      $region68: #{forward.1} parent=11 // pred_fallthru
        _
    $region12: #{forward.1} parent=5 // pred_fallthru
      _
    %p424 = scmp.lt.s32.totalorder %s21, 2
    // Predicated region
    $region69: #{forward.1} parent=5 // pred_check
      %p425 = pneg %p424
    $region70: #{forward.1} parent=5 // pred_check_branch
      %427 = sbr.rel (%p425) target = $region72
    $region71: #{forward.1} parent=5 // pred_region
      // Predicated region
      $region73: #{forward.1} parent=71 // pred_check
        %p428 = pneg %p41
      $region74: #{forward.1} parent=71 // pred_check_branch
        %430 = sbr.rel (%p428) target = $region76
      $region75: #{forward.1} parent=71 // pred_region
        %p431 = scmp.lt.s32.totalorder %s21, 1
        %s432 = scalar_select %p431, %s21, 1
        %s433 = smul.addr %s432, 32
        %s434 = smul.addr %s433, 4
        %s435 = scalar_lea.vmem %s0, %s434
      $region76: #{forward.1} parent=71 // pred_fallthru
        _
    $region72: #{forward.1} parent=5 // pred_fallthru
      _
    %p436 = scmp.le.s32.totalorder 1, %s21
    %p437 = scmp.lt.s32.totalorder %s21, 3
    %p438 = pnand %p436, %p437
    %p439 = pneg %p438
    // Predicated region
    $region77: #{forward.1} parent=5 // pred_check
      _
    $region78: #{forward.1} parent=5 // pred_check_branch
      %441 = sbr.rel (%p438) target = $region80
    $region79: #{forward.1} parent=5 // pred_region
      %s442 = ssub.s32 %s21, 1
      %p443 = scmp.lt.s32.totalorder %s26, 1
      %s444 = scalar_select %p443, %s26, 1
      %s445 = smul.addr %s444, 32
      %s446 = smul.addr %s445, 4
      %s447 = scalar_lea.vmem %s0, %s446
      %p448 = pneg %p47
      %p449 = pneg %p44
      %p450 = pneg %p68
      %p451 = pneg %p65
      %p452 = pneg %p89
      %p453 = pneg %p86
      %p454 = pneg %p110
      %p455 = pneg %p107
      %p456 = pneg %p131
      %p457 = pneg %p128
      %p458 = pneg %p152
      %p459 = pneg %p149
      %p460 = pneg %p173
      %p461 = pneg %p170
      %p462 = pneg %p194
      %p463 = pneg %p191
      %p464 = pneg %p215
      %p465 = pneg %p212
      %p466 = pneg %p236
      %p467 = pneg %p233
      %p468 = pneg %p257
      %p469 = pneg %p254
      %p470 = pneg %p278
      %p471 = pneg %p275
      %p472 = pneg %p299
      %p473 = pneg %p296
      %p474 = pneg %p320
      %p475 = pneg %p317
      %p476 = pneg %p341
      %p477 = pneg %p338
      %p478 = pneg %p367
      %p479 = pneg %p364
      %p480 = scmp.lt.s32.totalorder %s26, 1
      %s481 = scalar_select %p480, %s26, 1
      %s482 = smul.addr %s481, 2
      %s483 = smul.addr %s482, 8
      %s484 = scalar_lea.vmem %s15, %s483
      %p485 = scmp.lt.s32.totalorder %s26, 1
      %s486 = scalar_select %p485, %s26, 1
      %s487 = smul.addr %s486, 32
      %s488 = smul.addr %s487, 4
      %s489 = scalar_lea.vmem %s0, %s488
      %p490 = scmp.lt.s32.totalorder %s26, 1
      %s491 = scalar_select %p490, %s26, 1
      %s492 = smul.addr %s491, 2
      %s493 = smul.addr %s492, 8
      %s494 = scalar_lea.vmem %s15, %s493
      %v496 = vld [vmem:[%s489] sm:$0xf]
      %v497 = vld [vmem:[%s489 + $0x4] sm:$0xf]
      %v498 = vld [vmem:[%s489 + $0x8] sm:$0xf]
      %v499 = vld [vmem:[%s489 + $0xc] sm:$0xf]
      %v500 = vld [vmem:[%s489 + $0x10] sm:$0xf]
      %v501 = vld [vmem:[%s489 + $0x14] sm:$0xf]
      %v502 = vld [vmem:[%s489 + $0x18] sm:$0xf]
      %v503 = vld [vmem:[%s489 + $0x1c] sm:$0xf]
      %v504 = vld [vmem:[%s489 + $0x20] sm:$0xf]
      %v505 = vld [vmem:[%s489 + $0x24] sm:$0xf]
      %v506 = vld [vmem:[%s489 + $0x28] sm:$0xf]
      %v507 = vld [vmem:[%s489 + $0x2c] sm:$0xf]
      %v508 = vld [vmem:[%s489 + $0x30] sm:$0xf]
      %v509 = vld [vmem:[%s489 + $0x34] sm:$0xf]
      %v510 = vld [vmem:[%s489 + $0x38] sm:$0xf]
      %v511 = vld [vmem:[%s489 + $0x3c] sm:$0xf]
      %v512 = vld [vmem:[%s489 + $0x40] sm:$0xf]
      %v513 = vld [vmem:[%s489 + $0x44] sm:$0xf]
      %v514 = vld [vmem:[%s489 + $0x48] sm:$0xf]
      %v515 = vld [vmem:[%s489 + $0x4c] sm:$0xf]
      %v516 = vld [vmem:[%s489 + $0x50] sm:$0xf]
      %v517 = vld [vmem:[%s489 + $0x54] sm:$0xf]
      %v518 = vld [vmem:[%s489 + $0x58] sm:$0xf]
      %v519 = vld [vmem:[%s489 + $0x5c] sm:$0xf]
      %v520 = vld [vmem:[%s489 + $0x60] sm:$0xf]
      %v521 = vld [vmem:[%s489 + $0x64] sm:$0xf]
      %v522 = vld [vmem:[%s489 + $0x68] sm:$0xf]
      %v523 = vld [vmem:[%s489 + $0x6c] sm:$0xf]
      %v524 = vld [vmem:[%s489 + $0x70] sm:$0xf]
      %v525 = vld [vmem:[%s489 + $0x74] sm:$0xf]
      %v526 = vld [vmem:[%s489 + $0x78] sm:$0xf]
      %v527 = vld [vmem:[%s489 + $0x7c] sm:$0xf]
      %v528 = vld [vmem:[%s9] sm:$0x1]
      %v530 = vlaneseq
      %v531 = vshrl.u32 %v530, 7
      %v532 = vsub.s32 0, %v531
      %v533 = vrot.slane %v528, %v532
      %v535 = vld [vmem:[%s1] sm:$0xff]
      %v536 = vld [vmem:[%s1 + $0x8] sm:$0xff]
      %v537 = vld [vmem:[%s1 + $0x10] sm:$0xff]
      %v538 = vld [vmem:[%s1 + $0x18] sm:$0xff]
      %v539 = vld [vmem:[%s1 + $0x20] sm:$0xff]
      %v540 = vld [vmem:[%s1 + $0x28] sm:$0xff]
      %v541 = vld [vmem:[%s1 + $0x30] sm:$0xff]
      %v542 = vld [vmem:[%s1 + $0x38] sm:$0xff]
      %v551 = vunpack.c.l.b16 %v535
      %v552 = vunpack.c.h.b16 %v535
      %v553 = vunpack.c.l.b16 %v536
      %v554 = vunpack.c.h.b16 %v536
      %v555 = vunpack.c.l.b16 %v537
      %v556 = vunpack.c.h.b16 %v537
      %v557 = vunpack.c.l.b16 %v538
      %v558 = vunpack.c.h.b16 %v538
      %v559 = vunpack.c.l.b16 %v539
      %v560 = vunpack.c.h.b16 %v539
      %v561 = vunpack.c.l.b16 %v540
      %v562 = vunpack.c.h.b16 %v540
      %v563 = vunpack.c.l.b16 %v541
      %v564 = vunpack.c.h.b16 %v541
      %v565 = vunpack.c.l.b16 %v542
      %v566 = vunpack.c.h.b16 %v542
      %v567 = vpack.c.b16 %v553, %v551
      %v568 = vpack.c.b16 %v554, %v552
      %v569 = vpack.c.b16 %v557, %v555
      %v570 = vpack.c.b16 %v558, %v556
      %v571 = vpack.c.b16 %v561, %v559
      %v572 = vpack.c.b16 %v562, %v560
      %v573 = vpack.c.b16 %v565, %v563
      %v574 = vpack.c.b16 %v566, %v564
      %v615 = vunpack.c.l.b16 %v496
      %v616 = vunpack.c.l.b16 %v497
      %v617 = vunpack.c.l.b16 %v498
      %v618 = vunpack.c.l.b16 %v499
      %v619 = vunpack.c.l.b16 %v500
      %v620 = vunpack.c.l.b16 %v501
      %v621 = vunpack.c.l.b16 %v502
      %v622 = vunpack.c.l.b16 %v503
      %v623 = vunpack.c.l.b16 %v504
      %v624 = vunpack.c.l.b16 %v505
      %v625 = vunpack.c.l.b16 %v506
      %v626 = vunpack.c.l.b16 %v507
      %v627 = vunpack.c.l.b16 %v508
      %v628 = vunpack.c.l.b16 %v509
      %v629 = vunpack.c.l.b16 %v510
      %v630 = vunpack.c.l.b16 %v511
      %v631 = vunpack.c.l.b16 %v512
      %v632 = vunpack.c.l.b16 %v513
      %v633 = vunpack.c.l.b16 %v514
      %v634 = vunpack.c.l.b16 %v515
      %v635 = vunpack.c.l.b16 %v516
      %v636 = vunpack.c.l.b16 %v517
      %v637 = vunpack.c.l.b16 %v518
      %v638 = vunpack.c.l.b16 %v519
      %v639 = vunpack.c.l.b16 %v520
      %v640 = vunpack.c.l.b16 %v521
      %v641 = vunpack.c.l.b16 %v522
      %v642 = vunpack.c.l.b16 %v523
      %v643 = vunpack.c.l.b16 %v524
      %v644 = vunpack.c.l.b16 %v525
      %v645 = vunpack.c.l.b16 %v526
      %v646 = vunpack.c.l.b16 %v527
      %v647 = vpack.c.b16 %v616, %v615
      %v648 = vpack.c.b16 %v618, %v617
      %v649 = vpack.c.b16 %v620, %v619
      %v650 = vpack.c.b16 %v622, %v621
      %v651 = vpack.c.b16 %v624, %v623
      %v652 = vpack.c.b16 %v626, %v625
      %v653 = vpack.c.b16 %v628, %v627
      %v654 = vpack.c.b16 %v630, %v629
      %v655 = vpack.c.b16 %v632, %v631
      %v656 = vpack.c.b16 %v634, %v633
      %v657 = vpack.c.b16 %v636, %v635
      %v658 = vpack.c.b16 %v638, %v637
      %v659 = vpack.c.b16 %v640, %v639
      %v660 = vpack.c.b16 %v642, %v641
      %v661 = vpack.c.b16 %v644, %v643
      %v662 = vpack.c.b16 %v646, %v645
      %679 = vmatprep.subr.bf16.mxu0 0
      %680 = vmatpush1.bf16.msra.mxu0 %v647
      %681 = vmatprep.subr.bf16.mxu0 0
      %682 = vmatpush1.bf16.msra.mxu0 %v648
      %683 = vmatprep.subr.bf16.mxu0 0
      %684 = vmatpush1.bf16.msra.mxu0 %v649
      %685 = vmatprep.subr.bf16.mxu0 0
      %686 = vmatpush1.bf16.msra.mxu0 %v650
      %687 = vmatprep.subr.bf16.mxu0 0
      %688 = vmatpush1.bf16.msra.mxu0 %v651
      %689 = vmatprep.subr.bf16.mxu0 0
      %690 = vmatpush1.bf16.msra.mxu0 %v652
      %691 = vmatprep.subr.bf16.mxu0 0
      %692 = vmatpush1.bf16.msra.mxu0 %v653
      %693 = vmatprep.subr.bf16.mxu0 0
      %694 = vmatpush1.bf16.msra.mxu0 %v654
      %695 = vmatprep.subr.bf16.mxu0 0
      %696 = vmatpush1.bf16.msra.mxu0 %v655
      %697 = vmatprep.subr.bf16.mxu0 0
      %698 = vmatpush1.bf16.msra.mxu0 %v656
      %699 = vmatprep.subr.bf16.mxu0 0
      %700 = vmatpush1.bf16.msra.mxu0 %v657
      %701 = vmatprep.subr.bf16.mxu0 0
      %702 = vmatpush1.bf16.msra.mxu0 %v658
      %703 = vmatprep.subr.bf16.mxu0 0
      %704 = vmatpush1.bf16.msra.mxu0 %v659
      %705 = vmatprep.subr.bf16.mxu0 0
      %706 = vmatpush1.bf16.msra.mxu0 %v660
      %707 = vmatprep.subr.bf16.mxu0 0
      %708 = vmatpush1.bf16.msra.mxu0 %v661
      %709 = vmatprep.subr.bf16.mxu0 0
      %710 = vmatpush1.bf16.msra.mxu0 %v662
      %711 = vmatprep.mubr.bf16.mxu0 %v568
      %712 = vmatmul.mubr.bf16.gmra.mrb[0].mxu0 %v567
      %v713 = vpop.f32.mrb[0].mxu0
      %v714 = vadd.f32 0.0, %v713
      %v715 = vpop.f32.mrb[0].mxu0
      %v716 = vpop.f32.mrb[0].mxu0
      %v717 = vadd.f32 0.0, %v716
      %v718 = vpop.f32.mrb[0].mxu0
      %719 = vmatprep.mubr.bf16.mxu0 %v570
      %720 = vmatmul.mubr.bf16.gmra.mrb[0].mxu0 %v569
      %v721 = vpop.f32.mrb[0].mxu0
      %v722 = vadd.f32 0.0, %v721
      %v723 = vpop.f32.mrb[0].mxu0
      %v724 = vpop.f32.mrb[0].mxu0
      %v725 = vadd.f32 0.0, %v724
      %v726 = vpop.f32.mrb[0].mxu0
      %727 = vmatprep.mubr.bf16.mxu0 %v572
      %728 = vmatmul.mubr.bf16.gmra.mrb[0].mxu0 %v571
      %v729 = vpop.f32.mrb[0].mxu0
      %v730 = vadd.f32 0.0, %v729
      %v731 = vpop.f32.mrb[0].mxu0
      %v732 = vpop.f32.mrb[0].mxu0
      %v733 = vadd.f32 0.0, %v732
      %v734 = vpop.f32.mrb[0].mxu0
      %735 = vmatprep.mubr.bf16.mxu0 %v574
      %736 = vmatmul.mubr.bf16.gmra.mrb[0].mxu0 %v573
      %v737 = vpop.f32.mrb[0].mxu0
      %v738 = vadd.f32 0.0, %v737
      %v739 = vpop.f32.mrb[0].mxu0
      %v740 = vpop.f32.mrb[0].mxu0
      %v741 = vadd.f32 0.0, %v740
      %v742 = vpop.f32.mrb[0].mxu0
      %743 = vdwg.mxu0
      %v744 = vpack.c.bf16 %v717, %v714
      %v745 = vpack.c.bf16 %v725, %v722
      %v746 = vpack.c.bf16 %v733, %v730
      %v747 = vpack.c.bf16 %v741, %v738
      %v748 = vld [vmem:[%s5] sm:$0x3]
      %vm749 = vcmask 23552
      %v751 = vsel %vm749, %v744, 0
      %v754 = vsel %vm749, %v745, 0
      %v757 = vsel %vm749, %v746, 0
      %v760 = vsel %vm749, %v747, 0
      %vm762 = vcmask 1040384
      %vm763 = vcmask 1041408
      %v764 = vsel %vm762, 4294967295, 65535
      %v765 = vsel %vm763, %v764, 0
      %v767 = vand.u32 %v748, %v765
      %769 = vmatprep.subr.bf16.mxu0 0
      %770 = vmatpush1.bf16.msra.mxu0 %v767
      %771 = vmatprep.subr.bf16.mxu0 0
      %772 = vmatpush1.bf16.msra.mxu0 0
      %773 = vmatprep.subr.bf16.mxu0 0
      %774 = vmatpush1.bf16.msra.mxu0 0
      %775 = vmatprep.subr.bf16.mxu0 0
      %776 = vmatpush1.bf16.msra.mxu0 0
      %777 = vmatprep.subr.bf16.mxu0 0
      %778 = vmatpush1.bf16.msra.mxu0 0
      %779 = vmatprep.subr.bf16.mxu0 0
      %780 = vmatpush1.bf16.msra.mxu0 0
      %781 = vmatprep.subr.bf16.mxu0 0
      %782 = vmatpush1.bf16.msra.mxu0 0
      %783 = vmatprep.subr.bf16.mxu0 0
      %784 = vmatpush1.bf16.msra.mxu0 0
      %785 = vmatprep.subr.bf16.mxu0 0
      %786 = vmatpush1.bf16.msra.mxu0 0
      %787 = vmatprep.subr.bf16.mxu0 0
      %788 = vmatpush1.bf16.msra.mxu0 0
      %789 = vmatprep.subr.bf16.mxu0 0
      %790 = vmatpush1.bf16.msra.mxu0 0
      %791 = vmatprep.subr.bf16.mxu0 0
      %792 = vmatpush1.bf16.msra.mxu0 0
      %793 = vmatprep.subr.bf16.mxu0 0
      %794 = vmatpush1.bf16.msra.mxu0 0
      %795 = vmatprep.subr.bf16.mxu0 0
      %796 = vmatpush1.bf16.msra.mxu0 0
      %797 = vmatprep.subr.bf16.mxu0 0
      %798 = vmatpush1.bf16.msra.mxu0 0
      %799 = vmatprep.subr.bf16.mxu0 0
      %800 = vmatpush1.bf16.msra.mxu0 0
      %801 = vmatprep.mubr.bf16.mxu0 0
      %802 = vmatmul.mubr.bf16.gmra.mrb[0].mxu0 %v751
      %v803 = vpop.f32.mrb[0].mxu0
      %v804 = vadd.f32 0.0, %v803
      %v805 = vpop.f32.mrb[0].mxu0
      %v806 = vpop.f32.mrb[0].mxu0
      %v807 = vadd.f32 0.0, %v806
      %v808 = vpop.f32.mrb[0].mxu0
      %809 = vmatprep.mubr.bf16.mxu0 0
      %810 = vmatmul.mubr.bf16.gmra.mrb[0].mxu0 %v754
      %v811 = vpop.f32.mrb[0].mxu0
      %v812 = vadd.f32 0.0, %v811
      %v813 = vpop.f32.mrb[0].mxu0
      %v814 = vpop.f32.mrb[0].mxu0
      %v815 = vadd.f32 0.0, %v814
      %v816 = vpop.f32.mrb[0].mxu0
      %817 = vmatprep.mubr.bf16.mxu0 0
      %818 = vmatmul.mubr.bf16.gmra.mrb[0].mxu0 %v757
      %v819 = vpop.f32.mrb[0].mxu0
      %v820 = vadd.f32 0.0, %v819
      %v821 = vpop.f32.mrb[0].mxu0
      %v822 = vpop.f32.mrb[0].mxu0
      %v823 = vadd.f32 0.0, %v822
      %v824 = vpop.f32.mrb[0].mxu0
      %825 = vmatprep.mubr.bf16.mxu0 0
      %826 = vmatmul.mubr.bf16.gmra.mrb[0].mxu0 %v760
      %v827 = vpop.f32.mrb[0].mxu0
      %v828 = vadd.f32 0.0, %v827
      %v829 = vpop.f32.mrb[0].mxu0
      %v830 = vpop.f32.mrb[0].mxu0
      %v831 = vadd.f32 0.0, %v830
      %v832 = vpop.f32.mrb[0].mxu0
      %833 = vdwg.mxu0
      %v834 = vadd.f32 %v533, %v804
      %v835 = vadd.f32 %v533, %v807
      %v836 = vadd.f32 %v533, %v812
      %v837 = vadd.f32 %v533, %v815
      %v838 = vadd.f32 %v533, %v820
      %v839 = vadd.f32 %v533, %v823
      %v840 = vadd.f32 %v533, %v828
      %v841 = vadd.f32 %v533, %v831
      %s842 = scalar_lea.vmem %s1, 64
      %v843 = vld [vmem:[%s842] sm:$0xff]
      %v844 = vld [vmem:[%s842 + $0x8] sm:$0xff]
      %v845 = vld [vmem:[%s842 + $0x10] sm:$0xff]
      %v846 = vld [vmem:[%s842 + $0x18] sm:$0xff]
      %v847 = vld [vmem:[%s842 + $0x20] sm:$0xff]
      %v848 = vld [vmem:[%s842 + $0x28] sm:$0xff]
      %v849 = vld [vmem:[%s842 + $0x30] sm:$0xff]
      %v850 = vld [vmem:[%s842 + $0x38] sm:$0xff]
      %v859 = vunpack.c.l.b16 %v843
      %v860 = vunpack.c.h.b16 %v843
      %v861 = vunpack.c.l.b16 %v844
      %v862 = vunpack.c.h.b16 %v844
      %v863 = vunpack.c.l.b16 %v845
      %v864 = vunpack.c.h.b16 %v845
      %v865 = vunpack.c.l.b16 %v846
      %v866 = vunpack.c.h.b16 %v846
      %v867 = vunpack.c.l.b16 %v847
      %v868 = vunpack.c.h.b16 %v847
      %v869 = vunpack.c.l.b16 %v848
      %v870 = vunpack.c.h.b16 %v848
      %v871 = vunpack.c.l.b16 %v849
      %v872 = vunpack.c.h.b16 %v849
      %v873 = vunpack.c.l.b16 %v850
      %v874 = vunpack.c.h.b16 %v850
      %v875 = vpack.c.b16 %v861, %v859
      %v876 = vpack.c.b16 %v862, %v860
      %v877 = vpack.c.b16 %v865, %v863
      %v878 = vpack.c.b16 %v866, %v864
      %v879 = vpack.c.b16 %v869, %v867
      %v880 = vpack.c.b16 %v870, %v868
      %v881 = vpack.c.b16 %v873, %v871
      %v882 = vpack.c.b16 %v874, %v872
      %891 = vmatprep.subr.bf16.mxu0 0
      %892 = vmatpush1.bf16.msra.mxu0 %v647
      %893 = vmatprep.subr.bf16.mxu0 0
      %894 = vmatpush1.bf16.msra.mxu0 %v648
      %895 = vmatprep.subr.bf16.mxu0 0
      %896 = vmatpush1.bf16.msra.mxu0 %v649
      %897 = vmatprep.subr.bf16.mxu0 0
      %898 = vmatpush1.bf16.msra.mxu0 %v650
      %899 = vmatprep.subr.bf16.mxu0 0
      %900 = vmatpush1.bf16.msra.mxu0 %v651
      %901 = vmatprep.subr.bf16.mxu0 0
      %902 = vmatpush1.bf16.msra.mxu0 %v652
      %903 = vmatprep.subr.bf16.mxu0 0
      %904 = vmatpush1.bf16.msra.mxu0 %v653
      %905 = vmatprep.subr.bf16.mxu0 0
      %906 = vmatpush1.bf16.msra.mxu0 %v654
      %907 = vmatprep.subr.bf16.mxu0 0
      %908 = vmatpush1.bf16.msra.mxu0 %v655
      %909 = vmatprep.subr.bf16.mxu0 0
      %910 = vmatpush1.bf16.msra.mxu0 %v656
      %911 = vmatprep.subr.bf16.mxu0 0
      %912 = vmatpush1.bf16.msra.mxu0 %v657
      %913 = vmatprep.subr.bf16.mxu0 0
      %914 = vmatpush1.bf16.msra.mxu0 %v658
      %915 = vmatprep.subr.bf16.mxu0 0
      %916 = vmatpush1.bf16.msra.mxu0 %v659
      %917 = vmatprep.subr.bf16.mxu0 0
      %918 = vmatpush1.bf16.msra.mxu0 %v660
      %919 = vmatprep.subr.bf16.mxu0 0
      %920 = vmatpush1.bf16.msra.mxu0 %v661
      %921 = vmatprep.subr.bf16.mxu0 0
      %922 = vmatpush1.bf16.msra.mxu0 %v662
      %923 = vmatprep.mubr.bf16.mxu0 %v876
      %924 = vmatmul.mubr.bf16.gmra.mrb[0].mxu0 %v875
      %v925 = vpop.f32.mrb[0].mxu0
      %v926 = vadd.f32 0.0, %v925
      %v927 = vpop.f32.mrb[0].mxu0
      %v928 = vpop.f32.mrb[0].mxu0
      %v929 = vadd.f32 0.0, %v928
      %v930 = vpop.f32.mrb[0].mxu0
      %931 = vmatprep.mubr.bf16.mxu0 %v878
      %932 = vmatmul.mubr.bf16.gmra.mrb[0].mxu0 %v877
      %v933 = vpop.f32.mrb[0].mxu0
      %v934 = vadd.f32 0.0, %v933
      %v935 = vpop.f32.mrb[0].mxu0
      %v936 = vpop.f32.mrb[0].mxu0
      %v937 = vadd.f32 0.0, %v936
      %v938 = vpop.f32.mrb[0].mxu0
      %939 = vmatprep.mubr.bf16.mxu0 %v880
      %940 = vmatmul.mubr.bf16.gmra.mrb[0].mxu0 %v879
      %v941 = vpop.f32.mrb[0].mxu0
      %v942 = vadd.f32 0.0, %v941
      %v943 = vpop.f32.mrb[0].mxu0
      %v944 = vpop.f32.mrb[0].mxu0
      %v945 = vadd.f32 0.0, %v944
      %v946 = vpop.f32.mrb[0].mxu0
      %947 = vmatprep.mubr.bf16.mxu0 %v882
      %948 = vmatmul.mubr.bf16.gmra.mrb[0].mxu0 %v881
      %v949 = vpop.f32.mrb[0].mxu0
      %v950 = vadd.f32 0.0, %v949
      %v951 = vpop.f32.mrb[0].mxu0
      %v952 = vpop.f32.mrb[0].mxu0
      %v953 = vadd.f32 0.0, %v952
      %v954 = vpop.f32.mrb[0].mxu0
      %955 = vdwg.mxu0
      %v956 = vpack.c.bf16 %v929, %v926
      %v957 = vpack.c.bf16 %v937, %v934
      %v958 = vpack.c.bf16 %v945, %v942
      %v959 = vpack.c.bf16 %v953, %v950
      %s960 = scalar_lea.vmem %s5, 2
      %v961 = vld [vmem:[%s960] sm:$0x3]
      %v963 = vsel %vm749, %v956, 0
      %v966 = vsel %vm749, %v957, 0
      %v969 = vsel %vm749, %v958, 0
      %v972 = vsel %vm749, %v959, 0
      %v975 = vand.u32 %v961, %v765
      %977 = vmatprep.subr.bf16.mxu0 0
      %978 = vmatpush1.bf16.msra.mxu0 %v975
      %979 = vmatprep.subr.bf16.mxu0 0
      %980 = vmatpush1.bf16.msra.mxu0 0
      %981 = vmatprep.subr.bf16.mxu0 0
      %982 = vmatpush1.bf16.msra.mxu0 0
      %983 = vmatprep.subr.bf16.mxu0 0
      %984 = vmatpush1.bf16.msra.mxu0 0
      %985 = vmatprep.subr.bf16.mxu0 0
      %986 = vmatpush1.bf16.msra.mxu0 0
      %987 = vmatprep.subr.bf16.mxu0 0
      %988 = vmatpush1.bf16.msra.mxu0 0
      %989 = vmatprep.subr.bf16.mxu0 0
      %990 = vmatpush1.bf16.msra.mxu0 0
      %991 = vmatprep.subr.bf16.mxu0 0
      %992 = vmatpush1.bf16.msra.mxu0 0
      %993 = vmatprep.subr.bf16.mxu0 0
      %994 = vmatpush1.bf16.msra.mxu0 0
      %995 = vmatprep.subr.bf16.mxu0 0
      %996 = vmatpush1.bf16.msra.mxu0 0
      %997 = vmatprep.subr.bf16.mxu0 0
      %998 = vmatpush1.bf16.msra.mxu0 0
      %999 = vmatprep.subr.bf16.mxu0 0
      %1000 = vmatpush1.bf16.msra.mxu0 0
      %1001 = vmatprep.subr.bf16.mxu0 0
      %1002 = vmatpush1.bf16.msra.mxu0 0
      %1003 = vmatprep.subr.bf16.mxu0 0
      %1004 = vmatpush1.bf16.msra.mxu0 0
      %1005 = vmatprep.subr.bf16.mxu0 0
      %1006 = vmatpush1.bf16.msra.mxu0 0
      %1007 = vmatprep.subr.bf16.mxu0 0
      %1008 = vmatpush1.bf16.msra.mxu0 0
      %1009 = vmatprep.mubr.bf16.mxu0 0
      %1010 = vmatmul.mubr.bf16.gmra.mrb[0].mxu0 %v963
      %v1011 = vpop.f32.mrb[0].mxu0
      %v1012 = vadd.f32 0.0, %v1011
      %v1013 = vpop.f32.mrb[0].mxu0
      %v1014 = vpop.f32.mrb[0].mxu0
      %v1015 = vadd.f32 0.0, %v1014
      %v1016 = vpop.f32.mrb[0].mxu0
      %1017 = vmatprep.mubr.bf16.mxu0 0
      %1018 = vmatmul.mubr.bf16.gmra.mrb[0].mxu0 %v966
      %v1019 = vpop.f32.mrb[0].mxu0
      %v1020 = vadd.f32 0.0, %v1019
      %v1021 = vpop.f32.mrb[0].mxu0
      %v1022 = vpop.f32.mrb[0].mxu0
      %v1023 = vadd.f32 0.0, %v1022
      %v1024 = vpop.f32.mrb[0].mxu0
      %1025 = vmatprep.mubr.bf16.mxu0 0
      %1026 = vmatmul.mubr.bf16.gmra.mrb[0].mxu0 %v969
      %v1027 = vpop.f32.mrb[0].mxu0
      %v1028 = vadd.f32 0.0, %v1027
      %v1029 = vpop.f32.mrb[0].mxu0
      %v1030 = vpop.f32.mrb[0].mxu0
      %v1031 = vadd.f32 0.0, %v1030
      %v1032 = vpop.f32.mrb[0].mxu0
      %1033 = vmatprep.mubr.bf16.mxu0 0
      %1034 = vmatmul.mubr.bf16.gmra.mrb[0].mxu0 %v972
      %v1035 = vpop.f32.mrb[0].mxu0
      %v1036 = vadd.f32 0.0, %v1035
      %v1037 = vpop.f32.mrb[0].mxu0
      %v1038 = vpop.f32.mrb[0].mxu0
      %v1039 = vadd.f32 0.0, %v1038
      %v1040 = vpop.f32.mrb[0].mxu0
      %1041 = vdwg.mxu0
      %v1042 = vadd.f32 %v834, %v1012
      %v1043 = vadd.f32 %v835, %v1015
      %v1044 = vadd.f32 %v836, %v1020
      %v1045 = vadd.f32 %v837, %v1023
      %v1046 = vadd.f32 %v838, %v1028
      %v1047 = vadd.f32 %v839, %v1031
      %v1048 = vadd.f32 %v840, %v1036
      %v1049 = vadd.f32 %v841, %v1039
      %s1050 = scalar_lea.vmem %s1, 128
      %v1051 = vld [vmem:[%s1050] sm:$0xff]
      %v1052 = vld [vmem:[%s1050 + $0x8] sm:$0xff]
      %v1053 = vld [vmem:[%s1050 + $0x10] sm:$0xff]
      %v1054 = vld [vmem:[%s1050 + $0x18] sm:$0xff]
      %v1055 = vld [vmem:[%s1050 + $0x20] sm:$0xff]
      %v1056 = vld [vmem:[%s1050 + $0x28] sm:$0xff]
      %v1057 = vld [vmem:[%s1050 + $0x30] sm:$0xff]
      %v1058 = vld [vmem:[%s1050 + $0x38] sm:$0xff]
      %v1067 = vunpack.c.l.b16 %v1051
      %v1068 = vunpack.c.h.b16 %v1051
      %v1069 = vunpack.c.l.b16 %v1052
      %v1070 = vunpack.c.h.b16 %v1052
      %v1071 = vunpack.c.l.b16 %v1053
      %v1072 = vunpack.c.h.b16 %v1053
      %v1073 = vunpack.c.l.b16 %v1054
      %v1074 = vunpack.c.h.b16 %v1054
      %v1075 = vunpack.c.l.b16 %v1055
      %v1076 = vunpack.c.h.b16 %v1055
      %v1077 = vunpack.c.l.b16 %v1056
      %v1078 = vunpack.c.h.b16 %v1056
      %v1079 = vunpack.c.l.b16 %v1057
      %v1080 = vunpack.c.h.b16 %v1057
      %v1081 = vunpack.c.l.b16 %v1058
      %v1082 = vunpack.c.h.b16 %v1058
      %v1083 = vpack.c.b16 %v1069, %v1067
      %v1084 = vpack.c.b16 %v1070, %v1068
      %v1085 = vpack.c.b16 %v1073, %v1071
      %v1086 = vpack.c.b16 %v1074, %v1072
      %v1087 = vpack.c.b16 %v1077, %v1075
      %v1088 = vpack.c.b16 %v1078, %v1076
      %v1089 = vpack.c.b16 %v1081, %v1079
      %v1090 = vpack.c.b16 %v1082, %v1080
      %1099 = vmatprep.subr.bf16.mxu0 0
      %1100 = vmatpush1.bf16.msra.mxu0 %v647
      %1101 = vmatprep.subr.bf16.mxu0 0
      %1102 = vmatpush1.bf16.msra.mxu0 %v648
      %1103 = vmatprep.subr.bf16.mxu0 0
      %1104 = vmatpush1.bf16.msra.mxu0 %v649
      %1105 = vmatprep.subr.bf16.mxu0 0
      %1106 = vmatpush1.bf16.msra.mxu0 %v650
      %1107 = vmatprep.subr.bf16.mxu0 0
      %1108 = vmatpush1.bf16.msra.mxu0 %v651
      %1109 = vmatprep.subr.bf16.mxu0 0
      %1110 = vmatpush1.bf16.msra.mxu0 %v652
      %1111 = vmatprep.subr.bf16.mxu0 0
      %1112 = vmatpush1.bf16.msra.mxu0 %v653
      %1113 = vmatprep.subr.bf16.mxu0 0
      %1114 = vmatpush1.bf16.msra.mxu0 %v654
      %1115 = vmatprep.subr.bf16.mxu0 0
      %1116 = vmatpush1.bf16.msra.mxu0 %v655
      %1117 = vmatprep.subr.bf16.mxu0 0
      %1118 = vmatpush1.bf16.msra.mxu0 %v656
      %1119 = vmatprep.subr.bf16.mxu0 0
      %1120 = vmatpush1.bf16.msra.mxu0 %v657
      %1121 = vmatprep.subr.bf16.mxu0 0
      %1122 = vmatpush1.bf16.msra.mxu0 %v658
      %1123 = vmatprep.subr.bf16.mxu0 0
      %1124 = vmatpush1.bf16.msra.mxu0 %v659
      %1125 = vmatprep.subr.bf16.mxu0 0
      %1126 = vmatpush1.bf16.msra.mxu0 %v660
      %1127 = vmatprep.subr.bf16.mxu0 0
      %1128 = vmatpush1.bf16.msra.mxu0 %v661
      %1129 = vmatprep.subr.bf16.mxu0 0
      %1130 = vmatpush1.bf16.msra.mxu0 %v662
      %1131 = vmatprep.mubr.bf16.mxu0 %v1084
      %1132 = vmatmul.mubr.bf16.gmra.mrb[0].mxu0 %v1083
      %v1133 = vpop.f32.mrb[0].mxu0
      %v1134 = vadd.f32 0.0, %v1133
      %v1135 = vpop.f32.mrb[0].mxu0
      %v1136 = vpop.f32.mrb[0].mxu0
      %v1137 = vadd.f32 0.0, %v1136
      %v1138 = vpop.f32.mrb[0].mxu0
      %1139 = vmatprep.mubr.bf16.mxu0 %v1086
      %1140 = vmatmul.mubr.bf16.gmra.mrb[0].mxu0 %v1085
      %v1141 = vpop.f32.mrb[0].mxu0
      %v1142 = vadd.f32 0.0, %v1141
      %v1143 = vpop.f32.mrb[0].mxu0
      %v1144 = vpop.f32.mrb[0].mxu0
      %v1145 = vadd.f32 0.0, %v1144
      %v1146 = vpop.f32.mrb[0].mxu0
      %1147 = vmatprep.mubr.bf16.mxu0 %v1088
      %1148 = vmatmul.mubr.bf16.gmra.mrb[0].mxu0 %v1087
      %v1149 = vpop.f32.mrb[0].mxu0
      %v1150 = vadd.f32 0.0, %v1149
      %v1151 = vpop.f32.mrb[0].mxu0
      %v1152 = vpop.f32.mrb[0].mxu0
      %v1153 = vadd.f32 0.0, %v1152
      %v1154 = vpop.f32.mrb[0].mxu0
      %1155 = vmatprep.mubr.bf16.mxu0 %v1090
      %1156 = vmatmul.mubr.bf16.gmra.mrb[0].mxu0 %v1089
      %v1157 = vpop.f32.mrb[0].mxu0
      %v1158 = vadd.f32 0.0, %v1157
      %v1159 = vpop.f32.mrb[0].mxu0
      %v1160 = vpop.f32.mrb[0].mxu0
      %v1161 = vadd.f32 0.0, %v1160
      %v1162 = vpop.f32.mrb[0].mxu0
      %1163 = vdwg.mxu0
      %v1164 = vpack.c.bf16 %v1137, %v1134
      %v1165 = vpack.c.bf16 %v1145, %v1142
      %v1166 = vpack.c.bf16 %v1153, %v1150
      %v1167 = vpack.c.bf16 %v1161, %v1158
      %s1168 = scalar_lea.vmem %s5, 4
      %v1169 = vld [vmem:[%s1168] sm:$0x3]
      %v1171 = vsel %vm749, %v1164, 0
      %v1174 = vsel %vm749, %v1165, 0
      %v1177 = vsel %vm749, %v1166, 0
      %v1180 = vsel %vm749, %v1167, 0
      %v1183 = vand.u32 %v1169, %v765
      %1185 = vmatprep.subr.bf16.mxu0 0
      %1186 = vmatpush1.bf16.msra.mxu0 %v1183
      %1187 = vmatprep.subr.bf16.mxu0 0
      %1188 = vmatpush1.bf16.msra.mxu0 0
      %1189 = vmatprep.subr.bf16.mxu0 0
      %1190 = vmatpush1.bf16.msra.mxu0 0
      %1191 = vmatprep.subr.bf16.mxu0 0
      %1192 = vmatpush1.bf16.msra.mxu0 0
      %1193 = vmatprep.subr.bf16.mxu0 0
      %1194 = vmatpush1.bf16.msra.mxu0 0
      %1195 = vmatprep.subr.bf16.mxu0 0
      %1196 = vmatpush1.bf16.msra.mxu0 0
      %1197 = vmatprep.subr.bf16.mxu0 0
      %1198 = vmatpush1.bf16.msra.mxu0 0
      %1199 = vmatprep.subr.bf16.mxu0 0
      %1200 = vmatpush1.bf16.msra.mxu0 0
      %1201 = vmatprep.subr.bf16.mxu0 0
      %1202 = vmatpush1.bf16.msra.mxu0 0
      %1203 = vmatprep.subr.bf16.mxu0 0
      %1204 = vmatpush1.bf16.msra.mxu0 0
      %1205 = vmatprep.subr.bf16.mxu0 0
      %1206 = vmatpush1.bf16.msra.mxu0 0
      %1207 = vmatprep.subr.bf16.mxu0 0
      %1208 = vmatpush1.bf16.msra.mxu0 0
      %1209 = vmatprep.subr.bf16.mxu0 0
      %1210 = vmatpush1.bf16.msra.mxu0 0
      %1211 = vmatprep.subr.bf16.mxu0 0
      %1212 = vmatpush1.bf16.msra.mxu0 0
      %1213 = vmatprep.subr.bf16.mxu0 0
      %1214 = vmatpush1.bf16.msra.mxu0 0
      %1215 = vmatprep.subr.bf16.mxu0 0
      %1216 = vmatpush1.bf16.msra.mxu0 0
      %1217 = vmatprep.mubr.bf16.mxu0 0
      %1218 = vmatmul.mubr.bf16.gmra.mrb[0].mxu0 %v1171
      %v1219 = vpop.f32.mrb[0].mxu0
      %v1220 = vadd.f32 0.0, %v1219
      %v1221 = vpop.f32.mrb[0].mxu0
      %v1222 = vpop.f32.mrb[0].mxu0
      %v1223 = vadd.f32 0.0, %v1222
      %v1224 = vpop.f32.mrb[0].mxu0
      %1225 = vmatprep.mubr.bf16.mxu0 0
      %1226 = vmatmul.mubr.bf16.gmra.mrb[0].mxu0 %v1174
      %v1227 = vpop.f32.mrb[0].mxu0
      %v1228 = vadd.f32 0.0, %v1227
      %v1229 = vpop.f32.mrb[0].mxu0
      %v1230 = vpop.f32.mrb[0].mxu0
      %v1231 = vadd.f32 0.0, %v1230
      %v1232 = vpop.f32.mrb[0].mxu0
      %1233 = vmatprep.mubr.bf16.mxu0 0
      %1234 = vmatmul.mubr.bf16.gmra.mrb[0].mxu0 %v1177
      %v1235 = vpop.f32.mrb[0].mxu0
      %v1236 = vadd.f32 0.0, %v1235
      %v1237 = vpop.f32.mrb[0].mxu0
      %v1238 = vpop.f32.mrb[0].mxu0
      %v1239 = vadd.f32 0.0, %v1238
      %v1240 = vpop.f32.mrb[0].mxu0
      %1241 = vmatprep.mubr.bf16.mxu0 0
      %1242 = vmatmul.mubr.bf16.gmra.mrb[0].mxu0 %v1180
      %v1243 = vpop.f32.mrb[0].mxu0
      %v1244 = vadd.f32 0.0, %v1243
      %v1245 = vpop.f32.mrb[0].mxu0
      %v1246 = vpop.f32.mrb[0].mxu0
      %v1247 = vadd.f32 0.0, %v1246
      %v1248 = vpop.f32.mrb[0].mxu0
      %1249 = vdwg.mxu0
      %v1250 = vadd.f32 %v1042, %v1220
      %v1251 = vadd.f32 %v1043, %v1223
      %v1252 = vadd.f32 %v1044, %v1228
      %v1253 = vadd.f32 %v1045, %v1231
      %v1254 = vadd.f32 %v1046, %v1236
      %v1255 = vadd.f32 %v1047, %v1239
      %v1256 = vadd.f32 %v1048, %v1244
      %v1257 = vadd.f32 %v1049, %v1247
      %s1258 = scalar_lea.vmem %s1, 192
      %v1259 = vld [vmem:[%s1258] sm:$0xff]
      %v1260 = vld [vmem:[%s1258 + $0x8] sm:$0xff]
      %v1261 = vld [vmem:[%s1258 + $0x10] sm:$0xff]
      %v1262 = vld [vmem:[%s1258 + $0x18] sm:$0xff]
      %v1263 = vld [vmem:[%s1258 + $0x20] sm:$0xff]
      %v1264 = vld [vmem:[%s1258 + $0x28] sm:$0xff]
      %v1265 = vld [vmem:[%s1258 + $0x30] sm:$0xff]
      %v1266 = vld [vmem:[%s1258 + $0x38] sm:$0xff]
      %v1275 = vunpack.c.l.b16 %v1259
      %v1276 = vunpack.c.h.b16 %v1259
      %v1277 = vunpack.c.l.b16 %v1260
      %v1278 = vunpack.c.h.b16 %v1260
      %v1279 = vunpack.c.l.b16 %v1261
      %v1280 = vunpack.c.h.b16 %v1261
      %v1281 = vunpack.c.l.b16 %v1262
      %v1282 = vunpack.c.h.b16 %v1262
      %v1283 = vunpack.c.l.b16 %v1263
      %v1284 = vunpack.c.h.b16 %v1263
      %v1285 = vunpack.c.l.b16 %v1264
      %v1286 = vunpack.c.h.b16 %v1264
      %v1287 = vunpack.c.l.b16 %v1265
      %v1288 = vunpack.c.h.b16 %v1265
      %v1289 = vunpack.c.l.b16 %v1266
      %v1290 = vunpack.c.h.b16 %v1266
      %v1291 = vpack.c.b16 %v1277, %v1275
      %v1292 = vpack.c.b16 %v1278, %v1276
      %v1293 = vpack.c.b16 %v1281, %v1279
      %v1294 = vpack.c.b16 %v1282, %v1280
      %v1295 = vpack.c.b16 %v1285, %v1283
      %v1296 = vpack.c.b16 %v1286, %v1284
      %v1297 = vpack.c.b16 %v1289, %v1287
      %v1298 = vpack.c.b16 %v1290, %v1288
      %1307 = vmatprep.subr.bf16.mxu0 0
      %1308 = vmatpush1.bf16.msra.mxu0 %v647
      %1309 = vmatprep.subr.bf16.mxu0 0
      %1310 = vmatpush1.bf16.msra.mxu0 %v648
      %1311 = vmatprep.subr.bf16.mxu0 0
      %1312 = vmatpush1.bf16.msra.mxu0 %v649
      %1313 = vmatprep.subr.bf16.mxu0 0
      %1314 = vmatpush1.bf16.msra.mxu0 %v650
      %1315 = vmatprep.subr.bf16.mxu0 0
      %1316 = vmatpush1.bf16.msra.mxu0 %v651
      %1317 = vmatprep.subr.bf16.mxu0 0
      %1318 = vmatpush1.bf16.msra.mxu0 %v652
      %1319 = vmatprep.subr.bf16.mxu0 0
      %1320 = vmatpush1.bf16.msra.mxu0 %v653
      %1321 = vmatprep.subr.bf16.mxu0 0
      %1322 = vmatpush1.bf16.msra.mxu0 %v654
      %1323 = vmatprep.subr.bf16.mxu0 0
      %1324 = vmatpush1.bf16.msra.mxu0 %v655
      %1325 = vmatprep.subr.bf16.mxu0 0
      %1326 = vmatpush1.bf16.msra.mxu0 %v656
      %1327 = vmatprep.subr.bf16.mxu0 0
      %1328 = vmatpush1.bf16.msra.mxu0 %v657
      %1329 = vmatprep.subr.bf16.mxu0 0
      %1330 = vmatpush1.bf16.msra.mxu0 %v658
      %1331 = vmatprep.subr.bf16.mxu0 0
      %1332 = vmatpush1.bf16.msra.mxu0 %v659
      %1333 = vmatprep.subr.bf16.mxu0 0
      %1334 = vmatpush1.bf16.msra.mxu0 %v660
      %1335 = vmatprep.subr.bf16.mxu0 0
      %1336 = vmatpush1.bf16.msra.mxu0 %v661
      %1337 = vmatprep.subr.bf16.mxu0 0
      %1338 = vmatpush1.bf16.msra.mxu0 %v662
      %1339 = vmatprep.mubr.bf16.mxu0 %v1292
      %1340 = vmatmul.mubr.bf16.gmra.mrb[0].mxu0 %v1291
      %v1341 = vpop.f32.mrb[0].mxu0
      %v1342 = vadd.f32 0.0, %v1341
      %v1343 = vpop.f32.mrb[0].mxu0
      %v1344 = vpop.f32.mrb[0].mxu0
      %v1345 = vadd.f32 0.0, %v1344
      %v1346 = vpop.f32.mrb[0].mxu0
      %1347 = vmatprep.mubr.bf16.mxu0 %v1294
      %1348 = vmatmul.mubr.bf16.gmra.mrb[0].mxu0 %v1293
      %v1349 = vpop.f32.mrb[0].mxu0
      %v1350 = vadd.f32 0.0, %v1349
      %v1351 = vpop.f32.mrb[0].mxu0
      %v1352 = vpop.f32.mrb[0].mxu0
      %v1353 = vadd.f32 0.0, %v1352
      %v1354 = vpop.f32.mrb[0].mxu0
      %1355 = vmatprep.mubr.bf16.mxu0 %v1296
      %1356 = vmatmul.mubr.bf16.gmra.mrb[0].mxu0 %v1295
      %v1357 = vpop.f32.mrb[0].mxu0
      %v1358 = vadd.f32 0.0, %v1357
      %v1359 = vpop.f32.mrb[0].mxu0
      %v1360 = vpop.f32.mrb[0].mxu0
      %v1361 = vadd.f32 0.0, %v1360
      %v1362 = vpop.f32.mrb[0].mxu0
      %1363 = vmatprep.mubr.bf16.mxu0 %v1298
      %1364 = vmatmul.mubr.bf16.gmra.mrb[0].mxu0 %v1297
      %v1365 = vpop.f32.mrb[0].mxu0
      %v1366 = vadd.f32 0.0, %v1365
      %v1367 = vpop.f32.mrb[0].mxu0
      %v1368 = vpop.f32.mrb[0].mxu0
      %v1369 = vadd.f32 0.0, %v1368
      %v1370 = vpop.f32.mrb[0].mxu0
      %1371 = vdwg.mxu0
      %v1372 = vpack.c.bf16 %v1345, %v1342
      %v1373 = vpack.c.bf16 %v1353, %v1350
      %v1374 = vpack.c.bf16 %v1361, %v1358
      %v1375 = vpack.c.bf16 %v1369, %v1366
      %s1376 = scalar_lea.vmem %s5, 6
      %v1377 = vld [vmem:[%s1376] sm:$0x3]
      %v1379 = vsel %vm749, %v1372, 0
      %v1382 = vsel %vm749, %v1373, 0
      %v1385 = vsel %vm749, %v1374, 0
      %v1388 = vsel %vm749, %v1375, 0
      %v1391 = vand.u32 %v1377, %v765
      %1393 = vmatprep.subr.bf16.mxu0 0
      %1394 = vmatpush1.bf16.msra.mxu0 %v1391
      %1395 = vmatprep.subr.bf16.mxu0 0
      %1396 = vmatpush1.bf16.msra.mxu0 0
      %1397 = vmatprep.subr.bf16.mxu0 0
      %1398 = vmatpush1.bf16.msra.mxu0 0
      %1399 = vmatprep.subr.bf16.mxu0 0
      %1400 = vmatpush1.bf16.msra.mxu0 0
      %1401 = vmatprep.subr.bf16.mxu0 0
      %1402 = vmatpush1.bf16.msra.mxu0 0
      %1403 = vmatprep.subr.bf16.mxu0 0
      %1404 = vmatpush1.bf16.msra.mxu0 0
      %1405 = vmatprep.subr.bf16.mxu0 0
      %1406 = vmatpush1.bf16.msra.mxu0 0
      %1407 = vmatprep.subr.bf16.mxu0 0
      %1408 = vmatpush1.bf16.msra.mxu0 0
      %1409 = vmatprep.subr.bf16.mxu0 0
      %1410 = vmatpush1.bf16.msra.mxu0 0
      %1411 = vmatprep.subr.bf16.mxu0 0
      %1412 = vmatpush1.bf16.msra.mxu0 0
      %1413 = vmatprep.subr.bf16.mxu0 0
      %1414 = vmatpush1.bf16.msra.mxu0 0
      %1415 = vmatprep.subr.bf16.mxu0 0
      %1416 = vmatpush1.bf16.msra.mxu0 0
      %1417 = vmatprep.subr.bf16.mxu0 0
      %1418 = vmatpush1.bf16.msra.mxu0 0
      %1419 = vmatprep.subr.bf16.mxu0 0
      %1420 = vmatpush1.bf16.msra.mxu0 0
      %1421 = vmatprep.subr.bf16.mxu0 0
      %1422 = vmatpush1.bf16.msra.mxu0 0
      %1423 = vmatprep.subr.bf16.mxu0 0
      %1424 = vmatpush1.bf16.msra.mxu0 0
      %1425 = vmatprep.mubr.bf16.mxu0 0
      %1426 = vmatmul.mubr.bf16.gmra.mrb[0].mxu0 %v1379
      %v1427 = vpop.f32.mrb[0].mxu0
      %v1428 = vadd.f32 0.0, %v1427
      %v1429 = vpop.f32.mrb[0].mxu0
      %v1430 = vpop.f32.mrb[0].mxu0
      %v1431 = vadd.f32 0.0, %v1430
      %v1432 = vpop.f32.mrb[0].mxu0
      %1433 = vmatprep.mubr.bf16.mxu0 0
      %1434 = vmatmul.mubr.bf16.gmra.mrb[0].mxu0 %v1382
      %v1435 = vpop.f32.mrb[0].mxu0
      %v1436 = vadd.f32 0.0, %v1435
      %v1437 = vpop.f32.mrb[0].mxu0
      %v1438 = vpop.f32.mrb[0].mxu0
      %v1439 = vadd.f32 0.0, %v1438
      %v1440 = vpop.f32.mrb[0].mxu0
      %1441 = vmatprep.mubr.bf16.mxu0 0
      %1442 = vmatmul.mubr.bf16.gmra.mrb[0].mxu0 %v1385
      %v1443 = vpop.f32.mrb[0].mxu0
      %v1444 = vadd.f32 0.0, %v1443
      %v1445 = vpop.f32.mrb[0].mxu0
      %v1446 = vpop.f32.mrb[0].mxu0
      %v1447 = vadd.f32 0.0, %v1446
      %v1448 = vpop.f32.mrb[0].mxu0
      %1449 = vmatprep.mubr.bf16.mxu0 0
      %1450 = vmatmul.mubr.bf16.gmra.mrb[0].mxu0 %v1388
      %v1451 = vpop.f32.mrb[0].mxu0
      %v1452 = vadd.f32 0.0, %v1451
      %v1453 = vpop.f32.mrb[0].mxu0
      %v1454 = vpop.f32.mrb[0].mxu0
      %v1455 = vadd.f32 0.0, %v1454
      %v1456 = vpop.f32.mrb[0].mxu0
      %1457 = vdwg.mxu0
      %v1458 = vadd.f32 %v1250, %v1428
      %v1459 = vadd.f32 %v1251, %v1431
      %v1460 = vadd.f32 %v1252, %v1436
      %v1461 = vadd.f32 %v1253, %v1439
      %v1462 = vadd.f32 %v1254, %v1444
      %v1463 = vadd.f32 %v1255, %v1447
      %v1464 = vadd.f32 %v1256, %v1452
      %v1465 = vadd.f32 %v1257, %v1455
      %s1466 = scalar_lea.vmem %s1, 256
      %v1467 = vld [vmem:[%s1466] sm:$0xff]
      %v1468 = vld [vmem:[%s1466 + $0x8] sm:$0xff]
      %v1469 = vld [vmem:[%s1466 + $0x10] sm:$0xff]
      %v1470 = vld [vmem:[%s1466 + $0x18] sm:$0xff]
      %v1471 = vld [vmem:[%s1466 + $0x20] sm:$0xff]
      %v1472 = vld [vmem:[%s1466 + $0x28] sm:$0xff]
      %v1473 = vld [vmem:[%s1466 + $0x30] sm:$0xff]
      %v1474 = vld [vmem:[%s1466 + $0x38] sm:$0xff]
      %v1483 = vunpack.c.l.b16 %v1467
      %v1484 = vunpack.c.h.b16 %v1467
      %v1485 = vunpack.c.l.b16 %v1468
      %v1486 = vunpack.c.h.b16 %v1468
      %v1487 = vunpack.c.l.b16 %v1469
      %v1488 = vunpack.c.h.b16 %v1469
      %v1489 = vunpack.c.l.b16 %v1470
      %v1490 = vunpack.c.h.b16 %v1470
      %v1491 = vunpack.c.l.b16 %v1471
      %v1492 = vunpack.c.h.b16 %v1471
      %v1493 = vunpack.c.l.b16 %v1472
      %v1494 = vunpack.c.h.b16 %v1472
      %v1495 = vunpack.c.l.b16 %v1473
      %v1496 = vunpack.c.h.b16 %v1473
      %v1497 = vunpack.c.l.b16 %v1474
      %v1498 = vunpack.c.h.b16 %v1474
      %v1499 = vpack.c.b16 %v1485, %v1483
      %v1500 = vpack.c.b16 %v1486, %v1484
      %v1501 = vpack.c.b16 %v1489, %v1487
      %v1502 = vpack.c.b16 %v1490, %v1488
      %v1503 = vpack.c.b16 %v1493, %v1491
      %v1504 = vpack.c.b16 %v1494, %v1492
      %v1505 = vpack.c.b16 %v1497, %v1495
      %v1506 = vpack.c.b16 %v1498, %v1496
      %1515 = vmatprep.subr.bf16.mxu0 0
      %1516 = vmatpush1.bf16.msra.mxu0 %v647
      %1517 = vmatprep.subr.bf16.mxu0 0
      %1518 = vmatpush1.bf16.msra.mxu0 %v648
      %1519 = vmatprep.subr.bf16.mxu0 0
      %1520 = vmatpush1.bf16.msra.mxu0 %v649
      %1521 = vmatprep.subr.bf16.mxu0 0
      %1522 = vmatpush1.bf16.msra.mxu0 %v650
      %1523 = vmatprep.subr.bf16.mxu0 0
      %1524 = vmatpush1.bf16.msra.mxu0 %v651
      %1525 = vmatprep.subr.bf16.mxu0 0
      %1526 = vmatpush1.bf16.msra.mxu0 %v652
      %1527 = vmatprep.subr.bf16.mxu0 0
      %1528 = vmatpush1.bf16.msra.mxu0 %v653
      %1529 = vmatprep.subr.bf16.mxu0 0
      %1530 = vmatpush1.bf16.msra.mxu0 %v654
      %1531 = vmatprep.subr.bf16.mxu0 0
      %1532 = vmatpush1.bf16.msra.mxu0 %v655
      %1533 = vmatprep.subr.bf16.mxu0 0
      %1534 = vmatpush1.bf16.msra.mxu0 %v656
      %1535 = vmatprep.subr.bf16.mxu0 0
      %1536 = vmatpush1.bf16.msra.mxu0 %v657
      %1537 = vmatprep.subr.bf16.mxu0 0
      %1538 = vmatpush1.bf16.msra.mxu0 %v658
      %1539 = vmatprep.subr.bf16.mxu0 0
      %1540 = vmatpush1.bf16.msra.mxu0 %v659
      %1541 = vmatprep.subr.bf16.mxu0 0
      %1542 = vmatpush1.bf16.msra.mxu0 %v660
      %1543 = vmatprep.subr.bf16.mxu0 0
      %1544 = vmatpush1.bf16.msra.mxu0 %v661
      %1545 = vmatprep.subr.bf16.mxu0 0
      %1546 = vmatpush1.bf16.msra.mxu0 %v662
      %1547 = vmatprep.mubr.bf16.mxu0 %v1500
      %1548 = vmatmul.mubr.bf16.gmra.mrb[0].mxu0 %v1499
      %v1549 = vpop.f32.mrb[0].mxu0
      %v1550 = vadd.f32 0.0, %v1549
      %v1551 = vpop.f32.mrb[0].mxu0
      %v1552 = vpop.f32.mrb[0].mxu0
      %v1553 = vadd.f32 0.0, %v1552
      %v1554 = vpop.f32.mrb[0].mxu0
      %1555 = vmatprep.mubr.bf16.mxu0 %v1502
      %1556 = vmatmul.mubr.bf16.gmra.mrb[0].mxu0 %v1501
      %v1557 = vpop.f32.mrb[0].mxu0
      %v1558 = vadd.f32 0.0, %v1557
      %v1559 = vpop.f32.mrb[0].mxu0
      %v1560 = vpop.f32.mrb[0].mxu0
      %v1561 = vadd.f32 0.0, %v1560
      %v1562 = vpop.f32.mrb[0].mxu0
      %1563 = vmatprep.mubr.bf16.mxu0 %v1504
      %1564 = vmatmul.mubr.bf16.gmra.mrb[0].mxu0 %v1503
      %v1565 = vpop.f32.mrb[0].mxu0
      %v1566 = vadd.f32 0.0, %v1565
      %v1567 = vpop.f32.mrb[0].mxu0
      %v1568 = vpop.f32.mrb[0].mxu0
      %v1569 = vadd.f32 0.0, %v1568
      %v1570 = vpop.f32.mrb[0].mxu0
      %1571 = vmatprep.mubr.bf16.mxu0 %v1506
      %1572 = vmatmul.mubr.bf16.gmra.mrb[0].mxu0 %v1505
      %v1573 = vpop.f32.mrb[0].mxu0
      %v1574 = vadd.f32 0.0, %v1573
      %v1575 = vpop.f32.mrb[0].mxu0
      %v1576 = vpop.f32.mrb[0].mxu0
      %v1577 = vadd.f32 0.0, %v1576
      %v1578 = vpop.f32.mrb[0].mxu0
      %1579 = vdwg.mxu0
      %v1580 = vpack.c.bf16 %v1553, %v1550
      %v1581 = vpack.c.bf16 %v1561, %v1558
      %v1582 = vpack.c.bf16 %v1569, %v1566
      %v1583 = vpack.c.bf16 %v1577, %v1574
      %s1584 = scalar_lea.vmem %s5, 8
      %v1585 = vld [vmem:[%s1584] sm:$0x3]
      %v1587 = vsel %vm749, %v1580, 0
      %v1590 = vsel %vm749, %v1581, 0
      %v1593 = vsel %vm749, %v1582, 0
      %v1596 = vsel %vm749, %v1583, 0
      %v1599 = vand.u32 %v1585, %v765
      %1601 = vmatprep.subr.bf16.mxu0 0
      %1602 = vmatpush1.bf16.msra.mxu0 %v1599
      %1603 = vmatprep.subr.bf16.mxu0 0
      %1604 = vmatpush1.bf16.msra.mxu0 0
      %1605 = vmatprep.subr.bf16.mxu0 0
      %1606 = vmatpush1.bf16.msra.mxu0 0
      %1607 = vmatprep.subr.bf16.mxu0 0
      %1608 = vmatpush1.bf16.msra.mxu0 0
      %1609 = vmatprep.subr.bf16.mxu0 0
      %1610 = vmatpush1.bf16.msra.mxu0 0
      %1611 = vmatprep.subr.bf16.mxu0 0
      %1612 = vmatpush1.bf16.msra.mxu0 0
      %1613 = vmatprep.subr.bf16.mxu0 0
      %1614 = vmatpush1.bf16.msra.mxu0 0
      %1615 = vmatprep.subr.bf16.mxu0 0
      %1616 = vmatpush1.bf16.msra.mxu0 0
      %1617 = vmatprep.subr.bf16.mxu0 0
      %1618 = vmatpush1.bf16.msra.mxu0 0
      %1619 = vmatprep.subr.bf16.mxu0 0
      %1620 = vmatpush1.bf16.msra.mxu0 0
      %1621 = vmatprep.subr.bf16.mxu0 0
      %1622 = vmatpush1.bf16.msra.mxu0 0
      %1623 = vmatprep.subr.bf16.mxu0 0
      %1624 = vmatpush1.bf16.msra.mxu0 0
      %1625 = vmatprep.subr.bf16.mxu0 0
      %1626 = vmatpush1.bf16.msra.mxu0 0
      %1627 = vmatprep.subr.bf16.mxu0 0
      %1628 = vmatpush1.bf16.msra.mxu0 0
      %1629 = vmatprep.subr.bf16.mxu0 0
      %1630 = vmatpush1.bf16.msra.mxu0 0
      %1631 = vmatprep.subr.bf16.mxu0 0
      %1632 = vmatpush1.bf16.msra.mxu0 0
      %1633 = vmatprep.mubr.bf16.mxu0 0
      %1634 = vmatmul.mubr.bf16.gmra.mrb[0].mxu0 %v1587
      %v1635 = vpop.f32.mrb[0].mxu0
      %v1636 = vadd.f32 0.0, %v1635
      %v1637 = vpop.f32.mrb[0].mxu0
      %v1638 = vpop.f32.mrb[0].mxu0
      %v1639 = vadd.f32 0.0, %v1638
      %v1640 = vpop.f32.mrb[0].mxu0
      %1641 = vmatprep.mubr.bf16.mxu0 0
      %1642 = vmatmul.mubr.bf16.gmra.mrb[0].mxu0 %v1590
      %v1643 = vpop.f32.mrb[0].mxu0
      %v1644 = vadd.f32 0.0, %v1643
      %v1645 = vpop.f32.mrb[0].mxu0
      %v1646 = vpop.f32.mrb[0].mxu0
      %v1647 = vadd.f32 0.0, %v1646
      %v1648 = vpop.f32.mrb[0].mxu0
      %1649 = vmatprep.mubr.bf16.mxu0 0
      %1650 = vmatmul.mubr.bf16.gmra.mrb[0].mxu0 %v1593
      %v1651 = vpop.f32.mrb[0].mxu0
      %v1652 = vadd.f32 0.0, %v1651
      %v1653 = vpop.f32.mrb[0].mxu0
      %v1654 = vpop.f32.mrb[0].mxu0
      %v1655 = vadd.f32 0.0, %v1654
      %v1656 = vpop.f32.mrb[0].mxu0
      %1657 = vmatprep.mubr.bf16.mxu0 0
      %1658 = vmatmul.mubr.bf16.gmra.mrb[0].mxu0 %v1596
      %v1659 = vpop.f32.mrb[0].mxu0
      %v1660 = vadd.f32 0.0, %v1659
      %v1661 = vpop.f32.mrb[0].mxu0
      %v1662 = vpop.f32.mrb[0].mxu0
      %v1663 = vadd.f32 0.0, %v1662
      %v1664 = vpop.f32.mrb[0].mxu0
      %1665 = vdwg.mxu0
      %v1666 = vadd.f32 %v1458, %v1636
      %v1667 = vadd.f32 %v1459, %v1639
      %v1668 = vadd.f32 %v1460, %v1644
      %v1669 = vadd.f32 %v1461, %v1647
      %v1670 = vadd.f32 %v1462, %v1652
      %v1671 = vadd.f32 %v1463, %v1655
      %v1672 = vadd.f32 %v1464, %v1660
      %v1673 = vadd.f32 %v1465, %v1663
      %s1674 = scalar_lea.vmem %s1, 320
      %v1675 = vld [vmem:[%s1674] sm:$0xff]
      %v1676 = vld [vmem:[%s1674 + $0x8] sm:$0xff]
      %v1677 = vld [vmem:[%s1674 + $0x10] sm:$0xff]
      %v1678 = vld [vmem:[%s1674 + $0x18] sm:$0xff]
      %v1679 = vld [vmem:[%s1674 + $0x20] sm:$0xff]
      %v1680 = vld [vmem:[%s1674 + $0x28] sm:$0xff]
      %v1681 = vld [vmem:[%s1674 + $0x30] sm:$0xff]
      %v1682 = vld [vmem:[%s1674 + $0x38] sm:$0xff]
      %v1691 = vunpack.c.l.b16 %v1675
      %v1692 = vunpack.c.h.b16 %v1675
      %v1693 = vunpack.c.l.b16 %v1676
      %v1694 = vunpack.c.h.b16 %v1676
      %v1695 = vunpack.c.l.b16 %v1677
      %v1696 = vunpack.c.h.b16 %v1677
      %v1697 = vunpack.c.l.b16 %v1678
      %v1698 = vunpack.c.h.b16 %v1678
      %v1699 = vunpack.c.l.b16 %v1679
      %v1700 = vunpack.c.h.b16 %v1679
      %v1701 = vunpack.c.l.b16 %v1680
      %v1702 = vunpack.c.h.b16 %v1680
      %v1703 = vunpack.c.l.b16 %v1681
      %v1704 = vunpack.c.h.b16 %v1681
      %v1705 = vunpack.c.l.b16 %v1682
      %v1706 = vunpack.c.h.b16 %v1682
      %v1707 = vpack.c.b16 %v1693, %v1691
      %v1708 = vpack.c.b16 %v1694, %v1692
      %v1709 = vpack.c.b16 %v1697, %v1695
      %v1710 = vpack.c.b16 %v1698, %v1696
      %v1711 = vpack.c.b16 %v1701, %v1699
      %v1712 = vpack.c.b16 %v1702, %v1700
      %v1713 = vpack.c.b16 %v1705, %v1703
      %v1714 = vpack.c.b16 %v1706, %v1704
      %1723 = vmatprep.subr.bf16.mxu0 0
      %1724 = vmatpush1.bf16.msra.mxu0 %v647
      %1725 = vmatprep.subr.bf16.mxu0 0
      %1726 = vmatpush1.bf16.msra.mxu0 %v648
      %1727 = vmatprep.subr.bf16.mxu0 0
      %1728 = vmatpush1.bf16.msra.mxu0 %v649
      %1729 = vmatprep.subr.bf16.mxu0 0
      %1730 = vmatpush1.bf16.msra.mxu0 %v650
      %1731 = vmatprep.subr.bf16.mxu0 0
      %1732 = vmatpush1.bf16.msra.mxu0 %v651
      %1733 = vmatprep.subr.bf16.mxu0 0
      %1734 = vmatpush1.bf16.msra.mxu0 %v652
      %1735 = vmatprep.subr.bf16.mxu0 0
      %1736 = vmatpush1.bf16.msra.mxu0 %v653
      %1737 = vmatprep.subr.bf16.mxu0 0
      %1738 = vmatpush1.bf16.msra.mxu0 %v654
      %1739 = vmatprep.subr.bf16.mxu0 0
      %1740 = vmatpush1.bf16.msra.mxu0 %v655
      %1741 = vmatprep.subr.bf16.mxu0 0
      %1742 = vmatpush1.bf16.msra.mxu0 %v656
      %1743 = vmatprep.subr.bf16.mxu0 0
      %1744 = vmatpush1.bf16.msra.mxu0 %v657
      %1745 = vmatprep.subr.bf16.mxu0 0
      %1746 = vmatpush1.bf16.msra.mxu0 %v658
      %1747 = vmatprep.subr.bf16.mxu0 0
      %1748 = vmatpush1.bf16.msra.mxu0 %v659
      %1749 = vmatprep.subr.bf16.mxu0 0
      %1750 = vmatpush1.bf16.msra.mxu0 %v660
      %1751 = vmatprep.subr.bf16.mxu0 0
      %1752 = vmatpush1.bf16.msra.mxu0 %v661
      %1753 = vmatprep.subr.bf16.mxu0 0
      %1754 = vmatpush1.bf16.msra.mxu0 %v662
      %1755 = vmatprep.mubr.bf16.mxu0 %v1708
      %1756 = vmatmul.mubr.bf16.gmra.mrb[0].mxu0 %v1707
      %v1757 = vpop.f32.mrb[0].mxu0
      %v1758 = vadd.f32 0.0, %v1757
      %v1759 = vpop.f32.mrb[0].mxu0
      %v1760 = vpop.f32.mrb[0].mxu0
      %v1761 = vadd.f32 0.0, %v1760
      %v1762 = vpop.f32.mrb[0].mxu0
      %1763 = vmatprep.mubr.bf16.mxu0 %v1710
      %1764 = vmatmul.mubr.bf16.gmra.mrb[0].mxu0 %v1709
      %v1765 = vpop.f32.mrb[0].mxu0
      %v1766 = vadd.f32 0.0, %v1765
      %v1767 = vpop.f32.mrb[0].mxu0
      %v1768 = vpop.f32.mrb[0].mxu0
      %v1769 = vadd.f32 0.0, %v1768
      %v1770 = vpop.f32.mrb[0].mxu0
      %1771 = vmatprep.mubr.bf16.mxu0 %v1712
      %1772 = vmatmul.mubr.bf16.gmra.mrb[0].mxu0 %v1711
      %v1773 = vpop.f32.mrb[0].mxu0
      %v1774 = vadd.f32 0.0, %v1773
      %v1775 = vpop.f32.mrb[0].mxu0
      %v1776 = vpop.f32.mrb[0].mxu0
      %v1777 = vadd.f32 0.0, %v1776
      %v1778 = vpop.f32.mrb[0].mxu0
      %1779 = vmatprep.mubr.bf16.mxu0 %v1714
      %1780 = vmatmul.mubr.bf16.gmra.mrb[0].mxu0 %v1713
      %v1781 = vpop.f32.mrb[0].mxu0
      %v1782 = vadd.f32 0.0, %v1781
      %v1783 = vpop.f32.mrb[0].mxu0
      %v1784 = vpop.f32.mrb[0].mxu0
      %v1785 = vadd.f32 0.0, %v1784
      %v1786 = vpop.f32.mrb[0].mxu0
      %1787 = vdwg.mxu0
      %v1788 = vpack.c.bf16 %v1761, %v1758
      %v1789 = vpack.c.bf16 %v1769, %v1766
      %v1790 = vpack.c.bf16 %v1777, %v1774
      %v1791 = vpack.c.bf16 %v1785, %v1782
      %s1792 = scalar_lea.vmem %s5, 10
      %v1793 = vld [vmem:[%s1792] sm:$0x3]
      %v1795 = vsel %vm749, %v1788, 0
      %v1798 = vsel %vm749, %v1789, 0
      %v1801 = vsel %vm749, %v1790, 0
      %v1804 = vsel %vm749, %v1791, 0
      %v1807 = vand.u32 %v1793, %v765
      %1809 = vmatprep.subr.bf16.mxu0 0
      %1810 = vmatpush1.bf16.msra.mxu0 %v1807
      %1811 = vmatprep.subr.bf16.mxu0 0
      %1812 = vmatpush1.bf16.msra.mxu0 0
      %1813 = vmatprep.subr.bf16.mxu0 0
      %1814 = vmatpush1.bf16.msra.mxu0 0
      %1815 = vmatprep.subr.bf16.mxu0 0
      %1816 = vmatpush1.bf16.msra.mxu0 0
      %1817 = vmatprep.subr.bf16.mxu0 0
      %1818 = vmatpush1.bf16.msra.mxu0 0
      %1819 = vmatprep.subr.bf16.mxu0 0
      %1820 = vmatpush1.bf16.msra.mxu0 0
      %1821 = vmatprep.subr.bf16.mxu0 0
      %1822 = vmatpush1.bf16.msra.mxu0 0
      %1823 = vmatprep.subr.bf16.mxu0 0
      %1824 = vmatpush1.bf16.msra.mxu0 0
      %1825 = vmatprep.subr.bf16.mxu0 0
      %1826 = vmatpush1.bf16.msra.mxu0 0
      %1827 = vmatprep.subr.bf16.mxu0 0
      %1828 = vmatpush1.bf16.msra.mxu0 0
      %1829 = vmatprep.subr.bf16.mxu0 0
      %1830 = vmatpush1.bf16.msra.mxu0 0
      %1831 = vmatprep.subr.bf16.mxu0 0
      %1832 = vmatpush1.bf16.msra.mxu0 0
      %1833 = vmatprep.subr.bf16.mxu0 0
      %1834 = vmatpush1.bf16.msra.mxu0 0
      %1835 = vmatprep.subr.bf16.mxu0 0
      %1836 = vmatpush1.bf16.msra.mxu0 0
      %1837 = vmatprep.subr.bf16.mxu0 0
      %1838 = vmatpush1.bf16.msra.mxu0 0
      %1839 = vmatprep.subr.bf16.mxu0 0
      %1840 = vmatpush1.bf16.msra.mxu0 0
      %1841 = vmatprep.mubr.bf16.mxu0 0
      %1842 = vmatmul.mubr.bf16.gmra.mrb[0].mxu0 %v1795
      %v1843 = vpop.f32.mrb[0].mxu0
      %v1844 = vadd.f32 0.0, %v1843
      %v1845 = vpop.f32.mrb[0].mxu0
      %v1846 = vpop.f32.mrb[0].mxu0
      %v1847 = vadd.f32 0.0, %v1846
      %v1848 = vpop.f32.mrb[0].mxu0
      %1849 = vmatprep.mubr.bf16.mxu0 0
      %1850 = vmatmul.mubr.bf16.gmra.mrb[0].mxu0 %v1798
      %v1851 = vpop.f32.mrb[0].mxu0
      %v1852 = vadd.f32 0.0, %v1851
      %v1853 = vpop.f32.mrb[0].mxu0
      %v1854 = vpop.f32.mrb[0].mxu0
      %v1855 = vadd.f32 0.0, %v1854
      %v1856 = vpop.f32.mrb[0].mxu0
      %1857 = vmatprep.mubr.bf16.mxu0 0
      %1858 = vmatmul.mubr.bf16.gmra.mrb[0].mxu0 %v1801
      %v1859 = vpop.f32.mrb[0].mxu0
      %v1860 = vadd.f32 0.0, %v1859
      %v1861 = vpop.f32.mrb[0].mxu0
      %v1862 = vpop.f32.mrb[0].mxu0
      %v1863 = vadd.f32 0.0, %v1862
      %v1864 = vpop.f32.mrb[0].mxu0
      %1865 = vmatprep.mubr.bf16.mxu0 0
      %1866 = vmatmul.mubr.bf16.gmra.mrb[0].mxu0 %v1804
      %v1867 = vpop.f32.mrb[0].mxu0
      %v1868 = vadd.f32 0.0, %v1867
      %v1869 = vpop.f32.mrb[0].mxu0
      %v1870 = vpop.f32.mrb[0].mxu0
      %v1871 = vadd.f32 0.0, %v1870
      %v1872 = vpop.f32.mrb[0].mxu0
      %1873 = vdwg.mxu0
      %v1874 = vadd.f32 %v1666, %v1844
      %v1875 = vadd.f32 %v1667, %v1847
      %v1876 = vadd.f32 %v1668, %v1852
      %v1877 = vadd.f32 %v1669, %v1855
      %v1878 = vadd.f32 %v1670, %v1860
      %v1879 = vadd.f32 %v1671, %v1863
      %v1880 = vadd.f32 %v1672, %v1868
      %v1881 = vadd.f32 %v1673, %v1871
      %s1882 = scalar_lea.vmem %s1, 384
      %v1883 = vld [vmem:[%s1882] sm:$0xff]
      %v1884 = vld [vmem:[%s1882 + $0x8] sm:$0xff]
      %v1885 = vld [vmem:[%s1882 + $0x10] sm:$0xff]
      %v1886 = vld [vmem:[%s1882 + $0x18] sm:$0xff]
      %v1887 = vld [vmem:[%s1882 + $0x20] sm:$0xff]
      %v1888 = vld [vmem:[%s1882 + $0x28] sm:$0xff]
      %v1889 = vld [vmem:[%s1882 + $0x30] sm:$0xff]
      %v1890 = vld [vmem:[%s1882 + $0x38] sm:$0xff]
      %v1899 = vunpack.c.l.b16 %v1883
      %v1900 = vunpack.c.h.b16 %v1883
      %v1901 = vunpack.c.l.b16 %v1884
      %v1902 = vunpack.c.h.b16 %v1884
      %v1903 = vunpack.c.l.b16 %v1885
      %v1904 = vunpack.c.h.b16 %v1885
      %v1905 = vunpack.c.l.b16 %v1886
      %v1906 = vunpack.c.h.b16 %v1886
      %v1907 = vunpack.c.l.b16 %v1887
      %v1908 = vunpack.c.h.b16 %v1887
      %v1909 = vunpack.c.l.b16 %v1888
      %v1910 = vunpack.c.h.b16 %v1888
      %v1911 = vunpack.c.l.b16 %v1889
      %v1912 = vunpack.c.h.b16 %v1889
      %v1913 = vunpack.c.l.b16 %v1890
      %v1914 = vunpack.c.h.b16 %v1890
      %v1915 = vpack.c.b16 %v1901, %v1899
      %v1916 = vpack.c.b16 %v1902, %v1900
      %v1917 = vpack.c.b16 %v1905, %v1903
      %v1918 = vpack.c.b16 %v1906, %v1904
      %v1919 = vpack.c.b16 %v1909, %v1907
      %v1920 = vpack.c.b16 %v1910, %v1908
      %v1921 = vpack.c.b16 %v1913, %v1911
      %v1922 = vpack.c.b16 %v1914, %v1912
      %1931 = vmatprep.subr.bf16.mxu0 0
      %1932 = vmatpush1.bf16.msra.mxu0 %v647
      %1933 = vmatprep.subr.bf16.mxu0 0
      %1934 = vmatpush1.bf16.msra.mxu0 %v648
      %1935 = vmatprep.subr.bf16.mxu0 0
      %1936 = vmatpush1.bf16.msra.mxu0 %v649
      %1937 = vmatprep.subr.bf16.mxu0 0
      %1938 = vmatpush1.bf16.msra.mxu0 %v650
      %1939 = vmatprep.subr.bf16.mxu0 0
      %1940 = vmatpush1.bf16.msra.mxu0 %v651
      %1941 = vmatprep.subr.bf16.mxu0 0
      %1942 = vmatpush1.bf16.msra.mxu0 %v652
      %1943 = vmatprep.subr.bf16.mxu0 0
      %1944 = vmatpush1.bf16.msra.mxu0 %v653
      %1945 = vmatprep.subr.bf16.mxu0 0
      %1946 = vmatpush1.bf16.msra.mxu0 %v654
      %1947 = vmatprep.subr.bf16.mxu0 0
      %1948 = vmatpush1.bf16.msra.mxu0 %v655
      %1949 = vmatprep.subr.bf16.mxu0 0
      %1950 = vmatpush1.bf16.msra.mxu0 %v656
      %1951 = vmatprep.subr.bf16.mxu0 0
      %1952 = vmatpush1.bf16.msra.mxu0 %v657
      %1953 = vmatprep.subr.bf16.mxu0 0
      %1954 = vmatpush1.bf16.msra.mxu0 %v658
      %1955 = vmatprep.subr.bf16.mxu0 0
      %1956 = vmatpush1.bf16.msra.mxu0 %v659
      %1957 = vmatprep.subr.bf16.mxu0 0
      %1958 = vmatpush1.bf16.msra.mxu0 %v660
      %1959 = vmatprep.subr.bf16.mxu0 0
      %1960 = vmatpush1.bf16.msra.mxu0 %v661
      %1961 = vmatprep.subr.bf16.mxu0 0
      %1962 = vmatpush1.bf16.msra.mxu0 %v662
      %1963 = vmatprep.mubr.bf16.mxu0 %v1916
      %1964 = vmatmul.mubr.bf16.gmra.mrb[0].mxu0 %v1915
      %v1965 = vpop.f32.mrb[0].mxu0
      %v1966 = vadd.f32 0.0, %v1965
      %v1967 = vpop.f32.mrb[0].mxu0
      %v1968 = vpop.f32.mrb[0].mxu0
      %v1969 = vadd.f32 0.0, %v1968
      %v1970 = vpop.f32.mrb[0].mxu0
      %1971 = vmatprep.mubr.bf16.mxu0 %v1918
      %1972 = vmatmul.mubr.bf16.gmra.mrb[0].mxu0 %v1917
      %v1973 = vpop.f32.mrb[0].mxu0
      %v1974 = vadd.f32 0.0, %v1973
      %v1975 = vpop.f32.mrb[0].mxu0
      %v1976 = vpop.f32.mrb[0].mxu0
      %v1977 = vadd.f32 0.0, %v1976
      %v1978 = vpop.f32.mrb[0].mxu0
      %1979 = vmatprep.mubr.bf16.mxu0 %v1920
      %1980 = vmatmul.mubr.bf16.gmra.mrb[0].mxu0 %v1919
      %v1981 = vpop.f32.mrb[0].mxu0
      %v1982 = vadd.f32 0.0, %v1981
      %v1983 = vpop.f32.mrb[0].mxu0
      %v1984 = vpop.f32.mrb[0].mxu0
      %v1985 = vadd.f32 0.0, %v1984
      %v1986 = vpop.f32.mrb[0].mxu0
      %1987 = vmatprep.mubr.bf16.mxu0 %v1922
      %1988 = vmatmul.mubr.bf16.gmra.mrb[0].mxu0 %v1921
      %v1989 = vpop.f32.mrb[0].mxu0
      %v1990 = vadd.f32 0.0, %v1989
      %v1991 = vpop.f32.mrb[0].mxu0
      %v1992 = vpop.f32.mrb[0].mxu0
      %v1993 = vadd.f32 0.0, %v1992
      %v1994 = vpop.f32.mrb[0].mxu0
      %1995 = vdwg.mxu0
      %v1996 = vpack.c.bf16 %v1969, %v1966
      %v1997 = vpack.c.bf16 %v1977, %v1974
      %v1998 = vpack.c.bf16 %v1985, %v1982
      %v1999 = vpack.c.bf16 %v1993, %v1990
      %s2000 = scalar_lea.vmem %s5, 12
      %v2001 = vld [vmem:[%s2000] sm:$0x3]
      %v2003 = vsel %vm749, %v1996, 0
      %v2006 = vsel %vm749, %v1997, 0
      %v2009 = vsel %vm749, %v1998, 0
      %v2012 = vsel %vm749, %v1999, 0
      %v2015 = vand.u32 %v2001, %v765
      %2017 = vmatprep.subr.bf16.mxu0 0
      %2018 = vmatpush1.bf16.msra.mxu0 %v2015
      %2019 = vmatprep.subr.bf16.mxu0 0
      %2020 = vmatpush1.bf16.msra.mxu0 0
      %2021 = vmatprep.subr.bf16.mxu0 0
      %2022 = vmatpush1.bf16.msra.mxu0 0
      %2023 = vmatprep.subr.bf16.mxu0 0
      %2024 = vmatpush1.bf16.msra.mxu0 0
      %2025 = vmatprep.subr.bf16.mxu0 0
      %2026 = vmatpush1.bf16.msra.mxu0 0
      %2027 = vmatprep.subr.bf16.mxu0 0
      %2028 = vmatpush1.bf16.msra.mxu0 0
      %2029 = vmatprep.subr.bf16.mxu0 0
      %2030 = vmatpush1.bf16.msra.mxu0 0
      %2031 = vmatprep.subr.bf16.mxu0 0
      %2032 = vmatpush1.bf16.msra.mxu0 0
      %2033 = vmatprep.subr.bf16.mxu0 0
      %2034 = vmatpush1.bf16.msra.mxu0 0
      %2035 = vmatprep.subr.bf16.mxu0 0
      %2036 = vmatpush1.bf16.msra.mxu0 0
      %2037 = vmatprep.subr.bf16.mxu0 0
      %2038 = vmatpush1.bf16.msra.mxu0 0
      %2039 = vmatprep.subr.bf16.mxu0 0
      %2040 = vmatpush1.bf16.msra.mxu0 0
      %2041 = vmatprep.subr.bf16.mxu0 0
      %2042 = vmatpush1.bf16.msra.mxu0 0
      %2043 = vmatprep.subr.bf16.mxu0 0
      %2044 = vmatpush1.bf16.msra.mxu0 0
      %2045 = vmatprep.subr.bf16.mxu0 0
      %2046 = vmatpush1.bf16.msra.mxu0 0
      %2047 = vmatprep.subr.bf16.mxu0 0
      %2048 = vmatpush1.bf16.msra.mxu0 0
      %2049 = vmatprep.mubr.bf16.mxu0 0
      %2050 = vmatmul.mubr.bf16.gmra.mrb[0].mxu0 %v2003
      %v2051 = vpop.f32.mrb[0].mxu0
      %v2052 = vadd.f32 0.0, %v2051
      %v2053 = vpop.f32.mrb[0].mxu0
      %v2054 = vpop.f32.mrb[0].mxu0
      %v2055 = vadd.f32 0.0, %v2054
      %v2056 = vpop.f32.mrb[0].mxu0
      %2057 = vmatprep.mubr.bf16.mxu0 0
      %2058 = vmatmul.mubr.bf16.gmra.mrb[0].mxu0 %v2006
      %v2059 = vpop.f32.mrb[0].mxu0
      %v2060 = vadd.f32 0.0, %v2059
      %v2061 = vpop.f32.mrb[0].mxu0
      %v2062 = vpop.f32.mrb[0].mxu0
      %v2063 = vadd.f32 0.0, %v2062
      %v2064 = vpop.f32.mrb[0].mxu0
      %2065 = vmatprep.mubr.bf16.mxu0 0
      %2066 = vmatmul.mubr.bf16.gmra.mrb[0].mxu0 %v2009
      %v2067 = vpop.f32.mrb[0].mxu0
      %v2068 = vadd.f32 0.0, %v2067
      %v2069 = vpop.f32.mrb[0].mxu0
      %v2070 = vpop.f32.mrb[0].mxu0
      %v2071 = vadd.f32 0.0, %v2070
      %v2072 = vpop.f32.mrb[0].mxu0
      %2073 = vmatprep.mubr.bf16.mxu0 0
      %2074 = vmatmul.mubr.bf16.gmra.mrb[0].mxu0 %v2012
      %v2075 = vpop.f32.mrb[0].mxu0
      %v2076 = vadd.f32 0.0, %v2075
      %v2077 = vpop.f32.mrb[0].mxu0
      %v2078 = vpop.f32.mrb[0].mxu0
      %v2079 = vadd.f32 0.0, %v2078
      %v2080 = vpop.f32.mrb[0].mxu0
      %2081 = vdwg.mxu0
      %v2082 = vadd.f32 %v1874, %v2052
      %v2083 = vadd.f32 %v1875, %v2055
      %v2084 = vadd.f32 %v1876, %v2060
      %v2085 = vadd.f32 %v1877, %v2063
      %v2086 = vadd.f32 %v1878, %v2068
      %v2087 = vadd.f32 %v1879, %v2071
      %v2088 = vadd.f32 %v1880, %v2076
      %v2089 = vadd.f32 %v1881, %v2079
      %s2090 = scalar_lea.vmem %s1, 448
      %v2091 = vld [vmem:[%s2090] sm:$0xff]
      %v2092 = vld [vmem:[%s2090 + $0x8] sm:$0xff]
      %v2093 = vld [vmem:[%s2090 + $0x10] sm:$0xff]
      %v2094 = vld [vmem:[%s2090 + $0x18] sm:$0xff]
      %v2095 = vld [vmem:[%s2090 + $0x20] sm:$0xff]
      %v2096 = vld [vmem:[%s2090 + $0x28] sm:$0xff]
      %v2097 = vld [vmem:[%s2090 + $0x30] sm:$0xff]
      %v2098 = vld [vmem:[%s2090 + $0x38] sm:$0xff]
      %v2107 = vunpack.c.l.b16 %v2091
      %v2108 = vunpack.c.h.b16 %v2091
      %v2109 = vunpack.c.l.b16 %v2092
      %v2110 = vunpack.c.h.b16 %v2092
      %v2111 = vunpack.c.l.b16 %v2093
      %v2112 = vunpack.c.h.b16 %v2093
      %v2113 = vunpack.c.l.b16 %v2094
      %v2114 = vunpack.c.h.b16 %v2094
      %v2115 = vunpack.c.l.b16 %v2095
      %v2116 = vunpack.c.h.b16 %v2095
      %v2117 = vunpack.c.l.b16 %v2096
      %v2118 = vunpack.c.h.b16 %v2096
      %v2119 = vunpack.c.l.b16 %v2097
      %v2120 = vunpack.c.h.b16 %v2097
      %v2121 = vunpack.c.l.b16 %v2098
      %v2122 = vunpack.c.h.b16 %v2098
      %v2123 = vpack.c.b16 %v2109, %v2107
      %v2124 = vpack.c.b16 %v2110, %v2108
      %v2125 = vpack.c.b16 %v2113, %v2111
      %v2126 = vpack.c.b16 %v2114, %v2112
      %v2127 = vpack.c.b16 %v2117, %v2115
      %v2128 = vpack.c.b16 %v2118, %v2116
      %v2129 = vpack.c.b16 %v2121, %v2119
      %v2130 = vpack.c.b16 %v2122, %v2120
      %2139 = vmatprep.subr.bf16.mxu0 0
      %2140 = vmatpush1.bf16.msra.mxu0 %v647
      %2141 = vmatprep.subr.bf16.mxu0 0
      %2142 = vmatpush1.bf16.msra.mxu0 %v648
      %2143 = vmatprep.subr.bf16.mxu0 0
      %2144 = vmatpush1.bf16.msra.mxu0 %v649
      %2145 = vmatprep.subr.bf16.mxu0 0
      %2146 = vmatpush1.bf16.msra.mxu0 %v650
      %2147 = vmatprep.subr.bf16.mxu0 0
      %2148 = vmatpush1.bf16.msra.mxu0 %v651
      %2149 = vmatprep.subr.bf16.mxu0 0
      %2150 = vmatpush1.bf16.msra.mxu0 %v652
      %2151 = vmatprep.subr.bf16.mxu0 0
      %2152 = vmatpush1.bf16.msra.mxu0 %v653
      %2153 = vmatprep.subr.bf16.mxu0 0
      %2154 = vmatpush1.bf16.msra.mxu0 %v654
      %2155 = vmatprep.subr.bf16.mxu0 0
      %2156 = vmatpush1.bf16.msra.mxu0 %v655
      %2157 = vmatprep.subr.bf16.mxu0 0
      %2158 = vmatpush1.bf16.msra.mxu0 %v656
      %2159 = vmatprep.subr.bf16.mxu0 0
      %2160 = vmatpush1.bf16.msra.mxu0 %v657
      %2161 = vmatprep.subr.bf16.mxu0 0
      %2162 = vmatpush1.bf16.msra.mxu0 %v658
      %2163 = vmatprep.subr.bf16.mxu0 0
      %2164 = vmatpush1.bf16.msra.mxu0 %v659
      %2165 = vmatprep.subr.bf16.mxu0 0
      %2166 = vmatpush1.bf16.msra.mxu0 %v660
      %2167 = vmatprep.subr.bf16.mxu0 0
      %2168 = vmatpush1.bf16.msra.mxu0 %v661
      %2169 = vmatprep.subr.bf16.mxu0 0
      %2170 = vmatpush1.bf16.msra.mxu0 %v662
      %2171 = vmatprep.mubr.bf16.mxu0 %v2124
      %2172 = vmatmul.mubr.bf16.gmra.mrb[0].mxu0 %v2123
      %v2173 = vpop.f32.mrb[0].mxu0
      %v2174 = vadd.f32 0.0, %v2173
      %v2175 = vpop.f32.mrb[0].mxu0
      %v2176 = vpop.f32.mrb[0].mxu0
      %v2177 = vadd.f32 0.0, %v2176
      %v2178 = vpop.f32.mrb[0].mxu0
      %2179 = vmatprep.mubr.bf16.mxu0 %v2126
      %2180 = vmatmul.mubr.bf16.gmra.mrb[0].mxu0 %v2125
      %v2181 = vpop.f32.mrb[0].mxu0
      %v2182 = vadd.f32 0.0, %v2181
      %v2183 = vpop.f32.mrb[0].mxu0
      %v2184 = vpop.f32.mrb[0].mxu0
      %v2185 = vadd.f32 0.0, %v2184
      %v2186 = vpop.f32.mrb[0].mxu0
      %2187 = vmatprep.mubr.bf16.mxu0 %v2128
      %2188 = vmatmul.mubr.bf16.gmra.mrb[0].mxu0 %v2127
      %v2189 = vpop.f32.mrb[0].mxu0
      %v2190 = vadd.f32 0.0, %v2189
      %v2191 = vpop.f32.mrb[0].mxu0
      %v2192 = vpop.f32.mrb[0].mxu0
      %v2193 = vadd.f32 0.0, %v2192
      %v2194 = vpop.f32.mrb[0].mxu0
      %2195 = vmatprep.mubr.bf16.mxu0 %v2130
      %2196 = vmatmul.mubr.bf16.gmra.mrb[0].mxu0 %v2129
      %v2197 = vpop.f32.mrb[0].mxu0
      %v2198 = vadd.f32 0.0, %v2197
      %v2199 = vpop.f32.mrb[0].mxu0
      %v2200 = vpop.f32.mrb[0].mxu0
      %v2201 = vadd.f32 0.0, %v2200
      %v2202 = vpop.f32.mrb[0].mxu0
      %2203 = vdwg.mxu0
      %v2204 = vpack.c.bf16 %v2177, %v2174
      %v2205 = vpack.c.bf16 %v2185, %v2182
      %v2206 = vpack.c.bf16 %v2193, %v2190
      %v2207 = vpack.c.bf16 %v2201, %v2198
      %s2208 = scalar_lea.vmem %s5, 14
      %v2209 = vld [vmem:[%s2208] sm:$0x3]
      %v2211 = vsel %vm749, %v2204, 0
      %v2214 = vsel %vm749, %v2205, 0
      %v2217 = vsel %vm749, %v2206, 0
      %v2220 = vsel %vm749, %v2207, 0
      %v2223 = vand.u32 %v2209, %v765
      %2225 = vmatprep.subr.bf16.mxu0 0
      %2226 = vmatpush1.bf16.msra.mxu0 %v2223
      %2227 = vmatprep.subr.bf16.mxu0 0
      %2228 = vmatpush1.bf16.msra.mxu0 0
      %2229 = vmatprep.subr.bf16.mxu0 0
      %2230 = vmatpush1.bf16.msra.mxu0 0
      %2231 = vmatprep.subr.bf16.mxu0 0
      %2232 = vmatpush1.bf16.msra.mxu0 0
      %2233 = vmatprep.subr.bf16.mxu0 0
      %2234 = vmatpush1.bf16.msra.mxu0 0
      %2235 = vmatprep.subr.bf16.mxu0 0
      %2236 = vmatpush1.bf16.msra.mxu0 0
      %2237 = vmatprep.subr.bf16.mxu0 0
      %2238 = vmatpush1.bf16.msra.mxu0 0
      %2239 = vmatprep.subr.bf16.mxu0 0
      %2240 = vmatpush1.bf16.msra.mxu0 0
      %2241 = vmatprep.subr.bf16.mxu0 0
      %2242 = vmatpush1.bf16.msra.mxu0 0
      %2243 = vmatprep.subr.bf16.mxu0 0
      %2244 = vmatpush1.bf16.msra.mxu0 0
      %2245 = vmatprep.subr.bf16.mxu0 0
      %2246 = vmatpush1.bf16.msra.mxu0 0
      %2247 = vmatprep.subr.bf16.mxu0 0
      %2248 = vmatpush1.bf16.msra.mxu0 0
      %2249 = vmatprep.subr.bf16.mxu0 0
      %2250 = vmatpush1.bf16.msra.mxu0 0
      %2251 = vmatprep.subr.bf16.mxu0 0
      %2252 = vmatpush1.bf16.msra.mxu0 0
      %2253 = vmatprep.subr.bf16.mxu0 0
      %2254 = vmatpush1.bf16.msra.mxu0 0
      %2255 = vmatprep.subr.bf16.mxu0 0
      %2256 = vmatpush1.bf16.msra.mxu0 0
      %2257 = vmatprep.mubr.bf16.mxu0 0
      %2258 = vmatmul.mubr.bf16.gmra.mrb[0].mxu0 %v2211
      %v2259 = vpop.f32.mrb[0].mxu0
      %v2260 = vadd.f32 0.0, %v2259
      %v2261 = vpop.f32.mrb[0].mxu0
      %v2262 = vpop.f32.mrb[0].mxu0
      %v2263 = vadd.f32 0.0, %v2262
      %v2264 = vpop.f32.mrb[0].mxu0
      %2265 = vmatprep.mubr.bf16.mxu0 0
      %2266 = vmatmul.mubr.bf16.gmra.mrb[0].mxu0 %v2214
      %v2267 = vpop.f32.mrb[0].mxu0
      %v2268 = vadd.f32 0.0, %v2267
      %v2269 = vpop.f32.mrb[0].mxu0
      %v2270 = vpop.f32.mrb[0].mxu0
      %v2271 = vadd.f32 0.0, %v2270
      %v2272 = vpop.f32.mrb[0].mxu0
      %2273 = vmatprep.mubr.bf16.mxu0 0
      %2274 = vmatmul.mubr.bf16.gmra.mrb[0].mxu0 %v2217
      %v2275 = vpop.f32.mrb[0].mxu0
      %v2276 = vadd.f32 0.0, %v2275
      %v2277 = vpop.f32.mrb[0].mxu0
      %v2278 = vpop.f32.mrb[0].mxu0
      %v2279 = vadd.f32 0.0, %v2278
      %v2280 = vpop.f32.mrb[0].mxu0
      %2281 = vmatprep.mubr.bf16.mxu0 0
      %2282 = vmatmul.mubr.bf16.gmra.mrb[0].mxu0 %v2220
      %v2283 = vpop.f32.mrb[0].mxu0
      %v2284 = vadd.f32 0.0, %v2283
      %v2285 = vpop.f32.mrb[0].mxu0
      %v2286 = vpop.f32.mrb[0].mxu0
      %v2287 = vadd.f32 0.0, %v2286
      %v2288 = vpop.f32.mrb[0].mxu0
      %2289 = vdwg.mxu0
      %v2290 = vadd.f32 %v2082, %v2260
      %v2291 = vadd.f32 %v2083, %v2263
      %v2292 = vadd.f32 %v2084, %v2268
      %v2293 = vadd.f32 %v2085, %v2271
      %v2294 = vadd.f32 %v2086, %v2276
      %v2295 = vadd.f32 %v2087, %v2279
      %v2296 = vadd.f32 %v2088, %v2284
      %v2297 = vadd.f32 %v2089, %v2287
      %s2298 = scalar_lea.vmem %s1, 512
      %v2299 = vld [vmem:[%s2298] sm:$0xff]
      %v2300 = vld [vmem:[%s2298 + $0x8] sm:$0xff]
      %v2301 = vld [vmem:[%s2298 + $0x10] sm:$0xff]
      %v2302 = vld [vmem:[%s2298 + $0x18] sm:$0xff]
      %v2303 = vld [vmem:[%s2298 + $0x20] sm:$0xff]
      %v2304 = vld [vmem:[%s2298 + $0x28] sm:$0xff]
      %v2305 = vld [vmem:[%s2298 + $0x30] sm:$0xff]
      %v2306 = vld [vmem:[%s2298 + $0x38] sm:$0xff]
      %v2315 = vunpack.c.l.b16 %v2299
      %v2316 = vunpack.c.h.b16 %v2299
      %v2317 = vunpack.c.l.b16 %v2300
      %v2318 = vunpack.c.h.b16 %v2300
      %v2319 = vunpack.c.l.b16 %v2301
      %v2320 = vunpack.c.h.b16 %v2301
      %v2321 = vunpack.c.l.b16 %v2302
      %v2322 = vunpack.c.h.b16 %v2302
      %v2323 = vunpack.c.l.b16 %v2303
      %v2324 = vunpack.c.h.b16 %v2303
      %v2325 = vunpack.c.l.b16 %v2304
      %v2326 = vunpack.c.h.b16 %v2304
      %v2327 = vunpack.c.l.b16 %v2305
      %v2328 = vunpack.c.h.b16 %v2305
      %v2329 = vunpack.c.l.b16 %v2306
      %v2330 = vunpack.c.h.b16 %v2306
      %v2331 = vpack.c.b16 %v2317, %v2315
      %v2332 = vpack.c.b16 %v2318, %v2316
      %v2333 = vpack.c.b16 %v2321, %v2319
      %v2334 = vpack.c.b16 %v2322, %v2320
      %v2335 = vpack.c.b16 %v2325, %v2323
      %v2336 = vpack.c.b16 %v2326, %v2324
      %v2337 = vpack.c.b16 %v2329, %v2327
      %v2338 = vpack.c.b16 %v2330, %v2328
      %2347 = vmatprep.subr.bf16.mxu0 0
      %2348 = vmatpush1.bf16.msra.mxu0 %v647
      %2349 = vmatprep.subr.bf16.mxu0 0
      %2350 = vmatpush1.bf16.msra.mxu0 %v648
      %2351 = vmatprep.subr.bf16.mxu0 0
      %2352 = vmatpush1.bf16.msra.mxu0 %v649
      %2353 = vmatprep.subr.bf16.mxu0 0
      %2354 = vmatpush1.bf16.msra.mxu0 %v650
      %2355 = vmatprep.subr.bf16.mxu0 0
      %2356 = vmatpush1.bf16.msra.mxu0 %v651
      %2357 = vmatprep.subr.bf16.mxu0 0
      %2358 = vmatpush1.bf16.msra.mxu0 %v652
      %2359 = vmatprep.subr.bf16.mxu0 0
      %2360 = vmatpush1.bf16.msra.mxu0 %v653
      %2361 = vmatprep.subr.bf16.mxu0 0
      %2362 = vmatpush1.bf16.msra.mxu0 %v654
      %2363 = vmatprep.subr.bf16.mxu0 0
      %2364 = vmatpush1.bf16.msra.mxu0 %v655
      %2365 = vmatprep.subr.bf16.mxu0 0
      %2366 = vmatpush1.bf16.msra.mxu0 %v656
      %2367 = vmatprep.subr.bf16.mxu0 0
      %2368 = vmatpush1.bf16.msra.mxu0 %v657
      %2369 = vmatprep.subr.bf16.mxu0 0
      %2370 = vmatpush1.bf16.msra.mxu0 %v658
      %2371 = vmatprep.subr.bf16.mxu0 0
      %2372 = vmatpush1.bf16.msra.mxu0 %v659
      %2373 = vmatprep.subr.bf16.mxu0 0
      %2374 = vmatpush1.bf16.msra.mxu0 %v660
      %2375 = vmatprep.subr.bf16.mxu0 0
      %2376 = vmatpush1.bf16.msra.mxu0 %v661
      %2377 = vmatprep.subr.bf16.mxu0 0
      %2378 = vmatpush1.bf16.msra.mxu0 %v662
      %2379 = vmatprep.mubr.bf16.mxu0 %v2332
      %2380 = vmatmul.mubr.bf16.gmra.mrb[0].mxu0 %v2331
      %v2381 = vpop.f32.mrb[0].mxu0
      %v2382 = vadd.f32 0.0, %v2381
      %v2383 = vpop.f32.mrb[0].mxu0
      %v2384 = vpop.f32.mrb[0].mxu0
      %v2385 = vadd.f32 0.0, %v2384
      %v2386 = vpop.f32.mrb[0].mxu0
      %2387 = vmatprep.mubr.bf16.mxu0 %v2334
      %2388 = vmatmul.mubr.bf16.gmra.mrb[0].mxu0 %v2333
      %v2389 = vpop.f32.mrb[0].mxu0
      %v2390 = vadd.f32 0.0, %v2389
      %v2391 = vpop.f32.mrb[0].mxu0
      %v2392 = vpop.f32.mrb[0].mxu0
      %v2393 = vadd.f32 0.0, %v2392
      %v2394 = vpop.f32.mrb[0].mxu0
      %2395 = vmatprep.mubr.bf16.mxu0 %v2336
      %2396 = vmatmul.mubr.bf16.gmra.mrb[0].mxu0 %v2335
      %v2397 = vpop.f32.mrb[0].mxu0
      %v2398 = vadd.f32 0.0, %v2397
      %v2399 = vpop.f32.mrb[0].mxu0
      %v2400 = vpop.f32.mrb[0].mxu0
      %v2401 = vadd.f32 0.0, %v2400
      %v2402 = vpop.f32.mrb[0].mxu0
      %2403 = vmatprep.mubr.bf16.mxu0 %v2338
      %2404 = vmatmul.mubr.bf16.gmra.mrb[0].mxu0 %v2337
      %v2405 = vpop.f32.mrb[0].mxu0
      %v2406 = vadd.f32 0.0, %v2405
      %v2407 = vpop.f32.mrb[0].mxu0
      %v2408 = vpop.f32.mrb[0].mxu0
      %v2409 = vadd.f32 0.0, %v2408
      %v2410 = vpop.f32.mrb[0].mxu0
      %2411 = vdwg.mxu0
      %v2412 = vpack.c.bf16 %v2385, %v2382
      %v2413 = vpack.c.bf16 %v2393, %v2390
      %v2414 = vpack.c.bf16 %v2401, %v2398
      %v2415 = vpack.c.bf16 %v2409, %v2406
      %s2416 = scalar_lea.vmem %s5, 16
      %v2417 = vld [vmem:[%s2416] sm:$0x3]
      %v2419 = vsel %vm749, %v2412, 0
      %v2422 = vsel %vm749, %v2413, 0
      %v2425 = vsel %vm749, %v2414, 0
      %v2428 = vsel %vm749, %v2415, 0
      %v2431 = vand.u32 %v2417, %v765
      %2433 = vmatprep.subr.bf16.mxu0 0
      %2434 = vmatpush1.bf16.msra.mxu0 %v2431
      %2435 = vmatprep.subr.bf16.mxu0 0
      %2436 = vmatpush1.bf16.msra.mxu0 0
      %2437 = vmatprep.subr.bf16.mxu0 0
      %2438 = vmatpush1.bf16.msra.mxu0 0
      %2439 = vmatprep.subr.bf16.mxu0 0
      %2440 = vmatpush1.bf16.msra.mxu0 0
      %2441 = vmatprep.subr.bf16.mxu0 0
      %2442 = vmatpush1.bf16.msra.mxu0 0
      %2443 = vmatprep.subr.bf16.mxu0 0
      %2444 = vmatpush1.bf16.msra.mxu0 0
      %2445 = vmatprep.subr.bf16.mxu0 0
      %2446 = vmatpush1.bf16.msra.mxu0 0
      %2447 = vmatprep.subr.bf16.mxu0 0
      %2448 = vmatpush1.bf16.msra.mxu0 0
      %2449 = vmatprep.subr.bf16.mxu0 0
      %2450 = vmatpush1.bf16.msra.mxu0 0
      %2451 = vmatprep.subr.bf16.mxu0 0
      %2452 = vmatpush1.bf16.msra.mxu0 0
      %2453 = vmatprep.subr.bf16.mxu0 0
      %2454 = vmatpush1.bf16.msra.mxu0 0
      %2455 = vmatprep.subr.bf16.mxu0 0
      %2456 = vmatpush1.bf16.msra.mxu0 0
      %2457 = vmatprep.subr.bf16.mxu0 0
      %2458 = vmatpush1.bf16.msra.mxu0 0
      %2459 = vmatprep.subr.bf16.mxu0 0
      %2460 = vmatpush1.bf16.msra.mxu0 0
      %2461 = vmatprep.subr.bf16.mxu0 0
      %2462 = vmatpush1.bf16.msra.mxu0 0
      %2463 = vmatprep.subr.bf16.mxu0 0
      %2464 = vmatpush1.bf16.msra.mxu0 0
      %2465 = vmatprep.mubr.bf16.mxu0 0
      %2466 = vmatmul.mubr.bf16.gmra.mrb[0].mxu0 %v2419
      %v2467 = vpop.f32.mrb[0].mxu0
      %v2468 = vadd.f32 0.0, %v2467
      %v2469 = vpop.f32.mrb[0].mxu0
      %v2470 = vpop.f32.mrb[0].mxu0
      %v2471 = vadd.f32 0.0, %v2470
      %v2472 = vpop.f32.mrb[0].mxu0
      %2473 = vmatprep.mubr.bf16.mxu0 0
      %2474 = vmatmul.mubr.bf16.gmra.mrb[0].mxu0 %v2422
      %v2475 = vpop.f32.mrb[0].mxu0
      %v2476 = vadd.f32 0.0, %v2475
      %v2477 = vpop.f32.mrb[0].mxu0
      %v2478 = vpop.f32.mrb[0].mxu0
      %v2479 = vadd.f32 0.0, %v2478
      %v2480 = vpop.f32.mrb[0].mxu0
      %2481 = vmatprep.mubr.bf16.mxu0 0
      %2482 = vmatmul.mubr.bf16.gmra.mrb[0].mxu0 %v2425
      %v2483 = vpop.f32.mrb[0].mxu0
      %v2484 = vadd.f32 0.0, %v2483
      %v2485 = vpop.f32.mrb[0].mxu0
      %v2486 = vpop.f32.mrb[0].mxu0
      %v2487 = vadd.f32 0.0, %v2486
      %v2488 = vpop.f32.mrb[0].mxu0
      %2489 = vmatprep.mubr.bf16.mxu0 0
      %2490 = vmatmul.mubr.bf16.gmra.mrb[0].mxu0 %v2428
      %v2491 = vpop.f32.mrb[0].mxu0
      %v2492 = vadd.f32 0.0, %v2491
      %v2493 = vpop.f32.mrb[0].mxu0
      %v2494 = vpop.f32.mrb[0].mxu0
      %v2495 = vadd.f32 0.0, %v2494
      %v2496 = vpop.f32.mrb[0].mxu0
      %2497 = vdwg.mxu0
      %v2498 = vadd.f32 %v2290, %v2468
      %v2499 = vadd.f32 %v2291, %v2471
      %v2500 = vadd.f32 %v2292, %v2476
      %v2501 = vadd.f32 %v2293, %v2479
      %v2502 = vadd.f32 %v2294, %v2484
      %v2503 = vadd.f32 %v2295, %v2487
      %v2504 = vadd.f32 %v2296, %v2492
      %v2505 = vadd.f32 %v2297, %v2495
      %v2506 = vmax.f32 %v2498, 0.0
      %v2507 = vmax.f32 %v2499, 0.0
      %v2508 = vmax.f32 %v2500, 0.0
      %v2509 = vmax.f32 %v2501, 0.0
      %v2510 = vmax.f32 %v2502, 0.0
      %v2511 = vmax.f32 %v2503, 0.0
      %v2512 = vmax.f32 %v2504, 0.0
      %v2513 = vmax.f32 %v2505, 0.0
      %v2514 = vpack.c.bf16 %v2507, %v2506
      %v2515 = vpack.c.bf16 %v2509, %v2508
      %v2516 = vpack.c.bf16 %v2511, %v2510
      %v2517 = vpack.c.bf16 %v2513, %v2512
      %v2518 = vld [vmem:[%s10] sm:$0x1]
      %v2520 = vlaneseq
      %v2521 = vshrl.u32 %v2520, 7
      %v2522 = vsub.s32 0, %v2521
      %v2523 = vrot.slane %v2518, %v2522
      %v2525 = vld [vmem:[%s2] sm:$0xf]
      %v2526 = vld [vmem:[%s2 + $0x4] sm:$0xf]
      %v2529 = vunpack.c.l.b16 %v2525
      %v2530 = vunpack.c.l.b16 %v2526
      %v2531 = vpack.c.b16 %v2530, %v2529
      %vm2532 = vcmask 523264
      %v2534 = vsel %vm2532, %v2531, 0
      %2536 = vmatprep.subr.bf16.mxu0 0
      %2537 = vmatpush1.bf16.msra.mxu0 %v2514
      %2538 = vmatprep.subr.bf16.mxu0 0
      %2539 = vmatpush1.bf16.msra.mxu0 %v2515
      %2540 = vmatprep.subr.bf16.mxu0 0
      %2541 = vmatpush1.bf16.msra.mxu0 %v2516
      %2542 = vmatprep.subr.bf16.mxu0 0
      %2543 = vmatpush1.bf16.msra.mxu0 %v2517
      %2544 = vmatprep.subr.bf16.mxu0 0
      %2545 = vmatpush1.bf16.msra.mxu0 0
      %2546 = vmatprep.subr.bf16.mxu0 0
      %2547 = vmatpush1.bf16.msra.mxu0 0
      %2548 = vmatprep.subr.bf16.mxu0 0
      %2549 = vmatpush1.bf16.msra.mxu0 0
      %2550 = vmatprep.subr.bf16.mxu0 0
      %2551 = vmatpush1.bf16.msra.mxu0 0
      %2552 = vmatprep.subr.bf16.mxu0 0
      %2553 = vmatpush1.bf16.msra.mxu0 0
      %2554 = vmatprep.subr.bf16.mxu0 0
      %2555 = vmatpush1.bf16.msra.mxu0 0
      %2556 = vmatprep.subr.bf16.mxu0 0
      %2557 = vmatpush1.bf16.msra.mxu0 0
      %2558 = vmatprep.subr.bf16.mxu0 0
      %2559 = vmatpush1.bf16.msra.mxu0 0
      %2560 = vmatprep.subr.bf16.mxu0 0
      %2561 = vmatpush1.bf16.msra.mxu0 0
      %2562 = vmatprep.subr.bf16.mxu0 0
      %2563 = vmatpush1.bf16.msra.mxu0 0
      %2564 = vmatprep.subr.bf16.mxu0 0
      %2565 = vmatpush1.bf16.msra.mxu0 0
      %2566 = vmatprep.subr.bf16.mxu0 0
      %2567 = vmatpush1.bf16.msra.mxu0 0
      %2568 = vmatprep.mubr.bf16.mxu0 0
      %2569 = vmatmul.mubr.bf16.gmra.mrb[0].mxu0 %v2534
      %v2570 = vpop.f32.mrb[0].mxu0
      %v2571 = vadd.f32 0.0, %v2570
      %v2572 = vpop.f32.mrb[0].mxu0
      %v2573 = vpop.f32.mrb[0].mxu0
      %v2574 = vadd.f32 0.0, %v2573
      %v2575 = vpop.f32.mrb[0].mxu0
      %2576 = vdwg.mxu0
      %v2577 = vpack.c.bf16 %v2574, %v2571
      %v2578 = vld [vmem:[%s6] sm:$0xf]
      %v2579 = vld [vmem:[%s6 + $0x4] sm:$0xf]
      %v2580 = vld [vmem:[%s6 + $0x8] sm:$0xf]
      %v2581 = vld [vmem:[%s6 + $0xc] sm:$0xf]
      %v2582 = vld [vmem:[%s6 + $0x10] sm:$0xf]
      %v2583 = vld [vmem:[%s6 + $0x14] sm:$0xf]
      %v2584 = vld [vmem:[%s6 + $0x18] sm:$0xf]
      %v2585 = vld [vmem:[%s6 + $0x1c] sm:$0xf]
      %v2594 = vunpack.c.l.b16 %v2578
      %v2595 = vunpack.c.l.b16 %v2579
      %v2596 = vunpack.c.l.b16 %v2580
      %v2597 = vunpack.c.l.b16 %v2581
      %v2598 = vunpack.c.l.b16 %v2582
      %v2599 = vunpack.c.l.b16 %v2583
      %v2600 = vunpack.c.l.b16 %v2584
      %v2601 = vunpack.c.l.b16 %v2585
      %v2602 = vpack.c.b16 %v2595, %v2594
      %v2603 = vpack.c.b16 %v2597, %v2596
      %v2604 = vpack.c.b16 %v2599, %v2598
      %v2605 = vpack.c.b16 %v2601, %v2600
      %v2611 = vsel %vm2532, %v2577, 0
      %2613 = vmatprep.subr.bf16.mxu0 0
      %2614 = vmatpush1.bf16.msra.mxu0 %v2602
      %2615 = vmatprep.subr.bf16.mxu0 0
      %2616 = vmatpush1.bf16.msra.mxu0 %v2603
      %2617 = vmatprep.subr.bf16.mxu0 0
      %2618 = vmatpush1.bf16.msra.mxu0 %v2604
      %2619 = vmatprep.subr.bf16.mxu0 0
      %2620 = vmatpush1.bf16.msra.mxu0 %v2605
      %2621 = vmatprep.subr.bf16.mxu0 0
      %2622 = vmatpush1.bf16.msra.mxu0 0
      %2623 = vmatprep.subr.bf16.mxu0 0
      %2624 = vmatpush1.bf16.msra.mxu0 0
      %2625 = vmatprep.subr.bf16.mxu0 0
      %2626 = vmatpush1.bf16.msra.mxu0 0
      %2627 = vmatprep.subr.bf16.mxu0 0
      %2628 = vmatpush1.bf16.msra.mxu0 0
      %2629 = vmatprep.subr.bf16.mxu0 0
      %2630 = vmatpush1.bf16.msra.mxu0 0
      %2631 = vmatprep.subr.bf16.mxu0 0
      %2632 = vmatpush1.bf16.msra.mxu0 0
      %2633 = vmatprep.subr.bf16.mxu0 0
      %2634 = vmatpush1.bf16.msra.mxu0 0
      %2635 = vmatprep.subr.bf16.mxu0 0
      %2636 = vmatpush1.bf16.msra.mxu0 0
      %2637 = vmatprep.subr.bf16.mxu0 0
      %2638 = vmatpush1.bf16.msra.mxu0 0
      %2639 = vmatprep.subr.bf16.mxu0 0
      %2640 = vmatpush1.bf16.msra.mxu0 0
      %2641 = vmatprep.subr.bf16.mxu0 0
      %2642 = vmatpush1.bf16.msra.mxu0 0
      %2643 = vmatprep.subr.bf16.mxu0 0
      %2644 = vmatpush1.bf16.msra.mxu0 0
      %2645 = vmatprep.mubr.bf16.mxu0 0
      %2646 = vmatmul.mubr.bf16.gmra.mrb[0].mxu0 %v2611
      %v2647 = vpop.f32.mrb[0].mxu0
      %v2648 = vadd.f32 0.0, %v2647
      %v2649 = vpop.f32.mrb[0].mxu0
      %v2650 = vpop.f32.mrb[0].mxu0
      %v2651 = vadd.f32 0.0, %v2650
      %v2652 = vpop.f32.mrb[0].mxu0
      %2653 = vdwg.mxu0
      %v2654 = vadd.f32 %v2523, %v2648
      %v2655 = vadd.f32 %v2523, %v2651
      %s2656 = scalar_lea.vmem %s2, 8
      %v2657 = vld [vmem:[%s2656] sm:$0xf]
      %v2658 = vld [vmem:[%s2656 + $0x4] sm:$0xf]
      %v2661 = vunpack.c.l.b16 %v2657
      %v2662 = vunpack.c.l.b16 %v2658
      %v2663 = vpack.c.b16 %v2662, %v2661
      %v2665 = vsel %vm2532, %v2663, 0
      %2667 = vmatprep.subr.bf16.mxu0 0
      %2668 = vmatpush1.bf16.msra.mxu0 %v2514
      %2669 = vmatprep.subr.bf16.mxu0 0
      %2670 = vmatpush1.bf16.msra.mxu0 %v2515
      %2671 = vmatprep.subr.bf16.mxu0 0
      %2672 = vmatpush1.bf16.msra.mxu0 %v2516
      %2673 = vmatprep.subr.bf16.mxu0 0
      %2674 = vmatpush1.bf16.msra.mxu0 %v2517
      %2675 = vmatprep.subr.bf16.mxu0 0
      %2676 = vmatpush1.bf16.msra.mxu0 0
      %2677 = vmatprep.subr.bf16.mxu0 0
      %2678 = vmatpush1.bf16.msra.mxu0 0
      %2679 = vmatprep.subr.bf16.mxu0 0
      %2680 = vmatpush1.bf16.msra.mxu0 0
      %2681 = vmatprep.subr.bf16.mxu0 0
      %2682 = vmatpush1.bf16.msra.mxu0 0
      %2683 = vmatprep.subr.bf16.mxu0 0
      %2684 = vmatpush1.bf16.msra.mxu0 0
      %2685 = vmatprep.subr.bf16.mxu0 0
      %2686 = vmatpush1.bf16.msra.mxu0 0
      %2687 = vmatprep.subr.bf16.mxu0 0
      %2688 = vmatpush1.bf16.msra.mxu0 0
      %2689 = vmatprep.subr.bf16.mxu0 0
      %2690 = vmatpush1.bf16.msra.mxu0 0
      %2691 = vmatprep.subr.bf16.mxu0 0
      %2692 = vmatpush1.bf16.msra.mxu0 0
      %2693 = vmatprep.subr.bf16.mxu0 0
      %2694 = vmatpush1.bf16.msra.mxu0 0
      %2695 = vmatprep.subr.bf16.mxu0 0
      %2696 = vmatpush1.bf16.msra.mxu0 0
      %2697 = vmatprep.subr.bf16.mxu0 0
      %2698 = vmatpush1.bf16.msra.mxu0 0
      %2699 = vmatprep.mubr.bf16.mxu0 0
      %2700 = vmatmul.mubr.bf16.gmra.mrb[0].mxu0 %v2665
      %v2701 = vpop.f32.mrb[0].mxu0
      %v2702 = vadd.f32 0.0, %v2701
      %v2703 = vpop.f32.mrb[0].mxu0
      %v2704 = vpop.f32.mrb[0].mxu0
      %v2705 = vadd.f32 0.0, %v2704
      %v2706 = vpop.f32.mrb[0].mxu0
      %2707 = vdwg.mxu0
      %v2708 = vpack.c.bf16 %v2705, %v2702
      %s2709 = scalar_lea.vmem %s6, 32
      %v2710 = vld [vmem:[%s2709] sm:$0xf]
      %v2711 = vld [vmem:[%s2709 + $0x4] sm:$0xf]
      %v2712 = vld [vmem:[%s2709 + $0x8] sm:$0xf]
      %v2713 = vld [vmem:[%s2709 + $0xc] sm:$0xf]
      %v2714 = vld [vmem:[%s2709 + $0x10] sm:$0xf]
      %v2715 = vld [vmem:[%s2709 + $0x14] sm:$0xf]
      %v2716 = vld [vmem:[%s2709 + $0x18] sm:$0xf]
      %v2717 = vld [vmem:[%s2709 + $0x1c] sm:$0xf]
      %v2726 = vunpack.c.l.b16 %v2710
      %v2727 = vunpack.c.l.b16 %v2711
      %v2728 = vunpack.c.l.b16 %v2712
      %v2729 = vunpack.c.l.b16 %v2713
      %v2730 = vunpack.c.l.b16 %v2714
      %v2731 = vunpack.c.l.b16 %v2715
      %v2732 = vunpack.c.l.b16 %v2716
      %v2733 = vunpack.c.l.b16 %v2717
      %v2734 = vpack.c.b16 %v2727, %v2726
      %v2735 = vpack.c.b16 %v2729, %v2728
      %v2736 = vpack.c.b16 %v2731, %v2730
      %v2737 = vpack.c.b16 %v2733, %v2732
      %v2743 = vsel %vm2532, %v2708, 0
      %2745 = vmatprep.subr.bf16.mxu0 0
      %2746 = vmatpush1.bf16.msra.mxu0 %v2734
      %2747 = vmatprep.subr.bf16.mxu0 0
      %2748 = vmatpush1.bf16.msra.mxu0 %v2735
      %2749 = vmatprep.subr.bf16.mxu0 0
      %2750 = vmatpush1.bf16.msra.mxu0 %v2736
      %2751 = vmatprep.subr.bf16.mxu0 0
      %2752 = vmatpush1.bf16.msra.mxu0 %v2737
      %2753 = vmatprep.subr.bf16.mxu0 0
      %2754 = vmatpush1.bf16.msra.mxu0 0
      %2755 = vmatprep.subr.bf16.mxu0 0
      %2756 = vmatpush1.bf16.msra.mxu0 0
      %2757 = vmatprep.subr.bf16.mxu0 0
      %2758 = vmatpush1.bf16.msra.mxu0 0
      %2759 = vmatprep.subr.bf16.mxu0 0
      %2760 = vmatpush1.bf16.msra.mxu0 0
      %2761 = vmatprep.subr.bf16.mxu0 0
      %2762 = vmatpush1.bf16.msra.mxu0 0
      %2763 = vmatprep.subr.bf16.mxu0 0
      %2764 = vmatpush1.bf16.msra.mxu0 0
      %2765 = vmatprep.subr.bf16.mxu0 0
      %2766 = vmatpush1.bf16.msra.mxu0 0
      %2767 = vmatprep.subr.bf16.mxu0 0
      %2768 = vmatpush1.bf16.msra.mxu0 0
      %2769 = vmatprep.subr.bf16.mxu0 0
      %2770 = vmatpush1.bf16.msra.mxu0 0
      %2771 = vmatprep.subr.bf16.mxu0 0
      %2772 = vmatpush1.bf16.msra.mxu0 0
      %2773 = vmatprep.subr.bf16.mxu0 0
      %2774 = vmatpush1.bf16.msra.mxu0 0
      %2775 = vmatprep.subr.bf16.mxu0 0
      %2776 = vmatpush1.bf16.msra.mxu0 0
      %2777 = vmatprep.mubr.bf16.mxu0 0
      %2778 = vmatmul.mubr.bf16.gmra.mrb[0].mxu0 %v2743
      %v2779 = vpop.f32.mrb[0].mxu0
      %v2780 = vadd.f32 0.0, %v2779
      %v2781 = vpop.f32.mrb[0].mxu0
      %v2782 = vpop.f32.mrb[0].mxu0
      %v2783 = vadd.f32 0.0, %v2782
      %v2784 = vpop.f32.mrb[0].mxu0
      %2785 = vdwg.mxu0
      %v2786 = vadd.f32 %v2654, %v2780
      %v2787 = vadd.f32 %v2655, %v2783
      %s2788 = scalar_lea.vmem %s2, 16
      %v2789 = vld [vmem:[%s2788] sm:$0xf]
      %v2790 = vld [vmem:[%s2788 + $0x4] sm:$0xf]
      %v2793 = vunpack.c.l.b16 %v2789
      %v2794 = vunpack.c.l.b16 %v2790
      %v2795 = vpack.c.b16 %v2794, %v2793
      %v2797 = vsel %vm2532, %v2795, 0
      %2799 = vmatprep.subr.bf16.mxu0 0
      %2800 = vmatpush1.bf16.msra.mxu0 %v2514
      %2801 = vmatprep.subr.bf16.mxu0 0
      %2802 = vmatpush1.bf16.msra.mxu0 %v2515
      %2803 = vmatprep.subr.bf16.mxu0 0
      %2804 = vmatpush1.bf16.msra.mxu0 %v2516
      %2805 = vmatprep.subr.bf16.mxu0 0
      %2806 = vmatpush1.bf16.msra.mxu0 %v2517
      %2807 = vmatprep.subr.bf16.mxu0 0
      %2808 = vmatpush1.bf16.msra.mxu0 0
      %2809 = vmatprep.subr.bf16.mxu0 0
      %2810 = vmatpush1.bf16.msra.mxu0 0
      %2811 = vmatprep.subr.bf16.mxu0 0
      %2812 = vmatpush1.bf16.msra.mxu0 0
      %2813 = vmatprep.subr.bf16.mxu0 0
      %2814 = vmatpush1.bf16.msra.mxu0 0
      %2815 = vmatprep.subr.bf16.mxu0 0
      %2816 = vmatpush1.bf16.msra.mxu0 0
      %2817 = vmatprep.subr.bf16.mxu0 0
      %2818 = vmatpush1.bf16.msra.mxu0 0
      %2819 = vmatprep.subr.bf16.mxu0 0
      %2820 = vmatpush1.bf16.msra.mxu0 0
      %2821 = vmatprep.subr.bf16.mxu0 0
      %2822 = vmatpush1.bf16.msra.mxu0 0
      %2823 = vmatprep.subr.bf16.mxu0 0
      %2824 = vmatpush1.bf16.msra.mxu0 0
      %2825 = vmatprep.subr.bf16.mxu0 0
      %2826 = vmatpush1.bf16.msra.mxu0 0
      %2827 = vmatprep.subr.bf16.mxu0 0
      %2828 = vmatpush1.bf16.msra.mxu0 0
      %2829 = vmatprep.subr.bf16.mxu0 0
      %2830 = vmatpush1.bf16.msra.mxu0 0
      %2831 = vmatprep.mubr.bf16.mxu0 0
      %2832 = vmatmul.mubr.bf16.gmra.mrb[0].mxu0 %v2797
      %v2833 = vpop.f32.mrb[0].mxu0
      %v2834 = vadd.f32 0.0, %v2833
      %v2835 = vpop.f32.mrb[0].mxu0
      %v2836 = vpop.f32.mrb[0].mxu0
      %v2837 = vadd.f32 0.0, %v2836
      %v2838 = vpop.f32.mrb[0].mxu0
      %2839 = vdwg.mxu0
      %v2840 = vpack.c.bf16 %v2837, %v2834
      %s2841 = scalar_lea.vmem %s6, 64
      %v2842 = vld [vmem:[%s2841] sm:$0xf]
      %v2843 = vld [vmem:[%s2841 + $0x4] sm:$0xf]
      %v2844 = vld [vmem:[%s2841 + $0x8] sm:$0xf]
      %v2845 = vld [vmem:[%s2841 + $0xc] sm:$0xf]
      %v2846 = vld [vmem:[%s2841 + $0x10] sm:$0xf]
      %v2847 = vld [vmem:[%s2841 + $0x14] sm:$0xf]
      %v2848 = vld [vmem:[%s2841 + $0x18] sm:$0xf]
      %v2849 = vld [vmem:[%s2841 + $0x1c] sm:$0xf]
      %v2858 = vunpack.c.l.b16 %v2842
      %v2859 = vunpack.c.l.b16 %v2843
      %v2860 = vunpack.c.l.b16 %v2844
      %v2861 = vunpack.c.l.b16 %v2845
      %v2862 = vunpack.c.l.b16 %v2846
      %v2863 = vunpack.c.l.b16 %v2847
      %v2864 = vunpack.c.l.b16 %v2848
      %v2865 = vunpack.c.l.b16 %v2849
      %v2866 = vpack.c.b16 %v2859, %v2858
      %v2867 = vpack.c.b16 %v2861, %v2860
      %v2868 = vpack.c.b16 %v2863, %v2862
      %v2869 = vpack.c.b16 %v2865, %v2864
      %v2875 = vsel %vm2532, %v2840, 0
      %2877 = vmatprep.subr.bf16.mxu0 0
      %2878 = vmatpush1.bf16.msra.mxu0 %v2866
      %2879 = vmatprep.subr.bf16.mxu0 0
      %2880 = vmatpush1.bf16.msra.mxu0 %v2867
      %2881 = vmatprep.subr.bf16.mxu0 0
      %2882 = vmatpush1.bf16.msra.mxu0 %v2868
      %2883 = vmatprep.subr.bf16.mxu0 0
      %2884 = vmatpush1.bf16.msra.mxu0 %v2869
      %2885 = vmatprep.subr.bf16.mxu0 0
      %2886 = vmatpush1.bf16.msra.mxu0 0
      %2887 = vmatprep.subr.bf16.mxu0 0
      %2888 = vmatpush1.bf16.msra.mxu0 0
      %2889 = vmatprep.subr.bf16.mxu0 0
      %2890 = vmatpush1.bf16.msra.mxu0 0
      %2891 = vmatprep.subr.bf16.mxu0 0
      %2892 = vmatpush1.bf16.msra.mxu0 0
      %2893 = vmatprep.subr.bf16.mxu0 0
      %2894 = vmatpush1.bf16.msra.mxu0 0
      %2895 = vmatprep.subr.bf16.mxu0 0
      %2896 = vmatpush1.bf16.msra.mxu0 0
      %2897 = vmatprep.subr.bf16.mxu0 0
      %2898 = vmatpush1.bf16.msra.mxu0 0
      %2899 = vmatprep.subr.bf16.mxu0 0
      %2900 = vmatpush1.bf16.msra.mxu0 0
      %2901 = vmatprep.subr.bf16.mxu0 0
      %2902 = vmatpush1.bf16.msra.mxu0 0
      %2903 = vmatprep.subr.bf16.mxu0 0
      %2904 = vmatpush1.bf16.msra.mxu0 0
      %2905 = vmatprep.subr.bf16.mxu0 0
      %2906 = vmatpush1.bf16.msra.mxu0 0
      %2907 = vmatprep.subr.bf16.mxu0 0
      %2908 = vmatpush1.bf16.msra.mxu0 0
      %2909 = vmatprep.mubr.bf16.mxu0 0
      %2910 = vmatmul.mubr.bf16.gmra.mrb[0].mxu0 %v2875
      %v2911 = vpop.f32.mrb[0].mxu0
      %v2912 = vadd.f32 0.0, %v2911
      %v2913 = vpop.f32.mrb[0].mxu0
      %v2914 = vpop.f32.mrb[0].mxu0
      %v2915 = vadd.f32 0.0, %v2914
      %v2916 = vpop.f32.mrb[0].mxu0
      %2917 = vdwg.mxu0
      %v2918 = vadd.f32 %v2786, %v2912
      %v2919 = vadd.f32 %v2787, %v2915
      %s2920 = scalar_lea.vmem %s2, 24
      %v2921 = vld [vmem:[%s2920] sm:$0xf]
      %v2922 = vld [vmem:[%s2920 + $0x4] sm:$0xf]
      %v2925 = vunpack.c.l.b16 %v2921
      %v2926 = vunpack.c.l.b16 %v2922
      %v2927 = vpack.c.b16 %v2926, %v2925
      %v2929 = vsel %vm2532, %v2927, 0
      %2931 = vmatprep.subr.bf16.mxu0 0
      %2932 = vmatpush1.bf16.msra.mxu0 %v2514
      %2933 = vmatprep.subr.bf16.mxu0 0
      %2934 = vmatpush1.bf16.msra.mxu0 %v2515
      %2935 = vmatprep.subr.bf16.mxu0 0
      %2936 = vmatpush1.bf16.msra.mxu0 %v2516
      %2937 = vmatprep.subr.bf16.mxu0 0
      %2938 = vmatpush1.bf16.msra.mxu0 %v2517
      %2939 = vmatprep.subr.bf16.mxu0 0
      %2940 = vmatpush1.bf16.msra.mxu0 0
      %2941 = vmatprep.subr.bf16.mxu0 0
      %2942 = vmatpush1.bf16.msra.mxu0 0
      %2943 = vmatprep.subr.bf16.mxu0 0
      %2944 = vmatpush1.bf16.msra.mxu0 0
      %2945 = vmatprep.subr.bf16.mxu0 0
      %2946 = vmatpush1.bf16.msra.mxu0 0
      %2947 = vmatprep.subr.bf16.mxu0 0
      %2948 = vmatpush1.bf16.msra.mxu0 0
      %2949 = vmatprep.subr.bf16.mxu0 0
      %2950 = vmatpush1.bf16.msra.mxu0 0
      %2951 = vmatprep.subr.bf16.mxu0 0
      %2952 = vmatpush1.bf16.msra.mxu0 0
      %2953 = vmatprep.subr.bf16.mxu0 0
      %2954 = vmatpush1.bf16.msra.mxu0 0
      %2955 = vmatprep.subr.bf16.mxu0 0
      %2956 = vmatpush1.bf16.msra.mxu0 0
      %2957 = vmatprep.subr.bf16.mxu0 0
      %2958 = vmatpush1.bf16.msra.mxu0 0
      %2959 = vmatprep.subr.bf16.mxu0 0
      %2960 = vmatpush1.bf16.msra.mxu0 0
      %2961 = vmatprep.subr.bf16.mxu0 0
      %2962 = vmatpush1.bf16.msra.mxu0 0
      %2963 = vmatprep.mubr.bf16.mxu0 0
      %2964 = vmatmul.mubr.bf16.gmra.mrb[0].mxu0 %v2929
      %v2965 = vpop.f32.mrb[0].mxu0
      %v2966 = vadd.f32 0.0, %v2965
      %v2967 = vpop.f32.mrb[0].mxu0
      %v2968 = vpop.f32.mrb[0].mxu0
      %v2969 = vadd.f32 0.0, %v2968
      %v2970 = vpop.f32.mrb[0].mxu0
      %2971 = vdwg.mxu0
      %v2972 = vpack.c.bf16 %v2969, %v2966
      %s2973 = scalar_lea.vmem %s6, 96
      %v2974 = vld [vmem:[%s2973] sm:$0xf]
      %v2975 = vld [vmem:[%s2973 + $0x4] sm:$0xf]
      %v2976 = vld [vmem:[%s2973 + $0x8] sm:$0xf]
      %v2977 = vld [vmem:[%s2973 + $0xc] sm:$0xf]
      %v2978 = vld [vmem:[%s2973 + $0x10] sm:$0xf]
      %v2979 = vld [vmem:[%s2973 + $0x14] sm:$0xf]
      %v2980 = vld [vmem:[%s2973 + $0x18] sm:$0xf]
      %v2981 = vld [vmem:[%s2973 + $0x1c] sm:$0xf]
      %v2990 = vunpack.c.l.b16 %v2974
      %v2991 = vunpack.c.l.b16 %v2975
      %v2992 = vunpack.c.l.b16 %v2976
      %v2993 = vunpack.c.l.b16 %v2977
      %v2994 = vunpack.c.l.b16 %v2978
      %v2995 = vunpack.c.l.b16 %v2979
      %v2996 = vunpack.c.l.b16 %v2980
      %v2997 = vunpack.c.l.b16 %v2981
      %v2998 = vpack.c.b16 %v2991, %v2990
      %v2999 = vpack.c.b16 %v2993, %v2992
      %v3000 = vpack.c.b16 %v2995, %v2994
      %v3001 = vpack.c.b16 %v2997, %v2996
      %v3007 = vsel %vm2532, %v2972, 0
      %3009 = vmatprep.subr.bf16.mxu0 0
      %3010 = vmatpush1.bf16.msra.mxu0 %v2998
      %3011 = vmatprep.subr.bf16.mxu0 0
      %3012 = vmatpush1.bf16.msra.mxu0 %v2999
      %3013 = vmatprep.subr.bf16.mxu0 0
      %3014 = vmatpush1.bf16.msra.mxu0 %v3000
      %3015 = vmatprep.subr.bf16.mxu0 0
      %3016 = vmatpush1.bf16.msra.mxu0 %v3001
      %3017 = vmatprep.subr.bf16.mxu0 0
      %3018 = vmatpush1.bf16.msra.mxu0 0
      %3019 = vmatprep.subr.bf16.mxu0 0
      %3020 = vmatpush1.bf16.msra.mxu0 0
      %3021 = vmatprep.subr.bf16.mxu0 0
      %3022 = vmatpush1.bf16.msra.mxu0 0
      %3023 = vmatprep.subr.bf16.mxu0 0
      %3024 = vmatpush1.bf16.msra.mxu0 0
      %3025 = vmatprep.subr.bf16.mxu0 0
      %3026 = vmatpush1.bf16.msra.mxu0 0
      %3027 = vmatprep.subr.bf16.mxu0 0
      %3028 = vmatpush1.bf16.msra.mxu0 0
      %3029 = vmatprep.subr.bf16.mxu0 0
      %3030 = vmatpush1.bf16.msra.mxu0 0
      %3031 = vmatprep.subr.bf16.mxu0 0
      %3032 = vmatpush1.bf16.msra.mxu0 0
      %3033 = vmatprep.subr.bf16.mxu0 0
      %3034 = vmatpush1.bf16.msra.mxu0 0
      %3035 = vmatprep.subr.bf16.mxu0 0
      %3036 = vmatpush1.bf16.msra.mxu0 0
      %3037 = vmatprep.subr.bf16.mxu0 0
      %3038 = vmatpush1.bf16.msra.mxu0 0
      %3039 = vmatprep.subr.bf16.mxu0 0
      %3040 = vmatpush1.bf16.msra.mxu0 0
      %3041 = vmatprep.mubr.bf16.mxu0 0
      %3042 = vmatmul.mubr.bf16.gmra.mrb[0].mxu0 %v3007
      %v3043 = vpop.f32.mrb[0].mxu0
      %v3044 = vadd.f32 0.0, %v3043
      %v3045 = vpop.f32.mrb[0].mxu0
      %v3046 = vpop.f32.mrb[0].mxu0
      %v3047 = vadd.f32 0.0, %v3046
      %v3048 = vpop.f32.mrb[0].mxu0
      %3049 = vdwg.mxu0
      %v3050 = vadd.f32 %v2918, %v3044
      %v3051 = vadd.f32 %v2919, %v3047
      %s3052 = scalar_lea.vmem %s2, 32
      %v3053 = vld [vmem:[%s3052] sm:$0xf]
      %v3054 = vld [vmem:[%s3052 + $0x4] sm:$0xf]
      %v3057 = vunpack.c.l.b16 %v3053
      %v3058 = vunpack.c.l.b16 %v3054
      %v3059 = vpack.c.b16 %v3058, %v3057
      %v3061 = vsel %vm2532, %v3059, 0
      %3063 = vmatprep.subr.bf16.mxu0 0
      %3064 = vmatpush1.bf16.msra.mxu0 %v2514
      %3065 = vmatprep.subr.bf16.mxu0 0
      %3066 = vmatpush1.bf16.msra.mxu0 %v2515
      %3067 = vmatprep.subr.bf16.mxu0 0
      %3068 = vmatpush1.bf16.msra.mxu0 %v2516
      %3069 = vmatprep.subr.bf16.mxu0 0
      %3070 = vmatpush1.bf16.msra.mxu0 %v2517
      %3071 = vmatprep.subr.bf16.mxu0 0
      %3072 = vmatpush1.bf16.msra.mxu0 0
      %3073 = vmatprep.subr.bf16.mxu0 0
      %3074 = vmatpush1.bf16.msra.mxu0 0
      %3075 = vmatprep.subr.bf16.mxu0 0
      %3076 = vmatpush1.bf16.msra.mxu0 0
      %3077 = vmatprep.subr.bf16.mxu0 0
      %3078 = vmatpush1.bf16.msra.mxu0 0
      %3079 = vmatprep.subr.bf16.mxu0 0
      %3080 = vmatpush1.bf16.msra.mxu0 0
      %3081 = vmatprep.subr.bf16.mxu0 0
      %3082 = vmatpush1.bf16.msra.mxu0 0
      %3083 = vmatprep.subr.bf16.mxu0 0
      %3084 = vmatpush1.bf16.msra.mxu0 0
      %3085 = vmatprep.subr.bf16.mxu0 0
      %3086 = vmatpush1.bf16.msra.mxu0 0
      %3087 = vmatprep.subr.bf16.mxu0 0
      %3088 = vmatpush1.bf16.msra.mxu0 0
      %3089 = vmatprep.subr.bf16.mxu0 0
      %3090 = vmatpush1.bf16.msra.mxu0 0
      %3091 = vmatprep.subr.bf16.mxu0 0
      %3092 = vmatpush1.bf16.msra.mxu0 0
      %3093 = vmatprep.subr.bf16.mxu0 0
      %3094 = vmatpush1.bf16.msra.mxu0 0
      %3095 = vmatprep.mubr.bf16.mxu0 0
      %3096 = vmatmul.mubr.bf16.gmra.mrb[0].mxu0 %v3061
      %v3097 = vpop.f32.mrb[0].mxu0
      %v3098 = vadd.f32 0.0, %v3097
      %v3099 = vpop.f32.mrb[0].mxu0
      %v3100 = vpop.f32.mrb[0].mxu0
      %v3101 = vadd.f32 0.0, %v3100
      %v3102 = vpop.f32.mrb[0].mxu0
      %3103 = vdwg.mxu0
      %v3104 = vpack.c.bf16 %v3101, %v3098
      %s3105 = scalar_lea.vmem %s6, 128
      %v3106 = vld [vmem:[%s3105] sm:$0xf]
      %v3107 = vld [vmem:[%s3105 + $0x4] sm:$0xf]
      %v3108 = vld [vmem:[%s3105 + $0x8] sm:$0xf]
      %v3109 = vld [vmem:[%s3105 + $0xc] sm:$0xf]
      %v3110 = vld [vmem:[%s3105 + $0x10] sm:$0xf]
      %v3111 = vld [vmem:[%s3105 + $0x14] sm:$0xf]
      %v3112 = vld [vmem:[%s3105 + $0x18] sm:$0xf]
      %v3113 = vld [vmem:[%s3105 + $0x1c] sm:$0xf]
      %v3122 = vunpack.c.l.b16 %v3106
      %v3123 = vunpack.c.l.b16 %v3107
      %v3124 = vunpack.c.l.b16 %v3108
      %v3125 = vunpack.c.l.b16 %v3109
      %v3126 = vunpack.c.l.b16 %v3110
      %v3127 = vunpack.c.l.b16 %v3111
      %v3128 = vunpack.c.l.b16 %v3112
      %v3129 = vunpack.c.l.b16 %v3113
      %v3130 = vpack.c.b16 %v3123, %v3122
      %v3131 = vpack.c.b16 %v3125, %v3124
      %v3132 = vpack.c.b16 %v3127, %v3126
      %v3133 = vpack.c.b16 %v3129, %v3128
      %v3139 = vsel %vm2532, %v3104, 0
      %3141 = vmatprep.subr.bf16.mxu0 0
      %3142 = vmatpush1.bf16.msra.mxu0 %v3130
      %3143 = vmatprep.subr.bf16.mxu0 0
      %3144 = vmatpush1.bf16.msra.mxu0 %v3131
      %3145 = vmatprep.subr.bf16.mxu0 0
      %3146 = vmatpush1.bf16.msra.mxu0 %v3132
      %3147 = vmatprep.subr.bf16.mxu0 0
      %3148 = vmatpush1.bf16.msra.mxu0 %v3133
      %3149 = vmatprep.subr.bf16.mxu0 0
      %3150 = vmatpush1.bf16.msra.mxu0 0
      %3151 = vmatprep.subr.bf16.mxu0 0
      %3152 = vmatpush1.bf16.msra.mxu0 0
      %3153 = vmatprep.subr.bf16.mxu0 0
      %3154 = vmatpush1.bf16.msra.mxu0 0
      %3155 = vmatprep.subr.bf16.mxu0 0
      %3156 = vmatpush1.bf16.msra.mxu0 0
      %3157 = vmatprep.subr.bf16.mxu0 0
      %3158 = vmatpush1.bf16.msra.mxu0 0
      %3159 = vmatprep.subr.bf16.mxu0 0
      %3160 = vmatpush1.bf16.msra.mxu0 0
      %3161 = vmatprep.subr.bf16.mxu0 0
      %3162 = vmatpush1.bf16.msra.mxu0 0
      %3163 = vmatprep.subr.bf16.mxu0 0
      %3164 = vmatpush1.bf16.msra.mxu0 0
      %3165 = vmatprep.subr.bf16.mxu0 0
      %3166 = vmatpush1.bf16.msra.mxu0 0
      %3167 = vmatprep.subr.bf16.mxu0 0
      %3168 = vmatpush1.bf16.msra.mxu0 0
      %3169 = vmatprep.subr.bf16.mxu0 0
      %3170 = vmatpush1.bf16.msra.mxu0 0
      %3171 = vmatprep.subr.bf16.mxu0 0
      %3172 = vmatpush1.bf16.msra.mxu0 0
      %3173 = vmatprep.mubr.bf16.mxu0 0
      %3174 = vmatmul.mubr.bf16.gmra.mrb[0].mxu0 %v3139
      %v3175 = vpop.f32.mrb[0].mxu0
      %v3176 = vadd.f32 0.0, %v3175
      %v3177 = vpop.f32.mrb[0].mxu0
      %v3178 = vpop.f32.mrb[0].mxu0
      %v3179 = vadd.f32 0.0, %v3178
      %v3180 = vpop.f32.mrb[0].mxu0
      %3181 = vdwg.mxu0
      %v3182 = vadd.f32 %v3050, %v3176
      %v3183 = vadd.f32 %v3051, %v3179
      %s3184 = scalar_lea.vmem %s2, 40
      %v3185 = vld [vmem:[%s3184] sm:$0xf]
      %v3186 = vld [vmem:[%s3184 + $0x4] sm:$0xf]
      %v3189 = vunpack.c.l.b16 %v3185
      %v3190 = vunpack.c.l.b16 %v3186
      %v3191 = vpack.c.b16 %v3190, %v3189
      %v3193 = vsel %vm2532, %v3191, 0
      %3195 = vmatprep.subr.bf16.mxu0 0
      %3196 = vmatpush1.bf16.msra.mxu0 %v2514
      %3197 = vmatprep.subr.bf16.mxu0 0
      %3198 = vmatpush1.bf16.msra.mxu0 %v2515
      %3199 = vmatprep.subr.bf16.mxu0 0
      %3200 = vmatpush1.bf16.msra.mxu0 %v2516
      %3201 = vmatprep.subr.bf16.mxu0 0
      %3202 = vmatpush1.bf16.msra.mxu0 %v2517
      %3203 = vmatprep.subr.bf16.mxu0 0
      %3204 = vmatpush1.bf16.msra.mxu0 0
      %3205 = vmatprep.subr.bf16.mxu0 0
      %3206 = vmatpush1.bf16.msra.mxu0 0
      %3207 = vmatprep.subr.bf16.mxu0 0
      %3208 = vmatpush1.bf16.msra.mxu0 0
      %3209 = vmatprep.subr.bf16.mxu0 0
      %3210 = vmatpush1.bf16.msra.mxu0 0
      %3211 = vmatprep.subr.bf16.mxu0 0
      %3212 = vmatpush1.bf16.msra.mxu0 0
      %3213 = vmatprep.subr.bf16.mxu0 0
      %3214 = vmatpush1.bf16.msra.mxu0 0
      %3215 = vmatprep.subr.bf16.mxu0 0
      %3216 = vmatpush1.bf16.msra.mxu0 0
      %3217 = vmatprep.subr.bf16.mxu0 0
      %3218 = vmatpush1.bf16.msra.mxu0 0
      %3219 = vmatprep.subr.bf16.mxu0 0
      %3220 = vmatpush1.bf16.msra.mxu0 0
      %3221 = vmatprep.subr.bf16.mxu0 0
      %3222 = vmatpush1.bf16.msra.mxu0 0
      %3223 = vmatprep.subr.bf16.mxu0 0
      %3224 = vmatpush1.bf16.msra.mxu0 0
      %3225 = vmatprep.subr.bf16.mxu0 0
      %3226 = vmatpush1.bf16.msra.mxu0 0
      %3227 = vmatprep.mubr.bf16.mxu0 0
      %3228 = vmatmul.mubr.bf16.gmra.mrb[0].mxu0 %v3193
      %v3229 = vpop.f32.mrb[0].mxu0
      %v3230 = vadd.f32 0.0, %v3229
      %v3231 = vpop.f32.mrb[0].mxu0
      %v3232 = vpop.f32.mrb[0].mxu0
      %v3233 = vadd.f32 0.0, %v3232
      %v3234 = vpop.f32.mrb[0].mxu0
      %3235 = vdwg.mxu0
      %v3236 = vpack.c.bf16 %v3233, %v3230
      %s3237 = scalar_lea.vmem %s6, 160
      %v3238 = vld [vmem:[%s3237] sm:$0xf]
      %v3239 = vld [vmem:[%s3237 + $0x4] sm:$0xf]
      %v3240 = vld [vmem:[%s3237 + $0x8] sm:$0xf]
      %v3241 = vld [vmem:[%s3237 + $0xc] sm:$0xf]
      %v3242 = vld [vmem:[%s3237 + $0x10] sm:$0xf]
      %v3243 = vld [vmem:[%s3237 + $0x14] sm:$0xf]
      %v3244 = vld [vmem:[%s3237 + $0x18] sm:$0xf]
      %v3245 = vld [vmem:[%s3237 + $0x1c] sm:$0xf]
      %v3254 = vunpack.c.l.b16 %v3238
      %v3255 = vunpack.c.l.b16 %v3239
      %v3256 = vunpack.c.l.b16 %v3240
      %v3257 = vunpack.c.l.b16 %v3241
      %v3258 = vunpack.c.l.b16 %v3242
      %v3259 = vunpack.c.l.b16 %v3243
      %v3260 = vunpack.c.l.b16 %v3244
      %v3261 = vunpack.c.l.b16 %v3245
      %v3262 = vpack.c.b16 %v3255, %v3254
      %v3263 = vpack.c.b16 %v3257, %v3256
      %v3264 = vpack.c.b16 %v3259, %v3258
      %v3265 = vpack.c.b16 %v3261, %v3260
      %v3271 = vsel %vm2532, %v3236, 0
      %3273 = vmatprep.subr.bf16.mxu0 0
      %3274 = vmatpush1.bf16.msra.mxu0 %v3262
      %3275 = vmatprep.subr.bf16.mxu0 0
      %3276 = vmatpush1.bf16.msra.mxu0 %v3263
      %3277 = vmatprep.subr.bf16.mxu0 0
      %3278 = vmatpush1.bf16.msra.mxu0 %v3264
      %3279 = vmatprep.subr.bf16.mxu0 0
      %3280 = vmatpush1.bf16.msra.mxu0 %v3265
      %3281 = vmatprep.subr.bf16.mxu0 0
      %3282 = vmatpush1.bf16.msra.mxu0 0
      %3283 = vmatprep.subr.bf16.mxu0 0
      %3284 = vmatpush1.bf16.msra.mxu0 0
      %3285 = vmatprep.subr.bf16.mxu0 0
      %3286 = vmatpush1.bf16.msra.mxu0 0
      %3287 = vmatprep.subr.bf16.mxu0 0
      %3288 = vmatpush1.bf16.msra.mxu0 0
      %3289 = vmatprep.subr.bf16.mxu0 0
      %3290 = vmatpush1.bf16.msra.mxu0 0
      %3291 = vmatprep.subr.bf16.mxu0 0
      %3292 = vmatpush1.bf16.msra.mxu0 0
      %3293 = vmatprep.subr.bf16.mxu0 0
      %3294 = vmatpush1.bf16.msra.mxu0 0
      %3295 = vmatprep.subr.bf16.mxu0 0
      %3296 = vmatpush1.bf16.msra.mxu0 0
      %3297 = vmatprep.subr.bf16.mxu0 0
      %3298 = vmatpush1.bf16.msra.mxu0 0
      %3299 = vmatprep.subr.bf16.mxu0 0
      %3300 = vmatpush1.bf16.msra.mxu0 0
      %3301 = vmatprep.subr.bf16.mxu0 0
      %3302 = vmatpush1.bf16.msra.mxu0 0
      %3303 = vmatprep.subr.bf16.mxu0 0
      %3304 = vmatpush1.bf16.msra.mxu0 0
      %3305 = vmatprep.mubr.bf16.mxu0 0
      %3306 = vmatmul.mubr.bf16.gmra.mrb[0].mxu0 %v3271
      %v3307 = vpop.f32.mrb[0].mxu0
      %v3308 = vadd.f32 0.0, %v3307
      %v3309 = vpop.f32.mrb[0].mxu0
      %v3310 = vpop.f32.mrb[0].mxu0
      %v3311 = vadd.f32 0.0, %v3310
      %v3312 = vpop.f32.mrb[0].mxu0
      %3313 = vdwg.mxu0
      %v3314 = vadd.f32 %v3182, %v3308
      %v3315 = vadd.f32 %v3183, %v3311
      %s3316 = scalar_lea.vmem %s2, 48
      %v3317 = vld [vmem:[%s3316] sm:$0xf]
      %v3318 = vld [vmem:[%s3316 + $0x4] sm:$0xf]
      %v3321 = vunpack.c.l.b16 %v3317
      %v3322 = vunpack.c.l.b16 %v3318
      %v3323 = vpack.c.b16 %v3322, %v3321
      %v3325 = vsel %vm2532, %v3323, 0
      %3327 = vmatprep.subr.bf16.mxu0 0
      %3328 = vmatpush1.bf16.msra.mxu0 %v2514
      %3329 = vmatprep.subr.bf16.mxu0 0
      %3330 = vmatpush1.bf16.msra.mxu0 %v2515
      %3331 = vmatprep.subr.bf16.mxu0 0
      %3332 = vmatpush1.bf16.msra.mxu0 %v2516
      %3333 = vmatprep.subr.bf16.mxu0 0
      %3334 = vmatpush1.bf16.msra.mxu0 %v2517
      %3335 = vmatprep.subr.bf16.mxu0 0
      %3336 = vmatpush1.bf16.msra.mxu0 0
      %3337 = vmatprep.subr.bf16.mxu0 0
      %3338 = vmatpush1.bf16.msra.mxu0 0
      %3339 = vmatprep.subr.bf16.mxu0 0
      %3340 = vmatpush1.bf16.msra.mxu0 0
      %3341 = vmatprep.subr.bf16.mxu0 0
      %3342 = vmatpush1.bf16.msra.mxu0 0
      %3343 = vmatprep.subr.bf16.mxu0 0
      %3344 = vmatpush1.bf16.msra.mxu0 0
      %3345 = vmatprep.subr.bf16.mxu0 0
      %3346 = vmatpush1.bf16.msra.mxu0 0
      %3347 = vmatprep.subr.bf16.mxu0 0
      %3348 = vmatpush1.bf16.msra.mxu0 0
      %3349 = vmatprep.subr.bf16.mxu0 0
      %3350 = vmatpush1.bf16.msra.mxu0 0
      %3351 = vmatprep.subr.bf16.mxu0 0
      %3352 = vmatpush1.bf16.msra.mxu0 0
      %3353 = vmatprep.subr.bf16.mxu0 0
      %3354 = vmatpush1.bf16.msra.mxu0 0
      %3355 = vmatprep.subr.bf16.mxu0 0
      %3356 = vmatpush1.bf16.msra.mxu0 0
      %3357 = vmatprep.subr.bf16.mxu0 0
      %3358 = vmatpush1.bf16.msra.mxu0 0
      %3359 = vmatprep.mubr.bf16.mxu0 0
      %3360 = vmatmul.mubr.bf16.gmra.mrb[0].mxu0 %v3325
      %v3361 = vpop.f32.mrb[0].mxu0
      %v3362 = vadd.f32 0.0, %v3361
      %v3363 = vpop.f32.mrb[0].mxu0
      %v3364 = vpop.f32.mrb[0].mxu0
      %v3365 = vadd.f32 0.0, %v3364
      %v3366 = vpop.f32.mrb[0].mxu0
      %3367 = vdwg.mxu0
      %v3368 = vpack.c.bf16 %v3365, %v3362
      %s3369 = scalar_lea.vmem %s6, 192
      %v3370 = vld [vmem:[%s3369] sm:$0xf]
      %v3371 = vld [vmem:[%s3369 + $0x4] sm:$0xf]
      %v3372 = vld [vmem:[%s3369 + $0x8] sm:$0xf]
      %v3373 = vld [vmem:[%s3369 + $0xc] sm:$0xf]
      %v3374 = vld [vmem:[%s3369 + $0x10] sm:$0xf]
      %v3375 = vld [vmem:[%s3369 + $0x14] sm:$0xf]
      %v3376 = vld [vmem:[%s3369 + $0x18] sm:$0xf]
      %v3377 = vld [vmem:[%s3369 + $0x1c] sm:$0xf]
      %v3386 = vunpack.c.l.b16 %v3370
      %v3387 = vunpack.c.l.b16 %v3371
      %v3388 = vunpack.c.l.b16 %v3372
      %v3389 = vunpack.c.l.b16 %v3373
      %v3390 = vunpack.c.l.b16 %v3374
      %v3391 = vunpack.c.l.b16 %v3375
      %v3392 = vunpack.c.l.b16 %v3376
      %v3393 = vunpack.c.l.b16 %v3377
      %v3394 = vpack.c.b16 %v3387, %v3386
      %v3395 = vpack.c.b16 %v3389, %v3388
      %v3396 = vpack.c.b16 %v3391, %v3390
      %v3397 = vpack.c.b16 %v3393, %v3392
      %v3403 = vsel %vm2532, %v3368, 0
      %3405 = vmatprep.subr.bf16.mxu0 0
      %3406 = vmatpush1.bf16.msra.mxu0 %v3394
      %3407 = vmatprep.subr.bf16.mxu0 0
      %3408 = vmatpush1.bf16.msra.mxu0 %v3395
      %3409 = vmatprep.subr.bf16.mxu0 0
      %3410 = vmatpush1.bf16.msra.mxu0 %v3396
      %3411 = vmatprep.subr.bf16.mxu0 0
      %3412 = vmatpush1.bf16.msra.mxu0 %v3397
      %3413 = vmatprep.subr.bf16.mxu0 0
      %3414 = vmatpush1.bf16.msra.mxu0 0
      %3415 = vmatprep.subr.bf16.mxu0 0
      %3416 = vmatpush1.bf16.msra.mxu0 0
      %3417 = vmatprep.subr.bf16.mxu0 0
      %3418 = vmatpush1.bf16.msra.mxu0 0
      %3419 = vmatprep.subr.bf16.mxu0 0
      %3420 = vmatpush1.bf16.msra.mxu0 0
      %3421 = vmatprep.subr.bf16.mxu0 0
      %3422 = vmatpush1.bf16.msra.mxu0 0
      %3423 = vmatprep.subr.bf16.mxu0 0
      %3424 = vmatpush1.bf16.msra.mxu0 0
      %3425 = vmatprep.subr.bf16.mxu0 0
      %3426 = vmatpush1.bf16.msra.mxu0 0
      %3427 = vmatprep.subr.bf16.mxu0 0
      %3428 = vmatpush1.bf16.msra.mxu0 0
      %3429 = vmatprep.subr.bf16.mxu0 0
      %3430 = vmatpush1.bf16.msra.mxu0 0
      %3431 = vmatprep.subr.bf16.mxu0 0
      %3432 = vmatpush1.bf16.msra.mxu0 0
      %3433 = vmatprep.subr.bf16.mxu0 0
      %3434 = vmatpush1.bf16.msra.mxu0 0
      %3435 = vmatprep.subr.bf16.mxu0 0
      %3436 = vmatpush1.bf16.msra.mxu0 0
      %3437 = vmatprep.mubr.bf16.mxu0 0
      %3438 = vmatmul.mubr.bf16.gmra.mrb[0].mxu0 %v3403
      %v3439 = vpop.f32.mrb[0].mxu0
      %v3440 = vadd.f32 0.0, %v3439
      %v3441 = vpop.f32.mrb[0].mxu0
      %v3442 = vpop.f32.mrb[0].mxu0
      %v3443 = vadd.f32 0.0, %v3442
      %v3444 = vpop.f32.mrb[0].mxu0
      %3445 = vdwg.mxu0
      %v3446 = vadd.f32 %v3314, %v3440
      %v3447 = vadd.f32 %v3315, %v3443
      %s3448 = scalar_lea.vmem %s2, 56
      %v3449 = vld [vmem:[%s3448] sm:$0xf]
      %v3450 = vld [vmem:[%s3448 + $0x4] sm:$0xf]
      %v3453 = vunpack.c.l.b16 %v3449
      %v3454 = vunpack.c.l.b16 %v3450
      %v3455 = vpack.c.b16 %v3454, %v3453
      %v3457 = vsel %vm2532, %v3455, 0
      %3459 = vmatprep.subr.bf16.mxu0 0
      %3460 = vmatpush1.bf16.msra.mxu0 %v2514
      %3461 = vmatprep.subr.bf16.mxu0 0
      %3462 = vmatpush1.bf16.msra.mxu0 %v2515
      %3463 = vmatprep.subr.bf16.mxu0 0
      %3464 = vmatpush1.bf16.msra.mxu0 %v2516
      %3465 = vmatprep.subr.bf16.mxu0 0
      %3466 = vmatpush1.bf16.msra.mxu0 %v2517
      %3467 = vmatprep.subr.bf16.mxu0 0
      %3468 = vmatpush1.bf16.msra.mxu0 0
      %3469 = vmatprep.subr.bf16.mxu0 0
      %3470 = vmatpush1.bf16.msra.mxu0 0
      %3471 = vmatprep.subr.bf16.mxu0 0
      %3472 = vmatpush1.bf16.msra.mxu0 0
      %3473 = vmatprep.subr.bf16.mxu0 0
      %3474 = vmatpush1.bf16.msra.mxu0 0
      %3475 = vmatprep.subr.bf16.mxu0 0
      %3476 = vmatpush1.bf16.msra.mxu0 0
      %3477 = vmatprep.subr.bf16.mxu0 0
      %3478 = vmatpush1.bf16.msra.mxu0 0
      %3479 = vmatprep.subr.bf16.mxu0 0
      %3480 = vmatpush1.bf16.msra.mxu0 0
      %3481 = vmatprep.subr.bf16.mxu0 0
      %3482 = vmatpush1.bf16.msra.mxu0 0
      %3483 = vmatprep.subr.bf16.mxu0 0
      %3484 = vmatpush1.bf16.msra.mxu0 0
      %3485 = vmatprep.subr.bf16.mxu0 0
      %3486 = vmatpush1.bf16.msra.mxu0 0
      %3487 = vmatprep.subr.bf16.mxu0 0
      %3488 = vmatpush1.bf16.msra.mxu0 0
      %3489 = vmatprep.subr.bf16.mxu0 0
      %3490 = vmatpush1.bf16.msra.mxu0 0
      %3491 = vmatprep.mubr.bf16.mxu0 0
      %3492 = vmatmul.mubr.bf16.gmra.mrb[0].mxu0 %v3457
      %v3493 = vpop.f32.mrb[0].mxu0
      %v3494 = vadd.f32 0.0, %v3493
      %v3495 = vpop.f32.mrb[0].mxu0
      %v3496 = vpop.f32.mrb[0].mxu0
      %v3497 = vadd.f32 0.0, %v3496
      %v3498 = vpop.f32.mrb[0].mxu0
      %3499 = vdwg.mxu0
      %v3500 = vpack.c.bf16 %v3497, %v3494
      %s3501 = scalar_lea.vmem %s6, 224
      %v3502 = vld [vmem:[%s3501] sm:$0xf]
      %v3503 = vld [vmem:[%s3501 + $0x4] sm:$0xf]
      %v3504 = vld [vmem:[%s3501 + $0x8] sm:$0xf]
      %v3505 = vld [vmem:[%s3501 + $0xc] sm:$0xf]
      %v3506 = vld [vmem:[%s3501 + $0x10] sm:$0xf]
      %v3507 = vld [vmem:[%s3501 + $0x14] sm:$0xf]
      %v3508 = vld [vmem:[%s3501 + $0x18] sm:$0xf]
      %v3509 = vld [vmem:[%s3501 + $0x1c] sm:$0xf]
      %v3518 = vunpack.c.l.b16 %v3502
      %v3519 = vunpack.c.l.b16 %v3503
      %v3520 = vunpack.c.l.b16 %v3504
      %v3521 = vunpack.c.l.b16 %v3505
      %v3522 = vunpack.c.l.b16 %v3506
      %v3523 = vunpack.c.l.b16 %v3507
      %v3524 = vunpack.c.l.b16 %v3508
      %v3525 = vunpack.c.l.b16 %v3509
      %v3526 = vpack.c.b16 %v3519, %v3518
      %v3527 = vpack.c.b16 %v3521, %v3520
      %v3528 = vpack.c.b16 %v3523, %v3522
      %v3529 = vpack.c.b16 %v3525, %v3524
      %v3535 = vsel %vm2532, %v3500, 0
      %3537 = vmatprep.subr.bf16.mxu0 0
      %3538 = vmatpush1.bf16.msra.mxu0 %v3526
      %3539 = vmatprep.subr.bf16.mxu0 0
      %3540 = vmatpush1.bf16.msra.mxu0 %v3527
      %3541 = vmatprep.subr.bf16.mxu0 0
      %3542 = vmatpush1.bf16.msra.mxu0 %v3528
      %3543 = vmatprep.subr.bf16.mxu0 0
      %3544 = vmatpush1.bf16.msra.mxu0 %v3529
      %3545 = vmatprep.subr.bf16.mxu0 0
      %3546 = vmatpush1.bf16.msra.mxu0 0
      %3547 = vmatprep.subr.bf16.mxu0 0
      %3548 = vmatpush1.bf16.msra.mxu0 0
      %3549 = vmatprep.subr.bf16.mxu0 0
      %3550 = vmatpush1.bf16.msra.mxu0 0
      %3551 = vmatprep.subr.bf16.mxu0 0
      %3552 = vmatpush1.bf16.msra.mxu0 0
      %3553 = vmatprep.subr.bf16.mxu0 0
      %3554 = vmatpush1.bf16.msra.mxu0 0
      %3555 = vmatprep.subr.bf16.mxu0 0
      %3556 = vmatpush1.bf16.msra.mxu0 0
      %3557 = vmatprep.subr.bf16.mxu0 0
      %3558 = vmatpush1.bf16.msra.mxu0 0
      %3559 = vmatprep.subr.bf16.mxu0 0
      %3560 = vmatpush1.bf16.msra.mxu0 0
      %3561 = vmatprep.subr.bf16.mxu0 0
      %3562 = vmatpush1.bf16.msra.mxu0 0
      %3563 = vmatprep.subr.bf16.mxu0 0
      %3564 = vmatpush1.bf16.msra.mxu0 0
      %3565 = vmatprep.subr.bf16.mxu0 0
      %3566 = vmatpush1.bf16.msra.mxu0 0
      %3567 = vmatprep.subr.bf16.mxu0 0
      %3568 = vmatpush1.bf16.msra.mxu0 0
      %3569 = vmatprep.mubr.bf16.mxu0 0
      %3570 = vmatmul.mubr.bf16.gmra.mrb[0].mxu0 %v3535
      %v3571 = vpop.f32.mrb[0].mxu0
      %v3572 = vadd.f32 0.0, %v3571
      %v3573 = vpop.f32.mrb[0].mxu0
      %v3574 = vpop.f32.mrb[0].mxu0
      %v3575 = vadd.f32 0.0, %v3574
      %v3576 = vpop.f32.mrb[0].mxu0
      %3577 = vdwg.mxu0
      %v3578 = vadd.f32 %v3446, %v3572
      %v3579 = vadd.f32 %v3447, %v3575
      %s3580 = scalar_lea.vmem %s2, 64
      %v3581 = vld [vmem:[%s3580] sm:$0xf]
      %v3582 = vld [vmem:[%s3580 + $0x4] sm:$0xf]
      %v3585 = vunpack.c.l.b16 %v3581
      %v3586 = vunpack.c.l.b16 %v3582
      %v3587 = vpack.c.b16 %v3586, %v3585
      %v3589 = vsel %vm2532, %v3587, 0
      %3591 = vmatprep.subr.bf16.mxu0 0
      %3592 = vmatpush1.bf16.msra.mxu0 %v2514
      %3593 = vmatprep.subr.bf16.mxu0 0
      %3594 = vmatpush1.bf16.msra.mxu0 %v2515
      %3595 = vmatprep.subr.bf16.mxu0 0
      %3596 = vmatpush1.bf16.msra.mxu0 %v2516
      %3597 = vmatprep.subr.bf16.mxu0 0
      %3598 = vmatpush1.bf16.msra.mxu0 %v2517
      %3599 = vmatprep.subr.bf16.mxu0 0
      %3600 = vmatpush1.bf16.msra.mxu0 0
      %3601 = vmatprep.subr.bf16.mxu0 0
      %3602 = vmatpush1.bf16.msra.mxu0 0
      %3603 = vmatprep.subr.bf16.mxu0 0
      %3604 = vmatpush1.bf16.msra.mxu0 0
      %3605 = vmatprep.subr.bf16.mxu0 0
      %3606 = vmatpush1.bf16.msra.mxu0 0
      %3607 = vmatprep.subr.bf16.mxu0 0
      %3608 = vmatpush1.bf16.msra.mxu0 0
      %3609 = vmatprep.subr.bf16.mxu0 0
      %3610 = vmatpush1.bf16.msra.mxu0 0
      %3611 = vmatprep.subr.bf16.mxu0 0
      %3612 = vmatpush1.bf16.msra.mxu0 0
      %3613 = vmatprep.subr.bf16.mxu0 0
      %3614 = vmatpush1.bf16.msra.mxu0 0
      %3615 = vmatprep.subr.bf16.mxu0 0
      %3616 = vmatpush1.bf16.msra.mxu0 0
      %3617 = vmatprep.subr.bf16.mxu0 0
      %3618 = vmatpush1.bf16.msra.mxu0 0
      %3619 = vmatprep.subr.bf16.mxu0 0
      %3620 = vmatpush1.bf16.msra.mxu0 0
      %3621 = vmatprep.subr.bf16.mxu0 0
      %3622 = vmatpush1.bf16.msra.mxu0 0
      %3623 = vmatprep.mubr.bf16.mxu0 0
      %3624 = vmatmul.mubr.bf16.gmra.mrb[0].mxu0 %v3589
      %v3625 = vpop.f32.mrb[0].mxu0
      %v3626 = vadd.f32 0.0, %v3625
      %v3627 = vpop.f32.mrb[0].mxu0
      %v3628 = vpop.f32.mrb[0].mxu0
      %v3629 = vadd.f32 0.0, %v3628
      %v3630 = vpop.f32.mrb[0].mxu0
      %3631 = vdwg.mxu0
      %v3632 = vpack.c.bf16 %v3629, %v3626
      %s3633 = scalar_lea.vmem %s6, 256
      %v3634 = vld [vmem:[%s3633] sm:$0xf]
      %v3635 = vld [vmem:[%s3633 + $0x4] sm:$0xf]
      %v3636 = vld [vmem:[%s3633 + $0x8] sm:$0xf]
      %v3637 = vld [vmem:[%s3633 + $0xc] sm:$0xf]
      %v3638 = vld [vmem:[%s3633 + $0x10] sm:$0xf]
      %v3639 = vld [vmem:[%s3633 + $0x14] sm:$0xf]
      %v3640 = vld [vmem:[%s3633 + $0x18] sm:$0xf]
      %v3641 = vld [vmem:[%s3633 + $0x1c] sm:$0xf]
      %v3650 = vunpack.c.l.b16 %v3634
      %v3651 = vunpack.c.l.b16 %v3635
      %v3652 = vunpack.c.l.b16 %v3636
      %v3653 = vunpack.c.l.b16 %v3637
      %v3654 = vunpack.c.l.b16 %v3638
      %v3655 = vunpack.c.l.b16 %v3639
      %v3656 = vunpack.c.l.b16 %v3640
      %v3657 = vunpack.c.l.b16 %v3641
      %v3658 = vpack.c.b16 %v3651, %v3650
      %v3659 = vpack.c.b16 %v3653, %v3652
      %v3660 = vpack.c.b16 %v3655, %v3654
      %v3661 = vpack.c.b16 %v3657, %v3656
      %v3667 = vsel %vm2532, %v3632, 0
      %3669 = vmatprep.subr.bf16.mxu0 0
      %3670 = vmatpush1.bf16.msra.mxu0 %v3658
      %3671 = vmatprep.subr.bf16.mxu0 0
      %3672 = vmatpush1.bf16.msra.mxu0 %v3659
      %3673 = vmatprep.subr.bf16.mxu0 0
      %3674 = vmatpush1.bf16.msra.mxu0 %v3660
      %3675 = vmatprep.subr.bf16.mxu0 0
      %3676 = vmatpush1.bf16.msra.mxu0 %v3661
      %3677 = vmatprep.subr.bf16.mxu0 0
      %3678 = vmatpush1.bf16.msra.mxu0 0
      %3679 = vmatprep.subr.bf16.mxu0 0
      %3680 = vmatpush1.bf16.msra.mxu0 0
      %3681 = vmatprep.subr.bf16.mxu0 0
      %3682 = vmatpush1.bf16.msra.mxu0 0
      %3683 = vmatprep.subr.bf16.mxu0 0
      %3684 = vmatpush1.bf16.msra.mxu0 0
      %3685 = vmatprep.subr.bf16.mxu0 0
      %3686 = vmatpush1.bf16.msra.mxu0 0
      %3687 = vmatprep.subr.bf16.mxu0 0
      %3688 = vmatpush1.bf16.msra.mxu0 0
      %3689 = vmatprep.subr.bf16.mxu0 0
      %3690 = vmatpush1.bf16.msra.mxu0 0
      %3691 = vmatprep.subr.bf16.mxu0 0
      %3692 = vmatpush1.bf16.msra.mxu0 0
      %3693 = vmatprep.subr.bf16.mxu0 0
      %3694 = vmatpush1.bf16.msra.mxu0 0
      %3695 = vmatprep.subr.bf16.mxu0 0
      %3696 = vmatpush1.bf16.msra.mxu0 0
      %3697 = vmatprep.subr.bf16.mxu0 0
      %3698 = vmatpush1.bf16.msra.mxu0 0
      %3699 = vmatprep.subr.bf16.mxu0 0
      %3700 = vmatpush1.bf16.msra.mxu0 0
      %3701 = vmatprep.mubr.bf16.mxu0 0
      %3702 = vmatmul.mubr.bf16.gmra.mrb[0].mxu0 %v3667
      %v3703 = vpop.f32.mrb[0].mxu0
      %v3704 = vadd.f32 0.0, %v3703
      %v3705 = vpop.f32.mrb[0].mxu0
      %v3706 = vpop.f32.mrb[0].mxu0
      %v3707 = vadd.f32 0.0, %v3706
      %v3708 = vpop.f32.mrb[0].mxu0
      %3709 = vdwg.mxu0
      %v3710 = vadd.f32 %v3578, %v3704
      %v3711 = vadd.f32 %v3579, %v3707
      %v3712 = vmax.f32 %v3710, 0.0
      %v3713 = vmax.f32 %v3711, 0.0
      %v3714 = vpack.c.bf16 %v3713, %v3712
      %v3715 = vld [vmem:[%s11] sm:$0x3]
      %v3717 = vlaneseq
      %v3718 = vshrl.u32 %v3717, 7
      %v3719 = vsub.s32 0, %v3718
      %v3720 = vrot.slane %v3715, %v3719
      %v3721 = vlaneseq
      %v3722 = vshrl.u32 %v3721, 7
      %v3723 = vsub.s32 1, %v3722
      %v3724 = vrot.slane %v3715, %v3723
      %v3727 = vld [vmem:[%s3] sm:$0x3]
      %vm3728 = vcmask 130048
      %v3730 = vsel %vm3728, %v3727, 0
      %3732 = vmatprep.subr.bf16.mxu0 0
      %3733 = vmatpush1.bf16.msra.mxu0 %v3714
      %3734 = vmatprep.subr.bf16.mxu0 0
      %3735 = vmatpush1.bf16.msra.mxu0 0
      %3736 = vmatprep.subr.bf16.mxu0 0
      %3737 = vmatpush1.bf16.msra.mxu0 0
      %3738 = vmatprep.subr.bf16.mxu0 0
      %3739 = vmatpush1.bf16.msra.mxu0 0
      %3740 = vmatprep.subr.bf16.mxu0 0
      %3741 = vmatpush1.bf16.msra.mxu0 0
      %3742 = vmatprep.subr.bf16.mxu0 0
      %3743 = vmatpush1.bf16.msra.mxu0 0
      %3744 = vmatprep.subr.bf16.mxu0 0
      %3745 = vmatpush1.bf16.msra.mxu0 0
      %3746 = vmatprep.subr.bf16.mxu0 0
      %3747 = vmatpush1.bf16.msra.mxu0 0
      %3748 = vmatprep.subr.bf16.mxu0 0
      %3749 = vmatpush1.bf16.msra.mxu0 0
      %3750 = vmatprep.subr.bf16.mxu0 0
      %3751 = vmatpush1.bf16.msra.mxu0 0
      %3752 = vmatprep.subr.bf16.mxu0 0
      %3753 = vmatpush1.bf16.msra.mxu0 0
      %3754 = vmatprep.subr.bf16.mxu0 0
      %3755 = vmatpush1.bf16.msra.mxu0 0
      %3756 = vmatprep.subr.bf16.mxu0 0
      %3757 = vmatpush1.bf16.msra.mxu0 0
      %3758 = vmatprep.subr.bf16.mxu0 0
      %3759 = vmatpush1.bf16.msra.mxu0 0
      %3760 = vmatprep.subr.bf16.mxu0 0
      %3761 = vmatpush1.bf16.msra.mxu0 0
      %3762 = vmatprep.subr.bf16.mxu0 0
      %3763 = vmatpush1.bf16.msra.mxu0 0
      %3764 = vmatprep.mubr.bf16.mxu0 0
      %3765 = vmatmul.mubr.bf16.gmra.mrb[0].mxu0 %v3730
      %v3766 = vpop.f32.mrb[0].mxu0
      %v3767 = vadd.f32 0.0, %v3766
      %v3768 = vpop.f32.mrb[0].mxu0
      %v3769 = vpop.f32.mrb[0].mxu0
      %v3770 = vpop.f32.mrb[0].mxu0
      %3771 = vdwg.mxu0
      %v3772 = vpack.c.bf16 %v3767, %v3767
      %v3773 = vld [vmem:[%s7] sm:$0xff]
      %v3774 = vld [vmem:[%s7 + $0x8] sm:$0xff]
      %v3775 = vld [vmem:[%s7 + $0x10] sm:$0xff]
      %v3776 = vld [vmem:[%s7 + $0x18] sm:$0xff]
      %v3777 = vld [vmem:[%s7 + $0x20] sm:$0xff]
      %v3778 = vld [vmem:[%s7 + $0x28] sm:$0xff]
      %v3779 = vld [vmem:[%s7 + $0x30] sm:$0xff]
      %v3780 = vld [vmem:[%s7 + $0x38] sm:$0xff]
      %v3781 = vld [vmem:[%s7 + $0x40] sm:$0xff]
      %v3782 = vld [vmem:[%s7 + $0x48] sm:$0xff]
      %v3783 = vld [vmem:[%s7 + $0x50] sm:$0xff]
      %v3784 = vld [vmem:[%s7 + $0x58] sm:$0xff]
      %v3785 = vld [vmem:[%s7 + $0x60] sm:$0xff]
      %v3786 = vld [vmem:[%s7 + $0x68] sm:$0xff]
      %v3787 = vld [vmem:[%s7 + $0x70] sm:$0xff]
      %v3788 = vld [vmem:[%s7 + $0x78] sm:$0xff]
      %v3805 = vunpack.c.l.b16 %v3773
      %v3806 = vunpack.c.h.b16 %v3773
      %v3807 = vunpack.c.l.b16 %v3774
      %v3808 = vunpack.c.h.b16 %v3774
      %v3809 = vunpack.c.l.b16 %v3775
      %v3810 = vunpack.c.h.b16 %v3775
      %v3811 = vunpack.c.l.b16 %v3776
      %v3812 = vunpack.c.h.b16 %v3776
      %v3813 = vunpack.c.l.b16 %v3777
      %v3814 = vunpack.c.h.b16 %v3777
      %v3815 = vunpack.c.l.b16 %v3778
      %v3816 = vunpack.c.h.b16 %v3778
      %v3817 = vunpack.c.l.b16 %v3779
      %v3818 = vunpack.c.h.b16 %v3779
      %v3819 = vunpack.c.l.b16 %v3780
      %v3820 = vunpack.c.h.b16 %v3780
      %v3821 = vunpack.c.l.b16 %v3781
      %v3822 = vunpack.c.h.b16 %v3781
      %v3823 = vunpack.c.l.b16 %v3782
      %v3824 = vunpack.c.h.b16 %v3782
      %v3825 = vunpack.c.l.b16 %v3783
      %v3826 = vunpack.c.h.b16 %v3783
      %v3827 = vunpack.c.l.b16 %v3784
      %v3828 = vunpack.c.h.b16 %v3784
      %v3829 = vunpack.c.l.b16 %v3785
      %v3830 = vunpack.c.h.b16 %v3785
      %v3831 = vunpack.c.l.b16 %v3786
      %v3832 = vunpack.c.h.b16 %v3786
      %v3833 = vunpack.c.l.b16 %v3787
      %v3834 = vunpack.c.h.b16 %v3787
      %v3835 = vunpack.c.l.b16 %v3788
      %v3836 = vunpack.c.h.b16 %v3788
      %v3837 = vpack.c.b16 %v3807, %v3805
      %v3838 = vpack.c.b16 %v3808, %v3806
      %v3839 = vpack.c.b16 %v3811, %v3809
      %v3840 = vpack.c.b16 %v3812, %v3810
      %v3841 = vpack.c.b16 %v3815, %v3813
      %v3842 = vpack.c.b16 %v3816, %v3814
      %v3843 = vpack.c.b16 %v3819, %v3817
      %v3844 = vpack.c.b16 %v3820, %v3818
      %v3845 = vpack.c.b16 %v3823, %v3821
      %v3846 = vpack.c.b16 %v3824, %v3822
      %v3847 = vpack.c.b16 %v3827, %v3825
      %v3848 = vpack.c.b16 %v3828, %v3826
      %v3849 = vpack.c.b16 %v3831, %v3829
      %v3850 = vpack.c.b16 %v3832, %v3830
      %v3851 = vpack.c.b16 %v3835, %v3833
      %v3852 = vpack.c.b16 %v3836, %v3834
      %3869 = vmatprep.subr.bf16.mxu0 %v3838
      %3870 = vmatpush1.bf16.msra.mxu0 %v3837
      %3871 = vmatprep.subr.bf16.mxu0 %v3840
      %3872 = vmatpush1.bf16.msra.mxu0 %v3839
      %3873 = vmatprep.subr.bf16.mxu0 %v3842
      %3874 = vmatpush1.bf16.msra.mxu0 %v3841
      %3875 = vmatprep.subr.bf16.mxu0 %v3844
      %3876 = vmatpush1.bf16.msra.mxu0 %v3843
      %3877 = vmatprep.subr.bf16.mxu0 %v3846
      %3878 = vmatpush1.bf16.msra.mxu0 %v3845
      %3879 = vmatprep.subr.bf16.mxu0 %v3848
      %3880 = vmatpush1.bf16.msra.mxu0 %v3847
      %3881 = vmatprep.subr.bf16.mxu0 %v3850
      %3882 = vmatpush1.bf16.msra.mxu0 %v3849
      %3883 = vmatprep.subr.bf16.mxu0 %v3852
      %3884 = vmatpush1.bf16.msra.mxu0 %v3851
      %3885 = vmatprep.subr.bf16.mxu0 0
      %3886 = vmatpush1.bf16.msra.mxu0 0
      %3887 = vmatprep.subr.bf16.mxu0 0
      %3888 = vmatpush1.bf16.msra.mxu0 0
      %3889 = vmatprep.subr.bf16.mxu0 0
      %3890 = vmatpush1.bf16.msra.mxu0 0
      %3891 = vmatprep.subr.bf16.mxu0 0
      %3892 = vmatpush1.bf16.msra.mxu0 0
      %3893 = vmatprep.subr.bf16.mxu0 0
      %3894 = vmatpush1.bf16.msra.mxu0 0
      %3895 = vmatprep.subr.bf16.mxu0 0
      %3896 = vmatpush1.bf16.msra.mxu0 0
      %3897 = vmatprep.subr.bf16.mxu0 0
      %3898 = vmatpush1.bf16.msra.mxu0 0
      %3899 = vmatprep.subr.bf16.mxu0 0
      %3900 = vmatpush1.bf16.msra.mxu0 0
      %3901 = vmatprep.mubr.bf16.mxu0 0
      %3902 = vmatmul.mubr.bf16.gmra.mrb[0].mxu0 %v3772
      %v3903 = vpop.f32.mrb[0].mxu0
      %v3904 = vadd.f32 0.0, %v3903
      %v3905 = vpop.f32.mrb[0].mxu0
      %v3906 = vadd.f32 0.0, %v3905
      %v3907 = vpop.f32.mrb[0].mxu0
      %v3908 = vpop.f32.mrb[0].mxu0
      %3909 = vdwg.mxu0
      %v3910 = vadd.f32 %v3720, %v3904
      %v3911 = vadd.f32 %v3724, %v3906
      %s3912 = scalar_lea.vmem %s3, 2
      %v3913 = vld [vmem:[%s3912] sm:$0x3]
      %v3915 = vsel %vm3728, %v3913, 0
      %3917 = vmatprep.subr.bf16.mxu0 0
      %3918 = vmatpush1.bf16.msra.mxu0 %v3714
      %3919 = vmatprep.subr.bf16.mxu0 0
      %3920 = vmatpush1.bf16.msra.mxu0 0
      %3921 = vmatprep.subr.bf16.mxu0 0
      %3922 = vmatpush1.bf16.msra.mxu0 0
      %3923 = vmatprep.subr.bf16.mxu0 0
      %3924 = vmatpush1.bf16.msra.mxu0 0
      %3925 = vmatprep.subr.bf16.mxu0 0
      %3926 = vmatpush1.bf16.msra.mxu0 0
      %3927 = vmatprep.subr.bf16.mxu0 0
      %3928 = vmatpush1.bf16.msra.mxu0 0
      %3929 = vmatprep.subr.bf16.mxu0 0
      %3930 = vmatpush1.bf16.msra.mxu0 0
      %3931 = vmatprep.subr.bf16.mxu0 0
      %3932 = vmatpush1.bf16.msra.mxu0 0
      %3933 = vmatprep.subr.bf16.mxu0 0
      %3934 = vmatpush1.bf16.msra.mxu0 0
      %3935 = vmatprep.subr.bf16.mxu0 0
      %3936 = vmatpush1.bf16.msra.mxu0 0
      %3937 = vmatprep.subr.bf16.mxu0 0
      %3938 = vmatpush1.bf16.msra.mxu0 0
      %3939 = vmatprep.subr.bf16.mxu0 0
      %3940 = vmatpush1.bf16.msra.mxu0 0
      %3941 = vmatprep.subr.bf16.mxu0 0
      %3942 = vmatpush1.bf16.msra.mxu0 0
      %3943 = vmatprep.subr.bf16.mxu0 0
      %3944 = vmatpush1.bf16.msra.mxu0 0
      %3945 = vmatprep.subr.bf16.mxu0 0
      %3946 = vmatpush1.bf16.msra.mxu0 0
      %3947 = vmatprep.subr.bf16.mxu0 0
      %3948 = vmatpush1.bf16.msra.mxu0 0
      %3949 = vmatprep.mubr.bf16.mxu0 0
      %3950 = vmatmul.mubr.bf16.gmra.mrb[0].mxu0 %v3915
      %v3951 = vpop.f32.mrb[0].mxu0
      %v3952 = vadd.f32 0.0, %v3951
      %v3953 = vpop.f32.mrb[0].mxu0
      %v3954 = vpop.f32.mrb[0].mxu0
      %v3955 = vpop.f32.mrb[0].mxu0
      %3956 = vdwg.mxu0
      %v3957 = vpack.c.bf16 %v3952, %v3952
      %s3958 = scalar_lea.vmem %s7, 128
      %v3959 = vld [vmem:[%s3958] sm:$0xff]
      %v3960 = vld [vmem:[%s3958 + $0x8] sm:$0xff]
      %v3961 = vld [vmem:[%s3958 + $0x10] sm:$0xff]
      %v3962 = vld [vmem:[%s3958 + $0x18] sm:$0xff]
      %v3963 = vld [vmem:[%s3958 + $0x20] sm:$0xff]
      %v3964 = vld [vmem:[%s3958 + $0x28] sm:$0xff]
      %v3965 = vld [vmem:[%s3958 + $0x30] sm:$0xff]
      %v3966 = vld [vmem:[%s3958 + $0x38] sm:$0xff]
      %v3967 = vld [vmem:[%s3958 + $0x40] sm:$0xff]
      %v3968 = vld [vmem:[%s3958 + $0x48] sm:$0xff]
      %v3969 = vld [vmem:[%s3958 + $0x50] sm:$0xff]
      %v3970 = vld [vmem:[%s3958 + $0x58] sm:$0xff]
      %v3971 = vld [vmem:[%s3958 + $0x60] sm:$0xff]
      %v3972 = vld [vmem:[%s3958 + $0x68] sm:$0xff]
      %v3973 = vld [vmem:[%s3958 + $0x70] sm:$0xff]
      %v3974 = vld [vmem:[%s3958 + $0x78] sm:$0xff]
      %v3991 = vunpack.c.l.b16 %v3959
      %v3992 = vunpack.c.h.b16 %v3959
      %v3993 = vunpack.c.l.b16 %v3960
      %v3994 = vunpack.c.h.b16 %v3960
      %v3995 = vunpack.c.l.b16 %v3961
      %v3996 = vunpack.c.h.b16 %v3961
      %v3997 = vunpack.c.l.b16 %v3962
      %v3998 = vunpack.c.h.b16 %v3962
      %v3999 = vunpack.c.l.b16 %v3963
      %v4000 = vunpack.c.h.b16 %v3963
      %v4001 = vunpack.c.l.b16 %v3964
      %v4002 = vunpack.c.h.b16 %v3964
      %v4003 = vunpack.c.l.b16 %v3965
      %v4004 = vunpack.c.h.b16 %v3965
      %v4005 = vunpack.c.l.b16 %v3966
      %v4006 = vunpack.c.h.b16 %v3966
      %v4007 = vunpack.c.l.b16 %v3967
      %v4008 = vunpack.c.h.b16 %v3967
      %v4009 = vunpack.c.l.b16 %v3968
      %v4010 = vunpack.c.h.b16 %v3968
      %v4011 = vunpack.c.l.b16 %v3969
      %v4012 = vunpack.c.h.b16 %v3969
      %v4013 = vunpack.c.l.b16 %v3970
      %v4014 = vunpack.c.h.b16 %v3970
      %v4015 = vunpack.c.l.b16 %v3971
      %v4016 = vunpack.c.h.b16 %v3971
      %v4017 = vunpack.c.l.b16 %v3972
      %v4018 = vunpack.c.h.b16 %v3972
      %v4019 = vunpack.c.l.b16 %v3973
      %v4020 = vunpack.c.h.b16 %v3973
      %v4021 = vunpack.c.l.b16 %v3974
      %v4022 = vunpack.c.h.b16 %v3974
      %v4023 = vpack.c.b16 %v3993, %v3991
      %v4024 = vpack.c.b16 %v3994, %v3992
      %v4025 = vpack.c.b16 %v3997, %v3995
      %v4026 = vpack.c.b16 %v3998, %v3996
      %v4027 = vpack.c.b16 %v4001, %v3999
      %v4028 = vpack.c.b16 %v4002, %v4000
      %v4029 = vpack.c.b16 %v4005, %v4003
      %v4030 = vpack.c.b16 %v4006, %v4004
      %v4031 = vpack.c.b16 %v4009, %v4007
      %v4032 = vpack.c.b16 %v4010, %v4008
      %v4033 = vpack.c.b16 %v4013, %v4011
      %v4034 = vpack.c.b16 %v4014, %v4012
      %v4035 = vpack.c.b16 %v4017, %v4015
      %v4036 = vpack.c.b16 %v4018, %v4016
      %v4037 = vpack.c.b16 %v4021, %v4019
      %v4038 = vpack.c.b16 %v4022, %v4020
      %4055 = vmatprep.subr.bf16.mxu0 %v4024
      %4056 = vmatpush1.bf16.msra.mxu0 %v4023
      %4057 = vmatprep.subr.bf16.mxu0 %v4026
      %4058 = vmatpush1.bf16.msra.mxu0 %v4025
      %4059 = vmatprep.subr.bf16.mxu0 %v4028
      %4060 = vmatpush1.bf16.msra.mxu0 %v4027
      %4061 = vmatprep.subr.bf16.mxu0 %v4030
      %4062 = vmatpush1.bf16.msra.mxu0 %v4029
      %4063 = vmatprep.subr.bf16.mxu0 %v4032
      %4064 = vmatpush1.bf16.msra.mxu0 %v4031
      %4065 = vmatprep.subr.bf16.mxu0 %v4034
      %4066 = vmatpush1.bf16.msra.mxu0 %v4033
      %4067 = vmatprep.subr.bf16.mxu0 %v4036
      %4068 = vmatpush1.bf16.msra.mxu0 %v4035
      %4069 = vmatprep.subr.bf16.mxu0 %v4038
      %4070 = vmatpush1.bf16.msra.mxu0 %v4037
      %4071 = vmatprep.subr.bf16.mxu0 0
      %4072 = vmatpush1.bf16.msra.mxu0 0
      %4073 = vmatprep.subr.bf16.mxu0 0
      %4074 = vmatpush1.bf16.msra.mxu0 0
      %4075 = vmatprep.subr.bf16.mxu0 0
      %4076 = vmatpush1.bf16.msra.mxu0 0
      %4077 = vmatprep.subr.bf16.mxu0 0
      %4078 = vmatpush1.bf16.msra.mxu0 0
      %4079 = vmatprep.subr.bf16.mxu0 0
      %4080 = vmatpush1.bf16.msra.mxu0 0
      %4081 = vmatprep.subr.bf16.mxu0 0
      %4082 = vmatpush1.bf16.msra.mxu0 0
      %4083 = vmatprep.subr.bf16.mxu0 0
      %4084 = vmatpush1.bf16.msra.mxu0 0
      %4085 = vmatprep.subr.bf16.mxu0 0
      %4086 = vmatpush1.bf16.msra.mxu0 0
      %4087 = vmatprep.mubr.bf16.mxu0 0
      %4088 = vmatmul.mubr.bf16.gmra.mrb[0].mxu0 %v3957
      %v4089 = vpop.f32.mrb[0].mxu0
      %v4090 = vadd.f32 0.0, %v4089
      %v4091 = vpop.f32.mrb[0].mxu0
      %v4092 = vadd.f32 0.0, %v4091
      %v4093 = vpop.f32.mrb[0].mxu0
      %v4094 = vpop.f32.mrb[0].mxu0
      %4095 = vdwg.mxu0
      %v4096 = vadd.f32 %v3910, %v4090
      %v4097 = vadd.f32 %v3911, %v4092
      %s4098 = scalar_lea.vmem %s3, 4
      %v4099 = vld [vmem:[%s4098] sm:$0x3]
      %v4101 = vsel %vm3728, %v4099, 0
      %4103 = vmatprep.subr.bf16.mxu0 0
      %4104 = vmatpush1.bf16.msra.mxu0 %v3714
      %4105 = vmatprep.subr.bf16.mxu0 0
      %4106 = vmatpush1.bf16.msra.mxu0 0
      %4107 = vmatprep.subr.bf16.mxu0 0
      %4108 = vmatpush1.bf16.msra.mxu0 0
      %4109 = vmatprep.subr.bf16.mxu0 0
      %4110 = vmatpush1.bf16.msra.mxu0 0
      %4111 = vmatprep.subr.bf16.mxu0 0
      %4112 = vmatpush1.bf16.msra.mxu0 0
      %4113 = vmatprep.subr.bf16.mxu0 0
      %4114 = vmatpush1.bf16.msra.mxu0 0
      %4115 = vmatprep.subr.bf16.mxu0 0
      %4116 = vmatpush1.bf16.msra.mxu0 0
      %4117 = vmatprep.subr.bf16.mxu0 0
      %4118 = vmatpush1.bf16.msra.mxu0 0
      %4119 = vmatprep.subr.bf16.mxu0 0
      %4120 = vmatpush1.bf16.msra.mxu0 0
      %4121 = vmatprep.subr.bf16.mxu0 0
      %4122 = vmatpush1.bf16.msra.mxu0 0
      %4123 = vmatprep.subr.bf16.mxu0 0
      %4124 = vmatpush1.bf16.msra.mxu0 0
      %4125 = vmatprep.subr.bf16.mxu0 0
      %4126 = vmatpush1.bf16.msra.mxu0 0
      %4127 = vmatprep.subr.bf16.mxu0 0
      %4128 = vmatpush1.bf16.msra.mxu0 0
      %4129 = vmatprep.subr.bf16.mxu0 0
      %4130 = vmatpush1.bf16.msra.mxu0 0
      %4131 = vmatprep.subr.bf16.mxu0 0
      %4132 = vmatpush1.bf16.msra.mxu0 0
      %4133 = vmatprep.subr.bf16.mxu0 0
      %4134 = vmatpush1.bf16.msra.mxu0 0
      %4135 = vmatprep.mubr.bf16.mxu0 0
      %4136 = vmatmul.mubr.bf16.gmra.mrb[0].mxu0 %v4101
      %v4137 = vpop.f32.mrb[0].mxu0
      %v4138 = vadd.f32 0.0, %v4137
      %v4139 = vpop.f32.mrb[0].mxu0
      %v4140 = vpop.f32.mrb[0].mxu0
      %v4141 = vpop.f32.mrb[0].mxu0
      %4142 = vdwg.mxu0
      %v4143 = vpack.c.bf16 %v4138, %v4138
      %s4144 = scalar_lea.vmem %s7, 256
      %v4145 = vld [vmem:[%s4144] sm:$0xff]
      %v4146 = vld [vmem:[%s4144 + $0x8] sm:$0xff]
      %v4147 = vld [vmem:[%s4144 + $0x10] sm:$0xff]
      %v4148 = vld [vmem:[%s4144 + $0x18] sm:$0xff]
      %v4149 = vld [vmem:[%s4144 + $0x20] sm:$0xff]
      %v4150 = vld [vmem:[%s4144 + $0x28] sm:$0xff]
      %v4151 = vld [vmem:[%s4144 + $0x30] sm:$0xff]
      %v4152 = vld [vmem:[%s4144 + $0x38] sm:$0xff]
      %v4153 = vld [vmem:[%s4144 + $0x40] sm:$0xff]
      %v4154 = vld [vmem:[%s4144 + $0x48] sm:$0xff]
      %v4155 = vld [vmem:[%s4144 + $0x50] sm:$0xff]
      %v4156 = vld [vmem:[%s4144 + $0x58] sm:$0xff]
      %v4157 = vld [vmem:[%s4144 + $0x60] sm:$0xff]
      %v4158 = vld [vmem:[%s4144 + $0x68] sm:$0xff]
      %v4159 = vld [vmem:[%s4144 + $0x70] sm:$0xff]
      %v4160 = vld [vmem:[%s4144 + $0x78] sm:$0xff]
      %v4177 = vunpack.c.l.b16 %v4145
      %v4178 = vunpack.c.h.b16 %v4145
      %v4179 = vunpack.c.l.b16 %v4146
      %v4180 = vunpack.c.h.b16 %v4146
      %v4181 = vunpack.c.l.b16 %v4147
      %v4182 = vunpack.c.h.b16 %v4147
      %v4183 = vunpack.c.l.b16 %v4148
      %v4184 = vunpack.c.h.b16 %v4148
      %v4185 = vunpack.c.l.b16 %v4149
      %v4186 = vunpack.c.h.b16 %v4149
      %v4187 = vunpack.c.l.b16 %v4150
      %v4188 = vunpack.c.h.b16 %v4150
      %v4189 = vunpack.c.l.b16 %v4151
      %v4190 = vunpack.c.h.b16 %v4151
      %v4191 = vunpack.c.l.b16 %v4152
      %v4192 = vunpack.c.h.b16 %v4152
      %v4193 = vunpack.c.l.b16 %v4153
      %v4194 = vunpack.c.h.b16 %v4153
      %v4195 = vunpack.c.l.b16 %v4154
      %v4196 = vunpack.c.h.b16 %v4154
      %v4197 = vunpack.c.l.b16 %v4155
      %v4198 = vunpack.c.h.b16 %v4155
      %v4199 = vunpack.c.l.b16 %v4156
      %v4200 = vunpack.c.h.b16 %v4156
      %v4201 = vunpack.c.l.b16 %v4157
      %v4202 = vunpack.c.h.b16 %v4157
      %v4203 = vunpack.c.l.b16 %v4158
      %v4204 = vunpack.c.h.b16 %v4158
      %v4205 = vunpack.c.l.b16 %v4159
      %v4206 = vunpack.c.h.b16 %v4159
      %v4207 = vunpack.c.l.b16 %v4160
      %v4208 = vunpack.c.h.b16 %v4160
      %v4209 = vpack.c.b16 %v4179, %v4177
      %v4210 = vpack.c.b16 %v4180, %v4178
      %v4211 = vpack.c.b16 %v4183, %v4181
      %v4212 = vpack.c.b16 %v4184, %v4182
      %v4213 = vpack.c.b16 %v4187, %v4185
      %v4214 = vpack.c.b16 %v4188, %v4186
      %v4215 = vpack.c.b16 %v4191, %v4189
      %v4216 = vpack.c.b16 %v4192, %v4190
      %v4217 = vpack.c.b16 %v4195, %v4193
      %v4218 = vpack.c.b16 %v4196, %v4194
      %v4219 = vpack.c.b16 %v4199, %v4197
      %v4220 = vpack.c.b16 %v4200, %v4198
      %v4221 = vpack.c.b16 %v4203, %v4201
      %v4222 = vpack.c.b16 %v4204, %v4202
      %v4223 = vpack.c.b16 %v4207, %v4205
      %v4224 = vpack.c.b16 %v4208, %v4206
      %4241 = vmatprep.subr.bf16.mxu0 %v4210
      %4242 = vmatpush1.bf16.msra.mxu0 %v4209
      %4243 = vmatprep.subr.bf16.mxu0 %v4212
      %4244 = vmatpush1.bf16.msra.mxu0 %v4211
      %4245 = vmatprep.subr.bf16.mxu0 %v4214
      %4246 = vmatpush1.bf16.msra.mxu0 %v4213
      %4247 = vmatprep.subr.bf16.mxu0 %v4216
      %4248 = vmatpush1.bf16.msra.mxu0 %v4215
      %4249 = vmatprep.subr.bf16.mxu0 %v4218
      %4250 = vmatpush1.bf16.msra.mxu0 %v4217
      %4251 = vmatprep.subr.bf16.mxu0 %v4220
      %4252 = vmatpush1.bf16.msra.mxu0 %v4219
      %4253 = vmatprep.subr.bf16.mxu0 %v4222
      %4254 = vmatpush1.bf16.msra.mxu0 %v4221
      %4255 = vmatprep.subr.bf16.mxu0 %v4224
      %4256 = vmatpush1.bf16.msra.mxu0 %v4223
      %4257 = vmatprep.subr.bf16.mxu0 0
      %4258 = vmatpush1.bf16.msra.mxu0 0
      %4259 = vmatprep.subr.bf16.mxu0 0
      %4260 = vmatpush1.bf16.msra.mxu0 0
      %4261 = vmatprep.subr.bf16.mxu0 0
      %4262 = vmatpush1.bf16.msra.mxu0 0
      %4263 = vmatprep.subr.bf16.mxu0 0
      %4264 = vmatpush1.bf16.msra.mxu0 0
      %4265 = vmatprep.subr.bf16.mxu0 0
      %4266 = vmatpush1.bf16.msra.mxu0 0
      %4267 = vmatprep.subr.bf16.mxu0 0
      %4268 = vmatpush1.bf16.msra.mxu0 0
      %4269 = vmatprep.subr.bf16.mxu0 0
      %4270 = vmatpush1.bf16.msra.mxu0 0
      %4271 = vmatprep.subr.bf16.mxu0 0
      %4272 = vmatpush1.bf16.msra.mxu0 0
      %4273 = vmatprep.mubr.bf16.mxu0 0
      %4274 = vmatmul.mubr.bf16.gmra.mrb[0].mxu0 %v4143
      %v4275 = vpop.f32.mrb[0].mxu0
      %v4276 = vadd.f32 0.0, %v4275
      %v4277 = vpop.f32.mrb[0].mxu0
      %v4278 = vadd.f32 0.0, %v4277
      %v4279 = vpop.f32.mrb[0].mxu0
      %v4280 = vpop.f32.mrb[0].mxu0
      %4281 = vdwg.mxu0
      %v4282 = vadd.f32 %v4096, %v4276
      %v4283 = vadd.f32 %v4097, %v4278
      %s4284 = scalar_lea.vmem %s3, 6
      %v4285 = vld [vmem:[%s4284] sm:$0x3]
      %v4287 = vsel %vm3728, %v4285, 0
      %4289 = vmatprep.subr.bf16.mxu0 0
      %4290 = vmatpush1.bf16.msra.mxu0 %v3714
      %4291 = vmatprep.subr.bf16.mxu0 0
      %4292 = vmatpush1.bf16.msra.mxu0 0
      %4293 = vmatprep.subr.bf16.mxu0 0
      %4294 = vmatpush1.bf16.msra.mxu0 0
      %4295 = vmatprep.subr.bf16.mxu0 0
      %4296 = vmatpush1.bf16.msra.mxu0 0
      %4297 = vmatprep.subr.bf16.mxu0 0
      %4298 = vmatpush1.bf16.msra.mxu0 0
      %4299 = vmatprep.subr.bf16.mxu0 0
      %4300 = vmatpush1.bf16.msra.mxu0 0
      %4301 = vmatprep.subr.bf16.mxu0 0
      %4302 = vmatpush1.bf16.msra.mxu0 0
      %4303 = vmatprep.subr.bf16.mxu0 0
      %4304 = vmatpush1.bf16.msra.mxu0 0
      %4305 = vmatprep.subr.bf16.mxu0 0
      %4306 = vmatpush1.bf16.msra.mxu0 0
      %4307 = vmatprep.subr.bf16.mxu0 0
      %4308 = vmatpush1.bf16.msra.mxu0 0
      %4309 = vmatprep.subr.bf16.mxu0 0
      %4310 = vmatpush1.bf16.msra.mxu0 0
      %4311 = vmatprep.subr.bf16.mxu0 0
      %4312 = vmatpush1.bf16.msra.mxu0 0
      %4313 = vmatprep.subr.bf16.mxu0 0
      %4314 = vmatpush1.bf16.msra.mxu0 0
      %4315 = vmatprep.subr.bf16.mxu0 0
      %4316 = vmatpush1.bf16.msra.mxu0 0
      %4317 = vmatprep.subr.bf16.mxu0 0
      %4318 = vmatpush1.bf16.msra.mxu0 0
      %4319 = vmatprep.subr.bf16.mxu0 0
      %4320 = vmatpush1.bf16.msra.mxu0 0
      %4321 = vmatprep.mubr.bf16.mxu0 0
      %4322 = vmatmul.mubr.bf16.gmra.mrb[0].mxu0 %v4287
      %v4323 = vpop.f32.mrb[0].mxu0
      %v4324 = vadd.f32 0.0, %v4323
      %v4325 = vpop.f32.mrb[0].mxu0
      %v4326 = vpop.f32.mrb[0].mxu0
      %v4327 = vpop.f32.mrb[0].mxu0
      %4328 = vdwg.mxu0
      %v4329 = vpack.c.bf16 %v4324, %v4324
      %s4330 = scalar_lea.vmem %s7, 384
      %v4331 = vld [vmem:[%s4330] sm:$0xff]
      %v4332 = vld [vmem:[%s4330 + $0x8] sm:$0xff]
      %v4333 = vld [vmem:[%s4330 + $0x10] sm:$0xff]
      %v4334 = vld [vmem:[%s4330 + $0x18] sm:$0xff]
      %v4335 = vld [vmem:[%s4330 + $0x20] sm:$0xff]
      %v4336 = vld [vmem:[%s4330 + $0x28] sm:$0xff]
      %v4337 = vld [vmem:[%s4330 + $0x30] sm:$0xff]
      %v4338 = vld [vmem:[%s4330 + $0x38] sm:$0xff]
      %v4339 = vld [vmem:[%s4330 + $0x40] sm:$0xff]
      %v4340 = vld [vmem:[%s4330 + $0x48] sm:$0xff]
      %v4341 = vld [vmem:[%s4330 + $0x50] sm:$0xff]
      %v4342 = vld [vmem:[%s4330 + $0x58] sm:$0xff]
      %v4343 = vld [vmem:[%s4330 + $0x60] sm:$0xff]
      %v4344 = vld [vmem:[%s4330 + $0x68] sm:$0xff]
      %v4345 = vld [vmem:[%s4330 + $0x70] sm:$0xff]
      %v4346 = vld [vmem:[%s4330 + $0x78] sm:$0xff]
      %v4363 = vunpack.c.l.b16 %v4331
      %v4364 = vunpack.c.h.b16 %v4331
      %v4365 = vunpack.c.l.b16 %v4332
      %v4366 = vunpack.c.h.b16 %v4332
      %v4367 = vunpack.c.l.b16 %v4333
      %v4368 = vunpack.c.h.b16 %v4333
      %v4369 = vunpack.c.l.b16 %v4334
      %v4370 = vunpack.c.h.b16 %v4334
      %v4371 = vunpack.c.l.b16 %v4335
      %v4372 = vunpack.c.h.b16 %v4335
      %v4373 = vunpack.c.l.b16 %v4336
      %v4374 = vunpack.c.h.b16 %v4336
      %v4375 = vunpack.c.l.b16 %v4337
      %v4376 = vunpack.c.h.b16 %v4337
      %v4377 = vunpack.c.l.b16 %v4338
      %v4378 = vunpack.c.h.b16 %v4338
      %v4379 = vunpack.c.l.b16 %v4339
      %v4380 = vunpack.c.h.b16 %v4339
      %v4381 = vunpack.c.l.b16 %v4340
      %v4382 = vunpack.c.h.b16 %v4340
      %v4383 = vunpack.c.l.b16 %v4341
      %v4384 = vunpack.c.h.b16 %v4341
      %v4385 = vunpack.c.l.b16 %v4342
      %v4386 = vunpack.c.h.b16 %v4342
      %v4387 = vunpack.c.l.b16 %v4343
      %v4388 = vunpack.c.h.b16 %v4343
      %v4389 = vunpack.c.l.b16 %v4344
      %v4390 = vunpack.c.h.b16 %v4344
      %v4391 = vunpack.c.l.b16 %v4345
      %v4392 = vunpack.c.h.b16 %v4345
      %v4393 = vunpack.c.l.b16 %v4346
      %v4394 = vunpack.c.h.b16 %v4346
      %v4395 = vpack.c.b16 %v4365, %v4363
      %v4396 = vpack.c.b16 %v4366, %v4364
      %v4397 = vpack.c.b16 %v4369, %v4367
      %v4398 = vpack.c.b16 %v4370, %v4368
      %v4399 = vpack.c.b16 %v4373, %v4371
      %v4400 = vpack.c.b16 %v4374, %v4372
      %v4401 = vpack.c.b16 %v4377, %v4375
      %v4402 = vpack.c.b16 %v4378, %v4376
      %v4403 = vpack.c.b16 %v4381, %v4379
      %v4404 = vpack.c.b16 %v4382, %v4380
      %v4405 = vpack.c.b16 %v4385, %v4383
      %v4406 = vpack.c.b16 %v4386, %v4384
      %v4407 = vpack.c.b16 %v4389, %v4387
      %v4408 = vpack.c.b16 %v4390, %v4388
      %v4409 = vpack.c.b16 %v4393, %v4391
      %v4410 = vpack.c.b16 %v4394, %v4392
      %4427 = vmatprep.subr.bf16.mxu0 %v4396
      %4428 = vmatpush1.bf16.msra.mxu0 %v4395
      %4429 = vmatprep.subr.bf16.mxu0 %v4398
      %4430 = vmatpush1.bf16.msra.mxu0 %v4397
      %4431 = vmatprep.subr.bf16.mxu0 %v4400
      %4432 = vmatpush1.bf16.msra.mxu0 %v4399
      %4433 = vmatprep.subr.bf16.mxu0 %v4402
      %4434 = vmatpush1.bf16.msra.mxu0 %v4401
      %4435 = vmatprep.subr.bf16.mxu0 %v4404
      %4436 = vmatpush1.bf16.msra.mxu0 %v4403
      %4437 = vmatprep.subr.bf16.mxu0 %v4406
      %4438 = vmatpush1.bf16.msra.mxu0 %v4405
      %4439 = vmatprep.subr.bf16.mxu0 %v4408
      %4440 = vmatpush1.bf16.msra.mxu0 %v4407
      %4441 = vmatprep.subr.bf16.mxu0 %v4410
      %4442 = vmatpush1.bf16.msra.mxu0 %v4409
      %4443 = vmatprep.subr.bf16.mxu0 0
      %4444 = vmatpush1.bf16.msra.mxu0 0
      %4445 = vmatprep.subr.bf16.mxu0 0
      %4446 = vmatpush1.bf16.msra.mxu0 0
      %4447 = vmatprep.subr.bf16.mxu0 0
      %4448 = vmatpush1.bf16.msra.mxu0 0
      %4449 = vmatprep.subr.bf16.mxu0 0
      %4450 = vmatpush1.bf16.msra.mxu0 0
      %4451 = vmatprep.subr.bf16.mxu0 0
      %4452 = vmatpush1.bf16.msra.mxu0 0
      %4453 = vmatprep.subr.bf16.mxu0 0
      %4454 = vmatpush1.bf16.msra.mxu0 0
      %4455 = vmatprep.subr.bf16.mxu0 0
      %4456 = vmatpush1.bf16.msra.mxu0 0
      %4457 = vmatprep.subr.bf16.mxu0 0
      %4458 = vmatpush1.bf16.msra.mxu0 0
      %4459 = vmatprep.mubr.bf16.mxu0 0
      %4460 = vmatmul.mubr.bf16.gmra.mrb[0].mxu0 %v4329
      %v4461 = vpop.f32.mrb[0].mxu0
      %v4462 = vadd.f32 0.0, %v4461
      %v4463 = vpop.f32.mrb[0].mxu0
      %v4464 = vadd.f32 0.0, %v4463
      %v4465 = vpop.f32.mrb[0].mxu0
      %v4466 = vpop.f32.mrb[0].mxu0
      %4467 = vdwg.mxu0
      %v4468 = vadd.f32 %v4282, %v4462
      %v4469 = vadd.f32 %v4283, %v4464
      %s4470 = scalar_lea.vmem %s3, 8
      %v4471 = vld [vmem:[%s4470] sm:$0x3]
      %v4473 = vsel %vm3728, %v4471, 0
      %4475 = vmatprep.subr.bf16.mxu0 0
      %4476 = vmatpush1.bf16.msra.mxu0 %v3714
      %4477 = vmatprep.subr.bf16.mxu0 0
      %4478 = vmatpush1.bf16.msra.mxu0 0
      %4479 = vmatprep.subr.bf16.mxu0 0
      %4480 = vmatpush1.bf16.msra.mxu0 0
      %4481 = vmatprep.subr.bf16.mxu0 0
      %4482 = vmatpush1.bf16.msra.mxu0 0
      %4483 = vmatprep.subr.bf16.mxu0 0
      %4484 = vmatpush1.bf16.msra.mxu0 0
      %4485 = vmatprep.subr.bf16.mxu0 0
      %4486 = vmatpush1.bf16.msra.mxu0 0
      %4487 = vmatprep.subr.bf16.mxu0 0
      %4488 = vmatpush1.bf16.msra.mxu0 0
      %4489 = vmatprep.subr.bf16.mxu0 0
      %4490 = vmatpush1.bf16.msra.mxu0 0
      %4491 = vmatprep.subr.bf16.mxu0 0
      %4492 = vmatpush1.bf16.msra.mxu0 0
      %4493 = vmatprep.subr.bf16.mxu0 0
      %4494 = vmatpush1.bf16.msra.mxu0 0
      %4495 = vmatprep.subr.bf16.mxu0 0
      %4496 = vmatpush1.bf16.msra.mxu0 0
      %4497 = vmatprep.subr.bf16.mxu0 0
      %4498 = vmatpush1.bf16.msra.mxu0 0
      %4499 = vmatprep.subr.bf16.mxu0 0
      %4500 = vmatpush1.bf16.msra.mxu0 0
      %4501 = vmatprep.subr.bf16.mxu0 0
      %4502 = vmatpush1.bf16.msra.mxu0 0
      %4503 = vmatprep.subr.bf16.mxu0 0
      %4504 = vmatpush1.bf16.msra.mxu0 0
      %4505 = vmatprep.subr.bf16.mxu0 0
      %4506 = vmatpush1.bf16.msra.mxu0 0
      %4507 = vmatprep.mubr.bf16.mxu0 0
      %4508 = vmatmul.mubr.bf16.gmra.mrb[0].mxu0 %v4473
      %v4509 = vpop.f32.mrb[0].mxu0
      %v4510 = vadd.f32 0.0, %v4509
      %v4511 = vpop.f32.mrb[0].mxu0
      %v4512 = vpop.f32.mrb[0].mxu0
      %v4513 = vpop.f32.mrb[0].mxu0
      %4514 = vdwg.mxu0
      %v4515 = vpack.c.bf16 %v4510, %v4510
      %s4516 = scalar_lea.vmem %s7, 512
      %v4517 = vld [vmem:[%s4516] sm:$0xff]
      %v4518 = vld [vmem:[%s4516 + $0x8] sm:$0xff]
      %v4519 = vld [vmem:[%s4516 + $0x10] sm:$0xff]
      %v4520 = vld [vmem:[%s4516 + $0x18] sm:$0xff]
      %v4521 = vld [vmem:[%s4516 + $0x20] sm:$0xff]
      %v4522 = vld [vmem:[%s4516 + $0x28] sm:$0xff]
      %v4523 = vld [vmem:[%s4516 + $0x30] sm:$0xff]
      %v4524 = vld [vmem:[%s4516 + $0x38] sm:$0xff]
      %v4525 = vld [vmem:[%s4516 + $0x40] sm:$0xff]
      %v4526 = vld [vmem:[%s4516 + $0x48] sm:$0xff]
      %v4527 = vld [vmem:[%s4516 + $0x50] sm:$0xff]
      %v4528 = vld [vmem:[%s4516 + $0x58] sm:$0xff]
      %v4529 = vld [vmem:[%s4516 + $0x60] sm:$0xff]
      %v4530 = vld [vmem:[%s4516 + $0x68] sm:$0xff]
      %v4531 = vld [vmem:[%s4516 + $0x70] sm:$0xff]
      %v4532 = vld [vmem:[%s4516 + $0x78] sm:$0xff]
      %v4549 = vunpack.c.l.b16 %v4517
      %v4550 = vunpack.c.h.b16 %v4517
      %v4551 = vunpack.c.l.b16 %v4518
      %v4552 = vunpack.c.h.b16 %v4518
      %v4553 = vunpack.c.l.b16 %v4519
      %v4554 = vunpack.c.h.b16 %v4519
      %v4555 = vunpack.c.l.b16 %v4520
      %v4556 = vunpack.c.h.b16 %v4520
      %v4557 = vunpack.c.l.b16 %v4521
      %v4558 = vunpack.c.h.b16 %v4521
      %v4559 = vunpack.c.l.b16 %v4522
      %v4560 = vunpack.c.h.b16 %v4522
      %v4561 = vunpack.c.l.b16 %v4523
      %v4562 = vunpack.c.h.b16 %v4523
      %v4563 = vunpack.c.l.b16 %v4524
      %v4564 = vunpack.c.h.b16 %v4524
      %v4565 = vunpack.c.l.b16 %v4525
      %v4566 = vunpack.c.h.b16 %v4525
      %v4567 = vunpack.c.l.b16 %v4526
      %v4568 = vunpack.c.h.b16 %v4526
      %v4569 = vunpack.c.l.b16 %v4527
      %v4570 = vunpack.c.h.b16 %v4527
      %v4571 = vunpack.c.l.b16 %v4528
      %v4572 = vunpack.c.h.b16 %v4528
      %v4573 = vunpack.c.l.b16 %v4529
      %v4574 = vunpack.c.h.b16 %v4529
      %v4575 = vunpack.c.l.b16 %v4530
      %v4576 = vunpack.c.h.b16 %v4530
      %v4577 = vunpack.c.l.b16 %v4531
      %v4578 = vunpack.c.h.b16 %v4531
      %v4579 = vunpack.c.l.b16 %v4532
      %v4580 = vunpack.c.h.b16 %v4532
      %v4581 = vpack.c.b16 %v4551, %v4549
      %v4582 = vpack.c.b16 %v4552, %v4550
      %v4583 = vpack.c.b16 %v4555, %v4553
      %v4584 = vpack.c.b16 %v4556, %v4554
      %v4585 = vpack.c.b16 %v4559, %v4557
      %v4586 = vpack.c.b16 %v4560, %v4558
      %v4587 = vpack.c.b16 %v4563, %v4561
      %v4588 = vpack.c.b16 %v4564, %v4562
      %v4589 = vpack.c.b16 %v4567, %v4565
      %v4590 = vpack.c.b16 %v4568, %v4566
      %v4591 = vpack.c.b16 %v4571, %v4569
      %v4592 = vpack.c.b16 %v4572, %v4570
      %v4593 = vpack.c.b16 %v4575, %v4573
      %v4594 = vpack.c.b16 %v4576, %v4574
      %v4595 = vpack.c.b16 %v4579, %v4577
      %v4596 = vpack.c.b16 %v4580, %v4578
      %4613 = vmatprep.subr.bf16.mxu0 %v4582
      %4614 = vmatpush1.bf16.msra.mxu0 %v4581
      %4615 = vmatprep.subr.bf16.mxu0 %v4584
      %4616 = vmatpush1.bf16.msra.mxu0 %v4583
      %4617 = vmatprep.subr.bf16.mxu0 %v4586
      %4618 = vmatpush1.bf16.msra.mxu0 %v4585
      %4619 = vmatprep.subr.bf16.mxu0 %v4588
      %4620 = vmatpush1.bf16.msra.mxu0 %v4587
      %4621 = vmatprep.subr.bf16.mxu0 %v4590
      %4622 = vmatpush1.bf16.msra.mxu0 %v4589
      %4623 = vmatprep.subr.bf16.mxu0 %v4592
      %4624 = vmatpush1.bf16.msra.mxu0 %v4591
      %4625 = vmatprep.subr.bf16.mxu0 %v4594
      %4626 = vmatpush1.bf16.msra.mxu0 %v4593
      %4627 = vmatprep.subr.bf16.mxu0 %v4596
      %4628 = vmatpush1.bf16.msra.mxu0 %v4595
      %4629 = vmatprep.subr.bf16.mxu0 0
      %4630 = vmatpush1.bf16.msra.mxu0 0
      %4631 = vmatprep.subr.bf16.mxu0 0
      %4632 = vmatpush1.bf16.msra.mxu0 0
      %4633 = vmatprep.subr.bf16.mxu0 0
      %4634 = vmatpush1.bf16.msra.mxu0 0
      %4635 = vmatprep.subr.bf16.mxu0 0
      %4636 = vmatpush1.bf16.msra.mxu0 0
      %4637 = vmatprep.subr.bf16.mxu0 0
      %4638 = vmatpush1.bf16.msra.mxu0 0
      %4639 = vmatprep.subr.bf16.mxu0 0
      %4640 = vmatpush1.bf16.msra.mxu0 0
      %4641 = vmatprep.subr.bf16.mxu0 0
      %4642 = vmatpush1.bf16.msra.mxu0 0
      %4643 = vmatprep.subr.bf16.mxu0 0
      %4644 = vmatpush1.bf16.msra.mxu0 0
      %4645 = vmatprep.mubr.bf16.mxu0 0
      %4646 = vmatmul.mubr.bf16.gmra.mrb[0].mxu0 %v4515
      %v4647 = vpop.f32.mrb[0].mxu0
      %v4648 = vadd.f32 0.0, %v4647
      %v4649 = vpop.f32.mrb[0].mxu0
      %v4650 = vadd.f32 0.0, %v4649
      %v4651 = vpop.f32.mrb[0].mxu0
      %v4652 = vpop.f32.mrb[0].mxu0
      %4653 = vdwg.mxu0
      %v4654 = vadd.f32 %v4468, %v4648
      %v4655 = vadd.f32 %v4469, %v4650
      %s4656 = scalar_lea.vmem %s3, 10
      %v4657 = vld [vmem:[%s4656] sm:$0x3]
      %v4659 = vsel %vm3728, %v4657, 0
      %4661 = vmatprep.subr.bf16.mxu0 0
      %4662 = vmatpush1.bf16.msra.mxu0 %v3714
      %4663 = vmatprep.subr.bf16.mxu0 0
      %4664 = vmatpush1.bf16.msra.mxu0 0
      %4665 = vmatprep.subr.bf16.mxu0 0
      %4666 = vmatpush1.bf16.msra.mxu0 0
      %4667 = vmatprep.subr.bf16.mxu0 0
      %4668 = vmatpush1.bf16.msra.mxu0 0
      %4669 = vmatprep.subr.bf16.mxu0 0
      %4670 = vmatpush1.bf16.msra.mxu0 0
      %4671 = vmatprep.subr.bf16.mxu0 0
      %4672 = vmatpush1.bf16.msra.mxu0 0
      %4673 = vmatprep.subr.bf16.mxu0 0
      %4674 = vmatpush1.bf16.msra.mxu0 0
      %4675 = vmatprep.subr.bf16.mxu0 0
      %4676 = vmatpush1.bf16.msra.mxu0 0
      %4677 = vmatprep.subr.bf16.mxu0 0
      %4678 = vmatpush1.bf16.msra.mxu0 0
      %4679 = vmatprep.subr.bf16.mxu0 0
      %4680 = vmatpush1.bf16.msra.mxu0 0
      %4681 = vmatprep.subr.bf16.mxu0 0
      %4682 = vmatpush1.bf16.msra.mxu0 0
      %4683 = vmatprep.subr.bf16.mxu0 0
      %4684 = vmatpush1.bf16.msra.mxu0 0
      %4685 = vmatprep.subr.bf16.mxu0 0
      %4686 = vmatpush1.bf16.msra.mxu0 0
      %4687 = vmatprep.subr.bf16.mxu0 0
      %4688 = vmatpush1.bf16.msra.mxu0 0
      %4689 = vmatprep.subr.bf16.mxu0 0
      %4690 = vmatpush1.bf16.msra.mxu0 0
      %4691 = vmatprep.subr.bf16.mxu0 0
      %4692 = vmatpush1.bf16.msra.mxu0 0
      %4693 = vmatprep.mubr.bf16.mxu0 0
      %4694 = vmatmul.mubr.bf16.gmra.mrb[0].mxu0 %v4659
      %v4695 = vpop.f32.mrb[0].mxu0
      %v4696 = vadd.f32 0.0, %v4695
      %v4697 = vpop.f32.mrb[0].mxu0
      %v4698 = vpop.f32.mrb[0].mxu0
      %v4699 = vpop.f32.mrb[0].mxu0
      %4700 = vdwg.mxu0
      %v4701 = vpack.c.bf16 %v4696, %v4696
      %s4702 = scalar_lea.vmem %s7, 640
      %v4703 = vld [vmem:[%s4702] sm:$0xff]
      %v4704 = vld [vmem:[%s4702 + $0x8] sm:$0xff]
      %v4705 = vld [vmem:[%s4702 + $0x10] sm:$0xff]
      %v4706 = vld [vmem:[%s4702 + $0x18] sm:$0xff]
      %v4707 = vld [vmem:[%s4702 + $0x20] sm:$0xff]
      %v4708 = vld [vmem:[%s4702 + $0x28] sm:$0xff]
      %v4709 = vld [vmem:[%s4702 + $0x30] sm:$0xff]
      %v4710 = vld [vmem:[%s4702 + $0x38] sm:$0xff]
      %v4711 = vld [vmem:[%s4702 + $0x40] sm:$0xff]
      %v4712 = vld [vmem:[%s4702 + $0x48] sm:$0xff]
      %v4713 = vld [vmem:[%s4702 + $0x50] sm:$0xff]
      %v4714 = vld [vmem:[%s4702 + $0x58] sm:$0xff]
      %v4715 = vld [vmem:[%s4702 + $0x60] sm:$0xff]
      %v4716 = vld [vmem:[%s4702 + $0x68] sm:$0xff]
      %v4717 = vld [vmem:[%s4702 + $0x70] sm:$0xff]
      %v4718 = vld [vmem:[%s4702 + $0x78] sm:$0xff]
      %v4735 = vunpack.c.l.b16 %v4703
      %v4736 = vunpack.c.h.b16 %v4703
      %v4737 = vunpack.c.l.b16 %v4704
      %v4738 = vunpack.c.h.b16 %v4704
      %v4739 = vunpack.c.l.b16 %v4705
      %v4740 = vunpack.c.h.b16 %v4705
      %v4741 = vunpack.c.l.b16 %v4706
      %v4742 = vunpack.c.h.b16 %v4706
      %v4743 = vunpack.c.l.b16 %v4707
      %v4744 = vunpack.c.h.b16 %v4707
      %v4745 = vunpack.c.l.b16 %v4708
      %v4746 = vunpack.c.h.b16 %v4708
      %v4747 = vunpack.c.l.b16 %v4709
      %v4748 = vunpack.c.h.b16 %v4709
      %v4749 = vunpack.c.l.b16 %v4710
      %v4750 = vunpack.c.h.b16 %v4710
      %v4751 = vunpack.c.l.b16 %v4711
      %v4752 = vunpack.c.h.b16 %v4711
      %v4753 = vunpack.c.l.b16 %v4712
      %v4754 = vunpack.c.h.b16 %v4712
      %v4755 = vunpack.c.l.b16 %v4713
      %v4756 = vunpack.c.h.b16 %v4713
      %v4757 = vunpack.c.l.b16 %v4714
      %v4758 = vunpack.c.h.b16 %v4714
      %v4759 = vunpack.c.l.b16 %v4715
      %v4760 = vunpack.c.h.b16 %v4715
      %v4761 = vunpack.c.l.b16 %v4716
      %v4762 = vunpack.c.h.b16 %v4716
      %v4763 = vunpack.c.l.b16 %v4717
      %v4764 = vunpack.c.h.b16 %v4717
      %v4765 = vunpack.c.l.b16 %v4718
      %v4766 = vunpack.c.h.b16 %v4718
      %v4767 = vpack.c.b16 %v4737, %v4735
      %v4768 = vpack.c.b16 %v4738, %v4736
      %v4769 = vpack.c.b16 %v4741, %v4739
      %v4770 = vpack.c.b16 %v4742, %v4740
      %v4771 = vpack.c.b16 %v4745, %v4743
      %v4772 = vpack.c.b16 %v4746, %v4744
      %v4773 = vpack.c.b16 %v4749, %v4747
      %v4774 = vpack.c.b16 %v4750, %v4748
      %v4775 = vpack.c.b16 %v4753, %v4751
      %v4776 = vpack.c.b16 %v4754, %v4752
      %v4777 = vpack.c.b16 %v4757, %v4755
      %v4778 = vpack.c.b16 %v4758, %v4756
      %v4779 = vpack.c.b16 %v4761, %v4759
      %v4780 = vpack.c.b16 %v4762, %v4760
      %v4781 = vpack.c.b16 %v4765, %v4763
      %v4782 = vpack.c.b16 %v4766, %v4764
      %4799 = vmatprep.subr.bf16.mxu0 %v4768
      %4800 = vmatpush1.bf16.msra.mxu0 %v4767
      %4801 = vmatprep.subr.bf16.mxu0 %v4770
      %4802 = vmatpush1.bf16.msra.mxu0 %v4769
      %4803 = vmatprep.subr.bf16.mxu0 %v4772
      %4804 = vmatpush1.bf16.msra.mxu0 %v4771
      %4805 = vmatprep.subr.bf16.mxu0 %v4774
      %4806 = vmatpush1.bf16.msra.mxu0 %v4773
      %4807 = vmatprep.subr.bf16.mxu0 %v4776
      %4808 = vmatpush1.bf16.msra.mxu0 %v4775
      %4809 = vmatprep.subr.bf16.mxu0 %v4778
      %4810 = vmatpush1.bf16.msra.mxu0 %v4777
      %4811 = vmatprep.subr.bf16.mxu0 %v4780
      %4812 = vmatpush1.bf16.msra.mxu0 %v4779
      %4813 = vmatprep.subr.bf16.mxu0 %v4782
      %4814 = vmatpush1.bf16.msra.mxu0 %v4781
      %4815 = vmatprep.subr.bf16.mxu0 0
      %4816 = vmatpush1.bf16.msra.mxu0 0
      %4817 = vmatprep.subr.bf16.mxu0 0
      %4818 = vmatpush1.bf16.msra.mxu0 0
      %4819 = vmatprep.subr.bf16.mxu0 0
      %4820 = vmatpush1.bf16.msra.mxu0 0
      %4821 = vmatprep.subr.bf16.mxu0 0
      %4822 = vmatpush1.bf16.msra.mxu0 0
      %4823 = vmatprep.subr.bf16.mxu0 0
      %4824 = vmatpush1.bf16.msra.mxu0 0
      %4825 = vmatprep.subr.bf16.mxu0 0
      %4826 = vmatpush1.bf16.msra.mxu0 0
      %4827 = vmatprep.subr.bf16.mxu0 0
      %4828 = vmatpush1.bf16.msra.mxu0 0
      %4829 = vmatprep.subr.bf16.mxu0 0
      %4830 = vmatpush1.bf16.msra.mxu0 0
      %4831 = vmatprep.mubr.bf16.mxu0 0
      %4832 = vmatmul.mubr.bf16.gmra.mrb[0].mxu0 %v4701
      %v4833 = vpop.f32.mrb[0].mxu0
      %v4834 = vadd.f32 0.0, %v4833
      %v4835 = vpop.f32.mrb[0].mxu0
      %v4836 = vadd.f32 0.0, %v4835
      %v4837 = vpop.f32.mrb[0].mxu0
      %v4838 = vpop.f32.mrb[0].mxu0
      %4839 = vdwg.mxu0
      %v4840 = vadd.f32 %v4654, %v4834
      %v4841 = vadd.f32 %v4655, %v4836
      %s4842 = scalar_lea.vmem %s3, 12
      %v4843 = vld [vmem:[%s4842] sm:$0x3]
      %v4845 = vsel %vm3728, %v4843, 0
      %4847 = vmatprep.subr.bf16.mxu0 0
      %4848 = vmatpush1.bf16.msra.mxu0 %v3714
      %4849 = vmatprep.subr.bf16.mxu0 0
      %4850 = vmatpush1.bf16.msra.mxu0 0
      %4851 = vmatprep.subr.bf16.mxu0 0
      %4852 = vmatpush1.bf16.msra.mxu0 0
      %4853 = vmatprep.subr.bf16.mxu0 0
      %4854 = vmatpush1.bf16.msra.mxu0 0
      %4855 = vmatprep.subr.bf16.mxu0 0
      %4856 = vmatpush1.bf16.msra.mxu0 0
      %4857 = vmatprep.subr.bf16.mxu0 0
      %4858 = vmatpush1.bf16.msra.mxu0 0
      %4859 = vmatprep.subr.bf16.mxu0 0
      %4860 = vmatpush1.bf16.msra.mxu0 0
      %4861 = vmatprep.subr.bf16.mxu0 0
      %4862 = vmatpush1.bf16.msra.mxu0 0
      %4863 = vmatprep.subr.bf16.mxu0 0
      %4864 = vmatpush1.bf16.msra.mxu0 0
      %4865 = vmatprep.subr.bf16.mxu0 0
      %4866 = vmatpush1.bf16.msra.mxu0 0
      %4867 = vmatprep.subr.bf16.mxu0 0
      %4868 = vmatpush1.bf16.msra.mxu0 0
      %4869 = vmatprep.subr.bf16.mxu0 0
      %4870 = vmatpush1.bf16.msra.mxu0 0
      %4871 = vmatprep.subr.bf16.mxu0 0
      %4872 = vmatpush1.bf16.msra.mxu0 0
      %4873 = vmatprep.subr.bf16.mxu0 0
      %4874 = vmatpush1.bf16.msra.mxu0 0
      %4875 = vmatprep.subr.bf16.mxu0 0
      %4876 = vmatpush1.bf16.msra.mxu0 0
      %4877 = vmatprep.subr.bf16.mxu0 0
      %4878 = vmatpush1.bf16.msra.mxu0 0
      %4879 = vmatprep.mubr.bf16.mxu0 0
      %4880 = vmatmul.mubr.bf16.gmra.mrb[0].mxu0 %v4845
      %v4881 = vpop.f32.mrb[0].mxu0
      %v4882 = vadd.f32 0.0, %v4881
      %v4883 = vpop.f32.mrb[0].mxu0
      %v4884 = vpop.f32.mrb[0].mxu0
      %v4885 = vpop.f32.mrb[0].mxu0
      %4886 = vdwg.mxu0
      %v4887 = vpack.c.bf16 %v4882, %v4882
      %s4888 = scalar_lea.vmem %s7, 768
      %v4889 = vld [vmem:[%s4888] sm:$0xff]
      %v4890 = vld [vmem:[%s4888 + $0x8] sm:$0xff]
      %v4891 = vld [vmem:[%s4888 + $0x10] sm:$0xff]
      %v4892 = vld [vmem:[%s4888 + $0x18] sm:$0xff]
      %v4893 = vld [vmem:[%s4888 + $0x20] sm:$0xff]
      %v4894 = vld [vmem:[%s4888 + $0x28] sm:$0xff]
      %v4895 = vld [vmem:[%s4888 + $0x30] sm:$0xff]
      %v4896 = vld [vmem:[%s4888 + $0x38] sm:$0xff]
      %v4897 = vld [vmem:[%s4888 + $0x40] sm:$0xff]
      %v4898 = vld [vmem:[%s4888 + $0x48] sm:$0xff]
      %v4899 = vld [vmem:[%s4888 + $0x50] sm:$0xff]
      %v4900 = vld [vmem:[%s4888 + $0x58] sm:$0xff]
      %v4901 = vld [vmem:[%s4888 + $0x60] sm:$0xff]
      %v4902 = vld [vmem:[%s4888 + $0x68] sm:$0xff]
      %v4903 = vld [vmem:[%s4888 + $0x70] sm:$0xff]
      %v4904 = vld [vmem:[%s4888 + $0x78] sm:$0xff]
      %v4921 = vunpack.c.l.b16 %v4889
      %v4922 = vunpack.c.h.b16 %v4889
      %v4923 = vunpack.c.l.b16 %v4890
      %v4924 = vunpack.c.h.b16 %v4890
      %v4925 = vunpack.c.l.b16 %v4891
      %v4926 = vunpack.c.h.b16 %v4891
      %v4927 = vunpack.c.l.b16 %v4892
      %v4928 = vunpack.c.h.b16 %v4892
      %v4929 = vunpack.c.l.b16 %v4893
      %v4930 = vunpack.c.h.b16 %v4893
      %v4931 = vunpack.c.l.b16 %v4894
      %v4932 = vunpack.c.h.b16 %v4894
      %v4933 = vunpack.c.l.b16 %v4895
      %v4934 = vunpack.c.h.b16 %v4895
      %v4935 = vunpack.c.l.b16 %v4896
      %v4936 = vunpack.c.h.b16 %v4896
      %v4937 = vunpack.c.l.b16 %v4897
      %v4938 = vunpack.c.h.b16 %v4897
      %v4939 = vunpack.c.l.b16 %v4898
      %v4940 = vunpack.c.h.b16 %v4898
      %v4941 = vunpack.c.l.b16 %v4899
      %v4942 = vunpack.c.h.b16 %v4899
      %v4943 = vunpack.c.l.b16 %v4900
      %v4944 = vunpack.c.h.b16 %v4900
      %v4945 = vunpack.c.l.b16 %v4901
      %v4946 = vunpack.c.h.b16 %v4901
      %v4947 = vunpack.c.l.b16 %v4902
      %v4948 = vunpack.c.h.b16 %v4902
      %v4949 = vunpack.c.l.b16 %v4903
      %v4950 = vunpack.c.h.b16 %v4903
      %v4951 = vunpack.c.l.b16 %v4904
      %v4952 = vunpack.c.h.b16 %v4904
      %v4953 = vpack.c.b16 %v4923, %v4921
      %v4954 = vpack.c.b16 %v4924, %v4922
      %v4955 = vpack.c.b16 %v4927, %v4925
      %v4956 = vpack.c.b16 %v4928, %v4926
      %v4957 = vpack.c.b16 %v4931, %v4929
      %v4958 = vpack.c.b16 %v4932, %v4930
      %v4959 = vpack.c.b16 %v4935, %v4933
      %v4960 = vpack.c.b16 %v4936, %v4934
      %v4961 = vpack.c.b16 %v4939, %v4937
      %v4962 = vpack.c.b16 %v4940, %v4938
      %v4963 = vpack.c.b16 %v4943, %v4941
      %v4964 = vpack.c.b16 %v4944, %v4942
      %v4965 = vpack.c.b16 %v4947, %v4945
      %v4966 = vpack.c.b16 %v4948, %v4946
      %v4967 = vpack.c.b16 %v4951, %v4949
      %v4968 = vpack.c.b16 %v4952, %v4950
      %4985 = vmatprep.subr.bf16.mxu0 %v4954
      %4986 = vmatpush1.bf16.msra.mxu0 %v4953
      %4987 = vmatprep.subr.bf16.mxu0 %v4956
      %4988 = vmatpush1.bf16.msra.mxu0 %v4955
      %4989 = vmatprep.subr.bf16.mxu0 %v4958
      %4990 = vmatpush1.bf16.msra.mxu0 %v4957
      %4991 = vmatprep.subr.bf16.mxu0 %v4960
      %4992 = vmatpush1.bf16.msra.mxu0 %v4959
      %4993 = vmatprep.subr.bf16.mxu0 %v4962
      %4994 = vmatpush1.bf16.msra.mxu0 %v4961
      %4995 = vmatprep.subr.bf16.mxu0 %v4964
      %4996 = vmatpush1.bf16.msra.mxu0 %v4963
      %4997 = vmatprep.subr.bf16.mxu0 %v4966
      %4998 = vmatpush1.bf16.msra.mxu0 %v4965
      %4999 = vmatprep.subr.bf16.mxu0 %v4968
      %5000 = vmatpush1.bf16.msra.mxu0 %v4967
      %5001 = vmatprep.subr.bf16.mxu0 0
      %5002 = vmatpush1.bf16.msra.mxu0 0
      %5003 = vmatprep.subr.bf16.mxu0 0
      %5004 = vmatpush1.bf16.msra.mxu0 0
      %5005 = vmatprep.subr.bf16.mxu0 0
      %5006 = vmatpush1.bf16.msra.mxu0 0
      %5007 = vmatprep.subr.bf16.mxu0 0
      %5008 = vmatpush1.bf16.msra.mxu0 0
      %5009 = vmatprep.subr.bf16.mxu0 0
      %5010 = vmatpush1.bf16.msra.mxu0 0
      %5011 = vmatprep.subr.bf16.mxu0 0
      %5012 = vmatpush1.bf16.msra.mxu0 0
      %5013 = vmatprep.subr.bf16.mxu0 0
      %5014 = vmatpush1.bf16.msra.mxu0 0
      %5015 = vmatprep.subr.bf16.mxu0 0
      %5016 = vmatpush1.bf16.msra.mxu0 0
      %5017 = vmatprep.mubr.bf16.mxu0 0
      %5018 = vmatmul.mubr.bf16.gmra.mrb[0].mxu0 %v4887
      %v5019 = vpop.f32.mrb[0].mxu0
      %v5020 = vadd.f32 0.0, %v5019
      %v5021 = vpop.f32.mrb[0].mxu0
      %v5022 = vadd.f32 0.0, %v5021
      %v5023 = vpop.f32.mrb[0].mxu0
      %v5024 = vpop.f32.mrb[0].mxu0
      %5025 = vdwg.mxu0
      %v5026 = vadd.f32 %v4840, %v5020
      %v5027 = vadd.f32 %v4841, %v5022
      %s5028 = scalar_lea.vmem %s3, 14
      %v5029 = vld [vmem:[%s5028] sm:$0x3]
      %v5031 = vsel %vm3728, %v5029, 0
      %5033 = vmatprep.subr.bf16.mxu0 0
      %5034 = vmatpush1.bf16.msra.mxu0 %v3714
      %5035 = vmatprep.subr.bf16.mxu0 0
      %5036 = vmatpush1.bf16.msra.mxu0 0
      %5037 = vmatprep.subr.bf16.mxu0 0
      %5038 = vmatpush1.bf16.msra.mxu0 0
      %5039 = vmatprep.subr.bf16.mxu0 0
      %5040 = vmatpush1.bf16.msra.mxu0 0
      %5041 = vmatprep.subr.bf16.mxu0 0
      %5042 = vmatpush1.bf16.msra.mxu0 0
      %5043 = vmatprep.subr.bf16.mxu0 0
      %5044 = vmatpush1.bf16.msra.mxu0 0
      %5045 = vmatprep.subr.bf16.mxu0 0
      %5046 = vmatpush1.bf16.msra.mxu0 0
      %5047 = vmatprep.subr.bf16.mxu0 0
      %5048 = vmatpush1.bf16.msra.mxu0 0
      %5049 = vmatprep.subr.bf16.mxu0 0
      %5050 = vmatpush1.bf16.msra.mxu0 0
      %5051 = vmatprep.subr.bf16.mxu0 0
      %5052 = vmatpush1.bf16.msra.mxu0 0
      %5053 = vmatprep.subr.bf16.mxu0 0
      %5054 = vmatpush1.bf16.msra.mxu0 0
      %5055 = vmatprep.subr.bf16.mxu0 0
      %5056 = vmatpush1.bf16.msra.mxu0 0
      %5057 = vmatprep.subr.bf16.mxu0 0
      %5058 = vmatpush1.bf16.msra.mxu0 0
      %5059 = vmatprep.subr.bf16.mxu0 0
      %5060 = vmatpush1.bf16.msra.mxu0 0
      %5061 = vmatprep.subr.bf16.mxu0 0
      %5062 = vmatpush1.bf16.msra.mxu0 0
      %5063 = vmatprep.subr.bf16.mxu0 0
      %5064 = vmatpush1.bf16.msra.mxu0 0
      %5065 = vmatprep.mubr.bf16.mxu0 0
      %5066 = vmatmul.mubr.bf16.gmra.mrb[0].mxu0 %v5031
      %v5067 = vpop.f32.mrb[0].mxu0
      %v5068 = vadd.f32 0.0, %v5067
      %v5069 = vpop.f32.mrb[0].mxu0
      %v5070 = vpop.f32.mrb[0].mxu0
      %v5071 = vpop.f32.mrb[0].mxu0
      %5072 = vdwg.mxu0
      %v5073 = vpack.c.bf16 %v5068, %v5068
      %s5074 = scalar_lea.vmem %s7, 896
      %v5075 = vld [vmem:[%s5074] sm:$0xff]
      %v5076 = vld [vmem:[%s5074 + $0x8] sm:$0xff]
      %v5077 = vld [vmem:[%s5074 + $0x10] sm:$0xff]
      %v5078 = vld [vmem:[%s5074 + $0x18] sm:$0xff]
      %v5079 = vld [vmem:[%s5074 + $0x20] sm:$0xff]
      %v5080 = vld [vmem:[%s5074 + $0x28] sm:$0xff]
      %v5081 = vld [vmem:[%s5074 + $0x30] sm:$0xff]
      %v5082 = vld [vmem:[%s5074 + $0x38] sm:$0xff]
      %v5083 = vld [vmem:[%s5074 + $0x40] sm:$0xff]
      %v5084 = vld [vmem:[%s5074 + $0x48] sm:$0xff]
      %v5085 = vld [vmem:[%s5074 + $0x50] sm:$0xff]
      %v5086 = vld [vmem:[%s5074 + $0x58] sm:$0xff]
      %v5087 = vld [vmem:[%s5074 + $0x60] sm:$0xff]
      %v5088 = vld [vmem:[%s5074 + $0x68] sm:$0xff]
      %v5089 = vld [vmem:[%s5074 + $0x70] sm:$0xff]
      %v5090 = vld [vmem:[%s5074 + $0x78] sm:$0xff]
      %v5107 = vunpack.c.l.b16 %v5075
      %v5108 = vunpack.c.h.b16 %v5075
      %v5109 = vunpack.c.l.b16 %v5076
      %v5110 = vunpack.c.h.b16 %v5076
      %v5111 = vunpack.c.l.b16 %v5077
      %v5112 = vunpack.c.h.b16 %v5077
      %v5113 = vunpack.c.l.b16 %v5078
      %v5114 = vunpack.c.h.b16 %v5078
      %v5115 = vunpack.c.l.b16 %v5079
      %v5116 = vunpack.c.h.b16 %v5079
      %v5117 = vunpack.c.l.b16 %v5080
      %v5118 = vunpack.c.h.b16 %v5080
      %v5119 = vunpack.c.l.b16 %v5081
      %v5120 = vunpack.c.h.b16 %v5081
      %v5121 = vunpack.c.l.b16 %v5082
      %v5122 = vunpack.c.h.b16 %v5082
      %v5123 = vunpack.c.l.b16 %v5083
      %v5124 = vunpack.c.h.b16 %v5083
      %v5125 = vunpack.c.l.b16 %v5084
      %v5126 = vunpack.c.h.b16 %v5084
      %v5127 = vunpack.c.l.b16 %v5085
      %v5128 = vunpack.c.h.b16 %v5085
      %v5129 = vunpack.c.l.b16 %v5086
      %v5130 = vunpack.c.h.b16 %v5086
      %v5131 = vunpack.c.l.b16 %v5087
      %v5132 = vunpack.c.h.b16 %v5087
      %v5133 = vunpack.c.l.b16 %v5088
      %v5134 = vunpack.c.h.b16 %v5088
      %v5135 = vunpack.c.l.b16 %v5089
      %v5136 = vunpack.c.h.b16 %v5089
      %v5137 = vunpack.c.l.b16 %v5090
      %v5138 = vunpack.c.h.b16 %v5090
      %v5139 = vpack.c.b16 %v5109, %v5107
      %v5140 = vpack.c.b16 %v5110, %v5108
      %v5141 = vpack.c.b16 %v5113, %v5111
      %v5142 = vpack.c.b16 %v5114, %v5112
      %v5143 = vpack.c.b16 %v5117, %v5115
      %v5144 = vpack.c.b16 %v5118, %v5116
      %v5145 = vpack.c.b16 %v5121, %v5119
      %v5146 = vpack.c.b16 %v5122, %v5120
      %v5147 = vpack.c.b16 %v5125, %v5123
      %v5148 = vpack.c.b16 %v5126, %v5124
      %v5149 = vpack.c.b16 %v5129, %v5127
      %v5150 = vpack.c.b16 %v5130, %v5128
      %v5151 = vpack.c.b16 %v5133, %v5131
      %v5152 = vpack.c.b16 %v5134, %v5132
      %v5153 = vpack.c.b16 %v5137, %v5135
      %v5154 = vpack.c.b16 %v5138, %v5136
      %5171 = vmatprep.subr.bf16.mxu0 %v5140
      %5172 = vmatpush1.bf16.msra.mxu0 %v5139
      %5173 = vmatprep.subr.bf16.mxu0 %v5142
      %5174 = vmatpush1.bf16.msra.mxu0 %v5141
      %5175 = vmatprep.subr.bf16.mxu0 %v5144
      %5176 = vmatpush1.bf16.msra.mxu0 %v5143
      %5177 = vmatprep.subr.bf16.mxu0 %v5146
      %5178 = vmatpush1.bf16.msra.mxu0 %v5145
      %5179 = vmatprep.subr.bf16.mxu0 %v5148
      %5180 = vmatpush1.bf16.msra.mxu0 %v5147
      %5181 = vmatprep.subr.bf16.mxu0 %v5150
      %5182 = vmatpush1.bf16.msra.mxu0 %v5149
      %5183 = vmatprep.subr.bf16.mxu0 %v5152
      %5184 = vmatpush1.bf16.msra.mxu0 %v5151
      %5185 = vmatprep.subr.bf16.mxu0 %v5154
      %5186 = vmatpush1.bf16.msra.mxu0 %v5153
      %5187 = vmatprep.subr.bf16.mxu0 0
      %5188 = vmatpush1.bf16.msra.mxu0 0
      %5189 = vmatprep.subr.bf16.mxu0 0
      %5190 = vmatpush1.bf16.msra.mxu0 0
      %5191 = vmatprep.subr.bf16.mxu0 0
      %5192 = vmatpush1.bf16.msra.mxu0 0
      %5193 = vmatprep.subr.bf16.mxu0 0
      %5194 = vmatpush1.bf16.msra.mxu0 0
      %5195 = vmatprep.subr.bf16.mxu0 0
      %5196 = vmatpush1.bf16.msra.mxu0 0
      %5197 = vmatprep.subr.bf16.mxu0 0
      %5198 = vmatpush1.bf16.msra.mxu0 0
      %5199 = vmatprep.subr.bf16.mxu0 0
      %5200 = vmatpush1.bf16.msra.mxu0 0
      %5201 = vmatprep.subr.bf16.mxu0 0
      %5202 = vmatpush1.bf16.msra.mxu0 0
      %5203 = vmatprep.mubr.bf16.mxu0 0
      %5204 = vmatmul.mubr.bf16.gmra.mrb[0].mxu0 %v5073
      %v5205 = vpop.f32.mrb[0].mxu0
      %v5206 = vadd.f32 0.0, %v5205
      %v5207 = vpop.f32.mrb[0].mxu0
      %v5208 = vadd.f32 0.0, %v5207
      %v5209 = vpop.f32.mrb[0].mxu0
      %v5210 = vpop.f32.mrb[0].mxu0
      %5211 = vdwg.mxu0
      %v5212 = vadd.f32 %v5026, %v5206
      %v5213 = vadd.f32 %v5027, %v5208
      %s5214 = scalar_lea.vmem %s3, 16
      %v5215 = vld [vmem:[%s5214] sm:$0x3]
      %v5217 = vsel %vm3728, %v5215, 0
      %5219 = vmatprep.subr.bf16.mxu0 0
      %5220 = vmatpush1.bf16.msra.mxu0 %v3714
      %5221 = vmatprep.subr.bf16.mxu0 0
      %5222 = vmatpush1.bf16.msra.mxu0 0
      %5223 = vmatprep.subr.bf16.mxu0 0
      %5224 = vmatpush1.bf16.msra.mxu0 0
      %5225 = vmatprep.subr.bf16.mxu0 0
      %5226 = vmatpush1.bf16.msra.mxu0 0
      %5227 = vmatprep.subr.bf16.mxu0 0
      %5228 = vmatpush1.bf16.msra.mxu0 0
      %5229 = vmatprep.subr.bf16.mxu0 0
      %5230 = vmatpush1.bf16.msra.mxu0 0
      %5231 = vmatprep.subr.bf16.mxu0 0
      %5232 = vmatpush1.bf16.msra.mxu0 0
      %5233 = vmatprep.subr.bf16.mxu0 0
      %5234 = vmatpush1.bf16.msra.mxu0 0
      %5235 = vmatprep.subr.bf16.mxu0 0
      %5236 = vmatpush1.bf16.msra.mxu0 0
      %5237 = vmatprep.subr.bf16.mxu0 0
      %5238 = vmatpush1.bf16.msra.mxu0 0
      %5239 = vmatprep.subr.bf16.mxu0 0
      %5240 = vmatpush1.bf16.msra.mxu0 0
      %5241 = vmatprep.subr.bf16.mxu0 0
      %5242 = vmatpush1.bf16.msra.mxu0 0
      %5243 = vmatprep.subr.bf16.mxu0 0
      %5244 = vmatpush1.bf16.msra.mxu0 0
      %5245 = vmatprep.subr.bf16.mxu0 0
      %5246 = vmatpush1.bf16.msra.mxu0 0
      %5247 = vmatprep.subr.bf16.mxu0 0
      %5248 = vmatpush1.bf16.msra.mxu0 0
      %5249 = vmatprep.subr.bf16.mxu0 0
      %5250 = vmatpush1.bf16.msra.mxu0 0
      %5251 = vmatprep.mubr.bf16.mxu0 0
      %5252 = vmatmul.mubr.bf16.gmra.mrb[0].mxu0 %v5217
      %v5253 = vpop.f32.mrb[0].mxu0
      %v5254 = vadd.f32 0.0, %v5253
      %v5255 = vpop.f32.mrb[0].mxu0
      %v5256 = vpop.f32.mrb[0].mxu0
      %v5257 = vpop.f32.mrb[0].mxu0
      %5258 = vdwg.mxu0
      %v5259 = vpack.c.bf16 %v5254, %v5254
      %s5260 = scalar_lea.vmem %s7, 1024
      %v5261 = vld [vmem:[%s5260] sm:$0xff]
      %v5262 = vld [vmem:[%s5260 + $0x8] sm:$0xff]
      %v5263 = vld [vmem:[%s5260 + $0x10] sm:$0xff]
      %v5264 = vld [vmem:[%s5260 + $0x18] sm:$0xff]
      %v5265 = vld [vmem:[%s5260 + $0x20] sm:$0xff]
      %v5266 = vld [vmem:[%s5260 + $0x28] sm:$0xff]
      %v5267 = vld [vmem:[%s5260 + $0x30] sm:$0xff]
      %v5268 = vld [vmem:[%s5260 + $0x38] sm:$0xff]
      %v5269 = vld [vmem:[%s5260 + $0x40] sm:$0xff]
      %v5270 = vld [vmem:[%s5260 + $0x48] sm:$0xff]
      %v5271 = vld [vmem:[%s5260 + $0x50] sm:$0xff]
      %v5272 = vld [vmem:[%s5260 + $0x58] sm:$0xff]
      %v5273 = vld [vmem:[%s5260 + $0x60] sm:$0xff]
      %v5274 = vld [vmem:[%s5260 + $0x68] sm:$0xff]
      %v5275 = vld [vmem:[%s5260 + $0x70] sm:$0xff]
      %v5276 = vld [vmem:[%s5260 + $0x78] sm:$0xff]
      %v5293 = vunpack.c.l.b16 %v5261
      %v5294 = vunpack.c.h.b16 %v5261
      %v5295 = vunpack.c.l.b16 %v5262
      %v5296 = vunpack.c.h.b16 %v5262
      %v5297 = vunpack.c.l.b16 %v5263
      %v5298 = vunpack.c.h.b16 %v5263
      %v5299 = vunpack.c.l.b16 %v5264
      %v5300 = vunpack.c.h.b16 %v5264
      %v5301 = vunpack.c.l.b16 %v5265
      %v5302 = vunpack.c.h.b16 %v5265
      %v5303 = vunpack.c.l.b16 %v5266
      %v5304 = vunpack.c.h.b16 %v5266
      %v5305 = vunpack.c.l.b16 %v5267
      %v5306 = vunpack.c.h.b16 %v5267
      %v5307 = vunpack.c.l.b16 %v5268
      %v5308 = vunpack.c.h.b16 %v5268
      %v5309 = vunpack.c.l.b16 %v5269
      %v5310 = vunpack.c.h.b16 %v5269
      %v5311 = vunpack.c.l.b16 %v5270
      %v5312 = vunpack.c.h.b16 %v5270
      %v5313 = vunpack.c.l.b16 %v5271
      %v5314 = vunpack.c.h.b16 %v5271
      %v5315 = vunpack.c.l.b16 %v5272
      %v5316 = vunpack.c.h.b16 %v5272
      %v5317 = vunpack.c.l.b16 %v5273
      %v5318 = vunpack.c.h.b16 %v5273
      %v5319 = vunpack.c.l.b16 %v5274
      %v5320 = vunpack.c.h.b16 %v5274
      %v5321 = vunpack.c.l.b16 %v5275
      %v5322 = vunpack.c.h.b16 %v5275
      %v5323 = vunpack.c.l.b16 %v5276
      %v5324 = vunpack.c.h.b16 %v5276
      %v5325 = vpack.c.b16 %v5295, %v5293
      %v5326 = vpack.c.b16 %v5296, %v5294
      %v5327 = vpack.c.b16 %v5299, %v5297
      %v5328 = vpack.c.b16 %v5300, %v5298
      %v5329 = vpack.c.b16 %v5303, %v5301
      %v5330 = vpack.c.b16 %v5304, %v5302
      %v5331 = vpack.c.b16 %v5307, %v5305
      %v5332 = vpack.c.b16 %v5308, %v5306
      %v5333 = vpack.c.b16 %v5311, %v5309
      %v5334 = vpack.c.b16 %v5312, %v5310
      %v5335 = vpack.c.b16 %v5315, %v5313
      %v5336 = vpack.c.b16 %v5316, %v5314
      %v5337 = vpack.c.b16 %v5319, %v5317
      %v5338 = vpack.c.b16 %v5320, %v5318
      %v5339 = vpack.c.b16 %v5323, %v5321
      %v5340 = vpack.c.b16 %v5324, %v5322
      %5357 = vmatprep.subr.bf16.mxu0 %v5326
      %5358 = vmatpush1.bf16.msra.mxu0 %v5325
      %5359 = vmatprep.subr.bf16.mxu0 %v5328
      %5360 = vmatpush1.bf16.msra.mxu0 %v5327
      %5361 = vmatprep.subr.bf16.mxu0 %v5330
      %5362 = vmatpush1.bf16.msra.mxu0 %v5329
      %5363 = vmatprep.subr.bf16.mxu0 %v5332
      %5364 = vmatpush1.bf16.msra.mxu0 %v5331
      %5365 = vmatprep.subr.bf16.mxu0 %v5334
      %5366 = vmatpush1.bf16.msra.mxu0 %v5333
      %5367 = vmatprep.subr.bf16.mxu0 %v5336
      %5368 = vmatpush1.bf16.msra.mxu0 %v5335
      %5369 = vmatprep.subr.bf16.mxu0 %v5338
      %5370 = vmatpush1.bf16.msra.mxu0 %v5337
      %5371 = vmatprep.subr.bf16.mxu0 %v5340
      %5372 = vmatpush1.bf16.msra.mxu0 %v5339
      %5373 = vmatprep.subr.bf16.mxu0 0
      %5374 = vmatpush1.bf16.msra.mxu0 0
      %5375 = vmatprep.subr.bf16.mxu0 0
      %5376 = vmatpush1.bf16.msra.mxu0 0
      %5377 = vmatprep.subr.bf16.mxu0 0
      %5378 = vmatpush1.bf16.msra.mxu0 0
      %5379 = vmatprep.subr.bf16.mxu0 0
      %5380 = vmatpush1.bf16.msra.mxu0 0
      %5381 = vmatprep.subr.bf16.mxu0 0
      %5382 = vmatpush1.bf16.msra.mxu0 0
      %5383 = vmatprep.subr.bf16.mxu0 0
      %5384 = vmatpush1.bf16.msra.mxu0 0
      %5385 = vmatprep.subr.bf16.mxu0 0
      %5386 = vmatpush1.bf16.msra.mxu0 0
      %5387 = vmatprep.subr.bf16.mxu0 0
      %5388 = vmatpush1.bf16.msra.mxu0 0
      %5389 = vmatprep.mubr.bf16.mxu0 0
      %5390 = vmatmul.mubr.bf16.gmra.mrb[0].mxu0 %v5259
      %v5391 = vpop.f32.mrb[0].mxu0
      %v5392 = vadd.f32 0.0, %v5391
      %v5393 = vpop.f32.mrb[0].mxu0
      %v5394 = vadd.f32 0.0, %v5393
      %v5395 = vpop.f32.mrb[0].mxu0
      %v5396 = vpop.f32.mrb[0].mxu0
      %5397 = vdwg.mxu0
      %v5398 = vadd.f32 %v5212, %v5392
      %v5399 = vadd.f32 %v5213, %v5394
      %v5400 = vmax.f32 %v5398, 0.0
      %v5401 = vmax.f32 %v5399, 0.0
      %v5402 = vpack.c.bf16 %v5400, %v5400
      %v5403 = vpack.c.bf16 %v5401, %v5401
      %v5404 = vld [vmem:[%s12] sm:$0xf]
      %v5405 = vld [vmem:[%s4] sm:$0x1]
      %vm5406 = vcmask 31744
      %v5408 = vsel %vm5406, %v5405, 0
      %v5411 = vsel %vm763, %v5402, 0
      %v5414 = vsel %vm763, %v5403, 0
      %5416 = vmatprep.subr.bf16.mxu0 %v5414
      %5417 = vmatpush1.bf16.msra.mxu0 %v5411
      %5418 = vmatprep.subr.bf16.mxu0 0
      %5419 = vmatpush1.bf16.msra.mxu0 0
      %5420 = vmatprep.subr.bf16.mxu0 0
      %5421 = vmatpush1.bf16.msra.mxu0 0
      %5422 = vmatprep.subr.bf16.mxu0 0
      %5423 = vmatpush1.bf16.msra.mxu0 0
      %5424 = vmatprep.subr.bf16.mxu0 0
      %5425 = vmatpush1.bf16.msra.mxu0 0
      %5426 = vmatprep.subr.bf16.mxu0 0
      %5427 = vmatpush1.bf16.msra.mxu0 0
      %5428 = vmatprep.subr.bf16.mxu0 0
      %5429 = vmatpush1.bf16.msra.mxu0 0
      %5430 = vmatprep.subr.bf16.mxu0 0
      %5431 = vmatpush1.bf16.msra.mxu0 0
      %5432 = vmatprep.subr.bf16.mxu0 0
      %5433 = vmatpush1.bf16.msra.mxu0 0
      %5434 = vmatprep.subr.bf16.mxu0 0
      %5435 = vmatpush1.bf16.msra.mxu0 0
      %5436 = vmatprep.subr.bf16.mxu0 0
      %5437 = vmatpush1.bf16.msra.mxu0 0
      %5438 = vmatprep.subr.bf16.mxu0 0
      %5439 = vmatpush1.bf16.msra.mxu0 0
      %5440 = vmatprep.subr.bf16.mxu0 0
      %5441 = vmatpush1.bf16.msra.mxu0 0
      %5442 = vmatprep.subr.bf16.mxu0 0
      %5443 = vmatpush1.bf16.msra.mxu0 0
      %5444 = vmatprep.subr.bf16.mxu0 0
      %5445 = vmatpush1.bf16.msra.mxu0 0
      %5446 = vmatprep.subr.bf16.mxu0 0
      %5447 = vmatpush1.bf16.msra.mxu0 0
      %5448 = vmatprep.mubr.bf16.mxu0 0
      %5449 = vmatmul.mubr.bf16.gmra.mrb[0].mxu0 %v5408
      %v5450 = vpop.f32.mrb[0].mxu0
      %v5451 = vadd.f32 0.0, %v5450
      %v5452 = vpop.f32.mrb[0].mxu0
      %v5453 = vadd.f32 0.0, %v5452
      %v5454 = vpop.f32.mrb[0].mxu0
      %v5455 = vpop.f32.mrb[0].mxu0
      %5456 = vdwg.mxu0
      %v5457 = vpack.c.bf16 %v5451, %v5451
      %v5458 = vpack.c.bf16 %v5453, %v5453
      %v5459 = vld [vmem:[%s8] sm:$0xff]
      %v5460 = vld [vmem:[%s8 + $0x8] sm:$0xff]
      %v5461 = vld [vmem:[%s8 + $0x10] sm:$0xff]
      %v5462 = vld [vmem:[%s8 + $0x18] sm:$0xff]
      %v5463 = vld [vmem:[%s8 + $0x20] sm:$0xff]
      %v5464 = vld [vmem:[%s8 + $0x28] sm:$0xff]
      %v5465 = vld [vmem:[%s8 + $0x30] sm:$0xff]
      %v5466 = vld [vmem:[%s8 + $0x38] sm:$0xff]
      %v5467 = vld [vmem:[%s8 + $0x40] sm:$0xff]
      %v5468 = vld [vmem:[%s8 + $0x48] sm:$0xff]
      %v5469 = vld [vmem:[%s8 + $0x50] sm:$0xff]
      %v5470 = vld [vmem:[%s8 + $0x58] sm:$0xff]
      %v5471 = vld [vmem:[%s8 + $0x60] sm:$0xff]
      %v5472 = vld [vmem:[%s8 + $0x68] sm:$0xff]
      %v5473 = vld [vmem:[%s8 + $0x70] sm:$0xff]
      %v5474 = vld [vmem:[%s8 + $0x78] sm:$0xff]
      %v5475 = vld [vmem:[%s8 + $0x80] sm:$0xff]
      %v5476 = vld [vmem:[%s8 + $0x88] sm:$0xff]
      %v5477 = vld [vmem:[%s8 + $0x90] sm:$0xff]
      %v5478 = vld [vmem:[%s8 + $0x98] sm:$0xff]
      %v5479 = vld [vmem:[%s8 + $0xa0] sm:$0xff]
      %v5480 = vld [vmem:[%s8 + $0xa8] sm:$0xff]
      %v5481 = vld [vmem:[%s8 + $0xb0] sm:$0xff]
      %v5482 = vld [vmem:[%s8 + $0xb8] sm:$0xff]
      %v5483 = vld [vmem:[%s8 + $0xc0] sm:$0xff]
      %v5484 = vld [vmem:[%s8 + $0xc8] sm:$0xff]
      %v5485 = vld [vmem:[%s8 + $0xd0] sm:$0xff]
      %v5486 = vld [vmem:[%s8 + $0xd8] sm:$0xff]
      %v5487 = vld [vmem:[%s8 + $0xe0] sm:$0xff]
      %v5488 = vld [vmem:[%s8 + $0xe8] sm:$0xff]
      %v5489 = vld [vmem:[%s8 + $0xf0] sm:$0xff]
      %v5490 = vld [vmem:[%s8 + $0xf8] sm:$0xff]
      %v5491 = vld [vmem:[%s8 + $0x100] sm:$0xff]
      %v5492 = vld [vmem:[%s8 + $0x108] sm:$0xff]
      %v5493 = vld [vmem:[%s8 + $0x110] sm:$0xff]
      %v5494 = vld [vmem:[%s8 + $0x118] sm:$0xff]
      %v5495 = vld [vmem:[%s8 + $0x120] sm:$0xff]
      %v5496 = vld [vmem:[%s8 + $0x128] sm:$0xff]
      %v5497 = vld [vmem:[%s8 + $0x130] sm:$0xff]
      %v5498 = vld [vmem:[%s8 + $0x138] sm:$0xff]
      %v5499 = vld [vmem:[%s8 + $0x140] sm:$0xff]
      %v5500 = vld [vmem:[%s8 + $0x148] sm:$0xff]
      %v5501 = vld [vmem:[%s8 + $0x150] sm:$0xff]
      %v5502 = vld [vmem:[%s8 + $0x158] sm:$0xff]
      %v5503 = vld [vmem:[%s8 + $0x160] sm:$0xff]
      %v5504 = vld [vmem:[%s8 + $0x168] sm:$0xff]
      %v5505 = vld [vmem:[%s8 + $0x170] sm:$0xff]
      %v5506 = vld [vmem:[%s8 + $0x178] sm:$0xff]
      %v5507 = vld [vmem:[%s8 + $0x180] sm:$0xff]
      %v5508 = vld [vmem:[%s8 + $0x188] sm:$0xff]
      %v5509 = vld [vmem:[%s8 + $0x190] sm:$0xff]
      %v5510 = vld [vmem:[%s8 + $0x198] sm:$0xff]
      %v5511 = vld [vmem:[%s8 + $0x1a0] sm:$0xff]
      %v5512 = vld [vmem:[%s8 + $0x1a8] sm:$0xff]
      %v5513 = vld [vmem:[%s8 + $0x1b0] sm:$0xff]
      %v5514 = vld [vmem:[%s8 + $0x1b8] sm:$0xff]
      %v5515 = vld [vmem:[%s8 + $0x1c0] sm:$0xff]
      %v5516 = vld [vmem:[%s8 + $0x1c8] sm:$0xff]
      %v5517 = vld [vmem:[%s8 + $0x1d0] sm:$0xff]
      %v5518 = vld [vmem:[%s8 + $0x1d8] sm:$0xff]
      %v5519 = vld [vmem:[%s8 + $0x1e0] sm:$0xff]
      %v5520 = vld [vmem:[%s8 + $0x1e8] sm:$0xff]
      %v5521 = vld [vmem:[%s8 + $0x1f0] sm:$0xff]
      %v5522 = vld [vmem:[%s8 + $0x1f8] sm:$0xff]
      %v5587 = vunpack.c.l.b16 %v5459
      %v5588 = vunpack.c.h.b16 %v5459
      %v5589 = vunpack.c.l.b16 %v5460
      %v5590 = vunpack.c.h.b16 %v5460
      %v5591 = vunpack.c.l.b16 %v5461
      %v5592 = vunpack.c.h.b16 %v5461
      %v5593 = vunpack.c.l.b16 %v5462
      %v5594 = vunpack.c.h.b16 %v5462
      %v5595 = vunpack.c.l.b16 %v5463
      %v5596 = vunpack.c.h.b16 %v5463
      %v5597 = vunpack.c.l.b16 %v5464
      %v5598 = vunpack.c.h.b16 %v5464
      %v5599 = vunpack.c.l.b16 %v5465
      %v5600 = vunpack.c.h.b16 %v5465
      %v5601 = vunpack.c.l.b16 %v5466
      %v5602 = vunpack.c.h.b16 %v5466
      %v5603 = vunpack.c.l.b16 %v5467
      %v5604 = vunpack.c.h.b16 %v5467
      %v5605 = vunpack.c.l.b16 %v5468
      %v5606 = vunpack.c.h.b16 %v5468
      %v5607 = vunpack.c.l.b16 %v5469
      %v5608 = vunpack.c.h.b16 %v5469
      %v5609 = vunpack.c.l.b16 %v5470
      %v5610 = vunpack.c.h.b16 %v5470
      %v5611 = vunpack.c.l.b16 %v5471
      %v5612 = vunpack.c.h.b16 %v5471
      %v5613 = vunpack.c.l.b16 %v5472
      %v5614 = vunpack.c.h.b16 %v5472
      %v5615 = vunpack.c.l.b16 %v5473
      %v5616 = vunpack.c.h.b16 %v5473
      %v5617 = vunpack.c.l.b16 %v5474
      %v5618 = vunpack.c.h.b16 %v5474
      %v5619 = vunpack.c.l.b16 %v5475
      %v5620 = vunpack.c.h.b16 %v5475
      %v5621 = vunpack.c.l.b16 %v5476
      %v5622 = vunpack.c.h.b16 %v5476
      %v5623 = vunpack.c.l.b16 %v5477
      %v5624 = vunpack.c.h.b16 %v5477
      %v5625 = vunpack.c.l.b16 %v5478
      %v5626 = vunpack.c.h.b16 %v5478
      %v5627 = vunpack.c.l.b16 %v5479
      %v5628 = vunpack.c.h.b16 %v5479
      %v5629 = vunpack.c.l.b16 %v5480
      %v5630 = vunpack.c.h.b16 %v5480
      %v5631 = vunpack.c.l.b16 %v5481
      %v5632 = vunpack.c.h.b16 %v5481
      %v5633 = vunpack.c.l.b16 %v5482
      %v5634 = vunpack.c.h.b16 %v5482
      %v5635 = vunpack.c.l.b16 %v5483
      %v5636 = vunpack.c.h.b16 %v5483
      %v5637 = vunpack.c.l.b16 %v5484
      %v5638 = vunpack.c.h.b16 %v5484
      %v5639 = vunpack.c.l.b16 %v5485
      %v5640 = vunpack.c.h.b16 %v5485
      %v5641 = vunpack.c.l.b16 %v5486
      %v5642 = vunpack.c.h.b16 %v5486
      %v5643 = vunpack.c.l.b16 %v5487
      %v5644 = vunpack.c.h.b16 %v5487
      %v5645 = vunpack.c.l.b16 %v5488
      %v5646 = vunpack.c.h.b16 %v5488
      %v5647 = vunpack.c.l.b16 %v5489
      %v5648 = vunpack.c.h.b16 %v5489
      %v5649 = vunpack.c.l.b16 %v5490
      %v5650 = vunpack.c.h.b16 %v5490
      %v5651 = vunpack.c.l.b16 %v5491
      %v5652 = vunpack.c.h.b16 %v5491
      %v5653 = vunpack.c.l.b16 %v5492
      %v5654 = vunpack.c.h.b16 %v5492
      %v5655 = vunpack.c.l.b16 %v5493
      %v5656 = vunpack.c.h.b16 %v5493
      %v5657 = vunpack.c.l.b16 %v5494
      %v5658 = vunpack.c.h.b16 %v5494
      %v5659 = vunpack.c.l.b16 %v5495
      %v5660 = vunpack.c.h.b16 %v5495
      %v5661 = vunpack.c.l.b16 %v5496
      %v5662 = vunpack.c.h.b16 %v5496
      %v5663 = vunpack.c.l.b16 %v5497
      %v5664 = vunpack.c.h.b16 %v5497
      %v5665 = vunpack.c.l.b16 %v5498
      %v5666 = vunpack.c.h.b16 %v5498
      %v5667 = vunpack.c.l.b16 %v5499
      %v5668 = vunpack.c.h.b16 %v5499
      %v5669 = vunpack.c.l.b16 %v5500
      %v5670 = vunpack.c.h.b16 %v5500
      %v5671 = vunpack.c.l.b16 %v5501
      %v5672 = vunpack.c.h.b16 %v5501
      %v5673 = vunpack.c.l.b16 %v5502
      %v5674 = vunpack.c.h.b16 %v5502
      %v5675 = vunpack.c.l.b16 %v5503
      %v5676 = vunpack.c.h.b16 %v5503
      %v5677 = vunpack.c.l.b16 %v5504
      %v5678 = vunpack.c.h.b16 %v5504
      %v5679 = vunpack.c.l.b16 %v5505
      %v5680 = vunpack.c.h.b16 %v5505
      %v5681 = vunpack.c.l.b16 %v5506
      %v5682 = vunpack.c.h.b16 %v5506
      %v5683 = vunpack.c.l.b16 %v5507
      %v5684 = vunpack.c.h.b16 %v5507
      %v5685 = vunpack.c.l.b16 %v5508
      %v5686 = vunpack.c.h.b16 %v5508
      %v5687 = vunpack.c.l.b16 %v5509
      %v5688 = vunpack.c.h.b16 %v5509
      %v5689 = vunpack.c.l.b16 %v5510
      %v5690 = vunpack.c.h.b16 %v5510
      %v5691 = vunpack.c.l.b16 %v5511
      %v5692 = vunpack.c.h.b16 %v5511
      %v5693 = vunpack.c.l.b16 %v5512
      %v5694 = vunpack.c.h.b16 %v5512
      %v5695 = vunpack.c.l.b16 %v5513
      %v5696 = vunpack.c.h.b16 %v5513
      %v5697 = vunpack.c.l.b16 %v5514
      %v5698 = vunpack.c.h.b16 %v5514
      %v5699 = vunpack.c.l.b16 %v5515
      %v5700 = vunpack.c.h.b16 %v5515
      %v5701 = vunpack.c.l.b16 %v5516
      %v5702 = vunpack.c.h.b16 %v5516
      %v5703 = vunpack.c.l.b16 %v5517
      %v5704 = vunpack.c.h.b16 %v5517
      %v5705 = vunpack.c.l.b16 %v5518
      %v5706 = vunpack.c.h.b16 %v5518
      %v5707 = vunpack.c.l.b16 %v5519
      %v5708 = vunpack.c.h.b16 %v5519
      %v5709 = vunpack.c.l.b16 %v5520
      %v5710 = vunpack.c.h.b16 %v5520
      %v5711 = vunpack.c.l.b16 %v5521
      %v5712 = vunpack.c.h.b16 %v5521
      %v5713 = vunpack.c.l.b16 %v5522
      %v5714 = vunpack.c.h.b16 %v5522
      %v5715 = vpack.c.b16 %v5591, %v5587
      %v5716 = vpack.c.b16 %v5592, %v5588
      %v5717 = vpack.c.b16 %v5593, %v5589
      %v5718 = vpack.c.b16 %v5594, %v5590
      %v5719 = vpack.c.b16 %v5599, %v5595
      %v5720 = vpack.c.b16 %v5600, %v5596
      %v5721 = vpack.c.b16 %v5601, %v5597
      %v5722 = vpack.c.b16 %v5602, %v5598
      %v5723 = vpack.c.b16 %v5607, %v5603
      %v5724 = vpack.c.b16 %v5608, %v5604
      %v5725 = vpack.c.b16 %v5609, %v5605
      %v5726 = vpack.c.b16 %v5610, %v5606
      %v5727 = vpack.c.b16 %v5615, %v5611
      %v5728 = vpack.c.b16 %v5616, %v5612
      %v5729 = vpack.c.b16 %v5617, %v5613
      %v5730 = vpack.c.b16 %v5618, %v5614
      %v5731 = vpack.c.b16 %v5623, %v5619
      %v5732 = vpack.c.b16 %v5624, %v5620
      %v5733 = vpack.c.b16 %v5625, %v5621
      %v5734 = vpack.c.b16 %v5626, %v5622
      %v5735 = vpack.c.b16 %v5631, %v5627
      %v5736 = vpack.c.b16 %v5632, %v5628
      %v5737 = vpack.c.b16 %v5633, %v5629
      %v5738 = vpack.c.b16 %v5634, %v5630
      %v5739 = vpack.c.b16 %v5639, %v5635
      %v5740 = vpack.c.b16 %v5640, %v5636
      %v5741 = vpack.c.b16 %v5641, %v5637
      %v5742 = vpack.c.b16 %v5642, %v5638
      %v5743 = vpack.c.b16 %v5647, %v5643
      %v5744 = vpack.c.b16 %v5648, %v5644
      %v5745 = vpack.c.b16 %v5649, %v5645
      %v5746 = vpack.c.b16 %v5650, %v5646
      %v5747 = vpack.c.b16 %v5655, %v5651
      %v5748 = vpack.c.b16 %v5656, %v5652
      %v5749 = vpack.c.b16 %v5657, %v5653
      %v5750 = vpack.c.b16 %v5658, %v5654
      %v5751 = vpack.c.b16 %v5663, %v5659
      %v5752 = vpack.c.b16 %v5664, %v5660
      %v5753 = vpack.c.b16 %v5665, %v5661
      %v5754 = vpack.c.b16 %v5666, %v5662
      %v5755 = vpack.c.b16 %v5671, %v5667
      %v5756 = vpack.c.b16 %v5672, %v5668
      %v5757 = vpack.c.b16 %v5673, %v5669
      %v5758 = vpack.c.b16 %v5674, %v5670
      %v5759 = vpack.c.b16 %v5679, %v5675
      %v5760 = vpack.c.b16 %v5680, %v5676
      %v5761 = vpack.c.b16 %v5681, %v5677
      %v5762 = vpack.c.b16 %v5682, %v5678
      %v5763 = vpack.c.b16 %v5687, %v5683
      %v5764 = vpack.c.b16 %v5688, %v5684
      %v5765 = vpack.c.b16 %v5689, %v5685
      %v5766 = vpack.c.b16 %v5690, %v5686
      %v5767 = vpack.c.b16 %v5695, %v5691
      %v5768 = vpack.c.b16 %v5696, %v5692
      %v5769 = vpack.c.b16 %v5697, %v5693
      %v5770 = vpack.c.b16 %v5698, %v5694
      %v5771 = vpack.c.b16 %v5703, %v5699
      %v5772 = vpack.c.b16 %v5704, %v5700
      %v5773 = vpack.c.b16 %v5705, %v5701
      %v5774 = vpack.c.b16 %v5706, %v5702
      %v5775 = vpack.c.b16 %v5711, %v5707
      %v5776 = vpack.c.b16 %v5712, %v5708
      %v5777 = vpack.c.b16 %v5713, %v5709
      %v5778 = vpack.c.b16 %v5714, %v5710
      %5843 = vmatprep.subr.bf16.mxu0 %v5716
      %5844 = vmatpush1.bf16.msra.mxu0 %v5715
      %5845 = vmatprep.subr.bf16.mxu0 %v5720
      %5846 = vmatpush1.bf16.msra.mxu0 %v5719
      %5847 = vmatprep.subr.bf16.mxu0 %v5724
      %5848 = vmatpush1.bf16.msra.mxu0 %v5723
      %5849 = vmatprep.subr.bf16.mxu0 %v5728
      %5850 = vmatpush1.bf16.msra.mxu0 %v5727
      %5851 = vmatprep.subr.bf16.mxu0 %v5732
      %5852 = vmatpush1.bf16.msra.mxu0 %v5731
      %5853 = vmatprep.subr.bf16.mxu0 %v5736
      %5854 = vmatpush1.bf16.msra.mxu0 %v5735
      %5855 = vmatprep.subr.bf16.mxu0 %v5740
      %5856 = vmatpush1.bf16.msra.mxu0 %v5739
      %5857 = vmatprep.subr.bf16.mxu0 %v5744
      %5858 = vmatpush1.bf16.msra.mxu0 %v5743
      %5859 = vmatprep.subr.bf16.mxu0 %v5748
      %5860 = vmatpush1.bf16.msra.mxu0 %v5747
      %5861 = vmatprep.subr.bf16.mxu0 %v5752
      %5862 = vmatpush1.bf16.msra.mxu0 %v5751
      %5863 = vmatprep.subr.bf16.mxu0 %v5756
      %5864 = vmatpush1.bf16.msra.mxu0 %v5755
      %5865 = vmatprep.subr.bf16.mxu0 %v5760
      %5866 = vmatpush1.bf16.msra.mxu0 %v5759
      %5867 = vmatprep.subr.bf16.mxu0 %v5764
      %5868 = vmatpush1.bf16.msra.mxu0 %v5763
      %5869 = vmatprep.subr.bf16.mxu0 %v5768
      %5870 = vmatpush1.bf16.msra.mxu0 %v5767
      %5871 = vmatprep.subr.bf16.mxu0 %v5772
      %5872 = vmatpush1.bf16.msra.mxu0 %v5771
      %5873 = vmatprep.subr.bf16.mxu0 %v5776
      %5874 = vmatpush1.bf16.msra.mxu0 %v5775
      %5875 = vmatprep.mubr.bf16.mxu0 %v5458
      %5876 = vmatmul.mubr.bf16.gmra.mrb[0].mxu0 %v5457
      %v5877 = vpop.f32.mrb[0].mxu0
      %v5878 = vadd.f32 0.0, %v5877
      %v5879 = vpop.f32.mrb[0].mxu0
      %v5880 = vadd.f32 0.0, %v5879
      %v5881 = vpop.f32.mrb[0].mxu0
      %v5882 = vpop.f32.mrb[0].mxu0
      %5883 = vdwg.mxu0
      %5884 = vmatprep.subr.bf16.mxu0 %v5718
      %5885 = vmatpush1.bf16.msra.mxu0 %v5717
      %5886 = vmatprep.subr.bf16.mxu0 %v5722
      %5887 = vmatpush1.bf16.msra.mxu0 %v5721
      %5888 = vmatprep.subr.bf16.mxu0 %v5726
      %5889 = vmatpush1.bf16.msra.mxu0 %v5725
      %5890 = vmatprep.subr.bf16.mxu0 %v5730
      %5891 = vmatpush1.bf16.msra.mxu0 %v5729
      %5892 = vmatprep.subr.bf16.mxu0 %v5734
      %5893 = vmatpush1.bf16.msra.mxu0 %v5733
      %5894 = vmatprep.subr.bf16.mxu0 %v5738
      %5895 = vmatpush1.bf16.msra.mxu0 %v5737
      %5896 = vmatprep.subr.bf16.mxu0 %v5742
      %5897 = vmatpush1.bf16.msra.mxu0 %v5741
      %5898 = vmatprep.subr.bf16.mxu0 %v5746
      %5899 = vmatpush1.bf16.msra.mxu0 %v5745
      %5900 = vmatprep.subr.bf16.mxu0 %v5750
      %5901 = vmatpush1.bf16.msra.mxu0 %v5749
      %5902 = vmatprep.subr.bf16.mxu0 %v5754
      %5903 = vmatpush1.bf16.msra.mxu0 %v5753
      %5904 = vmatprep.subr.bf16.mxu0 %v5758
      %5905 = vmatpush1.bf16.msra.mxu0 %v5757
      %5906 = vmatprep.subr.bf16.mxu0 %v5762
      %5907 = vmatpush1.bf16.msra.mxu0 %v5761
      %5908 = vmatprep.subr.bf16.mxu0 %v5766
      %5909 = vmatpush1.bf16.msra.mxu0 %v5765
      %5910 = vmatprep.subr.bf16.mxu0 %v5770
      %5911 = vmatpush1.bf16.msra.mxu0 %v5769
      %5912 = vmatprep.subr.bf16.mxu0 %v5774
      %5913 = vmatpush1.bf16.msra.mxu0 %v5773
      %5914 = vmatprep.subr.bf16.mxu0 %v5778
      %5915 = vmatpush1.bf16.msra.mxu0 %v5777
      %5916 = vmatprep.mubr.bf16.mxu0 %v5458
      %5917 = vmatmul.mubr.bf16.gmra.mrb[0].mxu0 %v5457
      %v5918 = vpop.f32.mrb[0].mxu0
      %v5919 = vadd.f32 0.0, %v5918
      %v5920 = vpop.f32.mrb[0].mxu0
      %v5921 = vadd.f32 0.0, %v5920
      %v5922 = vpop.f32.mrb[0].mxu0
      %v5923 = vpop.f32.mrb[0].mxu0
      %5924 = vdwg.mxu0
      %v5929 = vcombine.low %v5878, %v5880
      %v5930 = vcombine.low %v5919, %v5921
      %v5932 = vunpack.c.l.s4 1966171168
      %v5933 = vunpack.c.0.s8 %v5932
      %v5934 = vlaneseq
      %v5935 = vshrl.u32 %v5934, 7
      %v5936 = vsub.s32 %v5933, %v5935
      %v5937 = vrot.slane %v5929, %v5936
      %v5939 = vunpack.c.l.s4 1966171168
      %v5940 = vunpack.c.0.s8 %v5939
      %v5941 = vlaneseq
      %v5942 = vshrl.u32 %v5941, 7
      %v5943 = vsub.s32 %v5940, %v5942
      %v5944 = vrot.slane %v5930, %v5943
      %v5945 = vcombine.low %v5937, %v5944
      %v5947 = vunpack.c.l.s4 1966171168
      %v5948 = vunpack.c.0.s8 %v5947
      %v5949 = vlaneseq
      %v5950 = vshrl.u32 %v5949, 7
      %v5951 = vsub.s32 %v5948, %v5950
      %v5952 = vrot.slane %v5945, %v5951
      %v5954 = vadd.f32 %v5404, %v5952
      %s5955 = scalar_lea.vmem %s4, 1
      %v5956 = vld [vmem:[%s5955] sm:$0x1]
      %v5958 = vsel %vm5406, %v5956, 0
      %5960 = vmatprep.subr.bf16.mxu0 %v5414
      %5961 = vmatpush1.bf16.msra.mxu0 %v5411
      %5962 = vmatprep.subr.bf16.mxu0 0
      %5963 = vmatpush1.bf16.msra.mxu0 0
      %5964 = vmatprep.subr.bf16.mxu0 0
      %5965 = vmatpush1.bf16.msra.mxu0 0
      %5966 = vmatprep.subr.bf16.mxu0 0
      %5967 = vmatpush1.bf16.msra.mxu0 0
      %5968 = vmatprep.subr.bf16.mxu0 0
      %5969 = vmatpush1.bf16.msra.mxu0 0
      %5970 = vmatprep.subr.bf16.mxu0 0
      %5971 = vmatpush1.bf16.msra.mxu0 0
      %5972 = vmatprep.subr.bf16.mxu0 0
      %5973 = vmatpush1.bf16.msra.mxu0 0
      %5974 = vmatprep.subr.bf16.mxu0 0
      %5975 = vmatpush1.bf16.msra.mxu0 0
      %5976 = vmatprep.subr.bf16.mxu0 0
      %5977 = vmatpush1.bf16.msra.mxu0 0
      %5978 = vmatprep.subr.bf16.mxu0 0
      %5979 = vmatpush1.bf16.msra.mxu0 0
      %5980 = vmatprep.subr.bf16.mxu0 0
      %5981 = vmatpush1.bf16.msra.mxu0 0
      %5982 = vmatprep.subr.bf16.mxu0 0
      %5983 = vmatpush1.bf16.msra.mxu0 0
      %5984 = vmatprep.subr.bf16.mxu0 0
      %5985 = vmatpush1.bf16.msra.mxu0 0
      %5986 = vmatprep.subr.bf16.mxu0 0
      %5987 = vmatpush1.bf16.msra.mxu0 0
      %5988 = vmatprep.subr.bf16.mxu0 0
      %5989 = vmatpush1.bf16.msra.mxu0 0
      %5990 = vmatprep.subr.bf16.mxu0 0
      %5991 = vmatpush1.bf16.msra.mxu0 0
      %5992 = vmatprep.mubr.bf16.mxu0 0
      %5993 = vmatmul.mubr.bf16.gmra.mrb[0].mxu0 %v5958
      %v5994 = vpop.f32.mrb[0].mxu0
      %v5995 = vadd.f32 0.0, %v5994
      %v5996 = vpop.f32.mrb[0].mxu0
      %v5997 = vadd.f32 0.0, %v5996
      %v5998 = vpop.f32.mrb[0].mxu0
      %v5999 = vpop.f32.mrb[0].mxu0
      %6000 = vdwg.mxu0
      %v6001 = vpack.c.bf16 %v5995, %v5995
      %v6002 = vpack.c.bf16 %v5997, %v5997
      %s6003 = scalar_lea.vmem %s8, 512
      %v6004 = vld [vmem:[%s6003] sm:$0xff]
      %v6005 = vld [vmem:[%s6003 + $0x8] sm:$0xff]
      %v6006 = vld [vmem:[%s6003 + $0x10] sm:$0xff]
      %v6007 = vld [vmem:[%s6003 + $0x18] sm:$0xff]
      %v6008 = vld [vmem:[%s6003 + $0x20] sm:$0xff]
      %v6009 = vld [vmem:[%s6003 + $0x28] sm:$0xff]
      %v6010 = vld [vmem:[%s6003 + $0x30] sm:$0xff]
      %v6011 = vld [vmem:[%s6003 + $0x38] sm:$0xff]
      %v6012 = vld [vmem:[%s6003 + $0x40] sm:$0xff]
      %v6013 = vld [vmem:[%s6003 + $0x48] sm:$0xff]
      %v6014 = vld [vmem:[%s6003 + $0x50] sm:$0xff]
      %v6015 = vld [vmem:[%s6003 + $0x58] sm:$0xff]
      %v6016 = vld [vmem:[%s6003 + $0x60] sm:$0xff]
      %v6017 = vld [vmem:[%s6003 + $0x68] sm:$0xff]
      %v6018 = vld [vmem:[%s6003 + $0x70] sm:$0xff]
      %v6019 = vld [vmem:[%s6003 + $0x78] sm:$0xff]
      %v6020 = vld [vmem:[%s6003 + $0x80] sm:$0xff]
      %v6021 = vld [vmem:[%s6003 + $0x88] sm:$0xff]
      %v6022 = vld [vmem:[%s6003 + $0x90] sm:$0xff]
      %v6023 = vld [vmem:[%s6003 + $0x98] sm:$0xff]
      %v6024 = vld [vmem:[%s6003 + $0xa0] sm:$0xff]
      %v6025 = vld [vmem:[%s6003 + $0xa8] sm:$0xff]
      %v6026 = vld [vmem:[%s6003 + $0xb0] sm:$0xff]
      %v6027 = vld [vmem:[%s6003 + $0xb8] sm:$0xff]
      %v6028 = vld [vmem:[%s6003 + $0xc0] sm:$0xff]
      %v6029 = vld [vmem:[%s6003 + $0xc8] sm:$0xff]
      %v6030 = vld [vmem:[%s6003 + $0xd0] sm:$0xff]
      %v6031 = vld [vmem:[%s6003 + $0xd8] sm:$0xff]
      %v6032 = vld [vmem:[%s6003 + $0xe0] sm:$0xff]
      %v6033 = vld [vmem:[%s6003 + $0xe8] sm:$0xff]
      %v6034 = vld [vmem:[%s6003 + $0xf0] sm:$0xff]
      %v6035 = vld [vmem:[%s6003 + $0xf8] sm:$0xff]
      %v6036 = vld [vmem:[%s6003 + $0x100] sm:$0xff]
      %v6037 = vld [vmem:[%s6003 + $0x108] sm:$0xff]
      %v6038 = vld [vmem:[%s6003 + $0x110] sm:$0xff]
      %v6039 = vld [vmem:[%s6003 + $0x118] sm:$0xff]
      %v6040 = vld [vmem:[%s6003 + $0x120] sm:$0xff]
      %v6041 = vld [vmem:[%s6003 + $0x128] sm:$0xff]
      %v6042 = vld [vmem:[%s6003 + $0x130] sm:$0xff]
      %v6043 = vld [vmem:[%s6003 + $0x138] sm:$0xff]
      %v6044 = vld [vmem:[%s6003 + $0x140] sm:$0xff]
      %v6045 = vld [vmem:[%s6003 + $0x148] sm:$0xff]
      %v6046 = vld [vmem:[%s6003 + $0x150] sm:$0xff]
      %v6047 = vld [vmem:[%s6003 + $0x158] sm:$0xff]
      %v6048 = vld [vmem:[%s6003 + $0x160] sm:$0xff]
      %v6049 = vld [vmem:[%s6003 + $0x168] sm:$0xff]
      %v6050 = vld [vmem:[%s6003 + $0x170] sm:$0xff]
      %v6051 = vld [vmem:[%s6003 + $0x178] sm:$0xff]
      %v6052 = vld [vmem:[%s6003 + $0x180] sm:$0xff]
      %v6053 = vld [vmem:[%s6003 + $0x188] sm:$0xff]
      %v6054 = vld [vmem:[%s6003 + $0x190] sm:$0xff]
      %v6055 = vld [vmem:[%s6003 + $0x198] sm:$0xff]
      %v6056 = vld [vmem:[%s6003 + $0x1a0] sm:$0xff]
      %v6057 = vld [vmem:[%s6003 + $0x1a8] sm:$0xff]
      %v6058 = vld [vmem:[%s6003 + $0x1b0] sm:$0xff]
      %v6059 = vld [vmem:[%s6003 + $0x1b8] sm:$0xff]
      %v6060 = vld [vmem:[%s6003 + $0x1c0] sm:$0xff]
      %v6061 = vld [vmem:[%s6003 + $0x1c8] sm:$0xff]
      %v6062 = vld [vmem:[%s6003 + $0x1d0] sm:$0xff]
      %v6063 = vld [vmem:[%s6003 + $0x1d8] sm:$0xff]
      %v6064 = vld [vmem:[%s6003 + $0x1e0] sm:$0xff]
      %v6065 = vld [vmem:[%s6003 + $0x1e8] sm:$0xff]
      %v6066 = vld [vmem:[%s6003 + $0x1f0] sm:$0xff]
      %v6067 = vld [vmem:[%s6003 + $0x1f8] sm:$0xff]
      %v6132 = vunpack.c.l.b16 %v6004
      %v6133 = vunpack.c.h.b16 %v6004
      %v6134 = vunpack.c.l.b16 %v6005
      %v6135 = vunpack.c.h.b16 %v6005
      %v6136 = vunpack.c.l.b16 %v6006
      %v6137 = vunpack.c.h.b16 %v6006
      %v6138 = vunpack.c.l.b16 %v6007
      %v6139 = vunpack.c.h.b16 %v6007
      %v6140 = vunpack.c.l.b16 %v6008
      %v6141 = vunpack.c.h.b16 %v6008
      %v6142 = vunpack.c.l.b16 %v6009
      %v6143 = vunpack.c.h.b16 %v6009
      %v6144 = vunpack.c.l.b16 %v6010
      %v6145 = vunpack.c.h.b16 %v6010
      %v6146 = vunpack.c.l.b16 %v6011
      %v6147 = vunpack.c.h.b16 %v6011
      %v6148 = vunpack.c.l.b16 %v6012
      %v6149 = vunpack.c.h.b16 %v6012
      %v6150 = vunpack.c.l.b16 %v6013
      %v6151 = vunpack.c.h.b16 %v6013
      %v6152 = vunpack.c.l.b16 %v6014
      %v6153 = vunpack.c.h.b16 %v6014
      %v6154 = vunpack.c.l.b16 %v6015
      %v6155 = vunpack.c.h.b16 %v6015
      %v6156 = vunpack.c.l.b16 %v6016
      %v6157 = vunpack.c.h.b16 %v6016
      %v6158 = vunpack.c.l.b16 %v6017
      %v6159 = vunpack.c.h.b16 %v6017
      %v6160 = vunpack.c.l.b16 %v6018
      %v6161 = vunpack.c.h.b16 %v6018
      %v6162 = vunpack.c.l.b16 %v6019
      %v6163 = vunpack.c.h.b16 %v6019
      %v6164 = vunpack.c.l.b16 %v6020
      %v6165 = vunpack.c.h.b16 %v6020
      %v6166 = vunpack.c.l.b16 %v6021
      %v6167 = vunpack.c.h.b16 %v6021
      %v6168 = vunpack.c.l.b16 %v6022
      %v6169 = vunpack.c.h.b16 %v6022
      %v6170 = vunpack.c.l.b16 %v6023
      %v6171 = vunpack.c.h.b16 %v6023
      %v6172 = vunpack.c.l.b16 %v6024
      %v6173 = vunpack.c.h.b16 %v6024
      %v6174 = vunpack.c.l.b16 %v6025
      %v6175 = vunpack.c.h.b16 %v6025
      %v6176 = vunpack.c.l.b16 %v6026
      %v6177 = vunpack.c.h.b16 %v6026
      %v6178 = vunpack.c.l.b16 %v6027
      %v6179 = vunpack.c.h.b16 %v6027
      %v6180 = vunpack.c.l.b16 %v6028
      %v6181 = vunpack.c.h.b16 %v6028
      %v6182 = vunpack.c.l.b16 %v6029
      %v6183 = vunpack.c.h.b16 %v6029
      %v6184 = vunpack.c.l.b16 %v6030
      %v6185 = vunpack.c.h.b16 %v6030
      %v6186 = vunpack.c.l.b16 %v6031
      %v6187 = vunpack.c.h.b16 %v6031
      %v6188 = vunpack.c.l.b16 %v6032
      %v6189 = vunpack.c.h.b16 %v6032
      %v6190 = vunpack.c.l.b16 %v6033
      %v6191 = vunpack.c.h.b16 %v6033
      %v6192 = vunpack.c.l.b16 %v6034
      %v6193 = vunpack.c.h.b16 %v6034
      %v6194 = vunpack.c.l.b16 %v6035
      %v6195 = vunpack.c.h.b16 %v6035
      %v6196 = vunpack.c.l.b16 %v6036
      %v6197 = vunpack.c.h.b16 %v6036
      %v6198 = vunpack.c.l.b16 %v6037
      %v6199 = vunpack.c.h.b16 %v6037
      %v6200 = vunpack.c.l.b16 %v6038
      %v6201 = vunpack.c.h.b16 %v6038
      %v6202 = vunpack.c.l.b16 %v6039
      %v6203 = vunpack.c.h.b16 %v6039
      %v6204 = vunpack.c.l.b16 %v6040
      %v6205 = vunpack.c.h.b16 %v6040
      %v6206 = vunpack.c.l.b16 %v6041
      %v6207 = vunpack.c.h.b16 %v6041
      %v6208 = vunpack.c.l.b16 %v6042
      %v6209 = vunpack.c.h.b16 %v6042
      %v6210 = vunpack.c.l.b16 %v6043
      %v6211 = vunpack.c.h.b16 %v6043
      %v6212 = vunpack.c.l.b16 %v6044
      %v6213 = vunpack.c.h.b16 %v6044
      %v6214 = vunpack.c.l.b16 %v6045
      %v6215 = vunpack.c.h.b16 %v6045
      %v6216 = vunpack.c.l.b16 %v6046
      %v6217 = vunpack.c.h.b16 %v6046
      %v6218 = vunpack.c.l.b16 %v6047
      %v6219 = vunpack.c.h.b16 %v6047
      %v6220 = vunpack.c.l.b16 %v6048
      %v6221 = vunpack.c.h.b16 %v6048
      %v6222 = vunpack.c.l.b16 %v6049
      %v6223 = vunpack.c.h.b16 %v6049
      %v6224 = vunpack.c.l.b16 %v6050
      %v6225 = vunpack.c.h.b16 %v6050
      %v6226 = vunpack.c.l.b16 %v6051
      %v6227 = vunpack.c.h.b16 %v6051
      %v6228 = vunpack.c.l.b16 %v6052
      %v6229 = vunpack.c.h.b16 %v6052
      %v6230 = vunpack.c.l.b16 %v6053
      %v6231 = vunpack.c.h.b16 %v6053
      %v6232 = vunpack.c.l.b16 %v6054
      %v6233 = vunpack.c.h.b16 %v6054
      %v6234 = vunpack.c.l.b16 %v6055
      %v6235 = vunpack.c.h.b16 %v6055
      %v6236 = vunpack.c.l.b16 %v6056
      %v6237 = vunpack.c.h.b16 %v6056
      %v6238 = vunpack.c.l.b16 %v6057
      %v6239 = vunpack.c.h.b16 %v6057
      %v6240 = vunpack.c.l.b16 %v6058
      %v6241 = vunpack.c.h.b16 %v6058
      %v6242 = vunpack.c.l.b16 %v6059
      %v6243 = vunpack.c.h.b16 %v6059
      %v6244 = vunpack.c.l.b16 %v6060
      %v6245 = vunpack.c.h.b16 %v6060
      %v6246 = vunpack.c.l.b16 %v6061
      %v6247 = vunpack.c.h.b16 %v6061
      %v6248 = vunpack.c.l.b16 %v6062
      %v6249 = vunpack.c.h.b16 %v6062
      %v6250 = vunpack.c.l.b16 %v6063
      %v6251 = vunpack.c.h.b16 %v6063
      %v6252 = vunpack.c.l.b16 %v6064
      %v6253 = vunpack.c.h.b16 %v6064
      %v6254 = vunpack.c.l.b16 %v6065
      %v6255 = vunpack.c.h.b16 %v6065
      %v6256 = vunpack.c.l.b16 %v6066
      %v6257 = vunpack.c.h.b16 %v6066
      %v6258 = vunpack.c.l.b16 %v6067
      %v6259 = vunpack.c.h.b16 %v6067
      %v6260 = vpack.c.b16 %v6136, %v6132
      %v6261 = vpack.c.b16 %v6137, %v6133
      %v6262 = vpack.c.b16 %v6138, %v6134
      %v6263 = vpack.c.b16 %v6139, %v6135
      %v6264 = vpack.c.b16 %v6144, %v6140
      %v6265 = vpack.c.b16 %v6145, %v6141
      %v6266 = vpack.c.b16 %v6146, %v6142
      %v6267 = vpack.c.b16 %v6147, %v6143
      %v6268 = vpack.c.b16 %v6152, %v6148
      %v6269 = vpack.c.b16 %v6153, %v6149
      %v6270 = vpack.c.b16 %v6154, %v6150
      %v6271 = vpack.c.b16 %v6155, %v6151
      %v6272 = vpack.c.b16 %v6160, %v6156
      %v6273 = vpack.c.b16 %v6161, %v6157
      %v6274 = vpack.c.b16 %v6162, %v6158
      %v6275 = vpack.c.b16 %v6163, %v6159
      %v6276 = vpack.c.b16 %v6168, %v6164
      %v6277 = vpack.c.b16 %v6169, %v6165
      %v6278 = vpack.c.b16 %v6170, %v6166
      %v6279 = vpack.c.b16 %v6171, %v6167
      %v6280 = vpack.c.b16 %v6176, %v6172
      %v6281 = vpack.c.b16 %v6177, %v6173
      %v6282 = vpack.c.b16 %v6178, %v6174
      %v6283 = vpack.c.b16 %v6179, %v6175
      %v6284 = vpack.c.b16 %v6184, %v6180
      %v6285 = vpack.c.b16 %v6185, %v6181
      %v6286 = vpack.c.b16 %v6186, %v6182
      %v6287 = vpack.c.b16 %v6187, %v6183
      %v6288 = vpack.c.b16 %v6192, %v6188
      %v6289 = vpack.c.b16 %v6193, %v6189
      %v6290 = vpack.c.b16 %v6194, %v6190
      %v6291 = vpack.c.b16 %v6195, %v6191
      %v6292 = vpack.c.b16 %v6200, %v6196
      %v6293 = vpack.c.b16 %v6201, %v6197
      %v6294 = vpack.c.b16 %v6202, %v6198
      %v6295 = vpack.c.b16 %v6203, %v6199
      %v6296 = vpack.c.b16 %v6208, %v6204
      %v6297 = vpack.c.b16 %v6209, %v6205
      %v6298 = vpack.c.b16 %v6210, %v6206
      %v6299 = vpack.c.b16 %v6211, %v6207
      %v6300 = vpack.c.b16 %v6216, %v6212
      %v6301 = vpack.c.b16 %v6217, %v6213
      %v6302 = vpack.c.b16 %v6218, %v6214
      %v6303 = vpack.c.b16 %v6219, %v6215
      %v6304 = vpack.c.b16 %v6224, %v6220
      %v6305 = vpack.c.b16 %v6225, %v6221
      %v6306 = vpack.c.b16 %v6226, %v6222
      %v6307 = vpack.c.b16 %v6227, %v6223
      %v6308 = vpack.c.b16 %v6232, %v6228
      %v6309 = vpack.c.b16 %v6233, %v6229
      %v6310 = vpack.c.b16 %v6234, %v6230
      %v6311 = vpack.c.b16 %v6235, %v6231
      %v6312 = vpack.c.b16 %v6240, %v6236
      %v6313 = vpack.c.b16 %v6241, %v6237
      %v6314 = vpack.c.b16 %v6242, %v6238
      %v6315 = vpack.c.b16 %v6243, %v6239
      %v6316 = vpack.c.b16 %v6248, %v6244
      %v6317 = vpack.c.b16 %v6249, %v6245
      %v6318 = vpack.c.b16 %v6250, %v6246
      %v6319 = vpack.c.b16 %v6251, %v6247
      %v6320 = vpack.c.b16 %v6256, %v6252
      %v6321 = vpack.c.b16 %v6257, %v6253
      %v6322 = vpack.c.b16 %v6258, %v6254
      %v6323 = vpack.c.b16 %v6259, %v6255
      %6388 = vmatprep.subr.bf16.mxu0 %v6261
      %6389 = vmatpush1.bf16.msra.mxu0 %v6260
      %6390 = vmatprep.subr.bf16.mxu0 %v6265
      %6391 = vmatpush1.bf16.msra.mxu0 %v6264
      %6392 = vmatprep.subr.bf16.mxu0 %v6269
      %6393 = vmatpush1.bf16.msra.mxu0 %v6268
      %6394 = vmatprep.subr.bf16.mxu0 %v6273
      %6395 = vmatpush1.bf16.msra.mxu0 %v6272
      %6396 = vmatprep.subr.bf16.mxu0 %v6277
      %6397 = vmatpush1.bf16.msra.mxu0 %v6276
      %6398 = vmatprep.subr.bf16.mxu0 %v6281
      %6399 = vmatpush1.bf16.msra.mxu0 %v6280
      %6400 = vmatprep.subr.bf16.mxu0 %v6285
      %6401 = vmatpush1.bf16.msra.mxu0 %v6284
      %6402 = vmatprep.subr.bf16.mxu0 %v6289
      %6403 = vmatpush1.bf16.msra.mxu0 %v6288
      %6404 = vmatprep.subr.bf16.mxu0 %v6293
      %6405 = vmatpush1.bf16.msra.mxu0 %v6292
      %6406 = vmatprep.subr.bf16.mxu0 %v6297
      %6407 = vmatpush1.bf16.msra.mxu0 %v6296
      %6408 = vmatprep.subr.bf16.mxu0 %v6301
      %6409 = vmatpush1.bf16.msra.mxu0 %v6300
      %6410 = vmatprep.subr.bf16.mxu0 %v6305
      %6411 = vmatpush1.bf16.msra.mxu0 %v6304
      %6412 = vmatprep.subr.bf16.mxu0 %v6309
      %6413 = vmatpush1.bf16.msra.mxu0 %v6308
      %6414 = vmatprep.subr.bf16.mxu0 %v6313
      %6415 = vmatpush1.bf16.msra.mxu0 %v6312
      %6416 = vmatprep.subr.bf16.mxu0 %v6317
      %6417 = vmatpush1.bf16.msra.mxu0 %v6316
      %6418 = vmatprep.subr.bf16.mxu0 %v6321
      %6419 = vmatpush1.bf16.msra.mxu0 %v6320
      %6420 = vmatprep.mubr.bf16.mxu0 %v6002
      %6421 = vmatmul.mubr.bf16.gmra.mrb[0].mxu0 %v6001
      %v6422 = vpop.f32.mrb[0].mxu0
      %v6423 = vadd.f32 0.0, %v6422
      %v6424 = vpop.f32.mrb[0].mxu0
      %v6425 = vadd.f32 0.0, %v6424
      %v6426 = vpop.f32.mrb[0].mxu0
      %v6427 = vpop.f32.mrb[0].mxu0
      %6428 = vdwg.mxu0
      %6429 = vmatprep.subr.bf16.mxu0 %v6263
      %6430 = vmatpush1.bf16.msra.mxu0 %v6262
      %6431 = vmatprep.subr.bf16.mxu0 %v6267
      %6432 = vmatpush1.bf16.msra.mxu0 %v6266
      %6433 = vmatprep.subr.bf16.mxu0 %v6271
      %6434 = vmatpush1.bf16.msra.mxu0 %v6270
      %6435 = vmatprep.subr.bf16.mxu0 %v6275
      %6436 = vmatpush1.bf16.msra.mxu0 %v6274
      %6437 = vmatprep.subr.bf16.mxu0 %v6279
      %6438 = vmatpush1.bf16.msra.mxu0 %v6278
      %6439 = vmatprep.subr.bf16.mxu0 %v6283
      %6440 = vmatpush1.bf16.msra.mxu0 %v6282
      %6441 = vmatprep.subr.bf16.mxu0 %v6287
      %6442 = vmatpush1.bf16.msra.mxu0 %v6286
      %6443 = vmatprep.subr.bf16.mxu0 %v6291
      %6444 = vmatpush1.bf16.msra.mxu0 %v6290
      %6445 = vmatprep.subr.bf16.mxu0 %v6295
      %6446 = vmatpush1.bf16.msra.mxu0 %v6294
      %6447 = vmatprep.subr.bf16.mxu0 %v6299
      %6448 = vmatpush1.bf16.msra.mxu0 %v6298
      %6449 = vmatprep.subr.bf16.mxu0 %v6303
      %6450 = vmatpush1.bf16.msra.mxu0 %v6302
      %6451 = vmatprep.subr.bf16.mxu0 %v6307
      %6452 = vmatpush1.bf16.msra.mxu0 %v6306
      %6453 = vmatprep.subr.bf16.mxu0 %v6311
      %6454 = vmatpush1.bf16.msra.mxu0 %v6310
      %6455 = vmatprep.subr.bf16.mxu0 %v6315
      %6456 = vmatpush1.bf16.msra.mxu0 %v6314
      %6457 = vmatprep.subr.bf16.mxu0 %v6319
      %6458 = vmatpush1.bf16.msra.mxu0 %v6318
      %6459 = vmatprep.subr.bf16.mxu0 %v6323
      %6460 = vmatpush1.bf16.msra.mxu0 %v6322
      %6461 = vmatprep.mubr.bf16.mxu0 %v6002
      %6462 = vmatmul.mubr.bf16.gmra.mrb[0].mxu0 %v6001
      %v6463 = vpop.f32.mrb[0].mxu0
      %v6464 = vadd.f32 0.0, %v6463
      %v6465 = vpop.f32.mrb[0].mxu0
      %v6466 = vadd.f32 0.0, %v6465
      %v6467 = vpop.f32.mrb[0].mxu0
      %v6468 = vpop.f32.mrb[0].mxu0
      %6469 = vdwg.mxu0
      %v6474 = vcombine.low %v6423, %v6425
      %v6475 = vcombine.low %v6464, %v6466
      %v6477 = vunpack.c.l.s4 1966171168
      %v6478 = vunpack.c.0.s8 %v6477
      %v6479 = vlaneseq
      %v6480 = vshrl.u32 %v6479, 7
      %v6481 = vsub.s32 %v6478, %v6480
      %v6482 = vrot.slane %v6474, %v6481
      %v6484 = vunpack.c.l.s4 1966171168
      %v6485 = vunpack.c.0.s8 %v6484
      %v6486 = vlaneseq
      %v6487 = vshrl.u32 %v6486, 7
      %v6488 = vsub.s32 %v6485, %v6487
      %v6489 = vrot.slane %v6475, %v6488
      %v6490 = vcombine.low %v6482, %v6489
      %v6492 = vunpack.c.l.s4 1966171168
      %v6493 = vunpack.c.0.s8 %v6492
      %v6494 = vlaneseq
      %v6495 = vshrl.u32 %v6494, 7
      %v6496 = vsub.s32 %v6493, %v6495
      %v6497 = vrot.slane %v6490, %v6496
      %v6499 = vadd.f32 %v5954, %v6497
      %s6500 = scalar_lea.vmem %s4, 2
      %v6501 = vld [vmem:[%s6500] sm:$0x1]
      %v6503 = vsel %vm5406, %v6501, 0
      %6505 = vmatprep.subr.bf16.mxu0 %v5414
      %6506 = vmatpush1.bf16.msra.mxu0 %v5411
      %6507 = vmatprep.subr.bf16.mxu0 0
      %6508 = vmatpush1.bf16.msra.mxu0 0
      %6509 = vmatprep.subr.bf16.mxu0 0
      %6510 = vmatpush1.bf16.msra.mxu0 0
      %6511 = vmatprep.subr.bf16.mxu0 0
      %6512 = vmatpush1.bf16.msra.mxu0 0
      %6513 = vmatprep.subr.bf16.mxu0 0
      %6514 = vmatpush1.bf16.msra.mxu0 0
      %6515 = vmatprep.subr.bf16.mxu0 0
      %6516 = vmatpush1.bf16.msra.mxu0 0
      %6517 = vmatprep.subr.bf16.mxu0 0
      %6518 = vmatpush1.bf16.msra.mxu0 0
      %6519 = vmatprep.subr.bf16.mxu0 0
      %6520 = vmatpush1.bf16.msra.mxu0 0
      %6521 = vmatprep.subr.bf16.mxu0 0
      %6522 = vmatpush1.bf16.msra.mxu0 0
      %6523 = vmatprep.subr.bf16.mxu0 0
      %6524 = vmatpush1.bf16.msra.mxu0 0
      %6525 = vmatprep.subr.bf16.mxu0 0
      %6526 = vmatpush1.bf16.msra.mxu0 0
      %6527 = vmatprep.subr.bf16.mxu0 0
      %6528 = vmatpush1.bf16.msra.mxu0 0
      %6529 = vmatprep.subr.bf16.mxu0 0
      %6530 = vmatpush1.bf16.msra.mxu0 0
      %6531 = vmatprep.subr.bf16.mxu0 0
      %6532 = vmatpush1.bf16.msra.mxu0 0
      %6533 = vmatprep.subr.bf16.mxu0 0
      %6534 = vmatpush1.bf16.msra.mxu0 0
      %6535 = vmatprep.subr.bf16.mxu0 0
      %6536 = vmatpush1.bf16.msra.mxu0 0
      %6537 = vmatprep.mubr.bf16.mxu0 0
      %6538 = vmatmul.mubr.bf16.gmra.mrb[0].mxu0 %v6503
      %v6539 = vpop.f32.mrb[0].mxu0
      %v6540 = vadd.f32 0.0, %v6539
      %v6541 = vpop.f32.mrb[0].mxu0
      %v6542 = vadd.f32 0.0, %v6541
      %v6543 = vpop.f32.mrb[0].mxu0
      %v6544 = vpop.f32.mrb[0].mxu0
      %6545 = vdwg.mxu0
      %v6546 = vpack.c.bf16 %v6540, %v6540
      %v6547 = vpack.c.bf16 %v6542, %v6542
      %s6548 = scalar_lea.vmem %s8, 1024
      %v6549 = vld [vmem:[%s6548] sm:$0xff]
      %v6550 = vld [vmem:[%s6548 + $0x8] sm:$0xff]
      %v6551 = vld [vmem:[%s6548 + $0x10] sm:$0xff]
      %v6552 = vld [vmem:[%s6548 + $0x18] sm:$0xff]
      %v6553 = vld [vmem:[%s6548 + $0x20] sm:$0xff]
      %v6554 = vld [vmem:[%s6548 + $0x28] sm:$0xff]
      %v6555 = vld [vmem:[%s6548 + $0x30] sm:$0xff]
      %v6556 = vld [vmem:[%s6548 + $0x38] sm:$0xff]
      %v6557 = vld [vmem:[%s6548 + $0x40] sm:$0xff]
      %v6558 = vld [vmem:[%s6548 + $0x48] sm:$0xff]
      %v6559 = vld [vmem:[%s6548 + $0x50] sm:$0xff]
      %v6560 = vld [vmem:[%s6548 + $0x58] sm:$0xff]
      %v6561 = vld [vmem:[%s6548 + $0x60] sm:$0xff]
      %v6562 = vld [vmem:[%s6548 + $0x68] sm:$0xff]
      %v6563 = vld [vmem:[%s6548 + $0x70] sm:$0xff]
      %v6564 = vld [vmem:[%s6548 + $0x78] sm:$0xff]
      %v6565 = vld [vmem:[%s6548 + $0x80] sm:$0xff]
      %v6566 = vld [vmem:[%s6548 + $0x88] sm:$0xff]
      %v6567 = vld [vmem:[%s6548 + $0x90] sm:$0xff]
      %v6568 = vld [vmem:[%s6548 + $0x98] sm:$0xff]
      %v6569 = vld [vmem:[%s6548 + $0xa0] sm:$0xff]
      %v6570 = vld [vmem:[%s6548 + $0xa8] sm:$0xff]
      %v6571 = vld [vmem:[%s6548 + $0xb0] sm:$0xff]
      %v6572 = vld [vmem:[%s6548 + $0xb8] sm:$0xff]
      %v6573 = vld [vmem:[%s6548 + $0xc0] sm:$0xff]
      %v6574 = vld [vmem:[%s6548 + $0xc8] sm:$0xff]
      %v6575 = vld [vmem:[%s6548 + $0xd0] sm:$0xff]
      %v6576 = vld [vmem:[%s6548 + $0xd8] sm:$0xff]
      %v6577 = vld [vmem:[%s6548 + $0xe0] sm:$0xff]
      %v6578 = vld [vmem:[%s6548 + $0xe8] sm:$0xff]
      %v6579 = vld [vmem:[%s6548 + $0xf0] sm:$0xff]
      %v6580 = vld [vmem:[%s6548 + $0xf8] sm:$0xff]
      %v6581 = vld [vmem:[%s6548 + $0x100] sm:$0xff]
      %v6582 = vld [vmem:[%s6548 + $0x108] sm:$0xff]
      %v6583 = vld [vmem:[%s6548 + $0x110] sm:$0xff]
      %v6584 = vld [vmem:[%s6548 + $0x118] sm:$0xff]
      %v6585 = vld [vmem:[%s6548 + $0x120] sm:$0xff]
      %v6586 = vld [vmem:[%s6548 + $0x128] sm:$0xff]
      %v6587 = vld [vmem:[%s6548 + $0x130] sm:$0xff]
      %v6588 = vld [vmem:[%s6548 + $0x138] sm:$0xff]
      %v6589 = vld [vmem:[%s6548 + $0x140] sm:$0xff]
      %v6590 = vld [vmem:[%s6548 + $0x148] sm:$0xff]
      %v6591 = vld [vmem:[%s6548 + $0x150] sm:$0xff]
      %v6592 = vld [vmem:[%s6548 + $0x158] sm:$0xff]
      %v6593 = vld [vmem:[%s6548 + $0x160] sm:$0xff]
      %v6594 = vld [vmem:[%s6548 + $0x168] sm:$0xff]
      %v6595 = vld [vmem:[%s6548 + $0x170] sm:$0xff]
      %v6596 = vld [vmem:[%s6548 + $0x178] sm:$0xff]
      %v6597 = vld [vmem:[%s6548 + $0x180] sm:$0xff]
      %v6598 = vld [vmem:[%s6548 + $0x188] sm:$0xff]
      %v6599 = vld [vmem:[%s6548 + $0x190] sm:$0xff]
      %v6600 = vld [vmem:[%s6548 + $0x198] sm:$0xff]
      %v6601 = vld [vmem:[%s6548 + $0x1a0] sm:$0xff]
      %v6602 = vld [vmem:[%s6548 + $0x1a8] sm:$0xff]
      %v6603 = vld [vmem:[%s6548 + $0x1b0] sm:$0xff]
      %v6604 = vld [vmem:[%s6548 + $0x1b8] sm:$0xff]
      %v6605 = vld [vmem:[%s6548 + $0x1c0] sm:$0xff]
      %v6606 = vld [vmem:[%s6548 + $0x1c8] sm:$0xff]
      %v6607 = vld [vmem:[%s6548 + $0x1d0] sm:$0xff]
      %v6608 = vld [vmem:[%s6548 + $0x1d8] sm:$0xff]
      %v6609 = vld [vmem:[%s6548 + $0x1e0] sm:$0xff]
      %v6610 = vld [vmem:[%s6548 + $0x1e8] sm:$0xff]
      %v6611 = vld [vmem:[%s6548 + $0x1f0] sm:$0xff]
      %v6612 = vld [vmem:[%s6548 + $0x1f8] sm:$0xff]
      %v6677 = vunpack.c.l.b16 %v6549
      %v6678 = vunpack.c.h.b16 %v6549
      %v6679 = vunpack.c.l.b16 %v6550
      %v6680 = vunpack.c.h.b16 %v6550
      %v6681 = vunpack.c.l.b16 %v6551
      %v6682 = vunpack.c.h.b16 %v6551
      %v6683 = vunpack.c.l.b16 %v6552
      %v6684 = vunpack.c.h.b16 %v6552
      %v6685 = vunpack.c.l.b16 %v6553
      %v6686 = vunpack.c.h.b16 %v6553
      %v6687 = vunpack.c.l.b16 %v6554
      %v6688 = vunpack.c.h.b16 %v6554
      %v6689 = vunpack.c.l.b16 %v6555
      %v6690 = vunpack.c.h.b16 %v6555
      %v6691 = vunpack.c.l.b16 %v6556
      %v6692 = vunpack.c.h.b16 %v6556
      %v6693 = vunpack.c.l.b16 %v6557
      %v6694 = vunpack.c.h.b16 %v6557
      %v6695 = vunpack.c.l.b16 %v6558
      %v6696 = vunpack.c.h.b16 %v6558
      %v6697 = vunpack.c.l.b16 %v6559
      %v6698 = vunpack.c.h.b16 %v6559
      %v6699 = vunpack.c.l.b16 %v6560
      %v6700 = vunpack.c.h.b16 %v6560
      %v6701 = vunpack.c.l.b16 %v6561
      %v6702 = vunpack.c.h.b16 %v6561
      %v6703 = vunpack.c.l.b16 %v6562
      %v6704 = vunpack.c.h.b16 %v6562
      %v6705 = vunpack.c.l.b16 %v6563
      %v6706 = vunpack.c.h.b16 %v6563
      %v6707 = vunpack.c.l.b16 %v6564
      %v6708 = vunpack.c.h.b16 %v6564
      %v6709 = vunpack.c.l.b16 %v6565
      %v6710 = vunpack.c.h.b16 %v6565
      %v6711 = vunpack.c.l.b16 %v6566
      %v6712 = vunpack.c.h.b16 %v6566
      %v6713 = vunpack.c.l.b16 %v6567
      %v6714 = vunpack.c.h.b16 %v6567
      %v6715 = vunpack.c.l.b16 %v6568
      %v6716 = vunpack.c.h.b16 %v6568
      %v6717 = vunpack.c.l.b16 %v6569
      %v6718 = vunpack.c.h.b16 %v6569
      %v6719 = vunpack.c.l.b16 %v6570
      %v6720 = vunpack.c.h.b16 %v6570
      %v6721 = vunpack.c.l.b16 %v6571
      %v6722 = vunpack.c.h.b16 %v6571
      %v6723 = vunpack.c.l.b16 %v6572
      %v6724 = vunpack.c.h.b16 %v6572
      %v6725 = vunpack.c.l.b16 %v6573
      %v6726 = vunpack.c.h.b16 %v6573
      %v6727 = vunpack.c.l.b16 %v6574
      %v6728 = vunpack.c.h.b16 %v6574
      %v6729 = vunpack.c.l.b16 %v6575
      %v6730 = vunpack.c.h.b16 %v6575
      %v6731 = vunpack.c.l.b16 %v6576
      %v6732 = vunpack.c.h.b16 %v6576
      %v6733 = vunpack.c.l.b16 %v6577
      %v6734 = vunpack.c.h.b16 %v6577
      %v6735 = vunpack.c.l.b16 %v6578
      %v6736 = vunpack.c.h.b16 %v6578
      %v6737 = vunpack.c.l.b16 %v6579
      %v6738 = vunpack.c.h.b16 %v6579
      %v6739 = vunpack.c.l.b16 %v6580
      %v6740 = vunpack.c.h.b16 %v6580
      %v6741 = vunpack.c.l.b16 %v6581
      %v6742 = vunpack.c.h.b16 %v6581
      %v6743 = vunpack.c.l.b16 %v6582
      %v6744 = vunpack.c.h.b16 %v6582
      %v6745 = vunpack.c.l.b16 %v6583
      %v6746 = vunpack.c.h.b16 %v6583
      %v6747 = vunpack.c.l.b16 %v6584
      %v6748 = vunpack.c.h.b16 %v6584
      %v6749 = vunpack.c.l.b16 %v6585
      %v6750 = vunpack.c.h.b16 %v6585
      %v6751 = vunpack.c.l.b16 %v6586
      %v6752 = vunpack.c.h.b16 %v6586
      %v6753 = vunpack.c.l.b16 %v6587
      %v6754 = vunpack.c.h.b16 %v6587
      %v6755 = vunpack.c.l.b16 %v6588
      %v6756 = vunpack.c.h.b16 %v6588
      %v6757 = vunpack.c.l.b16 %v6589
      %v6758 = vunpack.c.h.b16 %v6589
      %v6759 = vunpack.c.l.b16 %v6590
      %v6760 = vunpack.c.h.b16 %v6590
      %v6761 = vunpack.c.l.b16 %v6591
      %v6762 = vunpack.c.h.b16 %v6591
      %v6763 = vunpack.c.l.b16 %v6592
      %v6764 = vunpack.c.h.b16 %v6592
      %v6765 = vunpack.c.l.b16 %v6593
      %v6766 = vunpack.c.h.b16 %v6593
      %v6767 = vunpack.c.l.b16 %v6594
      %v6768 = vunpack.c.h.b16 %v6594
      %v6769 = vunpack.c.l.b16 %v6595
      %v6770 = vunpack.c.h.b16 %v6595
      %v6771 = vunpack.c.l.b16 %v6596
      %v6772 = vunpack.c.h.b16 %v6596
      %v6773 = vunpack.c.l.b16 %v6597
      %v6774 = vunpack.c.h.b16 %v6597
      %v6775 = vunpack.c.l.b16 %v6598
      %v6776 = vunpack.c.h.b16 %v6598
      %v6777 = vunpack.c.l.b16 %v6599
      %v6778 = vunpack.c.h.b16 %v6599
      %v6779 = vunpack.c.l.b16 %v6600
      %v6780 = vunpack.c.h.b16 %v6600
      %v6781 = vunpack.c.l.b16 %v6601
      %v6782 = vunpack.c.h.b16 %v6601
      %v6783 = vunpack.c.l.b16 %v6602
      %v6784 = vunpack.c.h.b16 %v6602
      %v6785 = vunpack.c.l.b16 %v6603
      %v6786 = vunpack.c.h.b16 %v6603
      %v6787 = vunpack.c.l.b16 %v6604
      %v6788 = vunpack.c.h.b16 %v6604
      %v6789 = vunpack.c.l.b16 %v6605
      %v6790 = vunpack.c.h.b16 %v6605
      %v6791 = vunpack.c.l.b16 %v6606
      %v6792 = vunpack.c.h.b16 %v6606
      %v6793 = vunpack.c.l.b16 %v6607
      %v6794 = vunpack.c.h.b16 %v6607
      %v6795 = vunpack.c.l.b16 %v6608
      %v6796 = vunpack.c.h.b16 %v6608
      %v6797 = vunpack.c.l.b16 %v6609
      %v6798 = vunpack.c.h.b16 %v6609
      %v6799 = vunpack.c.l.b16 %v6610
      %v6800 = vunpack.c.h.b16 %v6610
      %v6801 = vunpack.c.l.b16 %v6611
      %v6802 = vunpack.c.h.b16 %v6611
      %v6803 = vunpack.c.l.b16 %v6612
      %v6804 = vunpack.c.h.b16 %v6612
      %v6805 = vpack.c.b16 %v6681, %v6677
      %v6806 = vpack.c.b16 %v6682, %v6678
      %v6807 = vpack.c.b16 %v6683, %v6679
      %v6808 = vpack.c.b16 %v6684, %v6680
      %v6809 = vpack.c.b16 %v6689, %v6685
      %v6810 = vpack.c.b16 %v6690, %v6686
      %v6811 = vpack.c.b16 %v6691, %v6687
      %v6812 = vpack.c.b16 %v6692, %v6688
      %v6813 = vpack.c.b16 %v6697, %v6693
      %v6814 = vpack.c.b16 %v6698, %v6694
      %v6815 = vpack.c.b16 %v6699, %v6695
      %v6816 = vpack.c.b16 %v6700, %v6696
      %v6817 = vpack.c.b16 %v6705, %v6701
      %v6818 = vpack.c.b16 %v6706, %v6702
      %v6819 = vpack.c.b16 %v6707, %v6703
      %v6820 = vpack.c.b16 %v6708, %v6704
      %v6821 = vpack.c.b16 %v6713, %v6709
      %v6822 = vpack.c.b16 %v6714, %v6710
      %v6823 = vpack.c.b16 %v6715, %v6711
      %v6824 = vpack.c.b16 %v6716, %v6712
      %v6825 = vpack.c.b16 %v6721, %v6717
      %v6826 = vpack.c.b16 %v6722, %v6718
      %v6827 = vpack.c.b16 %v6723, %v6719
      %v6828 = vpack.c.b16 %v6724, %v6720
      %v6829 = vpack.c.b16 %v6729, %v6725
      %v6830 = vpack.c.b16 %v6730, %v6726
      %v6831 = vpack.c.b16 %v6731, %v6727
      %v6832 = vpack.c.b16 %v6732, %v6728
      %v6833 = vpack.c.b16 %v6737, %v6733
      %v6834 = vpack.c.b16 %v6738, %v6734
      %v6835 = vpack.c.b16 %v6739, %v6735
      %v6836 = vpack.c.b16 %v6740, %v6736
      %v6837 = vpack.c.b16 %v6745, %v6741
      %v6838 = vpack.c.b16 %v6746, %v6742
      %v6839 = vpack.c.b16 %v6747, %v6743
      %v6840 = vpack.c.b16 %v6748, %v6744
      %v6841 = vpack.c.b16 %v6753, %v6749
      %v6842 = vpack.c.b16 %v6754, %v6750
      %v6843 = vpack.c.b16 %v6755, %v6751
      %v6844 = vpack.c.b16 %v6756, %v6752
      %v6845 = vpack.c.b16 %v6761, %v6757
      %v6846 = vpack.c.b16 %v6762, %v6758
      %v6847 = vpack.c.b16 %v6763, %v6759
      %v6848 = vpack.c.b16 %v6764, %v6760
      %v6849 = vpack.c.b16 %v6769, %v6765
      %v6850 = vpack.c.b16 %v6770, %v6766
      %v6851 = vpack.c.b16 %v6771, %v6767
      %v6852 = vpack.c.b16 %v6772, %v6768
      %v6853 = vpack.c.b16 %v6777, %v6773
      %v6854 = vpack.c.b16 %v6778, %v6774
      %v6855 = vpack.c.b16 %v6779, %v6775
      %v6856 = vpack.c.b16 %v6780, %v6776
      %v6857 = vpack.c.b16 %v6785, %v6781
      %v6858 = vpack.c.b16 %v6786, %v6782
      %v6859 = vpack.c.b16 %v6787, %v6783
      %v6860 = vpack.c.b16 %v6788, %v6784
      %v6861 = vpack.c.b16 %v6793, %v6789
      %v6862 = vpack.c.b16 %v6794, %v6790
      %v6863 = vpack.c.b16 %v6795, %v6791
      %v6864 = vpack.c.b16 %v6796, %v6792
      %v6865 = vpack.c.b16 %v6801, %v6797
      %v6866 = vpack.c.b16 %v6802, %v6798
      %v6867 = vpack.c.b16 %v6803, %v6799
      %v6868 = vpack.c.b16 %v6804, %v6800
      %6933 = vmatprep.subr.bf16.mxu0 %v6806
      %6934 = vmatpush1.bf16.msra.mxu0 %v6805
      %6935 = vmatprep.subr.bf16.mxu0 %v6810
      %6936 = vmatpush1.bf16.msra.mxu0 %v6809
      %6937 = vmatprep.subr.bf16.mxu0 %v6814
      %6938 = vmatpush1.bf16.msra.mxu0 %v6813
      %6939 = vmatprep.subr.bf16.mxu0 %v6818
      %6940 = vmatpush1.bf16.msra.mxu0 %v6817
      %6941 = vmatprep.subr.bf16.mxu0 %v6822
      %6942 = vmatpush1.bf16.msra.mxu0 %v6821
      %6943 = vmatprep.subr.bf16.mxu0 %v6826
      %6944 = vmatpush1.bf16.msra.mxu0 %v6825
      %6945 = vmatprep.subr.bf16.mxu0 %v6830
      %6946 = vmatpush1.bf16.msra.mxu0 %v6829
      %6947 = vmatprep.subr.bf16.mxu0 %v6834
      %6948 = vmatpush1.bf16.msra.mxu0 %v6833
      %6949 = vmatprep.subr.bf16.mxu0 %v6838
      %6950 = vmatpush1.bf16.msra.mxu0 %v6837
      %6951 = vmatprep.subr.bf16.mxu0 %v6842
      %6952 = vmatpush1.bf16.msra.mxu0 %v6841
      %6953 = vmatprep.subr.bf16.mxu0 %v6846
      %6954 = vmatpush1.bf16.msra.mxu0 %v6845
      %6955 = vmatprep.subr.bf16.mxu0 %v6850
      %6956 = vmatpush1.bf16.msra.mxu0 %v6849
      %6957 = vmatprep.subr.bf16.mxu0 %v6854
      %6958 = vmatpush1.bf16.msra.mxu0 %v6853
      %6959 = vmatprep.subr.bf16.mxu0 %v6858
      %6960 = vmatpush1.bf16.msra.mxu0 %v6857
      %6961 = vmatprep.subr.bf16.mxu0 %v6862
      %6962 = vmatpush1.bf16.msra.mxu0 %v6861
      %6963 = vmatprep.subr.bf16.mxu0 %v6866
      %6964 = vmatpush1.bf16.msra.mxu0 %v6865
      %6965 = vmatprep.mubr.bf16.mxu0 %v6547
      %6966 = vmatmul.mubr.bf16.gmra.mrb[0].mxu0 %v6546
      %v6967 = vpop.f32.mrb[0].mxu0
      %v6968 = vadd.f32 0.0, %v6967
      %v6969 = vpop.f32.mrb[0].mxu0
      %v6970 = vadd.f32 0.0, %v6969
      %v6971 = vpop.f32.mrb[0].mxu0
      %v6972 = vpop.f32.mrb[0].mxu0
      %6973 = vdwg.mxu0
      %6974 = vmatprep.subr.bf16.mxu0 %v6808
      %6975 = vmatpush1.bf16.msra.mxu0 %v6807
      %6976 = vmatprep.subr.bf16.mxu0 %v6812
      %6977 = vmatpush1.bf16.msra.mxu0 %v6811
      %6978 = vmatprep.subr.bf16.mxu0 %v6816
      %6979 = vmatpush1.bf16.msra.mxu0 %v6815
      %6980 = vmatprep.subr.bf16.mxu0 %v6820
      %6981 = vmatpush1.bf16.msra.mxu0 %v6819
      %6982 = vmatprep.subr.bf16.mxu0 %v6824
      %6983 = vmatpush1.bf16.msra.mxu0 %v6823
      %6984 = vmatprep.subr.bf16.mxu0 %v6828
      %6985 = vmatpush1.bf16.msra.mxu0 %v6827
      %6986 = vmatprep.subr.bf16.mxu0 %v6832
      %6987 = vmatpush1.bf16.msra.mxu0 %v6831
      %6988 = vmatprep.subr.bf16.mxu0 %v6836
      %6989 = vmatpush1.bf16.msra.mxu0 %v6835
      %6990 = vmatprep.subr.bf16.mxu0 %v6840
      %6991 = vmatpush1.bf16.msra.mxu0 %v6839
      %6992 = vmatprep.subr.bf16.mxu0 %v6844
      %6993 = vmatpush1.bf16.msra.mxu0 %v6843
      %6994 = vmatprep.subr.bf16.mxu0 %v6848
      %6995 = vmatpush1.bf16.msra.mxu0 %v6847
      %6996 = vmatprep.subr.bf16.mxu0 %v6852
      %6997 = vmatpush1.bf16.msra.mxu0 %v6851
      %6998 = vmatprep.subr.bf16.mxu0 %v6856
      %6999 = vmatpush1.bf16.msra.mxu0 %v6855
      %7000 = vmatprep.subr.bf16.mxu0 %v6860
      %7001 = vmatpush1.bf16.msra.mxu0 %v6859
      %7002 = vmatprep.subr.bf16.mxu0 %v6864
      %7003 = vmatpush1.bf16.msra.mxu0 %v6863
      %7004 = vmatprep.subr.bf16.mxu0 %v6868
      %7005 = vmatpush1.bf16.msra.mxu0 %v6867
      %7006 = vmatprep.mubr.bf16.mxu0 %v6547
      %7007 = vmatmul.mubr.bf16.gmra.mrb[0].mxu0 %v6546
      %v7008 = vpop.f32.mrb[0].mxu0
      %v7009 = vadd.f32 0.0, %v7008
      %v7010 = vpop.f32.mrb[0].mxu0
      %v7011 = vadd.f32 0.0, %v7010
      %v7012 = vpop.f32.mrb[0].mxu0
      %v7013 = vpop.f32.mrb[0].mxu0
      %7014 = vdwg.mxu0
      %v7019 = vcombine.low %v6968, %v6970
      %v7020 = vcombine.low %v7009, %v7011
      %v7022 = vunpack.c.l.s4 1966171168
      %v7023 = vunpack.c.0.s8 %v7022
      %v7024 = vlaneseq
      %v7025 = vshrl.u32 %v7024, 7
      %v7026 = vsub.s32 %v7023, %v7025
      %v7027 = vrot.slane %v7019, %v7026
      %v7029 = vunpack.c.l.s4 1966171168
      %v7030 = vunpack.c.0.s8 %v7029
      %v7031 = vlaneseq
      %v7032 = vshrl.u32 %v7031, 7
      %v7033 = vsub.s32 %v7030, %v7032
      %v7034 = vrot.slane %v7020, %v7033
      %v7035 = vcombine.low %v7027, %v7034
      %v7037 = vunpack.c.l.s4 1966171168
      %v7038 = vunpack.c.0.s8 %v7037
      %v7039 = vlaneseq
      %v7040 = vshrl.u32 %v7039, 7
      %v7041 = vsub.s32 %v7038, %v7040
      %v7042 = vrot.slane %v7035, %v7041
      %v7044 = vadd.f32 %v6499, %v7042
      %s7045 = scalar_lea.vmem %s4, 3
      %v7046 = vld [vmem:[%s7045] sm:$0x1]
      %v7048 = vsel %vm5406, %v7046, 0
      %7050 = vmatprep.subr.bf16.mxu0 %v5414
      %7051 = vmatpush1.bf16.msra.mxu0 %v5411
      %7052 = vmatprep.subr.bf16.mxu0 0
      %7053 = vmatpush1.bf16.msra.mxu0 0
      %7054 = vmatprep.subr.bf16.mxu0 0
      %7055 = vmatpush1.bf16.msra.mxu0 0
      %7056 = vmatprep.subr.bf16.mxu0 0
      %7057 = vmatpush1.bf16.msra.mxu0 0
      %7058 = vmatprep.subr.bf16.mxu0 0
      %7059 = vmatpush1.bf16.msra.mxu0 0
      %7060 = vmatprep.subr.bf16.mxu0 0
      %7061 = vmatpush1.bf16.msra.mxu0 0
      %7062 = vmatprep.subr.bf16.mxu0 0
      %7063 = vmatpush1.bf16.msra.mxu0 0
      %7064 = vmatprep.subr.bf16.mxu0 0
      %7065 = vmatpush1.bf16.msra.mxu0 0
      %7066 = vmatprep.subr.bf16.mxu0 0
      %7067 = vmatpush1.bf16.msra.mxu0 0
      %7068 = vmatprep.subr.bf16.mxu0 0
      %7069 = vmatpush1.bf16.msra.mxu0 0
      %7070 = vmatprep.subr.bf16.mxu0 0
      %7071 = vmatpush1.bf16.msra.mxu0 0
      %7072 = vmatprep.subr.bf16.mxu0 0
      %7073 = vmatpush1.bf16.msra.mxu0 0
      %7074 = vmatprep.subr.bf16.mxu0 0
      %7075 = vmatpush1.bf16.msra.mxu0 0
      %7076 = vmatprep.subr.bf16.mxu0 0
      %7077 = vmatpush1.bf16.msra.mxu0 0
      %7078 = vmatprep.subr.bf16.mxu0 0
      %7079 = vmatpush1.bf16.msra.mxu0 0
      %7080 = vmatprep.subr.bf16.mxu0 0
      %7081 = vmatpush1.bf16.msra.mxu0 0
      %7082 = vmatprep.mubr.bf16.mxu0 0
      %7083 = vmatmul.mubr.bf16.gmra.mrb[0].mxu0 %v7048
      %v7084 = vpop.f32.mrb[0].mxu0
      %v7085 = vadd.f32 0.0, %v7084
      %v7086 = vpop.f32.mrb[0].mxu0
      %v7087 = vadd.f32 0.0, %v7086
      %v7088 = vpop.f32.mrb[0].mxu0
      %v7089 = vpop.f32.mrb[0].mxu0
      %7090 = vdwg.mxu0
      %v7091 = vpack.c.bf16 %v7085, %v7085
      %v7092 = vpack.c.bf16 %v7087, %v7087
      %s7093 = scalar_lea.vmem %s8, 1536
      %v7094 = vld [vmem:[%s7093] sm:$0xff]
      %v7095 = vld [vmem:[%s7093 + $0x8] sm:$0xff]
      %v7096 = vld [vmem:[%s7093 + $0x10] sm:$0xff]
      %v7097 = vld [vmem:[%s7093 + $0x18] sm:$0xff]
      %v7098 = vld [vmem:[%s7093 + $0x20] sm:$0xff]
      %v7099 = vld [vmem:[%s7093 + $0x28] sm:$0xff]
      %v7100 = vld [vmem:[%s7093 + $0x30] sm:$0xff]
      %v7101 = vld [vmem:[%s7093 + $0x38] sm:$0xff]
      %v7102 = vld [vmem:[%s7093 + $0x40] sm:$0xff]
      %v7103 = vld [vmem:[%s7093 + $0x48] sm:$0xff]
      %v7104 = vld [vmem:[%s7093 + $0x50] sm:$0xff]
      %v7105 = vld [vmem:[%s7093 + $0x58] sm:$0xff]
      %v7106 = vld [vmem:[%s7093 + $0x60] sm:$0xff]
      %v7107 = vld [vmem:[%s7093 + $0x68] sm:$0xff]
      %v7108 = vld [vmem:[%s7093 + $0x70] sm:$0xff]
      %v7109 = vld [vmem:[%s7093 + $0x78] sm:$0xff]
      %v7110 = vld [vmem:[%s7093 + $0x80] sm:$0xff]
      %v7111 = vld [vmem:[%s7093 + $0x88] sm:$0xff]
      %v7112 = vld [vmem:[%s7093 + $0x90] sm:$0xff]
      %v7113 = vld [vmem:[%s7093 + $0x98] sm:$0xff]
      %v7114 = vld [vmem:[%s7093 + $0xa0] sm:$0xff]
      %v7115 = vld [vmem:[%s7093 + $0xa8] sm:$0xff]
      %v7116 = vld [vmem:[%s7093 + $0xb0] sm:$0xff]
      %v7117 = vld [vmem:[%s7093 + $0xb8] sm:$0xff]
      %v7118 = vld [vmem:[%s7093 + $0xc0] sm:$0xff]
      %v7119 = vld [vmem:[%s7093 + $0xc8] sm:$0xff]
      %v7120 = vld [vmem:[%s7093 + $0xd0] sm:$0xff]
      %v7121 = vld [vmem:[%s7093 + $0xd8] sm:$0xff]
      %v7122 = vld [vmem:[%s7093 + $0xe0] sm:$0xff]
      %v7123 = vld [vmem:[%s7093 + $0xe8] sm:$0xff]
      %v7124 = vld [vmem:[%s7093 + $0xf0] sm:$0xff]
      %v7125 = vld [vmem:[%s7093 + $0xf8] sm:$0xff]
      %v7126 = vld [vmem:[%s7093 + $0x100] sm:$0xff]
      %v7127 = vld [vmem:[%s7093 + $0x108] sm:$0xff]
      %v7128 = vld [vmem:[%s7093 + $0x110] sm:$0xff]
      %v7129 = vld [vmem:[%s7093 + $0x118] sm:$0xff]
      %v7130 = vld [vmem:[%s7093 + $0x120] sm:$0xff]
      %v7131 = vld [vmem:[%s7093 + $0x128] sm:$0xff]
      %v7132 = vld [vmem:[%s7093 + $0x130] sm:$0xff]
      %v7133 = vld [vmem:[%s7093 + $0x138] sm:$0xff]
      %v7134 = vld [vmem:[%s7093 + $0x140] sm:$0xff]
      %v7135 = vld [vmem:[%s7093 + $0x148] sm:$0xff]
      %v7136 = vld [vmem:[%s7093 + $0x150] sm:$0xff]
      %v7137 = vld [vmem:[%s7093 + $0x158] sm:$0xff]
      %v7138 = vld [vmem:[%s7093 + $0x160] sm:$0xff]
      %v7139 = vld [vmem:[%s7093 + $0x168] sm:$0xff]
      %v7140 = vld [vmem:[%s7093 + $0x170] sm:$0xff]
      %v7141 = vld [vmem:[%s7093 + $0x178] sm:$0xff]
      %v7142 = vld [vmem:[%s7093 + $0x180] sm:$0xff]
      %v7143 = vld [vmem:[%s7093 + $0x188] sm:$0xff]
      %v7144 = vld [vmem:[%s7093 + $0x190] sm:$0xff]
      %v7145 = vld [vmem:[%s7093 + $0x198] sm:$0xff]
      %v7146 = vld [vmem:[%s7093 + $0x1a0] sm:$0xff]
      %v7147 = vld [vmem:[%s7093 + $0x1a8] sm:$0xff]
      %v7148 = vld [vmem:[%s7093 + $0x1b0] sm:$0xff]
      %v7149 = vld [vmem:[%s7093 + $0x1b8] sm:$0xff]
      %v7150 = vld [vmem:[%s7093 + $0x1c0] sm:$0xff]
      %v7151 = vld [vmem:[%s7093 + $0x1c8] sm:$0xff]
      %v7152 = vld [vmem:[%s7093 + $0x1d0] sm:$0xff]
      %v7153 = vld [vmem:[%s7093 + $0x1d8] sm:$0xff]
      %v7154 = vld [vmem:[%s7093 + $0x1e0] sm:$0xff]
      %v7155 = vld [vmem:[%s7093 + $0x1e8] sm:$0xff]
      %v7156 = vld [vmem:[%s7093 + $0x1f0] sm:$0xff]
      %v7157 = vld [vmem:[%s7093 + $0x1f8] sm:$0xff]
      %v7222 = vunpack.c.l.b16 %v7094
      %v7223 = vunpack.c.h.b16 %v7094
      %v7224 = vunpack.c.l.b16 %v7095
      %v7225 = vunpack.c.h.b16 %v7095
      %v7226 = vunpack.c.l.b16 %v7096
      %v7227 = vunpack.c.h.b16 %v7096
      %v7228 = vunpack.c.l.b16 %v7097
      %v7229 = vunpack.c.h.b16 %v7097
      %v7230 = vunpack.c.l.b16 %v7098
      %v7231 = vunpack.c.h.b16 %v7098
      %v7232 = vunpack.c.l.b16 %v7099
      %v7233 = vunpack.c.h.b16 %v7099
      %v7234 = vunpack.c.l.b16 %v7100
      %v7235 = vunpack.c.h.b16 %v7100
      %v7236 = vunpack.c.l.b16 %v7101
      %v7237 = vunpack.c.h.b16 %v7101
      %v7238 = vunpack.c.l.b16 %v7102
      %v7239 = vunpack.c.h.b16 %v7102
      %v7240 = vunpack.c.l.b16 %v7103
      %v7241 = vunpack.c.h.b16 %v7103
      %v7242 = vunpack.c.l.b16 %v7104
      %v7243 = vunpack.c.h.b16 %v7104
      %v7244 = vunpack.c.l.b16 %v7105
      %v7245 = vunpack.c.h.b16 %v7105
      %v7246 = vunpack.c.l.b16 %v7106
      %v7247 = vunpack.c.h.b16 %v7106
      %v7248 = vunpack.c.l.b16 %v7107
      %v7249 = vunpack.c.h.b16 %v7107
      %v7250 = vunpack.c.l.b16 %v7108
      %v7251 = vunpack.c.h.b16 %v7108
      %v7252 = vunpack.c.l.b16 %v7109
      %v7253 = vunpack.c.h.b16 %v7109
      %v7254 = vunpack.c.l.b16 %v7110
      %v7255 = vunpack.c.h.b16 %v7110
      %v7256 = vunpack.c.l.b16 %v7111
      %v7257 = vunpack.c.h.b16 %v7111
      %v7258 = vunpack.c.l.b16 %v7112
      %v7259 = vunpack.c.h.b16 %v7112
      %v7260 = vunpack.c.l.b16 %v7113
      %v7261 = vunpack.c.h.b16 %v7113
      %v7262 = vunpack.c.l.b16 %v7114
      %v7263 = vunpack.c.h.b16 %v7114
      %v7264 = vunpack.c.l.b16 %v7115
      %v7265 = vunpack.c.h.b16 %v7115
      %v7266 = vunpack.c.l.b16 %v7116
      %v7267 = vunpack.c.h.b16 %v7116
      %v7268 = vunpack.c.l.b16 %v7117
      %v7269 = vunpack.c.h.b16 %v7117
      %v7270 = vunpack.c.l.b16 %v7118
      %v7271 = vunpack.c.h.b16 %v7118
      %v7272 = vunpack.c.l.b16 %v7119
      %v7273 = vunpack.c.h.b16 %v7119
      %v7274 = vunpack.c.l.b16 %v7120
      %v7275 = vunpack.c.h.b16 %v7120
      %v7276 = vunpack.c.l.b16 %v7121
      %v7277 = vunpack.c.h.b16 %v7121
      %v7278 = vunpack.c.l.b16 %v7122
      %v7279 = vunpack.c.h.b16 %v7122
      %v7280 = vunpack.c.l.b16 %v7123
      %v7281 = vunpack.c.h.b16 %v7123
      %v7282 = vunpack.c.l.b16 %v7124
      %v7283 = vunpack.c.h.b16 %v7124
      %v7284 = vunpack.c.l.b16 %v7125
      %v7285 = vunpack.c.h.b16 %v7125
      %v7286 = vunpack.c.l.b16 %v7126
      %v7287 = vunpack.c.h.b16 %v7126
      %v7288 = vunpack.c.l.b16 %v7127
      %v7289 = vunpack.c.h.b16 %v7127
      %v7290 = vunpack.c.l.b16 %v7128
      %v7291 = vunpack.c.h.b16 %v7128
      %v7292 = vunpack.c.l.b16 %v7129
      %v7293 = vunpack.c.h.b16 %v7129
      %v7294 = vunpack.c.l.b16 %v7130
      %v7295 = vunpack.c.h.b16 %v7130
      %v7296 = vunpack.c.l.b16 %v7131
      %v7297 = vunpack.c.h.b16 %v7131
      %v7298 = vunpack.c.l.b16 %v7132
      %v7299 = vunpack.c.h.b16 %v7132
      %v7300 = vunpack.c.l.b16 %v7133
      %v7301 = vunpack.c.h.b16 %v7133
      %v7302 = vunpack.c.l.b16 %v7134
      %v7303 = vunpack.c.h.b16 %v7134
      %v7304 = vunpack.c.l.b16 %v7135
      %v7305 = vunpack.c.h.b16 %v7135
      %v7306 = vunpack.c.l.b16 %v7136
      %v7307 = vunpack.c.h.b16 %v7136
      %v7308 = vunpack.c.l.b16 %v7137
      %v7309 = vunpack.c.h.b16 %v7137
      %v7310 = vunpack.c.l.b16 %v7138
      %v7311 = vunpack.c.h.b16 %v7138
      %v7312 = vunpack.c.l.b16 %v7139
      %v7313 = vunpack.c.h.b16 %v7139
      %v7314 = vunpack.c.l.b16 %v7140
      %v7315 = vunpack.c.h.b16 %v7140
      %v7316 = vunpack.c.l.b16 %v7141
      %v7317 = vunpack.c.h.b16 %v7141
      %v7318 = vunpack.c.l.b16 %v7142
      %v7319 = vunpack.c.h.b16 %v7142
      %v7320 = vunpack.c.l.b16 %v7143
      %v7321 = vunpack.c.h.b16 %v7143
      %v7322 = vunpack.c.l.b16 %v7144
      %v7323 = vunpack.c.h.b16 %v7144
      %v7324 = vunpack.c.l.b16 %v7145
      %v7325 = vunpack.c.h.b16 %v7145
      %v7326 = vunpack.c.l.b16 %v7146
      %v7327 = vunpack.c.h.b16 %v7146
      %v7328 = vunpack.c.l.b16 %v7147
      %v7329 = vunpack.c.h.b16 %v7147
      %v7330 = vunpack.c.l.b16 %v7148
      %v7331 = vunpack.c.h.b16 %v7148
      %v7332 = vunpack.c.l.b16 %v7149
      %v7333 = vunpack.c.h.b16 %v7149
      %v7334 = vunpack.c.l.b16 %v7150
      %v7335 = vunpack.c.h.b16 %v7150
      %v7336 = vunpack.c.l.b16 %v7151
      %v7337 = vunpack.c.h.b16 %v7151
      %v7338 = vunpack.c.l.b16 %v7152
      %v7339 = vunpack.c.h.b16 %v7152
      %v7340 = vunpack.c.l.b16 %v7153
      %v7341 = vunpack.c.h.b16 %v7153
      %v7342 = vunpack.c.l.b16 %v7154
      %v7343 = vunpack.c.h.b16 %v7154
      %v7344 = vunpack.c.l.b16 %v7155
      %v7345 = vunpack.c.h.b16 %v7155
      %v7346 = vunpack.c.l.b16 %v7156
      %v7347 = vunpack.c.h.b16 %v7156
      %v7348 = vunpack.c.l.b16 %v7157
      %v7349 = vunpack.c.h.b16 %v7157
      %v7350 = vpack.c.b16 %v7226, %v7222
      %v7351 = vpack.c.b16 %v7227, %v7223
      %v7352 = vpack.c.b16 %v7228, %v7224
      %v7353 = vpack.c.b16 %v7229, %v7225
      %v7354 = vpack.c.b16 %v7234, %v7230
      %v7355 = vpack.c.b16 %v7235, %v7231
      %v7356 = vpack.c.b16 %v7236, %v7232
      %v7357 = vpack.c.b16 %v7237, %v7233
      %v7358 = vpack.c.b16 %v7242, %v7238
      %v7359 = vpack.c.b16 %v7243, %v7239
      %v7360 = vpack.c.b16 %v7244, %v7240
      %v7361 = vpack.c.b16 %v7245, %v7241
      %v7362 = vpack.c.b16 %v7250, %v7246
      %v7363 = vpack.c.b16 %v7251, %v7247
      %v7364 = vpack.c.b16 %v7252, %v7248
      %v7365 = vpack.c.b16 %v7253, %v7249
      %v7366 = vpack.c.b16 %v7258, %v7254
      %v7367 = vpack.c.b16 %v7259, %v7255
      %v7368 = vpack.c.b16 %v7260, %v7256
      %v7369 = vpack.c.b16 %v7261, %v7257
      %v7370 = vpack.c.b16 %v7266, %v7262
      %v7371 = vpack.c.b16 %v7267, %v7263
      %v7372 = vpack.c.b16 %v7268, %v7264
      %v7373 = vpack.c.b16 %v7269, %v7265
      %v7374 = vpack.c.b16 %v7274, %v7270
      %v7375 = vpack.c.b16 %v7275, %v7271
      %v7376 = vpack.c.b16 %v7276, %v7272
      %v7377 = vpack.c.b16 %v7277, %v7273
      %v7378 = vpack.c.b16 %v7282, %v7278
      %v7379 = vpack.c.b16 %v7283, %v7279
      %v7380 = vpack.c.b16 %v7284, %v7280
      %v7381 = vpack.c.b16 %v7285, %v7281
      %v7382 = vpack.c.b16 %v7290, %v7286
      %v7383 = vpack.c.b16 %v7291, %v7287
      %v7384 = vpack.c.b16 %v7292, %v7288
      %v7385 = vpack.c.b16 %v7293, %v7289
      %v7386 = vpack.c.b16 %v7298, %v7294
      %v7387 = vpack.c.b16 %v7299, %v7295
      %v7388 = vpack.c.b16 %v7300, %v7296
      %v7389 = vpack.c.b16 %v7301, %v7297
      %v7390 = vpack.c.b16 %v7306, %v7302
      %v7391 = vpack.c.b16 %v7307, %v7303
      %v7392 = vpack.c.b16 %v7308, %v7304
      %v7393 = vpack.c.b16 %v7309, %v7305
      %v7394 = vpack.c.b16 %v7314, %v7310
      %v7395 = vpack.c.b16 %v7315, %v7311
      %v7396 = vpack.c.b16 %v7316, %v7312
      %v7397 = vpack.c.b16 %v7317, %v7313
      %v7398 = vpack.c.b16 %v7322, %v7318
      %v7399 = vpack.c.b16 %v7323, %v7319
      %v7400 = vpack.c.b16 %v7324, %v7320
      %v7401 = vpack.c.b16 %v7325, %v7321
      %v7402 = vpack.c.b16 %v7330, %v7326
      %v7403 = vpack.c.b16 %v7331, %v7327
      %v7404 = vpack.c.b16 %v7332, %v7328
      %v7405 = vpack.c.b16 %v7333, %v7329
      %v7406 = vpack.c.b16 %v7338, %v7334
      %v7407 = vpack.c.b16 %v7339, %v7335
      %v7408 = vpack.c.b16 %v7340, %v7336
      %v7409 = vpack.c.b16 %v7341, %v7337
      %v7410 = vpack.c.b16 %v7346, %v7342
      %v7411 = vpack.c.b16 %v7347, %v7343
      %v7412 = vpack.c.b16 %v7348, %v7344
      %v7413 = vpack.c.b16 %v7349, %v7345
      %7478 = vmatprep.subr.bf16.mxu0 %v7351
      %7479 = vmatpush1.bf16.msra.mxu0 %v7350
      %7480 = vmatprep.subr.bf16.mxu0 %v7355
      %7481 = vmatpush1.bf16.msra.mxu0 %v7354
      %7482 = vmatprep.subr.bf16.mxu0 %v7359
      %7483 = vmatpush1.bf16.msra.mxu0 %v7358
      %7484 = vmatprep.subr.bf16.mxu0 %v7363
      %7485 = vmatpush1.bf16.msra.mxu0 %v7362
      %7486 = vmatprep.subr.bf16.mxu0 %v7367
      %7487 = vmatpush1.bf16.msra.mxu0 %v7366
      %7488 = vmatprep.subr.bf16.mxu0 %v7371
      %7489 = vmatpush1.bf16.msra.mxu0 %v7370
      %7490 = vmatprep.subr.bf16.mxu0 %v7375
      %7491 = vmatpush1.bf16.msra.mxu0 %v7374
      %7492 = vmatprep.subr.bf16.mxu0 %v7379
      %7493 = vmatpush1.bf16.msra.mxu0 %v7378
      %7494 = vmatprep.subr.bf16.mxu0 %v7383
      %7495 = vmatpush1.bf16.msra.mxu0 %v7382
      %7496 = vmatprep.subr.bf16.mxu0 %v7387
      %7497 = vmatpush1.bf16.msra.mxu0 %v7386
      %7498 = vmatprep.subr.bf16.mxu0 %v7391
      %7499 = vmatpush1.bf16.msra.mxu0 %v7390
      %7500 = vmatprep.subr.bf16.mxu0 %v7395
      %7501 = vmatpush1.bf16.msra.mxu0 %v7394
      %7502 = vmatprep.subr.bf16.mxu0 %v7399
      %7503 = vmatpush1.bf16.msra.mxu0 %v7398
      %7504 = vmatprep.subr.bf16.mxu0 %v7403
      %7505 = vmatpush1.bf16.msra.mxu0 %v7402
      %7506 = vmatprep.subr.bf16.mxu0 %v7407
      %7507 = vmatpush1.bf16.msra.mxu0 %v7406
      %7508 = vmatprep.subr.bf16.mxu0 %v7411
      %7509 = vmatpush1.bf16.msra.mxu0 %v7410
      %7510 = vmatprep.mubr.bf16.mxu0 %v7092
      %7511 = vmatmul.mubr.bf16.gmra.mrb[0].mxu0 %v7091
      %v7512 = vpop.f32.mrb[0].mxu0
      %v7513 = vadd.f32 0.0, %v7512
      %v7514 = vpop.f32.mrb[0].mxu0
      %v7515 = vadd.f32 0.0, %v7514
      %v7516 = vpop.f32.mrb[0].mxu0
      %v7517 = vpop.f32.mrb[0].mxu0
      %7518 = vdwg.mxu0
      %7519 = vmatprep.subr.bf16.mxu0 %v7353
      %7520 = vmatpush1.bf16.msra.mxu0 %v7352
      %7521 = vmatprep.subr.bf16.mxu0 %v7357
      %7522 = vmatpush1.bf16.msra.mxu0 %v7356
      %7523 = vmatprep.subr.bf16.mxu0 %v7361
      %7524 = vmatpush1.bf16.msra.mxu0 %v7360
      %7525 = vmatprep.subr.bf16.mxu0 %v7365
      %7526 = vmatpush1.bf16.msra.mxu0 %v7364
      %7527 = vmatprep.subr.bf16.mxu0 %v7369
      %7528 = vmatpush1.bf16.msra.mxu0 %v7368
      %7529 = vmatprep.subr.bf16.mxu0 %v7373
      %7530 = vmatpush1.bf16.msra.mxu0 %v7372
      %7531 = vmatprep.subr.bf16.mxu0 %v7377
      %7532 = vmatpush1.bf16.msra.mxu0 %v7376
      %7533 = vmatprep.subr.bf16.mxu0 %v7381
      %7534 = vmatpush1.bf16.msra.mxu0 %v7380
      %7535 = vmatprep.subr.bf16.mxu0 %v7385
      %7536 = vmatpush1.bf16.msra.mxu0 %v7384
      %7537 = vmatprep.subr.bf16.mxu0 %v7389
      %7538 = vmatpush1.bf16.msra.mxu0 %v7388
      %7539 = vmatprep.subr.bf16.mxu0 %v7393
      %7540 = vmatpush1.bf16.msra.mxu0 %v7392
      %7541 = vmatprep.subr.bf16.mxu0 %v7397
      %7542 = vmatpush1.bf16.msra.mxu0 %v7396
      %7543 = vmatprep.subr.bf16.mxu0 %v7401
      %7544 = vmatpush1.bf16.msra.mxu0 %v7400
      %7545 = vmatprep.subr.bf16.mxu0 %v7405
      %7546 = vmatpush1.bf16.msra.mxu0 %v7404
      %7547 = vmatprep.subr.bf16.mxu0 %v7409
      %7548 = vmatpush1.bf16.msra.mxu0 %v7408
      %7549 = vmatprep.subr.bf16.mxu0 %v7413
      %7550 = vmatpush1.bf16.msra.mxu0 %v7412
      %7551 = vmatprep.mubr.bf16.mxu0 %v7092
      %7552 = vmatmul.mubr.bf16.gmra.mrb[0].mxu0 %v7091
      %v7553 = vpop.f32.mrb[0].mxu0
      %v7554 = vadd.f32 0.0, %v7553
      %v7555 = vpop.f32.mrb[0].mxu0
      %v7556 = vadd.f32 0.0, %v7555
      %v7557 = vpop.f32.mrb[0].mxu0
      %v7558 = vpop.f32.mrb[0].mxu0
      %7559 = vdwg.mxu0
      %v7564 = vcombine.low %v7513, %v7515
      %v7565 = vcombine.low %v7554, %v7556
      %v7567 = vunpack.c.l.s4 1966171168
      %v7568 = vunpack.c.0.s8 %v7567
      %v7569 = vlaneseq
      %v7570 = vshrl.u32 %v7569, 7
      %v7571 = vsub.s32 %v7568, %v7570
      %v7572 = vrot.slane %v7564, %v7571
      %v7574 = vunpack.c.l.s4 1966171168
      %v7575 = vunpack.c.0.s8 %v7574
      %v7576 = vlaneseq
      %v7577 = vshrl.u32 %v7576, 7
      %v7578 = vsub.s32 %v7575, %v7577
      %v7579 = vrot.slane %v7565, %v7578
      %v7580 = vcombine.low %v7572, %v7579
      %v7582 = vunpack.c.l.s4 1966171168
      %v7583 = vunpack.c.0.s8 %v7582
      %v7584 = vlaneseq
      %v7585 = vshrl.u32 %v7584, 7
      %v7586 = vsub.s32 %v7583, %v7585
      %v7587 = vrot.slane %v7580, %v7586
      %v7589 = vadd.f32 %v7044, %v7587
      %s7590 = scalar_lea.vmem %s4, 4
      %v7591 = vld [vmem:[%s7590] sm:$0x1]
      %v7593 = vsel %vm5406, %v7591, 0
      %7595 = vmatprep.subr.bf16.mxu0 %v5414
      %7596 = vmatpush1.bf16.msra.mxu0 %v5411
      %7597 = vmatprep.subr.bf16.mxu0 0
      %7598 = vmatpush1.bf16.msra.mxu0 0
      %7599 = vmatprep.subr.bf16.mxu0 0
      %7600 = vmatpush1.bf16.msra.mxu0 0
      %7601 = vmatprep.subr.bf16.mxu0 0
      %7602 = vmatpush1.bf16.msra.mxu0 0
      %7603 = vmatprep.subr.bf16.mxu0 0
      %7604 = vmatpush1.bf16.msra.mxu0 0
      %7605 = vmatprep.subr.bf16.mxu0 0
      %7606 = vmatpush1.bf16.msra.mxu0 0
      %7607 = vmatprep.subr.bf16.mxu0 0
      %7608 = vmatpush1.bf16.msra.mxu0 0
      %7609 = vmatprep.subr.bf16.mxu0 0
      %7610 = vmatpush1.bf16.msra.mxu0 0
      %7611 = vmatprep.subr.bf16.mxu0 0
      %7612 = vmatpush1.bf16.msra.mxu0 0
      %7613 = vmatprep.subr.bf16.mxu0 0
      %7614 = vmatpush1.bf16.msra.mxu0 0
      %7615 = vmatprep.subr.bf16.mxu0 0
      %7616 = vmatpush1.bf16.msra.mxu0 0
      %7617 = vmatprep.subr.bf16.mxu0 0
      %7618 = vmatpush1.bf16.msra.mxu0 0
      %7619 = vmatprep.subr.bf16.mxu0 0
      %7620 = vmatpush1.bf16.msra.mxu0 0
      %7621 = vmatprep.subr.bf16.mxu0 0
      %7622 = vmatpush1.bf16.msra.mxu0 0
      %7623 = vmatprep.subr.bf16.mxu0 0
      %7624 = vmatpush1.bf16.msra.mxu0 0
      %7625 = vmatprep.subr.bf16.mxu0 0
      %7626 = vmatpush1.bf16.msra.mxu0 0
      %7627 = vmatprep.mubr.bf16.mxu0 0
      %7628 = vmatmul.mubr.bf16.gmra.mrb[0].mxu0 %v7593
      %v7629 = vpop.f32.mrb[0].mxu0
      %v7630 = vadd.f32 0.0, %v7629
      %v7631 = vpop.f32.mrb[0].mxu0
      %v7632 = vadd.f32 0.0, %v7631
      %v7633 = vpop.f32.mrb[0].mxu0
      %v7634 = vpop.f32.mrb[0].mxu0
      %7635 = vdwg.mxu0
      %v7636 = vpack.c.bf16 %v7630, %v7630
      %v7637 = vpack.c.bf16 %v7632, %v7632
      %s7638 = scalar_lea.vmem %s8, 2048
      %v7639 = vld [vmem:[%s7638] sm:$0xff]
      %v7640 = vld [vmem:[%s7638 + $0x8] sm:$0xff]
      %v7641 = vld [vmem:[%s7638 + $0x10] sm:$0xff]
      %v7642 = vld [vmem:[%s7638 + $0x18] sm:$0xff]
      %v7643 = vld [vmem:[%s7638 + $0x20] sm:$0xff]
      %v7644 = vld [vmem:[%s7638 + $0x28] sm:$0xff]
      %v7645 = vld [vmem:[%s7638 + $0x30] sm:$0xff]
      %v7646 = vld [vmem:[%s7638 + $0x38] sm:$0xff]
      %v7647 = vld [vmem:[%s7638 + $0x40] sm:$0xff]
      %v7648 = vld [vmem:[%s7638 + $0x48] sm:$0xff]
      %v7649 = vld [vmem:[%s7638 + $0x50] sm:$0xff]
      %v7650 = vld [vmem:[%s7638 + $0x58] sm:$0xff]
      %v7651 = vld [vmem:[%s7638 + $0x60] sm:$0xff]
      %v7652 = vld [vmem:[%s7638 + $0x68] sm:$0xff]
      %v7653 = vld [vmem:[%s7638 + $0x70] sm:$0xff]
      %v7654 = vld [vmem:[%s7638 + $0x78] sm:$0xff]
      %v7655 = vld [vmem:[%s7638 + $0x80] sm:$0xff]
      %v7656 = vld [vmem:[%s7638 + $0x88] sm:$0xff]
      %v7657 = vld [vmem:[%s7638 + $0x90] sm:$0xff]
      %v7658 = vld [vmem:[%s7638 + $0x98] sm:$0xff]
      %v7659 = vld [vmem:[%s7638 + $0xa0] sm:$0xff]
      %v7660 = vld [vmem:[%s7638 + $0xa8] sm:$0xff]
      %v7661 = vld [vmem:[%s7638 + $0xb0] sm:$0xff]
      %v7662 = vld [vmem:[%s7638 + $0xb8] sm:$0xff]
      %v7663 = vld [vmem:[%s7638 + $0xc0] sm:$0xff]
      %v7664 = vld [vmem:[%s7638 + $0xc8] sm:$0xff]
      %v7665 = vld [vmem:[%s7638 + $0xd0] sm:$0xff]
      %v7666 = vld [vmem:[%s7638 + $0xd8] sm:$0xff]
      %v7667 = vld [vmem:[%s7638 + $0xe0] sm:$0xff]
      %v7668 = vld [vmem:[%s7638 + $0xe8] sm:$0xff]
      %v7669 = vld [vmem:[%s7638 + $0xf0] sm:$0xff]
      %v7670 = vld [vmem:[%s7638 + $0xf8] sm:$0xff]
      %v7671 = vld [vmem:[%s7638 + $0x100] sm:$0xff]
      %v7672 = vld [vmem:[%s7638 + $0x108] sm:$0xff]
      %v7673 = vld [vmem:[%s7638 + $0x110] sm:$0xff]
      %v7674 = vld [vmem:[%s7638 + $0x118] sm:$0xff]
      %v7675 = vld [vmem:[%s7638 + $0x120] sm:$0xff]
      %v7676 = vld [vmem:[%s7638 + $0x128] sm:$0xff]
      %v7677 = vld [vmem:[%s7638 + $0x130] sm:$0xff]
      %v7678 = vld [vmem:[%s7638 + $0x138] sm:$0xff]
      %v7679 = vld [vmem:[%s7638 + $0x140] sm:$0xff]
      %v7680 = vld [vmem:[%s7638 + $0x148] sm:$0xff]
      %v7681 = vld [vmem:[%s7638 + $0x150] sm:$0xff]
      %v7682 = vld [vmem:[%s7638 + $0x158] sm:$0xff]
      %v7683 = vld [vmem:[%s7638 + $0x160] sm:$0xff]
      %v7684 = vld [vmem:[%s7638 + $0x168] sm:$0xff]
      %v7685 = vld [vmem:[%s7638 + $0x170] sm:$0xff]
      %v7686 = vld [vmem:[%s7638 + $0x178] sm:$0xff]
      %v7687 = vld [vmem:[%s7638 + $0x180] sm:$0xff]
      %v7688 = vld [vmem:[%s7638 + $0x188] sm:$0xff]
      %v7689 = vld [vmem:[%s7638 + $0x190] sm:$0xff]
      %v7690 = vld [vmem:[%s7638 + $0x198] sm:$0xff]
      %v7691 = vld [vmem:[%s7638 + $0x1a0] sm:$0xff]
      %v7692 = vld [vmem:[%s7638 + $0x1a8] sm:$0xff]
      %v7693 = vld [vmem:[%s7638 + $0x1b0] sm:$0xff]
      %v7694 = vld [vmem:[%s7638 + $0x1b8] sm:$0xff]
      %v7695 = vld [vmem:[%s7638 + $0x1c0] sm:$0xff]
      %v7696 = vld [vmem:[%s7638 + $0x1c8] sm:$0xff]
      %v7697 = vld [vmem:[%s7638 + $0x1d0] sm:$0xff]
      %v7698 = vld [vmem:[%s7638 + $0x1d8] sm:$0xff]
      %v7699 = vld [vmem:[%s7638 + $0x1e0] sm:$0xff]
      %v7700 = vld [vmem:[%s7638 + $0x1e8] sm:$0xff]
      %v7701 = vld [vmem:[%s7638 + $0x1f0] sm:$0xff]
      %v7702 = vld [vmem:[%s7638 + $0x1f8] sm:$0xff]
      %v7767 = vunpack.c.l.b16 %v7639
      %v7768 = vunpack.c.h.b16 %v7639
      %v7769 = vunpack.c.l.b16 %v7640
      %v7770 = vunpack.c.h.b16 %v7640
      %v7771 = vunpack.c.l.b16 %v7641
      %v7772 = vunpack.c.h.b16 %v7641
      %v7773 = vunpack.c.l.b16 %v7642
      %v7774 = vunpack.c.h.b16 %v7642
      %v7775 = vunpack.c.l.b16 %v7643
      %v7776 = vunpack.c.h.b16 %v7643
      %v7777 = vunpack.c.l.b16 %v7644
      %v7778 = vunpack.c.h.b16 %v7644
      %v7779 = vunpack.c.l.b16 %v7645
      %v7780 = vunpack.c.h.b16 %v7645
      %v7781 = vunpack.c.l.b16 %v7646
      %v7782 = vunpack.c.h.b16 %v7646
      %v7783 = vunpack.c.l.b16 %v7647
      %v7784 = vunpack.c.h.b16 %v7647
      %v7785 = vunpack.c.l.b16 %v7648
      %v7786 = vunpack.c.h.b16 %v7648
      %v7787 = vunpack.c.l.b16 %v7649
      %v7788 = vunpack.c.h.b16 %v7649
      %v7789 = vunpack.c.l.b16 %v7650
      %v7790 = vunpack.c.h.b16 %v7650
      %v7791 = vunpack.c.l.b16 %v7651
      %v7792 = vunpack.c.h.b16 %v7651
      %v7793 = vunpack.c.l.b16 %v7652
      %v7794 = vunpack.c.h.b16 %v7652
      %v7795 = vunpack.c.l.b16 %v7653
      %v7796 = vunpack.c.h.b16 %v7653
      %v7797 = vunpack.c.l.b16 %v7654
      %v7798 = vunpack.c.h.b16 %v7654
      %v7799 = vunpack.c.l.b16 %v7655
      %v7800 = vunpack.c.h.b16 %v7655
      %v7801 = vunpack.c.l.b16 %v7656
      %v7802 = vunpack.c.h.b16 %v7656
      %v7803 = vunpack.c.l.b16 %v7657
      %v7804 = vunpack.c.h.b16 %v7657
      %v7805 = vunpack.c.l.b16 %v7658
      %v7806 = vunpack.c.h.b16 %v7658
      %v7807 = vunpack.c.l.b16 %v7659
      %v7808 = vunpack.c.h.b16 %v7659
      %v7809 = vunpack.c.l.b16 %v7660
      %v7810 = vunpack.c.h.b16 %v7660
      %v7811 = vunpack.c.l.b16 %v7661
      %v7812 = vunpack.c.h.b16 %v7661
      %v7813 = vunpack.c.l.b16 %v7662
      %v7814 = vunpack.c.h.b16 %v7662
      %v7815 = vunpack.c.l.b16 %v7663
      %v7816 = vunpack.c.h.b16 %v7663
      %v7817 = vunpack.c.l.b16 %v7664
      %v7818 = vunpack.c.h.b16 %v7664
      %v7819 = vunpack.c.l.b16 %v7665
      %v7820 = vunpack.c.h.b16 %v7665
      %v7821 = vunpack.c.l.b16 %v7666
      %v7822 = vunpack.c.h.b16 %v7666
      %v7823 = vunpack.c.l.b16 %v7667
      %v7824 = vunpack.c.h.b16 %v7667
      %v7825 = vunpack.c.l.b16 %v7668
      %v7826 = vunpack.c.h.b16 %v7668
      %v7827 = vunpack.c.l.b16 %v7669
      %v7828 = vunpack.c.h.b16 %v7669
      %v7829 = vunpack.c.l.b16 %v7670
      %v7830 = vunpack.c.h.b16 %v7670
      %v7831 = vunpack.c.l.b16 %v7671
      %v7832 = vunpack.c.h.b16 %v7671
      %v7833 = vunpack.c.l.b16 %v7672
      %v7834 = vunpack.c.h.b16 %v7672
      %v7835 = vunpack.c.l.b16 %v7673
      %v7836 = vunpack.c.h.b16 %v7673
      %v7837 = vunpack.c.l.b16 %v7674
      %v7838 = vunpack.c.h.b16 %v7674
      %v7839 = vunpack.c.l.b16 %v7675
      %v7840 = vunpack.c.h.b16 %v7675
      %v7841 = vunpack.c.l.b16 %v7676
      %v7842 = vunpack.c.h.b16 %v7676
      %v7843 = vunpack.c.l.b16 %v7677
      %v7844 = vunpack.c.h.b16 %v7677
      %v7845 = vunpack.c.l.b16 %v7678
      %v7846 = vunpack.c.h.b16 %v7678
      %v7847 = vunpack.c.l.b16 %v7679
      %v7848 = vunpack.c.h.b16 %v7679
      %v7849 = vunpack.c.l.b16 %v7680
      %v7850 = vunpack.c.h.b16 %v7680
      %v7851 = vunpack.c.l.b16 %v7681
      %v7852 = vunpack.c.h.b16 %v7681
      %v7853 = vunpack.c.l.b16 %v7682
      %v7854 = vunpack.c.h.b16 %v7682
      %v7855 = vunpack.c.l.b16 %v7683
      %v7856 = vunpack.c.h.b16 %v7683
      %v7857 = vunpack.c.l.b16 %v7684
      %v7858 = vunpack.c.h.b16 %v7684
      %v7859 = vunpack.c.l.b16 %v7685
      %v7860 = vunpack.c.h.b16 %v7685
      %v7861 = vunpack.c.l.b16 %v7686
      %v7862 = vunpack.c.h.b16 %v7686
      %v7863 = vunpack.c.l.b16 %v7687
      %v7864 = vunpack.c.h.b16 %v7687
      %v7865 = vunpack.c.l.b16 %v7688
      %v7866 = vunpack.c.h.b16 %v7688
      %v7867 = vunpack.c.l.b16 %v7689
      %v7868 = vunpack.c.h.b16 %v7689
      %v7869 = vunpack.c.l.b16 %v7690
      %v7870 = vunpack.c.h.b16 %v7690
      %v7871 = vunpack.c.l.b16 %v7691
      %v7872 = vunpack.c.h.b16 %v7691
      %v7873 = vunpack.c.l.b16 %v7692
      %v7874 = vunpack.c.h.b16 %v7692
      %v7875 = vunpack.c.l.b16 %v7693
      %v7876 = vunpack.c.h.b16 %v7693
      %v7877 = vunpack.c.l.b16 %v7694
      %v7878 = vunpack.c.h.b16 %v7694
      %v7879 = vunpack.c.l.b16 %v7695
      %v7880 = vunpack.c.h.b16 %v7695
      %v7881 = vunpack.c.l.b16 %v7696
      %v7882 = vunpack.c.h.b16 %v7696
      %v7883 = vunpack.c.l.b16 %v7697
      %v7884 = vunpack.c.h.b16 %v7697
      %v7885 = vunpack.c.l.b16 %v7698
      %v7886 = vunpack.c.h.b16 %v7698
      %v7887 = vunpack.c.l.b16 %v7699
      %v7888 = vunpack.c.h.b16 %v7699
      %v7889 = vunpack.c.l.b16 %v7700
      %v7890 = vunpack.c.h.b16 %v7700
      %v7891 = vunpack.c.l.b16 %v7701
      %v7892 = vunpack.c.h.b16 %v7701
      %v7893 = vunpack.c.l.b16 %v7702
      %v7894 = vunpack.c.h.b16 %v7702
      %v7895 = vpack.c.b16 %v7771, %v7767
      %v7896 = vpack.c.b16 %v7772, %v7768
      %v7897 = vpack.c.b16 %v7773, %v7769
      %v7898 = vpack.c.b16 %v7774, %v7770
      %v7899 = vpack.c.b16 %v7779, %v7775
      %v7900 = vpack.c.b16 %v7780, %v7776
      %v7901 = vpack.c.b16 %v7781, %v7777
      %v7902 = vpack.c.b16 %v7782, %v7778
      %v7903 = vpack.c.b16 %v7787, %v7783
      %v7904 = vpack.c.b16 %v7788, %v7784
      %v7905 = vpack.c.b16 %v7789, %v7785
      %v7906 = vpack.c.b16 %v7790, %v7786
      %v7907 = vpack.c.b16 %v7795, %v7791
      %v7908 = vpack.c.b16 %v7796, %v7792
      %v7909 = vpack.c.b16 %v7797, %v7793
      %v7910 = vpack.c.b16 %v7798, %v7794
      %v7911 = vpack.c.b16 %v7803, %v7799
      %v7912 = vpack.c.b16 %v7804, %v7800
      %v7913 = vpack.c.b16 %v7805, %v7801
      %v7914 = vpack.c.b16 %v7806, %v7802
      %v7915 = vpack.c.b16 %v7811, %v7807
      %v7916 = vpack.c.b16 %v7812, %v7808
      %v7917 = vpack.c.b16 %v7813, %v7809
      %v7918 = vpack.c.b16 %v7814, %v7810
      %v7919 = vpack.c.b16 %v7819, %v7815
      %v7920 = vpack.c.b16 %v7820, %v7816
      %v7921 = vpack.c.b16 %v7821, %v7817
      %v7922 = vpack.c.b16 %v7822, %v7818
      %v7923 = vpack.c.b16 %v7827, %v7823
      %v7924 = vpack.c.b16 %v7828, %v7824
      %v7925 = vpack.c.b16 %v7829, %v7825
      %v7926 = vpack.c.b16 %v7830, %v7826
      %v7927 = vpack.c.b16 %v7835, %v7831
      %v7928 = vpack.c.b16 %v7836, %v7832
      %v7929 = vpack.c.b16 %v7837, %v7833
      %v7930 = vpack.c.b16 %v7838, %v7834
      %v7931 = vpack.c.b16 %v7843, %v7839
      %v7932 = vpack.c.b16 %v7844, %v7840
      %v7933 = vpack.c.b16 %v7845, %v7841
      %v7934 = vpack.c.b16 %v7846, %v7842
      %v7935 = vpack.c.b16 %v7851, %v7847
      %v7936 = vpack.c.b16 %v7852, %v7848
      %v7937 = vpack.c.b16 %v7853, %v7849
      %v7938 = vpack.c.b16 %v7854, %v7850
      %v7939 = vpack.c.b16 %v7859, %v7855
      %v7940 = vpack.c.b16 %v7860, %v7856
      %v7941 = vpack.c.b16 %v7861, %v7857
      %v7942 = vpack.c.b16 %v7862, %v7858
      %v7943 = vpack.c.b16 %v7867, %v7863
      %v7944 = vpack.c.b16 %v7868, %v7864
      %v7945 = vpack.c.b16 %v7869, %v7865
      %v7946 = vpack.c.b16 %v7870, %v7866
      %v7947 = vpack.c.b16 %v7875, %v7871
      %v7948 = vpack.c.b16 %v7876, %v7872
      %v7949 = vpack.c.b16 %v7877, %v7873
      %v7950 = vpack.c.b16 %v7878, %v7874
      %v7951 = vpack.c.b16 %v7883, %v7879
      %v7952 = vpack.c.b16 %v7884, %v7880
      %v7953 = vpack.c.b16 %v7885, %v7881
      %v7954 = vpack.c.b16 %v7886, %v7882
      %v7955 = vpack.c.b16 %v7891, %v7887
      %v7956 = vpack.c.b16 %v7892, %v7888
      %v7957 = vpack.c.b16 %v7893, %v7889
      %v7958 = vpack.c.b16 %v7894, %v7890
      %8023 = vmatprep.subr.bf16.mxu0 %v7896
      %8024 = vmatpush1.bf16.msra.mxu0 %v7895
      %8025 = vmatprep.subr.bf16.mxu0 %v7900
      %8026 = vmatpush1.bf16.msra.mxu0 %v7899
      %8027 = vmatprep.subr.bf16.mxu0 %v7904
      %8028 = vmatpush1.bf16.msra.mxu0 %v7903
      %8029 = vmatprep.subr.bf16.mxu0 %v7908
      %8030 = vmatpush1.bf16.msra.mxu0 %v7907
      %8031 = vmatprep.subr.bf16.mxu0 %v7912
      %8032 = vmatpush1.bf16.msra.mxu0 %v7911
      %8033 = vmatprep.subr.bf16.mxu0 %v7916
      %8034 = vmatpush1.bf16.msra.mxu0 %v7915
      %8035 = vmatprep.subr.bf16.mxu0 %v7920
      %8036 = vmatpush1.bf16.msra.mxu0 %v7919
      %8037 = vmatprep.subr.bf16.mxu0 %v7924
      %8038 = vmatpush1.bf16.msra.mxu0 %v7923
      %8039 = vmatprep.subr.bf16.mxu0 %v7928
      %8040 = vmatpush1.bf16.msra.mxu0 %v7927
      %8041 = vmatprep.subr.bf16.mxu0 %v7932
      %8042 = vmatpush1.bf16.msra.mxu0 %v7931
      %8043 = vmatprep.subr.bf16.mxu0 %v7936
      %8044 = vmatpush1.bf16.msra.mxu0 %v7935
      %8045 = vmatprep.subr.bf16.mxu0 %v7940
      %8046 = vmatpush1.bf16.msra.mxu0 %v7939
      %8047 = vmatprep.subr.bf16.mxu0 %v7944
      %8048 = vmatpush1.bf16.msra.mxu0 %v7943
      %8049 = vmatprep.subr.bf16.mxu0 %v7948
      %8050 = vmatpush1.bf16.msra.mxu0 %v7947
      %8051 = vmatprep.subr.bf16.mxu0 %v7952
      %8052 = vmatpush1.bf16.msra.mxu0 %v7951
      %8053 = vmatprep.subr.bf16.mxu0 %v7956
      %8054 = vmatpush1.bf16.msra.mxu0 %v7955
      %8055 = vmatprep.mubr.bf16.mxu0 %v7637
      %8056 = vmatmul.mubr.bf16.gmra.mrb[0].mxu0 %v7636
      %v8057 = vpop.f32.mrb[0].mxu0
      %v8058 = vadd.f32 0.0, %v8057
      %v8059 = vpop.f32.mrb[0].mxu0
      %v8060 = vadd.f32 0.0, %v8059
      %v8061 = vpop.f32.mrb[0].mxu0
      %v8062 = vpop.f32.mrb[0].mxu0
      %8063 = vdwg.mxu0
      %8064 = vmatprep.subr.bf16.mxu0 %v7898
      %8065 = vmatpush1.bf16.msra.mxu0 %v7897
      %8066 = vmatprep.subr.bf16.mxu0 %v7902
      %8067 = vmatpush1.bf16.msra.mxu0 %v7901
      %8068 = vmatprep.subr.bf16.mxu0 %v7906
      %8069 = vmatpush1.bf16.msra.mxu0 %v7905
      %8070 = vmatprep.subr.bf16.mxu0 %v7910
      %8071 = vmatpush1.bf16.msra.mxu0 %v7909
      %8072 = vmatprep.subr.bf16.mxu0 %v7914
      %8073 = vmatpush1.bf16.msra.mxu0 %v7913
      %8074 = vmatprep.subr.bf16.mxu0 %v7918
      %8075 = vmatpush1.bf16.msra.mxu0 %v7917
      %8076 = vmatprep.subr.bf16.mxu0 %v7922
      %8077 = vmatpush1.bf16.msra.mxu0 %v7921
      %8078 = vmatprep.subr.bf16.mxu0 %v7926
      %8079 = vmatpush1.bf16.msra.mxu0 %v7925
      %8080 = vmatprep.subr.bf16.mxu0 %v7930
      %8081 = vmatpush1.bf16.msra.mxu0 %v7929
      %8082 = vmatprep.subr.bf16.mxu0 %v7934
      %8083 = vmatpush1.bf16.msra.mxu0 %v7933
      %8084 = vmatprep.subr.bf16.mxu0 %v7938
      %8085 = vmatpush1.bf16.msra.mxu0 %v7937
      %8086 = vmatprep.subr.bf16.mxu0 %v7942
      %8087 = vmatpush1.bf16.msra.mxu0 %v7941
      %8088 = vmatprep.subr.bf16.mxu0 %v7946
      %8089 = vmatpush1.bf16.msra.mxu0 %v7945
      %8090 = vmatprep.subr.bf16.mxu0 %v7950
      %8091 = vmatpush1.bf16.msra.mxu0 %v7949
      %8092 = vmatprep.subr.bf16.mxu0 %v7954
      %8093 = vmatpush1.bf16.msra.mxu0 %v7953
      %8094 = vmatprep.subr.bf16.mxu0 %v7958
      %8095 = vmatpush1.bf16.msra.mxu0 %v7957
      %8096 = vmatprep.mubr.bf16.mxu0 %v7637
      %8097 = vmatmul.mubr.bf16.gmra.mrb[0].mxu0 %v7636
      %v8098 = vpop.f32.mrb[0].mxu0
      %v8099 = vadd.f32 0.0, %v8098
      %v8100 = vpop.f32.mrb[0].mxu0
      %v8101 = vadd.f32 0.0, %v8100
      %v8102 = vpop.f32.mrb[0].mxu0
      %v8103 = vpop.f32.mrb[0].mxu0
      %8104 = vdwg.mxu0
      %v8109 = vcombine.low %v8058, %v8060
      %v8110 = vcombine.low %v8099, %v8101
      %v8112 = vunpack.c.l.s4 1966171168
      %v8113 = vunpack.c.0.s8 %v8112
      %v8114 = vlaneseq
      %v8115 = vshrl.u32 %v8114, 7
      %v8116 = vsub.s32 %v8113, %v8115
      %v8117 = vrot.slane %v8109, %v8116
      %v8119 = vunpack.c.l.s4 1966171168
      %v8120 = vunpack.c.0.s8 %v8119
      %v8121 = vlaneseq
      %v8122 = vshrl.u32 %v8121, 7
      %v8123 = vsub.s32 %v8120, %v8122
      %v8124 = vrot.slane %v8110, %v8123
      %v8125 = vcombine.low %v8117, %v8124
      %v8127 = vunpack.c.l.s4 1966171168
      %v8128 = vunpack.c.0.s8 %v8127
      %v8129 = vlaneseq
      %v8130 = vshrl.u32 %v8129, 7
      %v8131 = vsub.s32 %v8128, %v8130
      %v8132 = vrot.slane %v8125, %v8131
      %v8134 = vadd.f32 %v7589, %v8132
      %s8135 = scalar_lea.vmem %s4, 5
      %v8136 = vld [vmem:[%s8135] sm:$0x1]
      %v8138 = vsel %vm5406, %v8136, 0
      %8140 = vmatprep.subr.bf16.mxu0 %v5414
      %8141 = vmatpush1.bf16.msra.mxu0 %v5411
      %8142 = vmatprep.subr.bf16.mxu0 0
      %8143 = vmatpush1.bf16.msra.mxu0 0
      %8144 = vmatprep.subr.bf16.mxu0 0
      %8145 = vmatpush1.bf16.msra.mxu0 0
      %8146 = vmatprep.subr.bf16.mxu0 0
      %8147 = vmatpush1.bf16.msra.mxu0 0
      %8148 = vmatprep.subr.bf16.mxu0 0
      %8149 = vmatpush1.bf16.msra.mxu0 0
      %8150 = vmatprep.subr.bf16.mxu0 0
      %8151 = vmatpush1.bf16.msra.mxu0 0
      %8152 = vmatprep.subr.bf16.mxu0 0
      %8153 = vmatpush1.bf16.msra.mxu0 0
      %8154 = vmatprep.subr.bf16.mxu0 0
      %8155 = vmatpush1.bf16.msra.mxu0 0
      %8156 = vmatprep.subr.bf16.mxu0 0
      %8157 = vmatpush1.bf16.msra.mxu0 0
      %8158 = vmatprep.subr.bf16.mxu0 0
      %8159 = vmatpush1.bf16.msra.mxu0 0
      %8160 = vmatprep.subr.bf16.mxu0 0
      %8161 = vmatpush1.bf16.msra.mxu0 0
      %8162 = vmatprep.subr.bf16.mxu0 0
      %8163 = vmatpush1.bf16.msra.mxu0 0
      %8164 = vmatprep.subr.bf16.mxu0 0
      %8165 = vmatpush1.bf16.msra.mxu0 0
      %8166 = vmatprep.subr.bf16.mxu0 0
      %8167 = vmatpush1.bf16.msra.mxu0 0
      %8168 = vmatprep.subr.bf16.mxu0 0
      %8169 = vmatpush1.bf16.msra.mxu0 0
      %8170 = vmatprep.subr.bf16.mxu0 0
      %8171 = vmatpush1.bf16.msra.mxu0 0
      %8172 = vmatprep.mubr.bf16.mxu0 0
      %8173 = vmatmul.mubr.bf16.gmra.mrb[0].mxu0 %v8138
      %v8174 = vpop.f32.mrb[0].mxu0
      %v8175 = vadd.f32 0.0, %v8174
      %v8176 = vpop.f32.mrb[0].mxu0
      %v8177 = vadd.f32 0.0, %v8176
      %v8178 = vpop.f32.mrb[0].mxu0
      %v8179 = vpop.f32.mrb[0].mxu0
      %8180 = vdwg.mxu0
      %v8181 = vpack.c.bf16 %v8175, %v8175
      %v8182 = vpack.c.bf16 %v8177, %v8177
      %s8183 = scalar_lea.vmem %s8, 2560
      %v8184 = vld [vmem:[%s8183] sm:$0xff]
      %v8185 = vld [vmem:[%s8183 + $0x8] sm:$0xff]
      %v8186 = vld [vmem:[%s8183 + $0x10] sm:$0xff]
      %v8187 = vld [vmem:[%s8183 + $0x18] sm:$0xff]
      %v8188 = vld [vmem:[%s8183 + $0x20] sm:$0xff]
      %v8189 = vld [vmem:[%s8183 + $0x28] sm:$0xff]
      %v8190 = vld [vmem:[%s8183 + $0x30] sm:$0xff]
      %v8191 = vld [vmem:[%s8183 + $0x38] sm:$0xff]
      %v8192 = vld [vmem:[%s8183 + $0x40] sm:$0xff]
      %v8193 = vld [vmem:[%s8183 + $0x48] sm:$0xff]
      %v8194 = vld [vmem:[%s8183 + $0x50] sm:$0xff]
      %v8195 = vld [vmem:[%s8183 + $0x58] sm:$0xff]
      %v8196 = vld [vmem:[%s8183 + $0x60] sm:$0xff]
      %v8197 = vld [vmem:[%s8183 + $0x68] sm:$0xff]
      %v8198 = vld [vmem:[%s8183 + $0x70] sm:$0xff]
      %v8199 = vld [vmem:[%s8183 + $0x78] sm:$0xff]
      %v8200 = vld [vmem:[%s8183 + $0x80] sm:$0xff]
      %v8201 = vld [vmem:[%s8183 + $0x88] sm:$0xff]
      %v8202 = vld [vmem:[%s8183 + $0x90] sm:$0xff]
      %v8203 = vld [vmem:[%s8183 + $0x98] sm:$0xff]
      %v8204 = vld [vmem:[%s8183 + $0xa0] sm:$0xff]
      %v8205 = vld [vmem:[%s8183 + $0xa8] sm:$0xff]
      %v8206 = vld [vmem:[%s8183 + $0xb0] sm:$0xff]
      %v8207 = vld [vmem:[%s8183 + $0xb8] sm:$0xff]
      %v8208 = vld [vmem:[%s8183 + $0xc0] sm:$0xff]
      %v8209 = vld [vmem:[%s8183 + $0xc8] sm:$0xff]
      %v8210 = vld [vmem:[%s8183 + $0xd0] sm:$0xff]
      %v8211 = vld [vmem:[%s8183 + $0xd8] sm:$0xff]
      %v8212 = vld [vmem:[%s8183 + $0xe0] sm:$0xff]
      %v8213 = vld [vmem:[%s8183 + $0xe8] sm:$0xff]
      %v8214 = vld [vmem:[%s8183 + $0xf0] sm:$0xff]
      %v8215 = vld [vmem:[%s8183 + $0xf8] sm:$0xff]
      %v8216 = vld [vmem:[%s8183 + $0x100] sm:$0xff]
      %v8217 = vld [vmem:[%s8183 + $0x108] sm:$0xff]
      %v8218 = vld [vmem:[%s8183 + $0x110] sm:$0xff]
      %v8219 = vld [vmem:[%s8183 + $0x118] sm:$0xff]
      %v8220 = vld [vmem:[%s8183 + $0x120] sm:$0xff]
      %v8221 = vld [vmem:[%s8183 + $0x128] sm:$0xff]
      %v8222 = vld [vmem:[%s8183 + $0x130] sm:$0xff]
      %v8223 = vld [vmem:[%s8183 + $0x138] sm:$0xff]
      %v8224 = vld [vmem:[%s8183 + $0x140] sm:$0xff]
      %v8225 = vld [vmem:[%s8183 + $0x148] sm:$0xff]
      %v8226 = vld [vmem:[%s8183 + $0x150] sm:$0xff]
      %v8227 = vld [vmem:[%s8183 + $0x158] sm:$0xff]
      %v8228 = vld [vmem:[%s8183 + $0x160] sm:$0xff]
      %v8229 = vld [vmem:[%s8183 + $0x168] sm:$0xff]
      %v8230 = vld [vmem:[%s8183 + $0x170] sm:$0xff]
      %v8231 = vld [vmem:[%s8183 + $0x178] sm:$0xff]
      %v8232 = vld [vmem:[%s8183 + $0x180] sm:$0xff]
      %v8233 = vld [vmem:[%s8183 + $0x188] sm:$0xff]
      %v8234 = vld [vmem:[%s8183 + $0x190] sm:$0xff]
      %v8235 = vld [vmem:[%s8183 + $0x198] sm:$0xff]
      %v8236 = vld [vmem:[%s8183 + $0x1a0] sm:$0xff]
      %v8237 = vld [vmem:[%s8183 + $0x1a8] sm:$0xff]
      %v8238 = vld [vmem:[%s8183 + $0x1b0] sm:$0xff]
      %v8239 = vld [vmem:[%s8183 + $0x1b8] sm:$0xff]
      %v8240 = vld [vmem:[%s8183 + $0x1c0] sm:$0xff]
      %v8241 = vld [vmem:[%s8183 + $0x1c8] sm:$0xff]
      %v8242 = vld [vmem:[%s8183 + $0x1d0] sm:$0xff]
      %v8243 = vld [vmem:[%s8183 + $0x1d8] sm:$0xff]
      %v8244 = vld [vmem:[%s8183 + $0x1e0] sm:$0xff]
      %v8245 = vld [vmem:[%s8183 + $0x1e8] sm:$0xff]
      %v8246 = vld [vmem:[%s8183 + $0x1f0] sm:$0xff]
      %v8247 = vld [vmem:[%s8183 + $0x1f8] sm:$0xff]
      %v8312 = vunpack.c.l.b16 %v8184
      %v8313 = vunpack.c.h.b16 %v8184
      %v8314 = vunpack.c.l.b16 %v8185
      %v8315 = vunpack.c.h.b16 %v8185
      %v8316 = vunpack.c.l.b16 %v8186
      %v8317 = vunpack.c.h.b16 %v8186
      %v8318 = vunpack.c.l.b16 %v8187
      %v8319 = vunpack.c.h.b16 %v8187
      %v8320 = vunpack.c.l.b16 %v8188
      %v8321 = vunpack.c.h.b16 %v8188
      %v8322 = vunpack.c.l.b16 %v8189
      %v8323 = vunpack.c.h.b16 %v8189
      %v8324 = vunpack.c.l.b16 %v8190
      %v8325 = vunpack.c.h.b16 %v8190
      %v8326 = vunpack.c.l.b16 %v8191
      %v8327 = vunpack.c.h.b16 %v8191
      %v8328 = vunpack.c.l.b16 %v8192
      %v8329 = vunpack.c.h.b16 %v8192
      %v8330 = vunpack.c.l.b16 %v8193
      %v8331 = vunpack.c.h.b16 %v8193
      %v8332 = vunpack.c.l.b16 %v8194
      %v8333 = vunpack.c.h.b16 %v8194
      %v8334 = vunpack.c.l.b16 %v8195
      %v8335 = vunpack.c.h.b16 %v8195
      %v8336 = vunpack.c.l.b16 %v8196
      %v8337 = vunpack.c.h.b16 %v8196
      %v8338 = vunpack.c.l.b16 %v8197
      %v8339 = vunpack.c.h.b16 %v8197
      %v8340 = vunpack.c.l.b16 %v8198
      %v8341 = vunpack.c.h.b16 %v8198
      %v8342 = vunpack.c.l.b16 %v8199
      %v8343 = vunpack.c.h.b16 %v8199
      %v8344 = vunpack.c.l.b16 %v8200
      %v8345 = vunpack.c.h.b16 %v8200
      %v8346 = vunpack.c.l.b16 %v8201
      %v8347 = vunpack.c.h.b16 %v8201
      %v8348 = vunpack.c.l.b16 %v8202
      %v8349 = vunpack.c.h.b16 %v8202
      %v8350 = vunpack.c.l.b16 %v8203
      %v8351 = vunpack.c.h.b16 %v8203
      %v8352 = vunpack.c.l.b16 %v8204
      %v8353 = vunpack.c.h.b16 %v8204
      %v8354 = vunpack.c.l.b16 %v8205
      %v8355 = vunpack.c.h.b16 %v8205
      %v8356 = vunpack.c.l.b16 %v8206
      %v8357 = vunpack.c.h.b16 %v8206
      %v8358 = vunpack.c.l.b16 %v8207
      %v8359 = vunpack.c.h.b16 %v8207
      %v8360 = vunpack.c.l.b16 %v8208
      %v8361 = vunpack.c.h.b16 %v8208
      %v8362 = vunpack.c.l.b16 %v8209
      %v8363 = vunpack.c.h.b16 %v8209
      %v8364 = vunpack.c.l.b16 %v8210
      %v8365 = vunpack.c.h.b16 %v8210
      %v8366 = vunpack.c.l.b16 %v8211
      %v8367 = vunpack.c.h.b16 %v8211
      %v8368 = vunpack.c.l.b16 %v8212
      %v8369 = vunpack.c.h.b16 %v8212
      %v8370 = vunpack.c.l.b16 %v8213
      %v8371 = vunpack.c.h.b16 %v8213
      %v8372 = vunpack.c.l.b16 %v8214
      %v8373 = vunpack.c.h.b16 %v8214
      %v8374 = vunpack.c.l.b16 %v8215
      %v8375 = vunpack.c.h.b16 %v8215
      %v8376 = vunpack.c.l.b16 %v8216
      %v8377 = vunpack.c.h.b16 %v8216
      %v8378 = vunpack.c.l.b16 %v8217
      %v8379 = vunpack.c.h.b16 %v8217
      %v8380 = vunpack.c.l.b16 %v8218
      %v8381 = vunpack.c.h.b16 %v8218
      %v8382 = vunpack.c.l.b16 %v8219
      %v8383 = vunpack.c.h.b16 %v8219
      %v8384 = vunpack.c.l.b16 %v8220
      %v8385 = vunpack.c.h.b16 %v8220
      %v8386 = vunpack.c.l.b16 %v8221
      %v8387 = vunpack.c.h.b16 %v8221
      %v8388 = vunpack.c.l.b16 %v8222
      %v8389 = vunpack.c.h.b16 %v8222
      %v8390 = vunpack.c.l.b16 %v8223
      %v8391 = vunpack.c.h.b16 %v8223
      %v8392 = vunpack.c.l.b16 %v8224
      %v8393 = vunpack.c.h.b16 %v8224
      %v8394 = vunpack.c.l.b16 %v8225
      %v8395 = vunpack.c.h.b16 %v8225
      %v8396 = vunpack.c.l.b16 %v8226
      %v8397 = vunpack.c.h.b16 %v8226
      %v8398 = vunpack.c.l.b16 %v8227
      %v8399 = vunpack.c.h.b16 %v8227
      %v8400 = vunpack.c.l.b16 %v8228
      %v8401 = vunpack.c.h.b16 %v8228
      %v8402 = vunpack.c.l.b16 %v8229
      %v8403 = vunpack.c.h.b16 %v8229
      %v8404 = vunpack.c.l.b16 %v8230
      %v8405 = vunpack.c.h.b16 %v8230
      %v8406 = vunpack.c.l.b16 %v8231
      %v8407 = vunpack.c.h.b16 %v8231
      %v8408 = vunpack.c.l.b16 %v8232
      %v8409 = vunpack.c.h.b16 %v8232
      %v8410 = vunpack.c.l.b16 %v8233
      %v8411 = vunpack.c.h.b16 %v8233
      %v8412 = vunpack.c.l.b16 %v8234
      %v8413 = vunpack.c.h.b16 %v8234
      %v8414 = vunpack.c.l.b16 %v8235
      %v8415 = vunpack.c.h.b16 %v8235
      %v8416 = vunpack.c.l.b16 %v8236
      %v8417 = vunpack.c.h.b16 %v8236
      %v8418 = vunpack.c.l.b16 %v8237
      %v8419 = vunpack.c.h.b16 %v8237
      %v8420 = vunpack.c.l.b16 %v8238
      %v8421 = vunpack.c.h.b16 %v8238
      %v8422 = vunpack.c.l.b16 %v8239
      %v8423 = vunpack.c.h.b16 %v8239
      %v8424 = vunpack.c.l.b16 %v8240
      %v8425 = vunpack.c.h.b16 %v8240
      %v8426 = vunpack.c.l.b16 %v8241
      %v8427 = vunpack.c.h.b16 %v8241
      %v8428 = vunpack.c.l.b16 %v8242
      %v8429 = vunpack.c.h.b16 %v8242
      %v8430 = vunpack.c.l.b16 %v8243
      %v8431 = vunpack.c.h.b16 %v8243
      %v8432 = vunpack.c.l.b16 %v8244
      %v8433 = vunpack.c.h.b16 %v8244
      %v8434 = vunpack.c.l.b16 %v8245
      %v8435 = vunpack.c.h.b16 %v8245
      %v8436 = vunpack.c.l.b16 %v8246
      %v8437 = vunpack.c.h.b16 %v8246
      %v8438 = vunpack.c.l.b16 %v8247
      %v8439 = vunpack.c.h.b16 %v8247
      %v8440 = vpack.c.b16 %v8316, %v8312
      %v8441 = vpack.c.b16 %v8317, %v8313
      %v8442 = vpack.c.b16 %v8318, %v8314
      %v8443 = vpack.c.b16 %v8319, %v8315
      %v8444 = vpack.c.b16 %v8324, %v8320
      %v8445 = vpack.c.b16 %v8325, %v8321
      %v8446 = vpack.c.b16 %v8326, %v8322
      %v8447 = vpack.c.b16 %v8327, %v8323
      %v8448 = vpack.c.b16 %v8332, %v8328
      %v8449 = vpack.c.b16 %v8333, %v8329
      %v8450 = vpack.c.b16 %v8334, %v8330
      %v8451 = vpack.c.b16 %v8335, %v8331
      %v8452 = vpack.c.b16 %v8340, %v8336
      %v8453 = vpack.c.b16 %v8341, %v8337
      %v8454 = vpack.c.b16 %v8342, %v8338
      %v8455 = vpack.c.b16 %v8343, %v8339
      %v8456 = vpack.c.b16 %v8348, %v8344
      %v8457 = vpack.c.b16 %v8349, %v8345
      %v8458 = vpack.c.b16 %v8350, %v8346
      %v8459 = vpack.c.b16 %v8351, %v8347
      %v8460 = vpack.c.b16 %v8356, %v8352
      %v8461 = vpack.c.b16 %v8357, %v8353
      %v8462 = vpack.c.b16 %v8358, %v8354
      %v8463 = vpack.c.b16 %v8359, %v8355
      %v8464 = vpack.c.b16 %v8364, %v8360
      %v8465 = vpack.c.b16 %v8365, %v8361
      %v8466 = vpack.c.b16 %v8366, %v8362
      %v8467 = vpack.c.b16 %v8367, %v8363
      %v8468 = vpack.c.b16 %v8372, %v8368
      %v8469 = vpack.c.b16 %v8373, %v8369
      %v8470 = vpack.c.b16 %v8374, %v8370
      %v8471 = vpack.c.b16 %v8375, %v8371
      %v8472 = vpack.c.b16 %v8380, %v8376
      %v8473 = vpack.c.b16 %v8381, %v8377
      %v8474 = vpack.c.b16 %v8382, %v8378
      %v8475 = vpack.c.b16 %v8383, %v8379
      %v8476 = vpack.c.b16 %v8388, %v8384
      %v8477 = vpack.c.b16 %v8389, %v8385
      %v8478 = vpack.c.b16 %v8390, %v8386
      %v8479 = vpack.c.b16 %v8391, %v8387
      %v8480 = vpack.c.b16 %v8396, %v8392
      %v8481 = vpack.c.b16 %v8397, %v8393
      %v8482 = vpack.c.b16 %v8398, %v8394
      %v8483 = vpack.c.b16 %v8399, %v8395
      %v8484 = vpack.c.b16 %v8404, %v8400
      %v8485 = vpack.c.b16 %v8405, %v8401
      %v8486 = vpack.c.b16 %v8406, %v8402
      %v8487 = vpack.c.b16 %v8407, %v8403
      %v8488 = vpack.c.b16 %v8412, %v8408
      %v8489 = vpack.c.b16 %v8413, %v8409
      %v8490 = vpack.c.b16 %v8414, %v8410
      %v8491 = vpack.c.b16 %v8415, %v8411
      %v8492 = vpack.c.b16 %v8420, %v8416
      %v8493 = vpack.c.b16 %v8421, %v8417
      %v8494 = vpack.c.b16 %v8422, %v8418
      %v8495 = vpack.c.b16 %v8423, %v8419
      %v8496 = vpack.c.b16 %v8428, %v8424
      %v8497 = vpack.c.b16 %v8429, %v8425
      %v8498 = vpack.c.b16 %v8430, %v8426
      %v8499 = vpack.c.b16 %v8431, %v8427
      %v8500 = vpack.c.b16 %v8436, %v8432
      %v8501 = vpack.c.b16 %v8437, %v8433
      %v8502 = vpack.c.b16 %v8438, %v8434
      %v8503 = vpack.c.b16 %v8439, %v8435
      %8568 = vmatprep.subr.bf16.mxu0 %v8441
      %8569 = vmatpush1.bf16.msra.mxu0 %v8440
      %8570 = vmatprep.subr.bf16.mxu0 %v8445
      %8571 = vmatpush1.bf16.msra.mxu0 %v8444
      %8572 = vmatprep.subr.bf16.mxu0 %v8449
      %8573 = vmatpush1.bf16.msra.mxu0 %v8448
      %8574 = vmatprep.subr.bf16.mxu0 %v8453
      %8575 = vmatpush1.bf16.msra.mxu0 %v8452
      %8576 = vmatprep.subr.bf16.mxu0 %v8457
      %8577 = vmatpush1.bf16.msra.mxu0 %v8456
      %8578 = vmatprep.subr.bf16.mxu0 %v8461
      %8579 = vmatpush1.bf16.msra.mxu0 %v8460
      %8580 = vmatprep.subr.bf16.mxu0 %v8465
      %8581 = vmatpush1.bf16.msra.mxu0 %v8464
      %8582 = vmatprep.subr.bf16.mxu0 %v8469
      %8583 = vmatpush1.bf16.msra.mxu0 %v8468
      %8584 = vmatprep.subr.bf16.mxu0 %v8473
      %8585 = vmatpush1.bf16.msra.mxu0 %v8472
      %8586 = vmatprep.subr.bf16.mxu0 %v8477
      %8587 = vmatpush1.bf16.msra.mxu0 %v8476
      %8588 = vmatprep.subr.bf16.mxu0 %v8481
      %8589 = vmatpush1.bf16.msra.mxu0 %v8480
      %8590 = vmatprep.subr.bf16.mxu0 %v8485
      %8591 = vmatpush1.bf16.msra.mxu0 %v8484
      %8592 = vmatprep.subr.bf16.mxu0 %v8489
      %8593 = vmatpush1.bf16.msra.mxu0 %v8488
      %8594 = vmatprep.subr.bf16.mxu0 %v8493
      %8595 = vmatpush1.bf16.msra.mxu0 %v8492
      %8596 = vmatprep.subr.bf16.mxu0 %v8497
      %8597 = vmatpush1.bf16.msra.mxu0 %v8496
      %8598 = vmatprep.subr.bf16.mxu0 %v8501
      %8599 = vmatpush1.bf16.msra.mxu0 %v8500
      %8600 = vmatprep.mubr.bf16.mxu0 %v8182
      %8601 = vmatmul.mubr.bf16.gmra.mrb[0].mxu0 %v8181
      %v8602 = vpop.f32.mrb[0].mxu0
      %v8603 = vadd.f32 0.0, %v8602
      %v8604 = vpop.f32.mrb[0].mxu0
      %v8605 = vadd.f32 0.0, %v8604
      %v8606 = vpop.f32.mrb[0].mxu0
      %v8607 = vpop.f32.mrb[0].mxu0
      %8608 = vdwg.mxu0
      %8609 = vmatprep.subr.bf16.mxu0 %v8443
      %8610 = vmatpush1.bf16.msra.mxu0 %v8442
      %8611 = vmatprep.subr.bf16.mxu0 %v8447
      %8612 = vmatpush1.bf16.msra.mxu0 %v8446
      %8613 = vmatprep.subr.bf16.mxu0 %v8451
      %8614 = vmatpush1.bf16.msra.mxu0 %v8450
      %8615 = vmatprep.subr.bf16.mxu0 %v8455
      %8616 = vmatpush1.bf16.msra.mxu0 %v8454
      %8617 = vmatprep.subr.bf16.mxu0 %v8459
      %8618 = vmatpush1.bf16.msra.mxu0 %v8458
      %8619 = vmatprep.subr.bf16.mxu0 %v8463
      %8620 = vmatpush1.bf16.msra.mxu0 %v8462
      %8621 = vmatprep.subr.bf16.mxu0 %v8467
      %8622 = vmatpush1.bf16.msra.mxu0 %v8466
      %8623 = vmatprep.subr.bf16.mxu0 %v8471
      %8624 = vmatpush1.bf16.msra.mxu0 %v8470
      %8625 = vmatprep.subr.bf16.mxu0 %v8475
      %8626 = vmatpush1.bf16.msra.mxu0 %v8474
      %8627 = vmatprep.subr.bf16.mxu0 %v8479
      %8628 = vmatpush1.bf16.msra.mxu0 %v8478
      %8629 = vmatprep.subr.bf16.mxu0 %v8483
      %8630 = vmatpush1.bf16.msra.mxu0 %v8482
      %8631 = vmatprep.subr.bf16.mxu0 %v8487
      %8632 = vmatpush1.bf16.msra.mxu0 %v8486
      %8633 = vmatprep.subr.bf16.mxu0 %v8491
      %8634 = vmatpush1.bf16.msra.mxu0 %v8490
      %8635 = vmatprep.subr.bf16.mxu0 %v8495
      %8636 = vmatpush1.bf16.msra.mxu0 %v8494
      %8637 = vmatprep.subr.bf16.mxu0 %v8499
      %8638 = vmatpush1.bf16.msra.mxu0 %v8498
      %8639 = vmatprep.subr.bf16.mxu0 %v8503
      %8640 = vmatpush1.bf16.msra.mxu0 %v8502
      %8641 = vmatprep.mubr.bf16.mxu0 %v8182
      %8642 = vmatmul.mubr.bf16.gmra.mrb[0].mxu0 %v8181
      %v8643 = vpop.f32.mrb[0].mxu0
      %v8644 = vadd.f32 0.0, %v8643
      %v8645 = vpop.f32.mrb[0].mxu0
      %v8646 = vadd.f32 0.0, %v8645
      %v8647 = vpop.f32.mrb[0].mxu0
      %v8648 = vpop.f32.mrb[0].mxu0
      %8649 = vdwg.mxu0
      %v8654 = vcombine.low %v8603, %v8605
      %v8655 = vcombine.low %v8644, %v8646
      %v8657 = vunpack.c.l.s4 1966171168
      %v8658 = vunpack.c.0.s8 %v8657
      %v8659 = vlaneseq
      %v8660 = vshrl.u32 %v8659, 7
      %v8661 = vsub.s32 %v8658, %v8660
      %v8662 = vrot.slane %v8654, %v8661
      %v8664 = vunpack.c.l.s4 1966171168
      %v8665 = vunpack.c.0.s8 %v8664
      %v8666 = vlaneseq
      %v8667 = vshrl.u32 %v8666, 7
      %v8668 = vsub.s32 %v8665, %v8667
      %v8669 = vrot.slane %v8655, %v8668
      %v8670 = vcombine.low %v8662, %v8669
      %v8672 = vunpack.c.l.s4 1966171168
      %v8673 = vunpack.c.0.s8 %v8672
      %v8674 = vlaneseq
      %v8675 = vshrl.u32 %v8674, 7
      %v8676 = vsub.s32 %v8673, %v8675
      %v8677 = vrot.slane %v8670, %v8676
      %v8679 = vadd.f32 %v8134, %v8677
      %s8680 = scalar_lea.vmem %s4, 6
      %v8681 = vld [vmem:[%s8680] sm:$0x1]
      %v8683 = vsel %vm5406, %v8681, 0
      %8685 = vmatprep.subr.bf16.mxu0 %v5414
      %8686 = vmatpush1.bf16.msra.mxu0 %v5411
      %8687 = vmatprep.subr.bf16.mxu0 0
      %8688 = vmatpush1.bf16.msra.mxu0 0
      %8689 = vmatprep.subr.bf16.mxu0 0
      %8690 = vmatpush1.bf16.msra.mxu0 0
      %8691 = vmatprep.subr.bf16.mxu0 0
      %8692 = vmatpush1.bf16.msra.mxu0 0
      %8693 = vmatprep.subr.bf16.mxu0 0
      %8694 = vmatpush1.bf16.msra.mxu0 0
      %8695 = vmatprep.subr.bf16.mxu0 0
      %8696 = vmatpush1.bf16.msra.mxu0 0
      %8697 = vmatprep.subr.bf16.mxu0 0
      %8698 = vmatpush1.bf16.msra.mxu0 0
      %8699 = vmatprep.subr.bf16.mxu0 0
      %8700 = vmatpush1.bf16.msra.mxu0 0
      %8701 = vmatprep.subr.bf16.mxu0 0
      %8702 = vmatpush1.bf16.msra.mxu0 0
      %8703 = vmatprep.subr.bf16.mxu0 0
      %8704 = vmatpush1.bf16.msra.mxu0 0
      %8705 = vmatprep.subr.bf16.mxu0 0
      %8706 = vmatpush1.bf16.msra.mxu0 0
      %8707 = vmatprep.subr.bf16.mxu0 0
      %8708 = vmatpush1.bf16.msra.mxu0 0
      %8709 = vmatprep.subr.bf16.mxu0 0
      %8710 = vmatpush1.bf16.msra.mxu0 0
      %8711 = vmatprep.subr.bf16.mxu0 0
      %8712 = vmatpush1.bf16.msra.mxu0 0
      %8713 = vmatprep.subr.bf16.mxu0 0
      %8714 = vmatpush1.bf16.msra.mxu0 0
      %8715 = vmatprep.subr.bf16.mxu0 0
      %8716 = vmatpush1.bf16.msra.mxu0 0
      %8717 = vmatprep.mubr.bf16.mxu0 0
      %8718 = vmatmul.mubr.bf16.gmra.mrb[0].mxu0 %v8683
      %v8719 = vpop.f32.mrb[0].mxu0
      %v8720 = vadd.f32 0.0, %v8719
      %v8721 = vpop.f32.mrb[0].mxu0
      %v8722 = vadd.f32 0.0, %v8721
      %v8723 = vpop.f32.mrb[0].mxu0
      %v8724 = vpop.f32.mrb[0].mxu0
      %8725 = vdwg.mxu0
      %v8726 = vpack.c.bf16 %v8720, %v8720
      %v8727 = vpack.c.bf16 %v8722, %v8722
      %s8728 = scalar_lea.vmem %s8, 3072
      %v8729 = vld [vmem:[%s8728] sm:$0xff]
      %v8730 = vld [vmem:[%s8728 + $0x8] sm:$0xff]
      %v8731 = vld [vmem:[%s8728 + $0x10] sm:$0xff]
      %v8732 = vld [vmem:[%s8728 + $0x18] sm:$0xff]
      %v8733 = vld [vmem:[%s8728 + $0x20] sm:$0xff]
      %v8734 = vld [vmem:[%s8728 + $0x28] sm:$0xff]
      %v8735 = vld [vmem:[%s8728 + $0x30] sm:$0xff]
      %v8736 = vld [vmem:[%s8728 + $0x38] sm:$0xff]
      %v8737 = vld [vmem:[%s8728 + $0x40] sm:$0xff]
      %v8738 = vld [vmem:[%s8728 + $0x48] sm:$0xff]
      %v8739 = vld [vmem:[%s8728 + $0x50] sm:$0xff]
      %v8740 = vld [vmem:[%s8728 + $0x58] sm:$0xff]
      %v8741 = vld [vmem:[%s8728 + $0x60] sm:$0xff]
      %v8742 = vld [vmem:[%s8728 + $0x68] sm:$0xff]
      %v8743 = vld [vmem:[%s8728 + $0x70] sm:$0xff]
      %v8744 = vld [vmem:[%s8728 + $0x78] sm:$0xff]
      %v8745 = vld [vmem:[%s8728 + $0x80] sm:$0xff]
      %v8746 = vld [vmem:[%s8728 + $0x88] sm:$0xff]
      %v8747 = vld [vmem:[%s8728 + $0x90] sm:$0xff]
      %v8748 = vld [vmem:[%s8728 + $0x98] sm:$0xff]
      %v8749 = vld [vmem:[%s8728 + $0xa0] sm:$0xff]
      %v8750 = vld [vmem:[%s8728 + $0xa8] sm:$0xff]
      %v8751 = vld [vmem:[%s8728 + $0xb0] sm:$0xff]
      %v8752 = vld [vmem:[%s8728 + $0xb8] sm:$0xff]
      %v8753 = vld [vmem:[%s8728 + $0xc0] sm:$0xff]
      %v8754 = vld [vmem:[%s8728 + $0xc8] sm:$0xff]
      %v8755 = vld [vmem:[%s8728 + $0xd0] sm:$0xff]
      %v8756 = vld [vmem:[%s8728 + $0xd8] sm:$0xff]
      %v8757 = vld [vmem:[%s8728 + $0xe0] sm:$0xff]
      %v8758 = vld [vmem:[%s8728 + $0xe8] sm:$0xff]
      %v8759 = vld [vmem:[%s8728 + $0xf0] sm:$0xff]
      %v8760 = vld [vmem:[%s8728 + $0xf8] sm:$0xff]
      %v8761 = vld [vmem:[%s8728 + $0x100] sm:$0xff]
      %v8762 = vld [vmem:[%s8728 + $0x108] sm:$0xff]
      %v8763 = vld [vmem:[%s8728 + $0x110] sm:$0xff]
      %v8764 = vld [vmem:[%s8728 + $0x118] sm:$0xff]
      %v8765 = vld [vmem:[%s8728 + $0x120] sm:$0xff]
      %v8766 = vld [vmem:[%s8728 + $0x128] sm:$0xff]
      %v8767 = vld [vmem:[%s8728 + $0x130] sm:$0xff]
      %v8768 = vld [vmem:[%s8728 + $0x138] sm:$0xff]
      %v8769 = vld [vmem:[%s8728 + $0x140] sm:$0xff]
      %v8770 = vld [vmem:[%s8728 + $0x148] sm:$0xff]
      %v8771 = vld [vmem:[%s8728 + $0x150] sm:$0xff]
      %v8772 = vld [vmem:[%s8728 + $0x158] sm:$0xff]
      %v8773 = vld [vmem:[%s8728 + $0x160] sm:$0xff]
      %v8774 = vld [vmem:[%s8728 + $0x168] sm:$0xff]
      %v8775 = vld [vmem:[%s8728 + $0x170] sm:$0xff]
      %v8776 = vld [vmem:[%s8728 + $0x178] sm:$0xff]
      %v8777 = vld [vmem:[%s8728 + $0x180] sm:$0xff]
      %v8778 = vld [vmem:[%s8728 + $0x188] sm:$0xff]
      %v8779 = vld [vmem:[%s8728 + $0x190] sm:$0xff]
      %v8780 = vld [vmem:[%s8728 + $0x198] sm:$0xff]
      %v8781 = vld [vmem:[%s8728 + $0x1a0] sm:$0xff]
      %v8782 = vld [vmem:[%s8728 + $0x1a8] sm:$0xff]
      %v8783 = vld [vmem:[%s8728 + $0x1b0] sm:$0xff]
      %v8784 = vld [vmem:[%s8728 + $0x1b8] sm:$0xff]
      %v8785 = vld [vmem:[%s8728 + $0x1c0] sm:$0xff]
      %v8786 = vld [vmem:[%s8728 + $0x1c8] sm:$0xff]
      %v8787 = vld [vmem:[%s8728 + $0x1d0] sm:$0xff]
      %v8788 = vld [vmem:[%s8728 + $0x1d8] sm:$0xff]
      %v8789 = vld [vmem:[%s8728 + $0x1e0] sm:$0xff]
      %v8790 = vld [vmem:[%s8728 + $0x1e8] sm:$0xff]
      %v8791 = vld [vmem:[%s8728 + $0x1f0] sm:$0xff]
      %v8792 = vld [vmem:[%s8728 + $0x1f8] sm:$0xff]
      %v8857 = vunpack.c.l.b16 %v8729
      %v8858 = vunpack.c.h.b16 %v8729
      %v8859 = vunpack.c.l.b16 %v8730
      %v8860 = vunpack.c.h.b16 %v8730
      %v8861 = vunpack.c.l.b16 %v8731
      %v8862 = vunpack.c.h.b16 %v8731
      %v8863 = vunpack.c.l.b16 %v8732
      %v8864 = vunpack.c.h.b16 %v8732
      %v8865 = vunpack.c.l.b16 %v8733
      %v8866 = vunpack.c.h.b16 %v8733
      %v8867 = vunpack.c.l.b16 %v8734
      %v8868 = vunpack.c.h.b16 %v8734
      %v8869 = vunpack.c.l.b16 %v8735
      %v8870 = vunpack.c.h.b16 %v8735
      %v8871 = vunpack.c.l.b16 %v8736
      %v8872 = vunpack.c.h.b16 %v8736
      %v8873 = vunpack.c.l.b16 %v8737
      %v8874 = vunpack.c.h.b16 %v8737
      %v8875 = vunpack.c.l.b16 %v8738
      %v8876 = vunpack.c.h.b16 %v8738
      %v8877 = vunpack.c.l.b16 %v8739
      %v8878 = vunpack.c.h.b16 %v8739
      %v8879 = vunpack.c.l.b16 %v8740
      %v8880 = vunpack.c.h.b16 %v8740
      %v8881 = vunpack.c.l.b16 %v8741
      %v8882 = vunpack.c.h.b16 %v8741
      %v8883 = vunpack.c.l.b16 %v8742
      %v8884 = vunpack.c.h.b16 %v8742
      %v8885 = vunpack.c.l.b16 %v8743
      %v8886 = vunpack.c.h.b16 %v8743
      %v8887 = vunpack.c.l.b16 %v8744
      %v8888 = vunpack.c.h.b16 %v8744
      %v8889 = vunpack.c.l.b16 %v8745
      %v8890 = vunpack.c.h.b16 %v8745
      %v8891 = vunpack.c.l.b16 %v8746
      %v8892 = vunpack.c.h.b16 %v8746
      %v8893 = vunpack.c.l.b16 %v8747
      %v8894 = vunpack.c.h.b16 %v8747
      %v8895 = vunpack.c.l.b16 %v8748
      %v8896 = vunpack.c.h.b16 %v8748
      %v8897 = vunpack.c.l.b16 %v8749
      %v8898 = vunpack.c.h.b16 %v8749
      %v8899 = vunpack.c.l.b16 %v8750
      %v8900 = vunpack.c.h.b16 %v8750
      %v8901 = vunpack.c.l.b16 %v8751
      %v8902 = vunpack.c.h.b16 %v8751
      %v8903 = vunpack.c.l.b16 %v8752
      %v8904 = vunpack.c.h.b16 %v8752
      %v8905 = vunpack.c.l.b16 %v8753
      %v8906 = vunpack.c.h.b16 %v8753
      %v8907 = vunpack.c.l.b16 %v8754
      %v8908 = vunpack.c.h.b16 %v8754
      %v8909 = vunpack.c.l.b16 %v8755
      %v8910 = vunpack.c.h.b16 %v8755
      %v8911 = vunpack.c.l.b16 %v8756
      %v8912 = vunpack.c.h.b16 %v8756
      %v8913 = vunpack.c.l.b16 %v8757
      %v8914 = vunpack.c.h.b16 %v8757
      %v8915 = vunpack.c.l.b16 %v8758
      %v8916 = vunpack.c.h.b16 %v8758
      %v8917 = vunpack.c.l.b16 %v8759
      %v8918 = vunpack.c.h.b16 %v8759
      %v8919 = vunpack.c.l.b16 %v8760
      %v8920 = vunpack.c.h.b16 %v8760
      %v8921 = vunpack.c.l.b16 %v8761
      %v8922 = vunpack.c.h.b16 %v8761
      %v8923 = vunpack.c.l.b16 %v8762
      %v8924 = vunpack.c.h.b16 %v8762
      %v8925 = vunpack.c.l.b16 %v8763
      %v8926 = vunpack.c.h.b16 %v8763
      %v8927 = vunpack.c.l.b16 %v8764
      %v8928 = vunpack.c.h.b16 %v8764
      %v8929 = vunpack.c.l.b16 %v8765
      %v8930 = vunpack.c.h.b16 %v8765
      %v8931 = vunpack.c.l.b16 %v8766
      %v8932 = vunpack.c.h.b16 %v8766
      %v8933 = vunpack.c.l.b16 %v8767
      %v8934 = vunpack.c.h.b16 %v8767
      %v8935 = vunpack.c.l.b16 %v8768
      %v8936 = vunpack.c.h.b16 %v8768
      %v8937 = vunpack.c.l.b16 %v8769
      %v8938 = vunpack.c.h.b16 %v8769
      %v8939 = vunpack.c.l.b16 %v8770
      %v8940 = vunpack.c.h.b16 %v8770
      %v8941 = vunpack.c.l.b16 %v8771
      %v8942 = vunpack.c.h.b16 %v8771
      %v8943 = vunpack.c.l.b16 %v8772
      %v8944 = vunpack.c.h.b16 %v8772
      %v8945 = vunpack.c.l.b16 %v8773
      %v8946 = vunpack.c.h.b16 %v8773
      %v8947 = vunpack.c.l.b16 %v8774
      %v8948 = vunpack.c.h.b16 %v8774
      %v8949 = vunpack.c.l.b16 %v8775
      %v8950 = vunpack.c.h.b16 %v8775
      %v8951 = vunpack.c.l.b16 %v8776
      %v8952 = vunpack.c.h.b16 %v8776
      %v8953 = vunpack.c.l.b16 %v8777
      %v8954 = vunpack.c.h.b16 %v8777
      %v8955 = vunpack.c.l.b16 %v8778
      %v8956 = vunpack.c.h.b16 %v8778
      %v8957 = vunpack.c.l.b16 %v8779
      %v8958 = vunpack.c.h.b16 %v8779
      %v8959 = vunpack.c.l.b16 %v8780
      %v8960 = vunpack.c.h.b16 %v8780
      %v8961 = vunpack.c.l.b16 %v8781
      %v8962 = vunpack.c.h.b16 %v8781
      %v8963 = vunpack.c.l.b16 %v8782
      %v8964 = vunpack.c.h.b16 %v8782
      %v8965 = vunpack.c.l.b16 %v8783
      %v8966 = vunpack.c.h.b16 %v8783
      %v8967 = vunpack.c.l.b16 %v8784
      %v8968 = vunpack.c.h.b16 %v8784
      %v8969 = vunpack.c.l.b16 %v8785
      %v8970 = vunpack.c.h.b16 %v8785
      %v8971 = vunpack.c.l.b16 %v8786
      %v8972 = vunpack.c.h.b16 %v8786
      %v8973 = vunpack.c.l.b16 %v8787
      %v8974 = vunpack.c.h.b16 %v8787
      %v8975 = vunpack.c.l.b16 %v8788
      %v8976 = vunpack.c.h.b16 %v8788
      %v8977 = vunpack.c.l.b16 %v8789
      %v8978 = vunpack.c.h.b16 %v8789
      %v8979 = vunpack.c.l.b16 %v8790
      %v8980 = vunpack.c.h.b16 %v8790
      %v8981 = vunpack.c.l.b16 %v8791
      %v8982 = vunpack.c.h.b16 %v8791
      %v8983 = vunpack.c.l.b16 %v8792
      %v8984 = vunpack.c.h.b16 %v8792
      %v8985 = vpack.c.b16 %v8861, %v8857
      %v8986 = vpack.c.b16 %v8862, %v8858
      %v8987 = vpack.c.b16 %v8863, %v8859
      %v8988 = vpack.c.b16 %v8864, %v8860
      %v8989 = vpack.c.b16 %v8869, %v8865
      %v8990 = vpack.c.b16 %v8870, %v8866
      %v8991 = vpack.c.b16 %v8871, %v8867
      %v8992 = vpack.c.b16 %v8872, %v8868
      %v8993 = vpack.c.b16 %v8877, %v8873
      %v8994 = vpack.c.b16 %v8878, %v8874
      %v8995 = vpack.c.b16 %v8879, %v8875
      %v8996 = vpack.c.b16 %v8880, %v8876
      %v8997 = vpack.c.b16 %v8885, %v8881
      %v8998 = vpack.c.b16 %v8886, %v8882
      %v8999 = vpack.c.b16 %v8887, %v8883
      %v9000 = vpack.c.b16 %v8888, %v8884
      %v9001 = vpack.c.b16 %v8893, %v8889
      %v9002 = vpack.c.b16 %v8894, %v8890
      %v9003 = vpack.c.b16 %v8895, %v8891
      %v9004 = vpack.c.b16 %v8896, %v8892
      %v9005 = vpack.c.b16 %v8901, %v8897
      %v9006 = vpack.c.b16 %v8902, %v8898
      %v9007 = vpack.c.b16 %v8903, %v8899
      %v9008 = vpack.c.b16 %v8904, %v8900
      %v9009 = vpack.c.b16 %v8909, %v8905
      %v9010 = vpack.c.b16 %v8910, %v8906
      %v9011 = vpack.c.b16 %v8911, %v8907
      %v9012 = vpack.c.b16 %v8912, %v8908
      %v9013 = vpack.c.b16 %v8917, %v8913
      %v9014 = vpack.c.b16 %v8918, %v8914
      %v9015 = vpack.c.b16 %v8919, %v8915
      %v9016 = vpack.c.b16 %v8920, %v8916
      %v9017 = vpack.c.b16 %v8925, %v8921
      %v9018 = vpack.c.b16 %v8926, %v8922
      %v9019 = vpack.c.b16 %v8927, %v8923
      %v9020 = vpack.c.b16 %v8928, %v8924
      %v9021 = vpack.c.b16 %v8933, %v8929
      %v9022 = vpack.c.b16 %v8934, %v8930
      %v9023 = vpack.c.b16 %v8935, %v8931
      %v9024 = vpack.c.b16 %v8936, %v8932
      %v9025 = vpack.c.b16 %v8941, %v8937
      %v9026 = vpack.c.b16 %v8942, %v8938
      %v9027 = vpack.c.b16 %v8943, %v8939
      %v9028 = vpack.c.b16 %v8944, %v8940
      %v9029 = vpack.c.b16 %v8949, %v8945
      %v9030 = vpack.c.b16 %v8950, %v8946
      %v9031 = vpack.c.b16 %v8951, %v8947
      %v9032 = vpack.c.b16 %v8952, %v8948
      %v9033 = vpack.c.b16 %v8957, %v8953
      %v9034 = vpack.c.b16 %v8958, %v8954
      %v9035 = vpack.c.b16 %v8959, %v8955
      %v9036 = vpack.c.b16 %v8960, %v8956
      %v9037 = vpack.c.b16 %v8965, %v8961
      %v9038 = vpack.c.b16 %v8966, %v8962
      %v9039 = vpack.c.b16 %v8967, %v8963
      %v9040 = vpack.c.b16 %v8968, %v8964
      %v9041 = vpack.c.b16 %v8973, %v8969
      %v9042 = vpack.c.b16 %v8974, %v8970
      %v9043 = vpack.c.b16 %v8975, %v8971
      %v9044 = vpack.c.b16 %v8976, %v8972
      %v9045 = vpack.c.b16 %v8981, %v8977
      %v9046 = vpack.c.b16 %v8982, %v8978
      %v9047 = vpack.c.b16 %v8983, %v8979
      %v9048 = vpack.c.b16 %v8984, %v8980
      %9113 = vmatprep.subr.bf16.mxu0 %v8986
      %9114 = vmatpush1.bf16.msra.mxu0 %v8985
      %9115 = vmatprep.subr.bf16.mxu0 %v8990
      %9116 = vmatpush1.bf16.msra.mxu0 %v8989
      %9117 = vmatprep.subr.bf16.mxu0 %v8994
      %9118 = vmatpush1.bf16.msra.mxu0 %v8993
      %9119 = vmatprep.subr.bf16.mxu0 %v8998
      %9120 = vmatpush1.bf16.msra.mxu0 %v8997
      %9121 = vmatprep.subr.bf16.mxu0 %v9002
      %9122 = vmatpush1.bf16.msra.mxu0 %v9001
      %9123 = vmatprep.subr.bf16.mxu0 %v9006
      %9124 = vmatpush1.bf16.msra.mxu0 %v9005
      %9125 = vmatprep.subr.bf16.mxu0 %v9010
      %9126 = vmatpush1.bf16.msra.mxu0 %v9009
      %9127 = vmatprep.subr.bf16.mxu0 %v9014
      %9128 = vmatpush1.bf16.msra.mxu0 %v9013
      %9129 = vmatprep.subr.bf16.mxu0 %v9018
      %9130 = vmatpush1.bf16.msra.mxu0 %v9017
      %9131 = vmatprep.subr.bf16.mxu0 %v9022
      %9132 = vmatpush1.bf16.msra.mxu0 %v9021
      %9133 = vmatprep.subr.bf16.mxu0 %v9026
      %9134 = vmatpush1.bf16.msra.mxu0 %v9025
      %9135 = vmatprep.subr.bf16.mxu0 %v9030
      %9136 = vmatpush1.bf16.msra.mxu0 %v9029
      %9137 = vmatprep.subr.bf16.mxu0 %v9034
      %9138 = vmatpush1.bf16.msra.mxu0 %v9033
      %9139 = vmatprep.subr.bf16.mxu0 %v9038
      %9140 = vmatpush1.bf16.msra.mxu0 %v9037
      %9141 = vmatprep.subr.bf16.mxu0 %v9042
      %9142 = vmatpush1.bf16.msra.mxu0 %v9041
      %9143 = vmatprep.subr.bf16.mxu0 %v9046
      %9144 = vmatpush1.bf16.msra.mxu0 %v9045
      %9145 = vmatprep.mubr.bf16.mxu0 %v8727
      %9146 = vmatmul.mubr.bf16.gmra.mrb[0].mxu0 %v8726
      %v9147 = vpop.f32.mrb[0].mxu0
      %v9148 = vadd.f32 0.0, %v9147
      %v9149 = vpop.f32.mrb[0].mxu0
      %v9150 = vadd.f32 0.0, %v9149
      %v9151 = vpop.f32.mrb[0].mxu0
      %v9152 = vpop.f32.mrb[0].mxu0
      %9153 = vdwg.mxu0
      %9154 = vmatprep.subr.bf16.mxu0 %v8988
      %9155 = vmatpush1.bf16.msra.mxu0 %v8987
      %9156 = vmatprep.subr.bf16.mxu0 %v8992
      %9157 = vmatpush1.bf16.msra.mxu0 %v8991
      %9158 = vmatprep.subr.bf16.mxu0 %v8996
      %9159 = vmatpush1.bf16.msra.mxu0 %v8995
      %9160 = vmatprep.subr.bf16.mxu0 %v9000
      %9161 = vmatpush1.bf16.msra.mxu0 %v8999
      %9162 = vmatprep.subr.bf16.mxu0 %v9004
      %9163 = vmatpush1.bf16.msra.mxu0 %v9003
      %9164 = vmatprep.subr.bf16.mxu0 %v9008
      %9165 = vmatpush1.bf16.msra.mxu0 %v9007
      %9166 = vmatprep.subr.bf16.mxu0 %v9012
      %9167 = vmatpush1.bf16.msra.mxu0 %v9011
      %9168 = vmatprep.subr.bf16.mxu0 %v9016
      %9169 = vmatpush1.bf16.msra.mxu0 %v9015
      %9170 = vmatprep.subr.bf16.mxu0 %v9020
      %9171 = vmatpush1.bf16.msra.mxu0 %v9019
      %9172 = vmatprep.subr.bf16.mxu0 %v9024
      %9173 = vmatpush1.bf16.msra.mxu0 %v9023
      %9174 = vmatprep.subr.bf16.mxu0 %v9028
      %9175 = vmatpush1.bf16.msra.mxu0 %v9027
      %9176 = vmatprep.subr.bf16.mxu0 %v9032
      %9177 = vmatpush1.bf16.msra.mxu0 %v9031
      %9178 = vmatprep.subr.bf16.mxu0 %v9036
      %9179 = vmatpush1.bf16.msra.mxu0 %v9035
      %9180 = vmatprep.subr.bf16.mxu0 %v9040
      %9181 = vmatpush1.bf16.msra.mxu0 %v9039
      %9182 = vmatprep.subr.bf16.mxu0 %v9044
      %9183 = vmatpush1.bf16.msra.mxu0 %v9043
      %9184 = vmatprep.subr.bf16.mxu0 %v9048
      %9185 = vmatpush1.bf16.msra.mxu0 %v9047
      %9186 = vmatprep.mubr.bf16.mxu0 %v8727
      %9187 = vmatmul.mubr.bf16.gmra.mrb[0].mxu0 %v8726
      %v9188 = vpop.f32.mrb[0].mxu0
      %v9189 = vadd.f32 0.0, %v9188
      %v9190 = vpop.f32.mrb[0].mxu0
      %v9191 = vadd.f32 0.0, %v9190
      %v9192 = vpop.f32.mrb[0].mxu0
      %v9193 = vpop.f32.mrb[0].mxu0
      %9194 = vdwg.mxu0
      %v9199 = vcombine.low %v9148, %v9150
      %v9200 = vcombine.low %v9189, %v9191
      %v9202 = vunpack.c.l.s4 1966171168
      %v9203 = vunpack.c.0.s8 %v9202
      %v9204 = vlaneseq
      %v9205 = vshrl.u32 %v9204, 7
      %v9206 = vsub.s32 %v9203, %v9205
      %v9207 = vrot.slane %v9199, %v9206
      %v9209 = vunpack.c.l.s4 1966171168
      %v9210 = vunpack.c.0.s8 %v9209
      %v9211 = vlaneseq
      %v9212 = vshrl.u32 %v9211, 7
      %v9213 = vsub.s32 %v9210, %v9212
      %v9214 = vrot.slane %v9200, %v9213
      %v9215 = vcombine.low %v9207, %v9214
      %v9217 = vunpack.c.l.s4 1966171168
      %v9218 = vunpack.c.0.s8 %v9217
      %v9219 = vlaneseq
      %v9220 = vshrl.u32 %v9219, 7
      %v9221 = vsub.s32 %v9218, %v9220
      %v9222 = vrot.slane %v9215, %v9221
      %v9224 = vadd.f32 %v8679, %v9222
      %s9225 = scalar_lea.vmem %s4, 7
      %v9226 = vld [vmem:[%s9225] sm:$0x1]
      %v9228 = vsel %vm5406, %v9226, 0
      %9230 = vmatprep.subr.bf16.mxu0 %v5414
      %9231 = vmatpush1.bf16.msra.mxu0 %v5411
      %9232 = vmatprep.subr.bf16.mxu0 0
      %9233 = vmatpush1.bf16.msra.mxu0 0
      %9234 = vmatprep.subr.bf16.mxu0 0
      %9235 = vmatpush1.bf16.msra.mxu0 0
      %9236 = vmatprep.subr.bf16.mxu0 0
      %9237 = vmatpush1.bf16.msra.mxu0 0
      %9238 = vmatprep.subr.bf16.mxu0 0
      %9239 = vmatpush1.bf16.msra.mxu0 0
      %9240 = vmatprep.subr.bf16.mxu0 0
      %9241 = vmatpush1.bf16.msra.mxu0 0
      %9242 = vmatprep.subr.bf16.mxu0 0
      %9243 = vmatpush1.bf16.msra.mxu0 0
      %9244 = vmatprep.subr.bf16.mxu0 0
      %9245 = vmatpush1.bf16.msra.mxu0 0
      %9246 = vmatprep.subr.bf16.mxu0 0
      %9247 = vmatpush1.bf16.msra.mxu0 0
      %9248 = vmatprep.subr.bf16.mxu0 0
      %9249 = vmatpush1.bf16.msra.mxu0 0
      %9250 = vmatprep.subr.bf16.mxu0 0
      %9251 = vmatpush1.bf16.msra.mxu0 0
      %9252 = vmatprep.subr.bf16.mxu0 0
      %9253 = vmatpush1.bf16.msra.mxu0 0
      %9254 = vmatprep.subr.bf16.mxu0 0
      %9255 = vmatpush1.bf16.msra.mxu0 0
      %9256 = vmatprep.subr.bf16.mxu0 0
      %9257 = vmatpush1.bf16.msra.mxu0 0
      %9258 = vmatprep.subr.bf16.mxu0 0
      %9259 = vmatpush1.bf16.msra.mxu0 0
      %9260 = vmatprep.subr.bf16.mxu0 0
      %9261 = vmatpush1.bf16.msra.mxu0 0
      %9262 = vmatprep.mubr.bf16.mxu0 0
      %9263 = vmatmul.mubr.bf16.gmra.mrb[0].mxu0 %v9228
      %v9264 = vpop.f32.mrb[0].mxu0
      %v9265 = vadd.f32 0.0, %v9264
      %v9266 = vpop.f32.mrb[0].mxu0
      %v9267 = vadd.f32 0.0, %v9266
      %v9268 = vpop.f32.mrb[0].mxu0
      %v9269 = vpop.f32.mrb[0].mxu0
      %9270 = vdwg.mxu0
      %v9271 = vpack.c.bf16 %v9265, %v9265
      %v9272 = vpack.c.bf16 %v9267, %v9267
      %s9273 = scalar_lea.vmem %s8, 3584
      %v9274 = vld [vmem:[%s9273] sm:$0xff]
      %v9275 = vld [vmem:[%s9273 + $0x8] sm:$0xff]
      %v9276 = vld [vmem:[%s9273 + $0x10] sm:$0xff]
      %v9277 = vld [vmem:[%s9273 + $0x18] sm:$0xff]
      %v9278 = vld [vmem:[%s9273 + $0x20] sm:$0xff]
      %v9279 = vld [vmem:[%s9273 + $0x28] sm:$0xff]
      %v9280 = vld [vmem:[%s9273 + $0x30] sm:$0xff]
      %v9281 = vld [vmem:[%s9273 + $0x38] sm:$0xff]
      %v9282 = vld [vmem:[%s9273 + $0x40] sm:$0xff]
      %v9283 = vld [vmem:[%s9273 + $0x48] sm:$0xff]
      %v9284 = vld [vmem:[%s9273 + $0x50] sm:$0xff]
      %v9285 = vld [vmem:[%s9273 + $0x58] sm:$0xff]
      %v9286 = vld [vmem:[%s9273 + $0x60] sm:$0xff]
      %v9287 = vld [vmem:[%s9273 + $0x68] sm:$0xff]
      %v9288 = vld [vmem:[%s9273 + $0x70] sm:$0xff]
      %v9289 = vld [vmem:[%s9273 + $0x78] sm:$0xff]
      %v9290 = vld [vmem:[%s9273 + $0x80] sm:$0xff]
      %v9291 = vld [vmem:[%s9273 + $0x88] sm:$0xff]
      %v9292 = vld [vmem:[%s9273 + $0x90] sm:$0xff]
      %v9293 = vld [vmem:[%s9273 + $0x98] sm:$0xff]
      %v9294 = vld [vmem:[%s9273 + $0xa0] sm:$0xff]
      %v9295 = vld [vmem:[%s9273 + $0xa8] sm:$0xff]
      %v9296 = vld [vmem:[%s9273 + $0xb0] sm:$0xff]
      %v9297 = vld [vmem:[%s9273 + $0xb8] sm:$0xff]
      %v9298 = vld [vmem:[%s9273 + $0xc0] sm:$0xff]
      %v9299 = vld [vmem:[%s9273 + $0xc8] sm:$0xff]
      %v9300 = vld [vmem:[%s9273 + $0xd0] sm:$0xff]
      %v9301 = vld [vmem:[%s9273 + $0xd8] sm:$0xff]
      %v9302 = vld [vmem:[%s9273 + $0xe0] sm:$0xff]
      %v9303 = vld [vmem:[%s9273 + $0xe8] sm:$0xff]
      %v9304 = vld [vmem:[%s9273 + $0xf0] sm:$0xff]
      %v9305 = vld [vmem:[%s9273 + $0xf8] sm:$0xff]
      %v9306 = vld [vmem:[%s9273 + $0x100] sm:$0xff]
      %v9307 = vld [vmem:[%s9273 + $0x108] sm:$0xff]
      %v9308 = vld [vmem:[%s9273 + $0x110] sm:$0xff]
      %v9309 = vld [vmem:[%s9273 + $0x118] sm:$0xff]
      %v9310 = vld [vmem:[%s9273 + $0x120] sm:$0xff]
      %v9311 = vld [vmem:[%s9273 + $0x128] sm:$0xff]
      %v9312 = vld [vmem:[%s9273 + $0x130] sm:$0xff]
      %v9313 = vld [vmem:[%s9273 + $0x138] sm:$0xff]
      %v9314 = vld [vmem:[%s9273 + $0x140] sm:$0xff]
      %v9315 = vld [vmem:[%s9273 + $0x148] sm:$0xff]
      %v9316 = vld [vmem:[%s9273 + $0x150] sm:$0xff]
      %v9317 = vld [vmem:[%s9273 + $0x158] sm:$0xff]
      %v9318 = vld [vmem:[%s9273 + $0x160] sm:$0xff]
      %v9319 = vld [vmem:[%s9273 + $0x168] sm:$0xff]
      %v9320 = vld [vmem:[%s9273 + $0x170] sm:$0xff]
      %v9321 = vld [vmem:[%s9273 + $0x178] sm:$0xff]
      %v9322 = vld [vmem:[%s9273 + $0x180] sm:$0xff]
      %v9323 = vld [vmem:[%s9273 + $0x188] sm:$0xff]
      %v9324 = vld [vmem:[%s9273 + $0x190] sm:$0xff]
      %v9325 = vld [vmem:[%s9273 + $0x198] sm:$0xff]
      %v9326 = vld [vmem:[%s9273 + $0x1a0] sm:$0xff]
      %v9327 = vld [vmem:[%s9273 + $0x1a8] sm:$0xff]
      %v9328 = vld [vmem:[%s9273 + $0x1b0] sm:$0xff]
      %v9329 = vld [vmem:[%s9273 + $0x1b8] sm:$0xff]
      %v9330 = vld [vmem:[%s9273 + $0x1c0] sm:$0xff]
      %v9331 = vld [vmem:[%s9273 + $0x1c8] sm:$0xff]
      %v9332 = vld [vmem:[%s9273 + $0x1d0] sm:$0xff]
      %v9333 = vld [vmem:[%s9273 + $0x1d8] sm:$0xff]
      %v9334 = vld [vmem:[%s9273 + $0x1e0] sm:$0xff]
      %v9335 = vld [vmem:[%s9273 + $0x1e8] sm:$0xff]
      %v9336 = vld [vmem:[%s9273 + $0x1f0] sm:$0xff]
      %v9337 = vld [vmem:[%s9273 + $0x1f8] sm:$0xff]
      %v9402 = vunpack.c.l.b16 %v9274
      %v9403 = vunpack.c.h.b16 %v9274
      %v9404 = vunpack.c.l.b16 %v9275
      %v9405 = vunpack.c.h.b16 %v9275
      %v9406 = vunpack.c.l.b16 %v9276
      %v9407 = vunpack.c.h.b16 %v9276
      %v9408 = vunpack.c.l.b16 %v9277
      %v9409 = vunpack.c.h.b16 %v9277
      %v9410 = vunpack.c.l.b16 %v9278
      %v9411 = vunpack.c.h.b16 %v9278
      %v9412 = vunpack.c.l.b16 %v9279
      %v9413 = vunpack.c.h.b16 %v9279
      %v9414 = vunpack.c.l.b16 %v9280
      %v9415 = vunpack.c.h.b16 %v9280
      %v9416 = vunpack.c.l.b16 %v9281
      %v9417 = vunpack.c.h.b16 %v9281
      %v9418 = vunpack.c.l.b16 %v9282
      %v9419 = vunpack.c.h.b16 %v9282
      %v9420 = vunpack.c.l.b16 %v9283
      %v9421 = vunpack.c.h.b16 %v9283
      %v9422 = vunpack.c.l.b16 %v9284
      %v9423 = vunpack.c.h.b16 %v9284
      %v9424 = vunpack.c.l.b16 %v9285
      %v9425 = vunpack.c.h.b16 %v9285
      %v9426 = vunpack.c.l.b16 %v9286
      %v9427 = vunpack.c.h.b16 %v9286
      %v9428 = vunpack.c.l.b16 %v9287
      %v9429 = vunpack.c.h.b16 %v9287
      %v9430 = vunpack.c.l.b16 %v9288
      %v9431 = vunpack.c.h.b16 %v9288
      %v9432 = vunpack.c.l.b16 %v9289
      %v9433 = vunpack.c.h.b16 %v9289
      %v9434 = vunpack.c.l.b16 %v9290
      %v9435 = vunpack.c.h.b16 %v9290
      %v9436 = vunpack.c.l.b16 %v9291
      %v9437 = vunpack.c.h.b16 %v9291
      %v9438 = vunpack.c.l.b16 %v9292
      %v9439 = vunpack.c.h.b16 %v9292
      %v9440 = vunpack.c.l.b16 %v9293
      %v9441 = vunpack.c.h.b16 %v9293
      %v9442 = vunpack.c.l.b16 %v9294
      %v9443 = vunpack.c.h.b16 %v9294
      %v9444 = vunpack.c.l.b16 %v9295
      %v9445 = vunpack.c.h.b16 %v9295
      %v9446 = vunpack.c.l.b16 %v9296
      %v9447 = vunpack.c.h.b16 %v9296
      %v9448 = vunpack.c.l.b16 %v9297
      %v9449 = vunpack.c.h.b16 %v9297
      %v9450 = vunpack.c.l.b16 %v9298
      %v9451 = vunpack.c.h.b16 %v9298
      %v9452 = vunpack.c.l.b16 %v9299
      %v9453 = vunpack.c.h.b16 %v9299
      %v9454 = vunpack.c.l.b16 %v9300
      %v9455 = vunpack.c.h.b16 %v9300
      %v9456 = vunpack.c.l.b16 %v9301
      %v9457 = vunpack.c.h.b16 %v9301
      %v9458 = vunpack.c.l.b16 %v9302
      %v9459 = vunpack.c.h.b16 %v9302
      %v9460 = vunpack.c.l.b16 %v9303
      %v9461 = vunpack.c.h.b16 %v9303
      %v9462 = vunpack.c.l.b16 %v9304
      %v9463 = vunpack.c.h.b16 %v9304
      %v9464 = vunpack.c.l.b16 %v9305
      %v9465 = vunpack.c.h.b16 %v9305
      %v9466 = vunpack.c.l.b16 %v9306
      %v9467 = vunpack.c.h.b16 %v9306
      %v9468 = vunpack.c.l.b16 %v9307
      %v9469 = vunpack.c.h.b16 %v9307
      %v9470 = vunpack.c.l.b16 %v9308
      %v9471 = vunpack.c.h.b16 %v9308
      %v9472 = vunpack.c.l.b16 %v9309
      %v9473 = vunpack.c.h.b16 %v9309
      %v9474 = vunpack.c.l.b16 %v9310
      %v9475 = vunpack.c.h.b16 %v9310
      %v9476 = vunpack.c.l.b16 %v9311
      %v9477 = vunpack.c.h.b16 %v9311
      %v9478 = vunpack.c.l.b16 %v9312
      %v9479 = vunpack.c.h.b16 %v9312
      %v9480 = vunpack.c.l.b16 %v9313
      %v9481 = vunpack.c.h.b16 %v9313
      %v9482 = vunpack.c.l.b16 %v9314
      %v9483 = vunpack.c.h.b16 %v9314
      %v9484 = vunpack.c.l.b16 %v9315
      %v9485 = vunpack.c.h.b16 %v9315
      %v9486 = vunpack.c.l.b16 %v9316
      %v9487 = vunpack.c.h.b16 %v9316
      %v9488 = vunpack.c.l.b16 %v9317
      %v9489 = vunpack.c.h.b16 %v9317
      %v9490 = vunpack.c.l.b16 %v9318
      %v9491 = vunpack.c.h.b16 %v9318
      %v9492 = vunpack.c.l.b16 %v9319
      %v9493 = vunpack.c.h.b16 %v9319
      %v9494 = vunpack.c.l.b16 %v9320
      %v9495 = vunpack.c.h.b16 %v9320
      %v9496 = vunpack.c.l.b16 %v9321
      %v9497 = vunpack.c.h.b16 %v9321
      %v9498 = vunpack.c.l.b16 %v9322
      %v9499 = vunpack.c.h.b16 %v9322
      %v9500 = vunpack.c.l.b16 %v9323
      %v9501 = vunpack.c.h.b16 %v9323
      %v9502 = vunpack.c.l.b16 %v9324
      %v9503 = vunpack.c.h.b16 %v9324
      %v9504 = vunpack.c.l.b16 %v9325
      %v9505 = vunpack.c.h.b16 %v9325
      %v9506 = vunpack.c.l.b16 %v9326
      %v9507 = vunpack.c.h.b16 %v9326
      %v9508 = vunpack.c.l.b16 %v9327
      %v9509 = vunpack.c.h.b16 %v9327
      %v9510 = vunpack.c.l.b16 %v9328
      %v9511 = vunpack.c.h.b16 %v9328
      %v9512 = vunpack.c.l.b16 %v9329
      %v9513 = vunpack.c.h.b16 %v9329
      %v9514 = vunpack.c.l.b16 %v9330
      %v9515 = vunpack.c.h.b16 %v9330
      %v9516 = vunpack.c.l.b16 %v9331
      %v9517 = vunpack.c.h.b16 %v9331
      %v9518 = vunpack.c.l.b16 %v9332
      %v9519 = vunpack.c.h.b16 %v9332
      %v9520 = vunpack.c.l.b16 %v9333
      %v9521 = vunpack.c.h.b16 %v9333
      %v9522 = vunpack.c.l.b16 %v9334
      %v9523 = vunpack.c.h.b16 %v9334
      %v9524 = vunpack.c.l.b16 %v9335
      %v9525 = vunpack.c.h.b16 %v9335
      %v9526 = vunpack.c.l.b16 %v9336
      %v9527 = vunpack.c.h.b16 %v9336
      %v9528 = vunpack.c.l.b16 %v9337
      %v9529 = vunpack.c.h.b16 %v9337
      %v9530 = vpack.c.b16 %v9406, %v9402
      %v9531 = vpack.c.b16 %v9407, %v9403
      %v9532 = vpack.c.b16 %v9408, %v9404
      %v9533 = vpack.c.b16 %v9409, %v9405
      %v9534 = vpack.c.b16 %v9414, %v9410
      %v9535 = vpack.c.b16 %v9415, %v9411
      %v9536 = vpack.c.b16 %v9416, %v9412
      %v9537 = vpack.c.b16 %v9417, %v9413
      %v9538 = vpack.c.b16 %v9422, %v9418
      %v9539 = vpack.c.b16 %v9423, %v9419
      %v9540 = vpack.c.b16 %v9424, %v9420
      %v9541 = vpack.c.b16 %v9425, %v9421
      %v9542 = vpack.c.b16 %v9430, %v9426
      %v9543 = vpack.c.b16 %v9431, %v9427
      %v9544 = vpack.c.b16 %v9432, %v9428
      %v9545 = vpack.c.b16 %v9433, %v9429
      %v9546 = vpack.c.b16 %v9438, %v9434
      %v9547 = vpack.c.b16 %v9439, %v9435
      %v9548 = vpack.c.b16 %v9440, %v9436
      %v9549 = vpack.c.b16 %v9441, %v9437
      %v9550 = vpack.c.b16 %v9446, %v9442
      %v9551 = vpack.c.b16 %v9447, %v9443
      %v9552 = vpack.c.b16 %v9448, %v9444
      %v9553 = vpack.c.b16 %v9449, %v9445
      %v9554 = vpack.c.b16 %v9454, %v9450
      %v9555 = vpack.c.b16 %v9455, %v9451
      %v9556 = vpack.c.b16 %v9456, %v9452
      %v9557 = vpack.c.b16 %v9457, %v9453
      %v9558 = vpack.c.b16 %v9462, %v9458
      %v9559 = vpack.c.b16 %v9463, %v9459
      %v9560 = vpack.c.b16 %v9464, %v9460
      %v9561 = vpack.c.b16 %v9465, %v9461
      %v9562 = vpack.c.b16 %v9470, %v9466
      %v9563 = vpack.c.b16 %v9471, %v9467
      %v9564 = vpack.c.b16 %v9472, %v9468
      %v9565 = vpack.c.b16 %v9473, %v9469
      %v9566 = vpack.c.b16 %v9478, %v9474
      %v9567 = vpack.c.b16 %v9479, %v9475
      %v9568 = vpack.c.b16 %v9480, %v9476
      %v9569 = vpack.c.b16 %v9481, %v9477
      %v9570 = vpack.c.b16 %v9486, %v9482
      %v9571 = vpack.c.b16 %v9487, %v9483
      %v9572 = vpack.c.b16 %v9488, %v9484
      %v9573 = vpack.c.b16 %v9489, %v9485
      %v9574 = vpack.c.b16 %v9494, %v9490
      %v9575 = vpack.c.b16 %v9495, %v9491
      %v9576 = vpack.c.b16 %v9496, %v9492
      %v9577 = vpack.c.b16 %v9497, %v9493
      %v9578 = vpack.c.b16 %v9502, %v9498
      %v9579 = vpack.c.b16 %v9503, %v9499
      %v9580 = vpack.c.b16 %v9504, %v9500
      %v9581 = vpack.c.b16 %v9505, %v9501
      %v9582 = vpack.c.b16 %v9510, %v9506
      %v9583 = vpack.c.b16 %v9511, %v9507
      %v9584 = vpack.c.b16 %v9512, %v9508
      %v9585 = vpack.c.b16 %v9513, %v9509
      %v9586 = vpack.c.b16 %v9518, %v9514
      %v9587 = vpack.c.b16 %v9519, %v9515
      %v9588 = vpack.c.b16 %v9520, %v9516
      %v9589 = vpack.c.b16 %v9521, %v9517
      %v9590 = vpack.c.b16 %v9526, %v9522
      %v9591 = vpack.c.b16 %v9527, %v9523
      %v9592 = vpack.c.b16 %v9528, %v9524
      %v9593 = vpack.c.b16 %v9529, %v9525
      %9658 = vmatprep.subr.bf16.mxu0 %v9531
      %9659 = vmatpush1.bf16.msra.mxu0 %v9530
      %9660 = vmatprep.subr.bf16.mxu0 %v9535
      %9661 = vmatpush1.bf16.msra.mxu0 %v9534
      %9662 = vmatprep.subr.bf16.mxu0 %v9539
      %9663 = vmatpush1.bf16.msra.mxu0 %v9538
      %9664 = vmatprep.subr.bf16.mxu0 %v9543
      %9665 = vmatpush1.bf16.msra.mxu0 %v9542
      %9666 = vmatprep.subr.bf16.mxu0 %v9547
      %9667 = vmatpush1.bf16.msra.mxu0 %v9546
      %9668 = vmatprep.subr.bf16.mxu0 %v9551
      %9669 = vmatpush1.bf16.msra.mxu0 %v9550
      %9670 = vmatprep.subr.bf16.mxu0 %v9555
      %9671 = vmatpush1.bf16.msra.mxu0 %v9554
      %9672 = vmatprep.subr.bf16.mxu0 %v9559
      %9673 = vmatpush1.bf16.msra.mxu0 %v9558
      %9674 = vmatprep.subr.bf16.mxu0 %v9563
      %9675 = vmatpush1.bf16.msra.mxu0 %v9562
      %9676 = vmatprep.subr.bf16.mxu0 %v9567
      %9677 = vmatpush1.bf16.msra.mxu0 %v9566
      %9678 = vmatprep.subr.bf16.mxu0 %v9571
      %9679 = vmatpush1.bf16.msra.mxu0 %v9570
      %9680 = vmatprep.subr.bf16.mxu0 %v9575
      %9681 = vmatpush1.bf16.msra.mxu0 %v9574
      %9682 = vmatprep.subr.bf16.mxu0 %v9579
      %9683 = vmatpush1.bf16.msra.mxu0 %v9578
      %9684 = vmatprep.subr.bf16.mxu0 %v9583
      %9685 = vmatpush1.bf16.msra.mxu0 %v9582
      %9686 = vmatprep.subr.bf16.mxu0 %v9587
      %9687 = vmatpush1.bf16.msra.mxu0 %v9586
      %9688 = vmatprep.subr.bf16.mxu0 %v9591
      %9689 = vmatpush1.bf16.msra.mxu0 %v9590
      %9690 = vmatprep.mubr.bf16.mxu0 %v9272
      %9691 = vmatmul.mubr.bf16.gmra.mrb[0].mxu0 %v9271
      %v9692 = vpop.f32.mrb[0].mxu0
      %v9693 = vadd.f32 0.0, %v9692
      %v9694 = vpop.f32.mrb[0].mxu0
      %v9695 = vadd.f32 0.0, %v9694
      %v9696 = vpop.f32.mrb[0].mxu0
      %v9697 = vpop.f32.mrb[0].mxu0
      %9698 = vdwg.mxu0
      %9699 = vmatprep.subr.bf16.mxu0 %v9533
      %9700 = vmatpush1.bf16.msra.mxu0 %v9532
      %9701 = vmatprep.subr.bf16.mxu0 %v9537
      %9702 = vmatpush1.bf16.msra.mxu0 %v9536
      %9703 = vmatprep.subr.bf16.mxu0 %v9541
      %9704 = vmatpush1.bf16.msra.mxu0 %v9540
      %9705 = vmatprep.subr.bf16.mxu0 %v9545
      %9706 = vmatpush1.bf16.msra.mxu0 %v9544
      %9707 = vmatprep.subr.bf16.mxu0 %v9549
      %9708 = vmatpush1.bf16.msra.mxu0 %v9548
      %9709 = vmatprep.subr.bf16.mxu0 %v9553
      %9710 = vmatpush1.bf16.msra.mxu0 %v9552
      %9711 = vmatprep.subr.bf16.mxu0 %v9557
      %9712 = vmatpush1.bf16.msra.mxu0 %v9556
      %9713 = vmatprep.subr.bf16.mxu0 %v9561
      %9714 = vmatpush1.bf16.msra.mxu0 %v9560
      %9715 = vmatprep.subr.bf16.mxu0 %v9565
      %9716 = vmatpush1.bf16.msra.mxu0 %v9564
      %9717 = vmatprep.subr.bf16.mxu0 %v9569
      %9718 = vmatpush1.bf16.msra.mxu0 %v9568
      %9719 = vmatprep.subr.bf16.mxu0 %v9573
      %9720 = vmatpush1.bf16.msra.mxu0 %v9572
      %9721 = vmatprep.subr.bf16.mxu0 %v9577
      %9722 = vmatpush1.bf16.msra.mxu0 %v9576
      %9723 = vmatprep.subr.bf16.mxu0 %v9581
      %9724 = vmatpush1.bf16.msra.mxu0 %v9580
      %9725 = vmatprep.subr.bf16.mxu0 %v9585
      %9726 = vmatpush1.bf16.msra.mxu0 %v9584
      %9727 = vmatprep.subr.bf16.mxu0 %v9589
      %9728 = vmatpush1.bf16.msra.mxu0 %v9588
      %9729 = vmatprep.subr.bf16.mxu0 %v9593
      %9730 = vmatpush1.bf16.msra.mxu0 %v9592
      %9731 = vmatprep.mubr.bf16.mxu0 %v9272
      %9732 = vmatmul.mubr.bf16.gmra.mrb[0].mxu0 %v9271
      %v9733 = vpop.f32.mrb[0].mxu0
      %v9734 = vadd.f32 0.0, %v9733
      %v9735 = vpop.f32.mrb[0].mxu0
      %v9736 = vadd.f32 0.0, %v9735
      %v9737 = vpop.f32.mrb[0].mxu0
      %v9738 = vpop.f32.mrb[0].mxu0
      %9739 = vdwg.mxu0
      %v9744 = vcombine.low %v9693, %v9695
      %v9745 = vcombine.low %v9734, %v9736
      %v9747 = vunpack.c.l.s4 1966171168
      %v9748 = vunpack.c.0.s8 %v9747
      %v9749 = vlaneseq
      %v9750 = vshrl.u32 %v9749, 7
      %v9751 = vsub.s32 %v9748, %v9750
      %v9752 = vrot.slane %v9744, %v9751
      %v9754 = vunpack.c.l.s4 1966171168
      %v9755 = vunpack.c.0.s8 %v9754
      %v9756 = vlaneseq
      %v9757 = vshrl.u32 %v9756, 7
      %v9758 = vsub.s32 %v9755, %v9757
      %v9759 = vrot.slane %v9745, %v9758
      %v9760 = vcombine.low %v9752, %v9759
      %v9762 = vunpack.c.l.s4 1966171168
      %v9763 = vunpack.c.0.s8 %v9762
      %v9764 = vlaneseq
      %v9765 = vshrl.u32 %v9764, 7
      %v9766 = vsub.s32 %v9763, %v9765
      %v9767 = vrot.slane %v9760, %v9766
      %v9769 = vadd.f32 %v9224, %v9767
      %s9770 = scalar_lea.vmem %s4, 8
      %v9771 = vld [vmem:[%s9770] sm:$0x1]
      %v9773 = vsel %vm5406, %v9771, 0
      %9775 = vmatprep.subr.bf16.mxu0 %v5414
      %9776 = vmatpush1.bf16.msra.mxu0 %v5411
      %9777 = vmatprep.subr.bf16.mxu0 0
      %9778 = vmatpush1.bf16.msra.mxu0 0
      %9779 = vmatprep.subr.bf16.mxu0 0
      %9780 = vmatpush1.bf16.msra.mxu0 0
      %9781 = vmatprep.subr.bf16.mxu0 0
      %9782 = vmatpush1.bf16.msra.mxu0 0
      %9783 = vmatprep.subr.bf16.mxu0 0
      %9784 = vmatpush1.bf16.msra.mxu0 0
      %9785 = vmatprep.subr.bf16.mxu0 0
      %9786 = vmatpush1.bf16.msra.mxu0 0
      %9787 = vmatprep.subr.bf16.mxu0 0
      %9788 = vmatpush1.bf16.msra.mxu0 0
      %9789 = vmatprep.subr.bf16.mxu0 0
      %9790 = vmatpush1.bf16.msra.mxu0 0
      %9791 = vmatprep.subr.bf16.mxu0 0
      %9792 = vmatpush1.bf16.msra.mxu0 0
      %9793 = vmatprep.subr.bf16.mxu0 0
      %9794 = vmatpush1.bf16.msra.mxu0 0
      %9795 = vmatprep.subr.bf16.mxu0 0
      %9796 = vmatpush1.bf16.msra.mxu0 0
      %9797 = vmatprep.subr.bf16.mxu0 0
      %9798 = vmatpush1.bf16.msra.mxu0 0
      %9799 = vmatprep.subr.bf16.mxu0 0
      %9800 = vmatpush1.bf16.msra.mxu0 0
      %9801 = vmatprep.subr.bf16.mxu0 0
      %9802 = vmatpush1.bf16.msra.mxu0 0
      %9803 = vmatprep.subr.bf16.mxu0 0
      %9804 = vmatpush1.bf16.msra.mxu0 0
      %9805 = vmatprep.subr.bf16.mxu0 0
      %9806 = vmatpush1.bf16.msra.mxu0 0
      %9807 = vmatprep.mubr.bf16.mxu0 0
      %9808 = vmatmul.mubr.bf16.gmra.mrb[0].mxu0 %v9773
      %v9809 = vpop.f32.mrb[0].mxu0
      %v9810 = vadd.f32 0.0, %v9809
      %v9811 = vpop.f32.mrb[0].mxu0
      %v9812 = vadd.f32 0.0, %v9811
      %v9813 = vpop.f32.mrb[0].mxu0
      %v9814 = vpop.f32.mrb[0].mxu0
      %9815 = vdwg.mxu0
      %v9816 = vpack.c.bf16 %v9810, %v9810
      %v9817 = vpack.c.bf16 %v9812, %v9812
      %s9818 = scalar_lea.vmem %s8, 4096
      %v9819 = vld [vmem:[%s9818] sm:$0xff]
      %v9820 = vld [vmem:[%s9818 + $0x8] sm:$0xff]
      %v9821 = vld [vmem:[%s9818 + $0x10] sm:$0xff]
      %v9822 = vld [vmem:[%s9818 + $0x18] sm:$0xff]
      %v9823 = vld [vmem:[%s9818 + $0x20] sm:$0xff]
      %v9824 = vld [vmem:[%s9818 + $0x28] sm:$0xff]
      %v9825 = vld [vmem:[%s9818 + $0x30] sm:$0xff]
      %v9826 = vld [vmem:[%s9818 + $0x38] sm:$0xff]
      %v9827 = vld [vmem:[%s9818 + $0x40] sm:$0xff]
      %v9828 = vld [vmem:[%s9818 + $0x48] sm:$0xff]
      %v9829 = vld [vmem:[%s9818 + $0x50] sm:$0xff]
      %v9830 = vld [vmem:[%s9818 + $0x58] sm:$0xff]
      %v9831 = vld [vmem:[%s9818 + $0x60] sm:$0xff]
      %v9832 = vld [vmem:[%s9818 + $0x68] sm:$0xff]
      %v9833 = vld [vmem:[%s9818 + $0x70] sm:$0xff]
      %v9834 = vld [vmem:[%s9818 + $0x78] sm:$0xff]
      %v9835 = vld [vmem:[%s9818 + $0x80] sm:$0xff]
      %v9836 = vld [vmem:[%s9818 + $0x88] sm:$0xff]
      %v9837 = vld [vmem:[%s9818 + $0x90] sm:$0xff]
      %v9838 = vld [vmem:[%s9818 + $0x98] sm:$0xff]
      %v9839 = vld [vmem:[%s9818 + $0xa0] sm:$0xff]
      %v9840 = vld [vmem:[%s9818 + $0xa8] sm:$0xff]
      %v9841 = vld [vmem:[%s9818 + $0xb0] sm:$0xff]
      %v9842 = vld [vmem:[%s9818 + $0xb8] sm:$0xff]
      %v9843 = vld [vmem:[%s9818 + $0xc0] sm:$0xff]
      %v9844 = vld [vmem:[%s9818 + $0xc8] sm:$0xff]
      %v9845 = vld [vmem:[%s9818 + $0xd0] sm:$0xff]
      %v9846 = vld [vmem:[%s9818 + $0xd8] sm:$0xff]
      %v9847 = vld [vmem:[%s9818 + $0xe0] sm:$0xff]
      %v9848 = vld [vmem:[%s9818 + $0xe8] sm:$0xff]
      %v9849 = vld [vmem:[%s9818 + $0xf0] sm:$0xff]
      %v9850 = vld [vmem:[%s9818 + $0xf8] sm:$0xff]
      %v9851 = vld [vmem:[%s9818 + $0x100] sm:$0xff]
      %v9852 = vld [vmem:[%s9818 + $0x108] sm:$0xff]
      %v9853 = vld [vmem:[%s9818 + $0x110] sm:$0xff]
      %v9854 = vld [vmem:[%s9818 + $0x118] sm:$0xff]
      %v9855 = vld [vmem:[%s9818 + $0x120] sm:$0xff]
      %v9856 = vld [vmem:[%s9818 + $0x128] sm:$0xff]
      %v9857 = vld [vmem:[%s9818 + $0x130] sm:$0xff]
      %v9858 = vld [vmem:[%s9818 + $0x138] sm:$0xff]
      %v9859 = vld [vmem:[%s9818 + $0x140] sm:$0xff]
      %v9860 = vld [vmem:[%s9818 + $0x148] sm:$0xff]
      %v9861 = vld [vmem:[%s9818 + $0x150] sm:$0xff]
      %v9862 = vld [vmem:[%s9818 + $0x158] sm:$0xff]
      %v9863 = vld [vmem:[%s9818 + $0x160] sm:$0xff]
      %v9864 = vld [vmem:[%s9818 + $0x168] sm:$0xff]
      %v9865 = vld [vmem:[%s9818 + $0x170] sm:$0xff]
      %v9866 = vld [vmem:[%s9818 + $0x178] sm:$0xff]
      %v9867 = vld [vmem:[%s9818 + $0x180] sm:$0xff]
      %v9868 = vld [vmem:[%s9818 + $0x188] sm:$0xff]
      %v9869 = vld [vmem:[%s9818 + $0x190] sm:$0xff]
      %v9870 = vld [vmem:[%s9818 + $0x198] sm:$0xff]
      %v9871 = vld [vmem:[%s9818 + $0x1a0] sm:$0xff]
      %v9872 = vld [vmem:[%s9818 + $0x1a8] sm:$0xff]
      %v9873 = vld [vmem:[%s9818 + $0x1b0] sm:$0xff]
      %v9874 = vld [vmem:[%s9818 + $0x1b8] sm:$0xff]
      %v9875 = vld [vmem:[%s9818 + $0x1c0] sm:$0xff]
      %v9876 = vld [vmem:[%s9818 + $0x1c8] sm:$0xff]
      %v9877 = vld [vmem:[%s9818 + $0x1d0] sm:$0xff]
      %v9878 = vld [vmem:[%s9818 + $0x1d8] sm:$0xff]
      %v9879 = vld [vmem:[%s9818 + $0x1e0] sm:$0xff]
      %v9880 = vld [vmem:[%s9818 + $0x1e8] sm:$0xff]
      %v9881 = vld [vmem:[%s9818 + $0x1f0] sm:$0xff]
      %v9882 = vld [vmem:[%s9818 + $0x1f8] sm:$0xff]
      %v9947 = vunpack.c.l.b16 %v9819
      %v9948 = vunpack.c.h.b16 %v9819
      %v9949 = vunpack.c.l.b16 %v9820
      %v9950 = vunpack.c.h.b16 %v9820
      %v9951 = vunpack.c.l.b16 %v9821
      %v9952 = vunpack.c.h.b16 %v9821
      %v9953 = vunpack.c.l.b16 %v9822
      %v9954 = vunpack.c.h.b16 %v9822
      %v9955 = vunpack.c.l.b16 %v9823
      %v9956 = vunpack.c.h.b16 %v9823
      %v9957 = vunpack.c.l.b16 %v9824
      %v9958 = vunpack.c.h.b16 %v9824
      %v9959 = vunpack.c.l.b16 %v9825
      %v9960 = vunpack.c.h.b16 %v9825
      %v9961 = vunpack.c.l.b16 %v9826
      %v9962 = vunpack.c.h.b16 %v9826
      %v9963 = vunpack.c.l.b16 %v9827
      %v9964 = vunpack.c.h.b16 %v9827
      %v9965 = vunpack.c.l.b16 %v9828
      %v9966 = vunpack.c.h.b16 %v9828
      %v9967 = vunpack.c.l.b16 %v9829
      %v9968 = vunpack.c.h.b16 %v9829
      %v9969 = vunpack.c.l.b16 %v9830
      %v9970 = vunpack.c.h.b16 %v9830
      %v9971 = vunpack.c.l.b16 %v9831
      %v9972 = vunpack.c.h.b16 %v9831
      %v9973 = vunpack.c.l.b16 %v9832
      %v9974 = vunpack.c.h.b16 %v9832
      %v9975 = vunpack.c.l.b16 %v9833
      %v9976 = vunpack.c.h.b16 %v9833
      %v9977 = vunpack.c.l.b16 %v9834
      %v9978 = vunpack.c.h.b16 %v9834
      %v9979 = vunpack.c.l.b16 %v9835
      %v9980 = vunpack.c.h.b16 %v9835
      %v9981 = vunpack.c.l.b16 %v9836
      %v9982 = vunpack.c.h.b16 %v9836
      %v9983 = vunpack.c.l.b16 %v9837
      %v9984 = vunpack.c.h.b16 %v9837
      %v9985 = vunpack.c.l.b16 %v9838
      %v9986 = vunpack.c.h.b16 %v9838
      %v9987 = vunpack.c.l.b16 %v9839
      %v9988 = vunpack.c.h.b16 %v9839
      %v9989 = vunpack.c.l.b16 %v9840
      %v9990 = vunpack.c.h.b16 %v9840
      %v9991 = vunpack.c.l.b16 %v9841
      %v9992 = vunpack.c.h.b16 %v9841
      %v9993 = vunpack.c.l.b16 %v9842
      %v9994 = vunpack.c.h.b16 %v9842
      %v9995 = vunpack.c.l.b16 %v9843
      %v9996 = vunpack.c.h.b16 %v9843
      %v9997 = vunpack.c.l.b16 %v9844
      %v9998 = vunpack.c.h.b16 %v9844
      %v9999 = vunpack.c.l.b16 %v9845
      %v10000 = vunpack.c.h.b16 %v9845
      %v10001 = vunpack.c.l.b16 %v9846
      %v10002 = vunpack.c.h.b16 %v9846
      %v10003 = vunpack.c.l.b16 %v9847
      %v10004 = vunpack.c.h.b16 %v9847
      %v10005 = vunpack.c.l.b16 %v9848
      %v10006 = vunpack.c.h.b16 %v9848
      %v10007 = vunpack.c.l.b16 %v9849
      %v10008 = vunpack.c.h.b16 %v9849
      %v10009 = vunpack.c.l.b16 %v9850
      %v10010 = vunpack.c.h.b16 %v9850
      %v10011 = vunpack.c.l.b16 %v9851
      %v10012 = vunpack.c.h.b16 %v9851
      %v10013 = vunpack.c.l.b16 %v9852
      %v10014 = vunpack.c.h.b16 %v9852
      %v10015 = vunpack.c.l.b16 %v9853
      %v10016 = vunpack.c.h.b16 %v9853
      %v10017 = vunpack.c.l.b16 %v9854
      %v10018 = vunpack.c.h.b16 %v9854
      %v10019 = vunpack.c.l.b16 %v9855
      %v10020 = vunpack.c.h.b16 %v9855
      %v10021 = vunpack.c.l.b16 %v9856
      %v10022 = vunpack.c.h.b16 %v9856
      %v10023 = vunpack.c.l.b16 %v9857
      %v10024 = vunpack.c.h.b16 %v9857
      %v10025 = vunpack.c.l.b16 %v9858
      %v10026 = vunpack.c.h.b16 %v9858
      %v10027 = vunpack.c.l.b16 %v9859
      %v10028 = vunpack.c.h.b16 %v9859
      %v10029 = vunpack.c.l.b16 %v9860
      %v10030 = vunpack.c.h.b16 %v9860
      %v10031 = vunpack.c.l.b16 %v9861
      %v10032 = vunpack.c.h.b16 %v9861
      %v10033 = vunpack.c.l.b16 %v9862
      %v10034 = vunpack.c.h.b16 %v9862
      %v10035 = vunpack.c.l.b16 %v9863
      %v10036 = vunpack.c.h.b16 %v9863
      %v10037 = vunpack.c.l.b16 %v9864
      %v10038 = vunpack.c.h.b16 %v9864
      %v10039 = vunpack.c.l.b16 %v9865
      %v10040 = vunpack.c.h.b16 %v9865
      %v10041 = vunpack.c.l.b16 %v9866
      %v10042 = vunpack.c.h.b16 %v9866
      %v10043 = vunpack.c.l.b16 %v9867
      %v10044 = vunpack.c.h.b16 %v9867
      %v10045 = vunpack.c.l.b16 %v9868
      %v10046 = vunpack.c.h.b16 %v9868
      %v10047 = vunpack.c.l.b16 %v9869
      %v10048 = vunpack.c.h.b16 %v9869
      %v10049 = vunpack.c.l.b16 %v9870
      %v10050 = vunpack.c.h.b16 %v9870
      %v10051 = vunpack.c.l.b16 %v9871
      %v10052 = vunpack.c.h.b16 %v9871
      %v10053 = vunpack.c.l.b16 %v9872
      %v10054 = vunpack.c.h.b16 %v9872
      %v10055 = vunpack.c.l.b16 %v9873
      %v10056 = vunpack.c.h.b16 %v9873
      %v10057 = vunpack.c.l.b16 %v9874
      %v10058 = vunpack.c.h.b16 %v9874
      %v10059 = vunpack.c.l.b16 %v9875
      %v10060 = vunpack.c.h.b16 %v9875
      %v10061 = vunpack.c.l.b16 %v9876
      %v10062 = vunpack.c.h.b16 %v9876
      %v10063 = vunpack.c.l.b16 %v9877
      %v10064 = vunpack.c.h.b16 %v9877
      %v10065 = vunpack.c.l.b16 %v9878
      %v10066 = vunpack.c.h.b16 %v9878
      %v10067 = vunpack.c.l.b16 %v9879
      %v10068 = vunpack.c.h.b16 %v9879
      %v10069 = vunpack.c.l.b16 %v9880
      %v10070 = vunpack.c.h.b16 %v9880
      %v10071 = vunpack.c.l.b16 %v9881
      %v10072 = vunpack.c.h.b16 %v9881
      %v10073 = vunpack.c.l.b16 %v9882
      %v10074 = vunpack.c.h.b16 %v9882
      %v10075 = vpack.c.b16 %v9951, %v9947
      %v10076 = vpack.c.b16 %v9952, %v9948
      %v10077 = vpack.c.b16 %v9953, %v9949
      %v10078 = vpack.c.b16 %v9954, %v9950
      %v10079 = vpack.c.b16 %v9959, %v9955
      %v10080 = vpack.c.b16 %v9960, %v9956
      %v10081 = vpack.c.b16 %v9961, %v9957
      %v10082 = vpack.c.b16 %v9962, %v9958
      %v10083 = vpack.c.b16 %v9967, %v9963
      %v10084 = vpack.c.b16 %v9968, %v9964
      %v10085 = vpack.c.b16 %v9969, %v9965
      %v10086 = vpack.c.b16 %v9970, %v9966
      %v10087 = vpack.c.b16 %v9975, %v9971
      %v10088 = vpack.c.b16 %v9976, %v9972
      %v10089 = vpack.c.b16 %v9977, %v9973
      %v10090 = vpack.c.b16 %v9978, %v9974
      %v10091 = vpack.c.b16 %v9983, %v9979
      %v10092 = vpack.c.b16 %v9984, %v9980
      %v10093 = vpack.c.b16 %v9985, %v9981
      %v10094 = vpack.c.b16 %v9986, %v9982
      %v10095 = vpack.c.b16 %v9991, %v9987
      %v10096 = vpack.c.b16 %v9992, %v9988
      %v10097 = vpack.c.b16 %v9993, %v9989
      %v10098 = vpack.c.b16 %v9994, %v9990
      %v10099 = vpack.c.b16 %v9999, %v9995
      %v10100 = vpack.c.b16 %v10000, %v9996
      %v10101 = vpack.c.b16 %v10001, %v9997
      %v10102 = vpack.c.b16 %v10002, %v9998
      %v10103 = vpack.c.b16 %v10007, %v10003
      %v10104 = vpack.c.b16 %v10008, %v10004
      %v10105 = vpack.c.b16 %v10009, %v10005
      %v10106 = vpack.c.b16 %v10010, %v10006
      %v10107 = vpack.c.b16 %v10015, %v10011
      %v10108 = vpack.c.b16 %v10016, %v10012
      %v10109 = vpack.c.b16 %v10017, %v10013
      %v10110 = vpack.c.b16 %v10018, %v10014
      %v10111 = vpack.c.b16 %v10023, %v10019
      %v10112 = vpack.c.b16 %v10024, %v10020
      %v10113 = vpack.c.b16 %v10025, %v10021
      %v10114 = vpack.c.b16 %v10026, %v10022
      %v10115 = vpack.c.b16 %v10031, %v10027
      %v10116 = vpack.c.b16 %v10032, %v10028
      %v10117 = vpack.c.b16 %v10033, %v10029
      %v10118 = vpack.c.b16 %v10034, %v10030
      %v10119 = vpack.c.b16 %v10039, %v10035
      %v10120 = vpack.c.b16 %v10040, %v10036
      %v10121 = vpack.c.b16 %v10041, %v10037
      %v10122 = vpack.c.b16 %v10042, %v10038
      %v10123 = vpack.c.b16 %v10047, %v10043
      %v10124 = vpack.c.b16 %v10048, %v10044
      %v10125 = vpack.c.b16 %v10049, %v10045
      %v10126 = vpack.c.b16 %v10050, %v10046
      %v10127 = vpack.c.b16 %v10055, %v10051
      %v10128 = vpack.c.b16 %v10056, %v10052
      %v10129 = vpack.c.b16 %v10057, %v10053
      %v10130 = vpack.c.b16 %v10058, %v10054
      %v10131 = vpack.c.b16 %v10063, %v10059
      %v10132 = vpack.c.b16 %v10064, %v10060
      %v10133 = vpack.c.b16 %v10065, %v10061
      %v10134 = vpack.c.b16 %v10066, %v10062
      %v10135 = vpack.c.b16 %v10071, %v10067
      %v10136 = vpack.c.b16 %v10072, %v10068
      %v10137 = vpack.c.b16 %v10073, %v10069
      %v10138 = vpack.c.b16 %v10074, %v10070
      %10203 = vmatprep.subr.bf16.mxu0 %v10076
      %10204 = vmatpush1.bf16.msra.mxu0 %v10075
      %10205 = vmatprep.subr.bf16.mxu0 %v10080
      %10206 = vmatpush1.bf16.msra.mxu0 %v10079
      %10207 = vmatprep.subr.bf16.mxu0 %v10084
      %10208 = vmatpush1.bf16.msra.mxu0 %v10083
      %10209 = vmatprep.subr.bf16.mxu0 %v10088
      %10210 = vmatpush1.bf16.msra.mxu0 %v10087
      %10211 = vmatprep.subr.bf16.mxu0 %v10092
      %10212 = vmatpush1.bf16.msra.mxu0 %v10091
      %10213 = vmatprep.subr.bf16.mxu0 %v10096
      %10214 = vmatpush1.bf16.msra.mxu0 %v10095
      %10215 = vmatprep.subr.bf16.mxu0 %v10100
      %10216 = vmatpush1.bf16.msra.mxu0 %v10099
      %10217 = vmatprep.subr.bf16.mxu0 %v10104
      %10218 = vmatpush1.bf16.msra.mxu0 %v10103
      %10219 = vmatprep.subr.bf16.mxu0 %v10108
      %10220 = vmatpush1.bf16.msra.mxu0 %v10107
      %10221 = vmatprep.subr.bf16.mxu0 %v10112
      %10222 = vmatpush1.bf16.msra.mxu0 %v10111
      %10223 = vmatprep.subr.bf16.mxu0 %v10116
      %10224 = vmatpush1.bf16.msra.mxu0 %v10115
      %10225 = vmatprep.subr.bf16.mxu0 %v10120
      %10226 = vmatpush1.bf16.msra.mxu0 %v10119
      %10227 = vmatprep.subr.bf16.mxu0 %v10124
      %10228 = vmatpush1.bf16.msra.mxu0 %v10123
      %10229 = vmatprep.subr.bf16.mxu0 %v10128
      %10230 = vmatpush1.bf16.msra.mxu0 %v10127
      %10231 = vmatprep.subr.bf16.mxu0 %v10132
      %10232 = vmatpush1.bf16.msra.mxu0 %v10131
      %10233 = vmatprep.subr.bf16.mxu0 %v10136
      %10234 = vmatpush1.bf16.msra.mxu0 %v10135
      %10235 = vmatprep.mubr.bf16.mxu0 %v9817
      %10236 = vmatmul.mubr.bf16.gmra.mrb[0].mxu0 %v9816
      %v10237 = vpop.f32.mrb[0].mxu0
      %v10238 = vadd.f32 0.0, %v10237
      %v10239 = vpop.f32.mrb[0].mxu0
      %v10240 = vadd.f32 0.0, %v10239
      %v10241 = vpop.f32.mrb[0].mxu0
      %v10242 = vpop.f32.mrb[0].mxu0
      %10243 = vdwg.mxu0
      %10244 = vmatprep.subr.bf16.mxu0 %v10078
      %10245 = vmatpush1.bf16.msra.mxu0 %v10077
      %10246 = vmatprep.subr.bf16.mxu0 %v10082
      %10247 = vmatpush1.bf16.msra.mxu0 %v10081
      %10248 = vmatprep.subr.bf16.mxu0 %v10086
      %10249 = vmatpush1.bf16.msra.mxu0 %v10085
      %10250 = vmatprep.subr.bf16.mxu0 %v10090
      %10251 = vmatpush1.bf16.msra.mxu0 %v10089
      %10252 = vmatprep.subr.bf16.mxu0 %v10094
      %10253 = vmatpush1.bf16.msra.mxu0 %v10093
      %10254 = vmatprep.subr.bf16.mxu0 %v10098
      %10255 = vmatpush1.bf16.msra.mxu0 %v10097
      %10256 = vmatprep.subr.bf16.mxu0 %v10102
      %10257 = vmatpush1.bf16.msra.mxu0 %v10101
      %10258 = vmatprep.subr.bf16.mxu0 %v10106
      %10259 = vmatpush1.bf16.msra.mxu0 %v10105
      %10260 = vmatprep.subr.bf16.mxu0 %v10110
      %10261 = vmatpush1.bf16.msra.mxu0 %v10109
      %10262 = vmatprep.subr.bf16.mxu0 %v10114
      %10263 = vmatpush1.bf16.msra.mxu0 %v10113
      %10264 = vmatprep.subr.bf16.mxu0 %v10118
      %10265 = vmatpush1.bf16.msra.mxu0 %v10117
      %10266 = vmatprep.subr.bf16.mxu0 %v10122
      %10267 = vmatpush1.bf16.msra.mxu0 %v10121
      %10268 = vmatprep.subr.bf16.mxu0 %v10126
      %10269 = vmatpush1.bf16.msra.mxu0 %v10125
      %10270 = vmatprep.subr.bf16.mxu0 %v10130
      %10271 = vmatpush1.bf16.msra.mxu0 %v10129
      %10272 = vmatprep.subr.bf16.mxu0 %v10134
      %10273 = vmatpush1.bf16.msra.mxu0 %v10133
      %10274 = vmatprep.subr.bf16.mxu0 %v10138
      %10275 = vmatpush1.bf16.msra.mxu0 %v10137
      %10276 = vmatprep.mubr.bf16.mxu0 %v9817
      %10277 = vmatmul.mubr.bf16.gmra.mrb[0].mxu0 %v9816
      %v10278 = vpop.f32.mrb[0].mxu0
      %v10279 = vadd.f32 0.0, %v10278
      %v10280 = vpop.f32.mrb[0].mxu0
      %v10281 = vadd.f32 0.0, %v10280
      %v10282 = vpop.f32.mrb[0].mxu0
      %v10283 = vpop.f32.mrb[0].mxu0
      %10284 = vdwg.mxu0
      %v10289 = vcombine.low %v10238, %v10240
      %v10290 = vcombine.low %v10279, %v10281
      %v10292 = vunpack.c.l.s4 1966171168
      %v10293 = vunpack.c.0.s8 %v10292
      %v10294 = vlaneseq
      %v10295 = vshrl.u32 %v10294, 7
      %v10296 = vsub.s32 %v10293, %v10295
      %v10297 = vrot.slane %v10289, %v10296
      %v10299 = vunpack.c.l.s4 1966171168
      %v10300 = vunpack.c.0.s8 %v10299
      %v10301 = vlaneseq
      %v10302 = vshrl.u32 %v10301, 7
      %v10303 = vsub.s32 %v10300, %v10302
      %v10304 = vrot.slane %v10290, %v10303
      %v10305 = vcombine.low %v10297, %v10304
      %v10307 = vunpack.c.l.s4 1966171168
      %v10308 = vunpack.c.0.s8 %v10307
      %v10309 = vlaneseq
      %v10310 = vshrl.u32 %v10309, 7
      %v10311 = vsub.s32 %v10308, %v10310
      %v10312 = vrot.slane %v10305, %v10311
      %v10314 = vadd.f32 %v9769, %v10312
      %v10315 = vmax.f32 %v10314, 0.0
      %v10317 = vlaneseq
      %v10318 = vshrl.u32 %v10317, 7
      %v10319 = vsub.s32 0, %v10318
      %v10320 = vrot.slane %v10315, %v10319
      %v10321 = vlaneseq
      %v10322 = vshrl.u32 %v10321, 7
      %v10323 = vsub.s32 1, %v10322
      %v10324 = vrot.slane %v10315, %v10323
      %v10325 = vlaneseq
      %v10326 = vshrl.u32 %v10325, 7
      %v10327 = vsub.s32 2, %v10326
      %v10328 = vrot.slane %v10315, %v10327
      %v10329 = vlaneseq
      %v10330 = vshrl.u32 %v10329, 7
      %v10331 = vsub.s32 3, %v10330
      %v10332 = vrot.slane %v10315, %v10331
      %v10337 = vpack.c.bf16 %v10320, %v10320
      %v10338 = vpack.c.bf16 %v10324, %v10324
      %v10339 = vpack.c.bf16 %v10328, %v10328
      %v10340 = vpack.c.bf16 %v10332, %v10332
      %v10341 = vunpack.c.l.bf16 %v10337
      %v10342 = vunpack.c.l.bf16 %v10338
      %v10343 = vunpack.c.l.bf16 %v10339
      %v10344 = vunpack.c.l.bf16 %v10340
      %v10345 = vadd.f32 %v10341, 0.0
      %v10346 = vadd.f32 %v10342, 0.0
      %v10347 = vadd.f32 %v10343, 0.0
      %v10348 = vadd.f32 %v10344, 0.0
      %v10349 = vpack.c.bf16 %v10345, %v10345
      %v10350 = vpack.c.bf16 %v10346, %v10346
      %v10351 = vpack.c.bf16 %v10347, %v10347
      %v10352 = vpack.c.bf16 %v10348, %v10348
      %v10353 = vld [vmem:[%s13] sm:$0xff]
      %v10354 = vld [vmem:[%s13 + $0x8] sm:$0xff]
      %v10355 = vld [vmem:[%s13 + $0x10] sm:$0xff]
      %v10356 = vld [vmem:[%s13 + $0x18] sm:$0xff]
      %v10357 = vld [vmem:[%s13 + $0x20] sm:$0xff]
      %v10358 = vld [vmem:[%s13 + $0x28] sm:$0xff]
      %v10359 = vld [vmem:[%s13 + $0x30] sm:$0xff]
      %v10360 = vld [vmem:[%s13 + $0x38] sm:$0xff]
      %v10361 = vld [vmem:[%s13 + $0x40] sm:$0xff]
      %v10362 = vld [vmem:[%s13 + $0x48] sm:$0xff]
      %v10363 = vld [vmem:[%s13 + $0x50] sm:$0xff]
      %v10364 = vld [vmem:[%s13 + $0x58] sm:$0xff]
      %v10365 = vld [vmem:[%s13 + $0x60] sm:$0xff]
      %v10366 = vld [vmem:[%s13 + $0x68] sm:$0xff]
      %v10367 = vld [vmem:[%s13 + $0x70] sm:$0xff]
      %v10368 = vld [vmem:[%s13 + $0x78] sm:$0xff]
      %v10369 = vld [vmem:[%s13 + $0x80] sm:$0xff]
      %v10370 = vld [vmem:[%s13 + $0x88] sm:$0xff]
      %v10371 = vld [vmem:[%s13 + $0x90] sm:$0xff]
      %v10372 = vld [vmem:[%s13 + $0x98] sm:$0xff]
      %v10373 = vld [vmem:[%s13 + $0xa0] sm:$0xff]
      %v10374 = vld [vmem:[%s13 + $0xa8] sm:$0xff]
      %v10375 = vld [vmem:[%s13 + $0xb0] sm:$0xff]
      %v10376 = vld [vmem:[%s13 + $0xb8] sm:$0xff]
      %v10377 = vld [vmem:[%s13 + $0xc0] sm:$0xff]
      %v10378 = vld [vmem:[%s13 + $0xc8] sm:$0xff]
      %v10379 = vld [vmem:[%s13 + $0xd0] sm:$0xff]
      %v10380 = vld [vmem:[%s13 + $0xd8] sm:$0xff]
      %v10381 = vld [vmem:[%s13 + $0xe0] sm:$0xff]
      %v10382 = vld [vmem:[%s13 + $0xe8] sm:$0xff]
      %v10383 = vld [vmem:[%s13 + $0xf0] sm:$0xff]
      %v10384 = vld [vmem:[%s13 + $0xf8] sm:$0xff]
      %v10385 = vld [vmem:[%s13 + $0x100] sm:$0xff]
      %v10386 = vld [vmem:[%s13 + $0x108] sm:$0xff]
      %v10387 = vld [vmem:[%s13 + $0x110] sm:$0xff]
      %v10388 = vld [vmem:[%s13 + $0x118] sm:$0xff]
      %v10389 = vld [vmem:[%s13 + $0x120] sm:$0xff]
      %v10390 = vld [vmem:[%s13 + $0x128] sm:$0xff]
      %v10391 = vld [vmem:[%s13 + $0x130] sm:$0xff]
      %v10392 = vld [vmem:[%s13 + $0x138] sm:$0xff]
      %v10393 = vld [vmem:[%s13 + $0x140] sm:$0xff]
      %v10394 = vld [vmem:[%s13 + $0x148] sm:$0xff]
      %v10395 = vld [vmem:[%s13 + $0x150] sm:$0xff]
      %v10396 = vld [vmem:[%s13 + $0x158] sm:$0xff]
      %v10397 = vld [vmem:[%s13 + $0x160] sm:$0xff]
      %v10398 = vld [vmem:[%s13 + $0x168] sm:$0xff]
      %v10399 = vld [vmem:[%s13 + $0x170] sm:$0xff]
      %v10400 = vld [vmem:[%s13 + $0x178] sm:$0xff]
      %v10401 = vld [vmem:[%s13 + $0x180] sm:$0xff]
      %v10402 = vld [vmem:[%s13 + $0x188] sm:$0xff]
      %v10403 = vld [vmem:[%s13 + $0x190] sm:$0xff]
      %v10404 = vld [vmem:[%s13 + $0x198] sm:$0xff]
      %v10405 = vld [vmem:[%s13 + $0x1a0] sm:$0xff]
      %v10406 = vld [vmem:[%s13 + $0x1a8] sm:$0xff]
      %v10407 = vld [vmem:[%s13 + $0x1b0] sm:$0xff]
      %v10408 = vld [vmem:[%s13 + $0x1b8] sm:$0xff]
      %v10409 = vld [vmem:[%s13 + $0x1c0] sm:$0xff]
      %v10410 = vld [vmem:[%s13 + $0x1c8] sm:$0xff]
      %v10411 = vld [vmem:[%s13 + $0x1d0] sm:$0xff]
      %v10412 = vld [vmem:[%s13 + $0x1d8] sm:$0xff]
      %v10413 = vld [vmem:[%s13 + $0x1e0] sm:$0xff]
      %v10414 = vld [vmem:[%s13 + $0x1e8] sm:$0xff]
      %v10415 = vld [vmem:[%s13 + $0x1f0] sm:$0xff]
      %v10416 = vld [vmem:[%s13 + $0x1f8] sm:$0xff]
      %v10417 = vld [vmem:[%s14] sm:$0x3]
      %v10482 = vunpack.c.l.b16 %v10353
      %v10483 = vunpack.c.h.b16 %v10353
      %v10484 = vunpack.c.l.b16 %v10354
      %v10485 = vunpack.c.h.b16 %v10354
      %v10486 = vunpack.c.l.b16 %v10355
      %v10487 = vunpack.c.h.b16 %v10355
      %v10488 = vunpack.c.l.b16 %v10356
      %v10489 = vunpack.c.h.b16 %v10356
      %v10490 = vunpack.c.l.b16 %v10357
      %v10491 = vunpack.c.h.b16 %v10357
      %v10492 = vunpack.c.l.b16 %v10358
      %v10493 = vunpack.c.h.b16 %v10358
      %v10494 = vunpack.c.l.b16 %v10359
      %v10495 = vunpack.c.h.b16 %v10359
      %v10496 = vunpack.c.l.b16 %v10360
      %v10497 = vunpack.c.h.b16 %v10360
      %v10498 = vunpack.c.l.b16 %v10361
      %v10499 = vunpack.c.h.b16 %v10361
      %v10500 = vunpack.c.l.b16 %v10362
      %v10501 = vunpack.c.h.b16 %v10362
      %v10502 = vunpack.c.l.b16 %v10363
      %v10503 = vunpack.c.h.b16 %v10363
      %v10504 = vunpack.c.l.b16 %v10364
      %v10505 = vunpack.c.h.b16 %v10364
      %v10506 = vunpack.c.l.b16 %v10365
      %v10507 = vunpack.c.h.b16 %v10365
      %v10508 = vunpack.c.l.b16 %v10366
      %v10509 = vunpack.c.h.b16 %v10366
      %v10510 = vunpack.c.l.b16 %v10367
      %v10511 = vunpack.c.h.b16 %v10367
      %v10512 = vunpack.c.l.b16 %v10368
      %v10513 = vunpack.c.h.b16 %v10368
      %v10514 = vunpack.c.l.b16 %v10369
      %v10515 = vunpack.c.h.b16 %v10369
      %v10516 = vunpack.c.l.b16 %v10370
      %v10517 = vunpack.c.h.b16 %v10370
      %v10518 = vunpack.c.l.b16 %v10371
      %v10519 = vunpack.c.h.b16 %v10371
      %v10520 = vunpack.c.l.b16 %v10372
      %v10521 = vunpack.c.h.b16 %v10372
      %v10522 = vunpack.c.l.b16 %v10373
      %v10523 = vunpack.c.h.b16 %v10373
      %v10524 = vunpack.c.l.b16 %v10374
      %v10525 = vunpack.c.h.b16 %v10374
      %v10526 = vunpack.c.l.b16 %v10375
      %v10527 = vunpack.c.h.b16 %v10375
      %v10528 = vunpack.c.l.b16 %v10376
      %v10529 = vunpack.c.h.b16 %v10376
      %v10530 = vunpack.c.l.b16 %v10377
      %v10531 = vunpack.c.h.b16 %v10377
      %v10532 = vunpack.c.l.b16 %v10378
      %v10533 = vunpack.c.h.b16 %v10378
      %v10534 = vunpack.c.l.b16 %v10379
      %v10535 = vunpack.c.h.b16 %v10379
      %v10536 = vunpack.c.l.b16 %v10380
      %v10537 = vunpack.c.h.b16 %v10380
      %v10538 = vunpack.c.l.b16 %v10381
      %v10539 = vunpack.c.h.b16 %v10381
      %v10540 = vunpack.c.l.b16 %v10382
      %v10541 = vunpack.c.h.b16 %v10382
      %v10542 = vunpack.c.l.b16 %v10383
      %v10543 = vunpack.c.h.b16 %v10383
      %v10544 = vunpack.c.l.b16 %v10384
      %v10545 = vunpack.c.h.b16 %v10384
      %v10546 = vunpack.c.l.b16 %v10385
      %v10547 = vunpack.c.h.b16 %v10385
      %v10548 = vunpack.c.l.b16 %v10386
      %v10549 = vunpack.c.h.b16 %v10386
      %v10550 = vunpack.c.l.b16 %v10387
      %v10551 = vunpack.c.h.b16 %v10387
      %v10552 = vunpack.c.l.b16 %v10388
      %v10553 = vunpack.c.h.b16 %v10388
      %v10554 = vunpack.c.l.b16 %v10389
      %v10555 = vunpack.c.h.b16 %v10389
      %v10556 = vunpack.c.l.b16 %v10390
      %v10557 = vunpack.c.h.b16 %v10390
      %v10558 = vunpack.c.l.b16 %v10391
      %v10559 = vunpack.c.h.b16 %v10391
      %v10560 = vunpack.c.l.b16 %v10392
      %v10561 = vunpack.c.h.b16 %v10392
      %v10562 = vunpack.c.l.b16 %v10393
      %v10563 = vunpack.c.h.b16 %v10393
      %v10564 = vunpack.c.l.b16 %v10394
      %v10565 = vunpack.c.h.b16 %v10394
      %v10566 = vunpack.c.l.b16 %v10395
      %v10567 = vunpack.c.h.b16 %v10395
      %v10568 = vunpack.c.l.b16 %v10396
      %v10569 = vunpack.c.h.b16 %v10396
      %v10570 = vunpack.c.l.b16 %v10397
      %v10571 = vunpack.c.h.b16 %v10397
      %v10572 = vunpack.c.l.b16 %v10398
      %v10573 = vunpack.c.h.b16 %v10398
      %v10574 = vunpack.c.l.b16 %v10399
      %v10575 = vunpack.c.h.b16 %v10399
      %v10576 = vunpack.c.l.b16 %v10400
      %v10577 = vunpack.c.h.b16 %v10400
      %v10578 = vunpack.c.l.b16 %v10401
      %v10579 = vunpack.c.h.b16 %v10401
      %v10580 = vunpack.c.l.b16 %v10402
      %v10581 = vunpack.c.h.b16 %v10402
      %v10582 = vunpack.c.l.b16 %v10403
      %v10583 = vunpack.c.h.b16 %v10403
      %v10584 = vunpack.c.l.b16 %v10404
      %v10585 = vunpack.c.h.b16 %v10404
      %v10586 = vunpack.c.l.b16 %v10405
      %v10587 = vunpack.c.h.b16 %v10405
      %v10588 = vunpack.c.l.b16 %v10406
      %v10589 = vunpack.c.h.b16 %v10406
      %v10590 = vunpack.c.l.b16 %v10407
      %v10591 = vunpack.c.h.b16 %v10407
      %v10592 = vunpack.c.l.b16 %v10408
      %v10593 = vunpack.c.h.b16 %v10408
      %v10594 = vunpack.c.l.b16 %v10409
      %v10595 = vunpack.c.h.b16 %v10409
      %v10596 = vunpack.c.l.b16 %v10410
      %v10597 = vunpack.c.h.b16 %v10410
      %v10598 = vunpack.c.l.b16 %v10411
      %v10599 = vunpack.c.h.b16 %v10411
      %v10600 = vunpack.c.l.b16 %v10412
      %v10601 = vunpack.c.h.b16 %v10412
      %v10602 = vunpack.c.l.b16 %v10413
      %v10603 = vunpack.c.h.b16 %v10413
      %v10604 = vunpack.c.l.b16 %v10414
      %v10605 = vunpack.c.h.b16 %v10414
      %v10606 = vunpack.c.l.b16 %v10415
      %v10607 = vunpack.c.h.b16 %v10415
      %v10608 = vunpack.c.l.b16 %v10416
      %v10609 = vunpack.c.h.b16 %v10416
      %v10610 = vpack.c.b16 %v10484, %v10482
      %v10611 = vpack.c.b16 %v10485, %v10483
      %v10612 = vpack.c.b16 %v10488, %v10486
      %v10613 = vpack.c.b16 %v10489, %v10487
      %v10614 = vpack.c.b16 %v10492, %v10490
      %v10615 = vpack.c.b16 %v10493, %v10491
      %v10616 = vpack.c.b16 %v10496, %v10494
      %v10617 = vpack.c.b16 %v10497, %v10495
      %v10618 = vpack.c.b16 %v10500, %v10498
      %v10619 = vpack.c.b16 %v10501, %v10499
      %v10620 = vpack.c.b16 %v10504, %v10502
      %v10621 = vpack.c.b16 %v10505, %v10503
      %v10622 = vpack.c.b16 %v10508, %v10506
      %v10623 = vpack.c.b16 %v10509, %v10507
      %v10624 = vpack.c.b16 %v10512, %v10510
      %v10625 = vpack.c.b16 %v10513, %v10511
      %v10626 = vpack.c.b16 %v10516, %v10514
      %v10627 = vpack.c.b16 %v10517, %v10515
      %v10628 = vpack.c.b16 %v10520, %v10518
      %v10629 = vpack.c.b16 %v10521, %v10519
      %v10630 = vpack.c.b16 %v10524, %v10522
      %v10631 = vpack.c.b16 %v10525, %v10523
      %v10632 = vpack.c.b16 %v10528, %v10526
      %v10633 = vpack.c.b16 %v10529, %v10527
      %v10634 = vpack.c.b16 %v10532, %v10530
      %v10635 = vpack.c.b16 %v10533, %v10531
      %v10636 = vpack.c.b16 %v10536, %v10534
      %v10637 = vpack.c.b16 %v10537, %v10535
      %v10638 = vpack.c.b16 %v10540, %v10538
      %v10639 = vpack.c.b16 %v10541, %v10539
      %v10640 = vpack.c.b16 %v10544, %v10542
      %v10641 = vpack.c.b16 %v10545, %v10543
      %v10642 = vpack.c.b16 %v10548, %v10546
      %v10643 = vpack.c.b16 %v10549, %v10547
      %v10644 = vpack.c.b16 %v10552, %v10550
      %v10645 = vpack.c.b16 %v10553, %v10551
      %v10646 = vpack.c.b16 %v10556, %v10554
      %v10647 = vpack.c.b16 %v10557, %v10555
      %v10648 = vpack.c.b16 %v10560, %v10558
      %v10649 = vpack.c.b16 %v10561, %v10559
      %v10650 = vpack.c.b16 %v10564, %v10562
      %v10651 = vpack.c.b16 %v10565, %v10563
      %v10652 = vpack.c.b16 %v10568, %v10566
      %v10653 = vpack.c.b16 %v10569, %v10567
      %v10654 = vpack.c.b16 %v10572, %v10570
      %v10655 = vpack.c.b16 %v10573, %v10571
      %v10656 = vpack.c.b16 %v10576, %v10574
      %v10657 = vpack.c.b16 %v10577, %v10575
      %v10658 = vpack.c.b16 %v10580, %v10578
      %v10659 = vpack.c.b16 %v10581, %v10579
      %v10660 = vpack.c.b16 %v10584, %v10582
      %v10661 = vpack.c.b16 %v10585, %v10583
      %v10662 = vpack.c.b16 %v10588, %v10586
      %v10663 = vpack.c.b16 %v10589, %v10587
      %v10664 = vpack.c.b16 %v10592, %v10590
      %v10665 = vpack.c.b16 %v10593, %v10591
      %v10666 = vpack.c.b16 %v10596, %v10594
      %v10667 = vpack.c.b16 %v10597, %v10595
      %v10668 = vpack.c.b16 %v10600, %v10598
      %v10669 = vpack.c.b16 %v10601, %v10599
      %v10670 = vpack.c.b16 %v10604, %v10602
      %v10671 = vpack.c.b16 %v10605, %v10603
      %v10672 = vpack.c.b16 %v10608, %v10606
      %v10673 = vpack.c.b16 %v10609, %v10607
      %v10739 = vlaneseq
      %v10740 = vshrl.u32 %v10739, 7
      %v10741 = vsub.s32 0, %v10740
      %v10742 = vrot.slane %v10417, %v10741
      %v10743 = vlaneseq
      %v10744 = vshrl.u32 %v10743, 7
      %v10745 = vsub.s32 1, %v10744
      %v10746 = vrot.slane %v10417, %v10745
      %10749 = vmatprep.subr.bf16.mxu0 %v10611
      %10750 = vmatpush1.bf16.msra.mxu0 %v10610
      %10751 = vmatprep.subr.bf16.mxu0 %v10613
      %10752 = vmatpush1.bf16.msra.mxu0 %v10612
      %10753 = vmatprep.subr.bf16.mxu0 %v10615
      %10754 = vmatpush1.bf16.msra.mxu0 %v10614
      %10755 = vmatprep.subr.bf16.mxu0 %v10617
      %10756 = vmatpush1.bf16.msra.mxu0 %v10616
      %10757 = vmatprep.subr.bf16.mxu0 %v10619
      %10758 = vmatpush1.bf16.msra.mxu0 %v10618
      %10759 = vmatprep.subr.bf16.mxu0 %v10621
      %10760 = vmatpush1.bf16.msra.mxu0 %v10620
      %10761 = vmatprep.subr.bf16.mxu0 %v10623
      %10762 = vmatpush1.bf16.msra.mxu0 %v10622
      %10763 = vmatprep.subr.bf16.mxu0 %v10625
      %10764 = vmatpush1.bf16.msra.mxu0 %v10624
      %10765 = vmatprep.subr.bf16.mxu0 %v10627
      %10766 = vmatpush1.bf16.msra.mxu0 %v10626
      %10767 = vmatprep.subr.bf16.mxu0 %v10629
      %10768 = vmatpush1.bf16.msra.mxu0 %v10628
      %10769 = vmatprep.subr.bf16.mxu0 %v10631
      %10770 = vmatpush1.bf16.msra.mxu0 %v10630
      %10771 = vmatprep.subr.bf16.mxu0 %v10633
      %10772 = vmatpush1.bf16.msra.mxu0 %v10632
      %10773 = vmatprep.subr.bf16.mxu0 %v10635
      %10774 = vmatpush1.bf16.msra.mxu0 %v10634
      %10775 = vmatprep.subr.bf16.mxu0 %v10637
      %10776 = vmatpush1.bf16.msra.mxu0 %v10636
      %10777 = vmatprep.subr.bf16.mxu0 %v10639
      %10778 = vmatpush1.bf16.msra.mxu0 %v10638
      %10779 = vmatprep.subr.bf16.mxu0 %v10641
      %10780 = vmatpush1.bf16.msra.mxu0 %v10640
      %10781 = vmatprep.mubr.bf16.mxu0 %v10350
      %10782 = vmatmul.mubr.bf16.gmra.mrb[0].mxu0 %v10349
      %v10783 = vpop.f32.mrb[0].mxu0
      %v10784 = vadd.f32 %v10742, %v10783
      %v10785 = vpop.f32.mrb[0].mxu0
      %v10786 = vadd.f32 %v10746, %v10785
      %v10787 = vpop.f32.mrb[0].mxu0
      %v10788 = vpop.f32.mrb[0].mxu0
      %10789 = vdwg.mxu0
      %10790 = vmatprep.subr.bf16.mxu0 %v10643
      %10791 = vmatpush1.bf16.msra.mxu0 %v10642
      %10792 = vmatprep.subr.bf16.mxu0 %v10645
      %10793 = vmatpush1.bf16.msra.mxu0 %v10644
      %10794 = vmatprep.subr.bf16.mxu0 %v10647
      %10795 = vmatpush1.bf16.msra.mxu0 %v10646
      %10796 = vmatprep.subr.bf16.mxu0 %v10649
      %10797 = vmatpush1.bf16.msra.mxu0 %v10648
      %10798 = vmatprep.subr.bf16.mxu0 %v10651
      %10799 = vmatpush1.bf16.msra.mxu0 %v10650
      %10800 = vmatprep.subr.bf16.mxu0 %v10653
      %10801 = vmatpush1.bf16.msra.mxu0 %v10652
      %10802 = vmatprep.subr.bf16.mxu0 %v10655
      %10803 = vmatpush1.bf16.msra.mxu0 %v10654
      %10804 = vmatprep.subr.bf16.mxu0 %v10657
      %10805 = vmatpush1.bf16.msra.mxu0 %v10656
      %10806 = vmatprep.subr.bf16.mxu0 %v10659
      %10807 = vmatpush1.bf16.msra.mxu0 %v10658
      %10808 = vmatprep.subr.bf16.mxu0 %v10661
      %10809 = vmatpush1.bf16.msra.mxu0 %v10660
      %10810 = vmatprep.subr.bf16.mxu0 %v10663
      %10811 = vmatpush1.bf16.msra.mxu0 %v10662
      %10812 = vmatprep.subr.bf16.mxu0 %v10665
      %10813 = vmatpush1.bf16.msra.mxu0 %v10664
      %10814 = vmatprep.subr.bf16.mxu0 %v10667
      %10815 = vmatpush1.bf16.msra.mxu0 %v10666
      %10816 = vmatprep.subr.bf16.mxu0 %v10669
      %10817 = vmatpush1.bf16.msra.mxu0 %v10668
      %10818 = vmatprep.subr.bf16.mxu0 %v10671
      %10819 = vmatpush1.bf16.msra.mxu0 %v10670
      %10820 = vmatprep.subr.bf16.mxu0 %v10673
      %10821 = vmatpush1.bf16.msra.mxu0 %v10672
      %10822 = vmatprep.mubr.bf16.mxu0 %v10352
      %10823 = vmatmul.mubr.bf16.gmra.mrb[0].mxu0 %v10351
      %v10824 = vpop.f32.mrb[0].mxu0
      %v10825 = vadd.f32 %v10784, %v10824
      %v10826 = vpop.f32.mrb[0].mxu0
      %v10827 = vadd.f32 %v10786, %v10826
      %v10828 = vpop.f32.mrb[0].mxu0
      %v10829 = vpop.f32.mrb[0].mxu0
      %10830 = vdwg.mxu0
      %v10831 = vlaneseq
      %v10832 = vshrl.u32 %v10831, 7
      %v10833 = vsub.s32 0, %v10832
      %v10834 = vrot.slane %v10825, %v10833
      %v10835 = vlaneseq
      %v10836 = vshrl.u32 %v10835, 7
      %v10837 = vsub.s32 0, %v10836
      %v10838 = vrot.slane %v10827, %v10837
      %10839 = vst [vmem:[%s494] sm:$0xff] %v10834
      %10840 = vst [vmem:[%s494 + $0x8] sm:$0xff] %v10838
      %p10841 = scmp.lt.s32.totalorder %s26, 1
      %s10842 = scalar_select %p10841, %s26, 1
      %s10843 = smul.addr %s10842, 2
      %s10844 = smul.addr %s10843, 8
      %s10845 = scalar_lea.vmem %s15, %s10844
      // Predicated region
      $region81: #{forward.1} parent=79 // pred_check
        %p10846 = pneg %p364
      $region82: #{forward.1} parent=79 // pred_check_branch
        %10848 = sbr.rel (%p10846) target = $region84
      $region83: #{forward.1} parent=79 // pred_region
        _
      $region84: #{forward.1} parent=79 // pred_fallthru
        _
    $region80: #{forward.1} parent=5 // pred_fallthru
      _
    %p10849 = scmp.le.s32.totalorder 2, %s21
    // Predicated region
    $region85: #{forward.1} parent=5 // pred_check
      %p10850 = pneg %p10849
    $region86: #{forward.1} parent=5 // pred_check_branch
      %10852 = sbr.rel (%p10850) target = $region88
    $region87: #{forward.1} parent=5 // pred_region
      %s10853 = ssub.s32 %s21, 2
      // Predicated region
      $region89: #{forward.1} parent=87 // pred_check
        %p10854 = pneg %p370
      $region90: #{forward.1} parent=87 // pred_check_branch
        %10856 = sbr.rel (%p10854) target = $region92
      $region91: #{forward.1} parent=87 // pred_region
        %p10857 = scmp.lt.s32.totalorder %s27, 1
        %s10858 = scalar_select %p10857, %s27, 1
        %s10859 = smul.addr %s10858, 2
        %s10860 = smul.addr %s10859, 8
        %s10861 = scalar_lea.vmem %s15, %s10860
      $region92: #{forward.1} parent=87 // pred_fallthru
        _
    $region88: #{forward.1} parent=5 // pred_fallthru
      _
  $region6: #{forward.1} parent=0 // loop_footer
    %s25 = sadd.s32 1, %s21
  $region7: #{forward.1} parent=0 // loop_footer_branch
    %20 = sbr.rel target = $region3
  $region8: #{forward.1} parent=0 // loop_exit
    _

</llo_original>
